<compile_context>
chip_gen: v7x
topology: tpu7x:2x2x1
jax: 0.10.0
libtpu: 0.0.40
codegen_flags: <defaults>
</compile_context>

<pallas_src>
import functools

import jax
import jax.numpy as jnp
from jax.experimental import pallas as pl
from jax.experimental.pallas import tpu as pltpu

LRELU_SLOPE = 0.2
BN_EPS = 1e-5
VMEM_LIMIT_BYTES = 32 * 1024 * 1024  # actual peak ~8.5 MiB; fits every generation


# ---------------------------------------------------------------------------
# Pallas kernels
# ---------------------------------------------------------------------------
def _conv_lrelu_kernel(p_ref, w_ref, b_ref, o_ref):
    """One row tile: out = leaky_relu(patches @ W + b). bf16 GEMM, fp32 accum."""
    acc = jnp.dot(p_ref[...].astype(jnp.bfloat16), w_ref[...],
                  preferred_element_type=jnp.float32)
    acc = acc + b_ref[...]
    y = jnp.where(acc > 0, acc, LRELU_SLOPE * acc)
    o_ref[...] = y.astype(o_ref.dtype)


def _conv_bn_lrelu_kernel(p_ref, w_ref, b_ref, g_ref, bb_ref, o_ref, *, inv_n):
    """Fused conv GEMM + train-mode BatchNorm (batch stats) + LeakyReLU(0.2).

    grid=(1,): the whole [M, Cout] result sits in VMEM, so the per-channel
    reduction over the M = N*Ho*Wo rows happens here (fp32).  No padded rows
    exist (block == full array), so no mask is needed; inv_n = 1/M is static.
    """
    acc = jnp.dot(p_ref[...], w_ref[...], preferred_element_type=jnp.float32)
    acc = acc + b_ref[...]
    mean = jnp.sum(acc, axis=0, keepdims=True) * inv_n
    diff = acc - mean
    var = jnp.sum(diff * diff, axis=0, keepdims=True) * inv_n  # biased (PyTorch train)
    y = diff * jax.lax.rsqrt(var + BN_EPS) * g_ref[...] + bb_ref[...]
    y = jnp.where(y > 0, y, LRELU_SLOPE * y)
    o_ref[...] = y.astype(o_ref.dtype)


def _conv_cout1_sigmoid_kernel(p_ref, w_ref, b_ref, o_ref):
    """Final Cout=1 conv as multiply + lane reduction (avoids a 128x lane-padded
    weight tile and dead MXU columns), then sigmoid. fp32 VPU/XLU/EUP path."""
    acc = jnp.sum(p_ref[...].astype(jnp.float32) * w_ref[...], axis=1,
                  keepdims=True) + b_ref[...]
    o_ref[...] = 1.0 / (1.0 + jnp.exp(-acc))


# ---------------------------------------------------------------------------
# pallas_call wrappers (no host-side padding / slicing; full-array blocks)
# ---------------------------------------------------------------------------
def conv_lrelu(patches, w_bf16, bias, row_tile=256):
    """patches:[M,K], w:[K,Cout] bf16, bias:[Cout] -> [M,Cout] bf16."""
    M, K = patches.shape
    Cout = w_bf16.shape[1]
    if M % row_tile != 0 or M <= row_tile:
        row_tile = M
    grid = (M // row_tile,)
    return pl.pallas_call(
        _conv_lrelu_kernel,
        out_shape=jax.ShapeDtypeStruct((M, Cout), jnp.bfloat16),
        grid=grid,
        in_specs=[
            pl.BlockSpec((row_tile, K), lambda i: (i, 0)),
            pl.BlockSpec((K, Cout), lambda i: (0, 0)),
            pl.BlockSpec((1, Cout), lambda i: (0, 0)),
        ],
        out_specs=pl.BlockSpec((row_tile, Cout), lambda i: (i, 0)),
        compiler_params=pltpu.CompilerParams(
            dimension_semantics=("parallel",),  # row blocks across TCs on v7x
            vmem_limit_bytes=VMEM_LIMIT_BYTES),
    )(patches, w_bf16, bias.reshape(1, -1))


def conv_bn_lrelu(patches_bf16, w_bf16, bias, gamma, beta):
    """Fused conv + BatchNorm(batch stats) + LeakyReLU, single kernel. bf16 out."""
    M, K = patches_bf16.shape
    Cout = w_bf16.shape[1]
    return pl.pallas_call(
        functools.partial(_conv_bn_lrelu_kernel, inv_n=1.0 / M),
        out_shape=jax.ShapeDtypeStruct((M, Cout), jnp.bfloat16),
        grid=(1,),
        in_specs=[
            pl.BlockSpec((M, K), lambda i: (0, 0)),
            pl.BlockSpec((K, Cout), lambda i: (0, 0)),
            pl.BlockSpec((1, Cout), lambda i: (0, 0)),
            pl.BlockSpec((1, Cout), lambda i: (0, 0)),
            pl.BlockSpec((1, Cout), lambda i: (0, 0)),
        ],
        out_specs=pl.BlockSpec((M, Cout), lambda i: (0, 0)),
        compiler_params=pltpu.CompilerParams(vmem_limit_bytes=VMEM_LIMIT_BYTES),
    )(patches_bf16, w_bf16, bias.reshape(1, -1), gamma.reshape(1, -1),
      beta.reshape(1, -1))


def conv_cout1_sigmoid(patches, w_row, bias):
    """patches:[M,K], w_row:[1,K] f32, bias:[1] -> [M,1] f32 (sigmoid)."""
    M, K = patches.shape
    return pl.pallas_call(
        _conv_cout1_sigmoid_kernel,
        out_shape=jax.ShapeDtypeStruct((M, 1), jnp.float32),
        grid=(1,),
        in_specs=[
            pl.BlockSpec((M, K), lambda i: (0, 0)),
            pl.BlockSpec((1, K), lambda i: (0, 0)),
            pl.BlockSpec((1, 1), lambda i: (0, 0)),
        ],
        out_specs=pl.BlockSpec((M, 1), lambda i: (0, 0)),
        compiler_params=pltpu.CompilerParams(vmem_limit_bytes=VMEM_LIMIT_BYTES),
    )(patches, w_row, bias.reshape(1, 1))


# ---------------------------------------------------------------------------
# im2col on NHWC (pure JAX layout plumbing; K-order = (kh, kw, cin))
# ---------------------------------------------------------------------------
def im2col_nhwc(x, k, stride, pad):
    """x: [N, H, W, C] -> cols [N*Ho*Wo, k*k*C] (dtype preserved)."""
    N, H, W, C = x.shape
    xp = jnp.pad(x, ((0, 0), (pad, pad), (pad, pad), (0, 0)))
    Ho = (H + 2 * pad - k) // stride + 1
    Wo = (W + 2 * pad - k) // stride + 1
    taps = []
    for i in range(k):
        for j in range(k):
            taps.append(xp[:, i:i + stride * Ho:stride, j:j + stride * Wo:stride, :])
    cols = jnp.stack(taps, axis=3)                 # [N, Ho, Wo, k*k, C]
    cols = cols.reshape(N * Ho * Wo, k * k * C)    # channel-contiguous (lane) K order
    return cols, Ho, Wo


# ---------------------------------------------------------------------------
# Discriminator forward (Pallas)
# ---------------------------------------------------------------------------
def discriminator_forward(x, params):
    """x: [N, 1, H, W] float32 (NCHW).  Returns [N, 1, H', W'] float32 after 5 convs."""
    N = x.shape[0]
    h = x.transpose(0, 2, 3, 1)  # NHWC internally; single layout change at boundary

    layer_cfgs = [
        ("conv1", 2, None),
        ("conv2", 2, "bn2"),
        ("conv3", 2, "bn3"),
        ("conv4", 1, "bn4"),
        ("conv5", 1, None),
    ]
    for name, stride, bn in layer_cfgs:
        w, b = params[name]                        # w: [Cout, Cin, 4, 4]
        Cout, k = w.shape[0], w.shape[2]
        cols, Ho, Wo = im2col_nhwc(h, k, stride, pad=1)
        # Reorder tiny weight once to match (kh, kw, cin) K order of im2col.
        w2 = w.transpose(2, 3, 1, 0).reshape(-1, Cout)   # [k*k*Cin, Cout]
        if name == "conv5":
            out = conv_cout1_sigmoid(cols, w2.reshape(1, -1), b)       # f32 out
        elif bn is not None:
            gamma, beta = params[bn]
            # TODO(synk): running-mean/var buffer updates (training side effect) not modeled.
            out = conv_bn_lrelu(cols, w2.astype(jnp.bfloat16), b, gamma, beta)
        else:
            out = conv_lrelu(cols, w2.astype(jnp.bfloat16), b, row_tile=256)
        h = out.reshape(N, Ho, Wo, Cout)           # stays NHWC (bf16 between layers)
    return h.transpose(0, 3, 1, 2)                 # back to NCHW (PyTorch parity)


# ---------------------------------------------------------------------------
# Pure-JAX fp32 reference (PyTorch-semantics: train-mode BN with batch stats)
# ---------------------------------------------------------------------------
def _ref_forward(x, params):
    def conv(h, wb, stride):
        w, b = wb
        out = jax.lax.conv_general_dilated(
            h, w, window_strides=(stride, stride), padding=((1, 1), (1, 1)),
            dimension_numbers=("NCHW", "OIHW", "NCHW"),
            precision=jax.lax.Precision.HIGHEST)
        return out + b.reshape(1, -1, 1, 1)

    def bn(h, gb):
        gamma, beta = gb
        mean = jnp.mean(h, axis=(0, 2, 3), keepdims=True)
        var = jnp.var(h, axis=(0, 2, 3), keepdims=True)   # biased, like PyTorch train
        return ((h - mean) * jax.lax.rsqrt(var + BN_EPS)
                * gamma.reshape(1, -1, 1, 1) + beta.reshape(1, -1, 1, 1))

    def lrelu(h):
        return jnp.where(h > 0, h, LRELU_SLOPE * h)

    h = lrelu(conv(x, params["conv1"], 2))
    h = lrelu(bn(conv(h, params["conv2"], 2), params["bn2"]))
    h = lrelu(bn(conv(h, params["conv3"], 2), params["bn3"]))
    h = lrelu(bn(conv(h, params["conv4"], 1), params["bn4"]))
    h = conv(h, params["conv5"], 1)
    return jax.nn.sigmoid(h)


def init_params(key):
    """Deterministic params matching the module __init__ (normal_init std=0.001, bias=0)."""
    conv_shapes = {
        "conv1": (64, 1, 4, 4),
        "conv2": (128, 64, 4, 4),
        "conv3": (256, 128, 4, 4),
        "conv4": (512, 256, 4, 4),
        "conv5": (1, 512, 4, 4),
    }
    params = {}
    for name, shp in conv_shapes.items():
        key, sub = jax.random.split(key)
        wgt = jax.random.normal(sub, shp, dtype=jnp.float32) * 0.001
        bia = jnp.zeros((shp[0],), jnp.float32)
        params[name] = (wgt, bia)
    for name, c in (("bn2", 128), ("bn3", 256), ("bn4", 512)):
        params[name] = (jnp.ones((c,), jnp.float32), jnp.zeros((c,), jnp.float32))
    return params


if __name__ == "__main__":
    key = jax.random.PRNGKey(0)
    pkey, xkey = jax.random.split(key)
    params = init_params(pkey)
    x = jax.random.normal(xkey, (2, 1, 32, 32), dtype=jnp.float32)  # N=2, C=1, 32x32

    fwd = jax.jit(discriminator_forward)
    out = jax.block_until_ready(fwd(x, params))

    # 32 -> 16 -> 8 -> 4 -> 3 -> 2
    assert out.shape == (2, 1, 2, 2), out.shape
    assert bool(jnp.all(jnp.isfinite(out)))
    assert bool(jnp.all((out >= 0.0) & (out <= 1.0)))  # sigmoid output

    ref = jax.block_until_ready(jax.jit(_ref_forward)(x, params))
    max_err = float(jnp.max(jnp.abs(out - ref)))
    assert max_err < 5e-3, f"max abs err vs fp32 reference: {max_err}"
    print("KERNEL_OK")
</pallas_src>

<mosaic_0001>
module attributes {stable_mosaic.version = 11 : i64} {
  func.func @_conv_lrelu_kernel(%arg0: i32, %arg1: memref<256x16xf32, #tpu.memory_space<vmem>>, %arg2: memref<16x64xbf16, #tpu.memory_space<vmem>>, %arg3: memref<1x64xf32, #tpu.memory_space<vmem>>, %arg4: memref<256x64xbf16, #tpu.memory_space<vmem>>) attributes {dimension_semantics = [#tpu.dimension_semantics<parallel>], iteration_bounds = array<i64: 2>, scalar_prefetch = 0 : i64, scratch_operands = 0 : i64, tpu.core_type = #tpu.core_type<tc>, window_params = [{transform_indices = @transform_0, window_bounds = array<i64: 256, 16>}, {pipeline_mode = #tpu.pipeline_mode<synchronous>, transform_indices = @transform_1, window_bounds = array<i64: 16, 64>}, {pipeline_mode = #tpu.pipeline_mode<synchronous>, transform_indices = @transform_2, window_bounds = array<i64: 1, 64>}, {transform_indices = @transform_3, window_bounds = array<i64: 256, 64>}]} {
    %c0 = arith.constant 0 : index
    %c0_0 = arith.constant 0 : index
    %0 = vector.load %arg1[%c0, %c0_0] : memref<256x16xf32, #tpu.memory_space<vmem>>, vector<256x16xf32>
    %1 = arith.truncf %0 : vector<256x16xf32> to vector<256x16xbf16>
    %c0_1 = arith.constant 0 : index
    %c0_2 = arith.constant 0 : index
    %2 = vector.load %arg2[%c0_1, %c0_2] : memref<16x64xbf16, #tpu.memory_space<vmem>>, vector<16x64xbf16>
    %cst = arith.constant dense<0.000000e+00> : vector<256x64xf32>
    %3 = tpu.matmul %1, %2, %cst {dimension_numbers = #tpu.dot_dimension_numbers<[1], [0], [0], [1], [0, 0, 1, 1], [], []>} : vector<256x16xbf16>, vector<16x64xbf16>, vector<256x64xf32> -> vector<256x64xf32>
    %c0_3 = arith.constant 0 : index
    %c0_4 = arith.constant 0 : index
    %4 = vector.load %arg3[%c0_3, %c0_4] : memref<1x64xf32, #tpu.memory_space<vmem>>, vector<1x64xf32>
    %5 = vector.broadcast %4 : vector<1x64xf32> to vector<256x64xf32>
    %6 = arith.addf %3, %5 : vector<256x64xf32>
    %cst_5 = arith.constant 0.000000e+00 : f32
    %7 = vector.broadcast %cst_5 : f32 to vector<256x64xf32>
    %8 = arith.cmpf ogt, %6, %7 : vector<256x64xf32>
    %cst_6 = arith.constant 2.000000e-01 : f32
    %9 = vector.broadcast %cst_6 : f32 to vector<256x64xf32>
    %10 = arith.mulf %9, %6 : vector<256x64xf32>
    %11 = arith.select %8, %6, %10 : vector<256x64xi1>, vector<256x64xf32>
    %12 = arith.truncf %11 : vector<256x64xf32> to vector<256x64xbf16>
    %c0_7 = arith.constant 0 : index
    %c0_8 = arith.constant 0 : index
    %13 = vector.load %arg4[%c0_7, %c0_8] : memref<256x64xbf16, #tpu.memory_space<vmem>>, vector<256x64xbf16>
    tpu.vector_store %arg4[%c0_7, %c0_8], %12 {strides = array<i32>} : memref<256x64xbf16, #tpu.memory_space<vmem>>, vector<256x64xbf16>,
    return
  }
  func.func @transform_0(%arg0: i32) -> (i32, i32) {
    %c0_i32 = arith.constant 0 : i32
    %c0_i32_0 = arith.constant 0 : i32
    return %arg0, %c0_i32 : i32, i32
  }
  func.func @transform_1(%arg0: i32) -> (i32, i32) {
    %c0_i32 = arith.constant 0 : i32
    %c0_i32_0 = arith.constant 0 : i32
    %c0_i32_1 = arith.constant 0 : i32
    return %c0_i32, %c0_i32_0 : i32, i32
  }
  func.func @transform_2(%arg0: i32) -> (i32, i32) {
    %c0_i32 = arith.constant 0 : i32
    %c0_i32_0 = arith.constant 0 : i32
    %c0_i32_1 = arith.constant 0 : i32
    return %c0_i32, %c0_i32_0 : i32, i32
  }
  func.func @transform_3(%arg0: i32) -> (i32, i32) {
    %c0_i32 = arith.constant 0 : i32
    %c0_i32_0 = arith.constant 0 : i32
    return %arg0, %c0_i32 : i32, i32
  }
}

module attributes {stable_mosaic.version = 11 : i64} {
  func.func @_conv_bn_lrelu_kernel(%arg0: i32, %arg1: memref<128x1024xbf16, #tpu.memory_space<vmem>>, %arg2: memref<1024x128xbf16, #tpu.memory_space<vmem>>, %arg3: memref<1x128xf32, #tpu.memory_space<vmem>>, %arg4: memref<1x128xf32, #tpu.memory_space<vmem>>, %arg5: memref<1x128xf32, #tpu.memory_space<vmem>>, %arg6: memref<128x128xbf16, #tpu.memory_space<vmem>>) attributes {dimension_semantics = [#tpu.dimension_semantics<arbitrary>], iteration_bounds = array<i64: 1>, scalar_prefetch = 0 : i64, scratch_operands = 0 : i64, tpu.core_type = #tpu.core_type<tc>, window_params = [{pipeline_mode = #tpu.pipeline_mode<synchronous>, transform_indices = @transform_0, window_bounds = array<i64: 128, 1024>}, {pipeline_mode = #tpu.pipeline_mode<synchronous>, transform_indices = @transform_1, window_bounds = array<i64: 1024, 128>}, {pipeline_mode = #tpu.pipeline_mode<synchronous>, transform_indices = @transform_2, window_bounds = array<i64: 1, 128>}, {pipeline_mode = #tpu.pipeline_mode<synchronous>, transform_indices = @transform_3, window_bounds = array<i64: 1, 128>}, {pipeline_mode = #tpu.pipeline_mode<synchronous>, transform_indices = @transform_4, window_bounds = array<i64: 1, 128>}, {pipeline_mode = #tpu.pipeline_mode<synchronous>, transform_indices = @transform_5, window_bounds = array<i64: 128, 128>}]} {
    %c0 = arith.constant 0 : index
    %c0_0 = arith.constant 0 : index
    %0 = vector.load %arg1[%c0, %c0_0] : memref<128x1024xbf16, #tpu.memory_space<vmem>>, vector<128x1024xbf16>
    %c0_1 = arith.constant 0 : index
    %c0_2 = arith.constant 0 : index
    %1 = vector.load %arg2[%c0_1, %c0_2] : memref<1024x128xbf16, #tpu.memory_space<vmem>>, vector<1024x128xbf16>
    %cst = arith.constant dense<0.000000e+00> : vector<128x128xf32>
    %2 = tpu.matmul %0, %1, %cst {dimension_numbers = #tpu.dot_dimension_numbers<[1], [0], [0], [1], [0, 0, 1, 1], [], []>} : vector<128x1024xbf16>, vector<1024x128xbf16>, vector<128x128xf32> -> vector<128x128xf32>
    %c0_3 = arith.constant 0 : index
    %c0_4 = arith.constant 0 : index
    %3 = vector.load %arg3[%c0_3, %c0_4] : memref<1x128xf32, #tpu.memory_space<vmem>>, vector<1x128xf32>
    %4 = vector.broadcast %3 : vector<1x128xf32> to vector<128x128xf32>
    %5 = arith.addf %2, %4 : vector<128x128xf32>
    %cst_5 = arith.constant dense<0.000000e+00> : vector<128xf32>
    %6 = vector.multi_reduction <add>, %5, %cst_5 [0] : vector<128x128xf32> to vector<128xf32>
    %7 = vector.shape_cast %6 : vector<128xf32> to vector<1x128xf32>
    %cst_6 = arith.constant 7.812500e-03 : f32
    %8 = vector.broadcast %cst_6 : f32 to vector<1x128xf32>
    %9 = arith.mulf %7, %8 : vector<1x128xf32>
    %10 = vector.broadcast %9 : vector<1x128xf32> to vector<128x128xf32>
    %11 = arith.subf %5, %10 : vector<128x128xf32>
    %12 = arith.mulf %11, %11 : vector<128x128xf32>
    %cst_7 = arith.constant dense<0.000000e+00> : vector<128xf32>
    %13 = vector.multi_reduction <add>, %12, %cst_7 [0] : vector<128x128xf32> to vector<128xf32>
    %14 = vector.shape_cast %13 : vector<128xf32> to vector<1x128xf32>
    %cst_8 = arith.constant 7.812500e-03 : f32
    %15 = vector.broadcast %cst_8 : f32 to vector<1x128xf32>
    %16 = arith.mulf %14, %15 : vector<1x128xf32>
    %cst_9 = arith.constant 9.99999974E-6 : f32
    %17 = vector.broadcast %cst_9 : f32 to vector<1x128xf32>
    %18 = arith.addf %16, %17 : vector<1x128xf32>
    %19 = math.rsqrt %18 : vector<1x128xf32>
    %20 = vector.broadcast %19 : vector<1x128xf32> to vector<128x128xf32>
    %21 = arith.mulf %11, %20 : vector<128x128xf32>
    %c0_10 = arith.constant 0 : index
    %c0_11 = arith.constant 0 : index
    %22 = vector.load %arg4[%c0_10, %c0_11] : memref<1x128xf32, #tpu.memory_space<vmem>>, vector<1x128xf32>
    %23 = vector.broadcast %22 : vector<1x128xf32> to vector<128x128xf32>
    %24 = arith.mulf %21, %23 : vector<128x128xf32>
    %c0_12 = arith.constant 0 : index
    %c0_13 = arith.constant 0 : index
    %25 = vector.load %arg5[%c0_12, %c0_13] : memref<1x128xf32, #tpu.memory_space<vmem>>, vector<1x128xf32>
    %26 = vector.broadcast %25 : vector<1x128xf32> to vector<128x128xf32>
    %27 = arith.addf %24, %26 : vector<128x128xf32>
    %cst_14 = arith.constant 0.000000e+00 : f32
    %28 = vector.broadcast %cst_14 : f32 to vector<128x128xf32>
    %29 = arith.cmpf ogt, %27, %28 : vector<128x128xf32>
    %cst_15 = arith.constant 2.000000e-01 : f32
    %30 = vector.broadcast %cst_15 : f32 to vector<128x128xf32>
    %31 = arith.mulf %30, %27 : vector<128x128xf32>
    %32 = arith.select %29, %27, %31 : vector<128x128xi1>, vector<128x128xf32>
    %33 = arith.truncf %32 : vector<128x128xf32> to vector<128x128xbf16>
    %c0_16 = arith.constant 0 : index
    %c0_17 = arith.constant 0 : index
    %34 = vector.load %arg6[%c0_16, %c0_17] : memref<128x128xbf16, #tpu.memory_space<vmem>>, vector<128x128xbf16>
    tpu.vector_store %arg6[%c0_16, %c0_17], %33 {strides = array<i32>} : memref<128x128xbf16, #tpu.memory_space<vmem>>, vector<128x128xbf16>,
    return
  }
  func.func @transform_0(%arg0: i32) -> (i32, i32) {
    %c0_i32 = arith.constant 0 : i32
    %c0_i32_0 = arith.constant 0 : i32
    %c0_i32_1 = arith.constant 0 : i32
    return %c0_i32, %c0_i32_0 : i32, i32
  }
  func.func @transform_1(%arg0: i32) -> (i32, i32) {
    %c0_i32 = arith.constant 0 : i32
    %c0_i32_0 = arith.constant 0 : i32
    %c0_i32_1 = arith.constant 0 : i32
    return %c0_i32, %c0_i32_0 : i32, i32
  }
  func.func @transform_2(%arg0: i32) -> (i32, i32) {
    %c0_i32 = arith.constant 0 : i32
    %c0_i32_0 = arith.constant 0 : i32
    %c0_i32_1 = arith.constant 0 : i32
    return %c0_i32, %c0_i32_0 : i32, i32
  }
  func.func @transform_3(%arg0: i32) -> (i32, i32) {
    %c0_i32 = arith.constant 0 : i32
    %c0_i32_0 = arith.constant 0 : i32
    %c0_i32_1 = arith.constant 0 : i32
    return %c0_i32, %c0_i32_0 : i32, i32
  }
  func.func @transform_4(%arg0: i32) -> (i32, i32) {
    %c0_i32 = arith.constant 0 : i32
    %c0_i32_0 = arith.constant 0 : i32
    %c0_i32_1 = arith.constant 0 : i32
    return %c0_i32, %c0_i32_0 : i32, i32
  }
  func.func @transform_5(%arg0: i32) -> (i32, i32) {
    %c0_i32 = arith.constant 0 : i32
    %c0_i32_0 = arith.constant 0 : i32
    %c0_i32_1 = arith.constant 0 : i32
    return %c0_i32, %c0_i32_0 : i32, i32
  }
}

module attributes {stable_mosaic.version = 11 : i64} {
  func.func @_conv_bn_lrelu_kernel(%arg0: i32, %arg1: memref<32x2048xbf16, #tpu.memory_space<vmem>>, %arg2: memref<2048x256xbf16, #tpu.memory_space<vmem>>, %arg3: memref<1x256xf32, #tpu.memory_space<vmem>>, %arg4: memref<1x256xf32, #tpu.memory_space<vmem>>, %arg5: memref<1x256xf32, #tpu.memory_space<vmem>>, %arg6: memref<32x256xbf16, #tpu.memory_space<vmem>>) attributes {dimension_semantics = [#tpu.dimension_semantics<arbitrary>], iteration_bounds = array<i64: 1>, scalar_prefetch = 0 : i64, scratch_operands = 0 : i64, tpu.core_type = #tpu.core_type<tc>, window_params = [{pipeline_mode = #tpu.pipeline_mode<synchronous>, transform_indices = @transform_0, window_bounds = array<i64: 32, 2048>}, {pipeline_mode = #tpu.pipeline_mode<synchronous>, transform_indices = @transform_1, window_bounds = array<i64: 2048, 256>}, {pipeline_mode = #tpu.pipeline_mode<synchronous>, transform_indices = @transform_2, window_bounds = array<i64: 1, 256>}, {pipeline_mode = #tpu.pipeline_mode<synchronous>, transform_indices = @transform_3, window_bounds = array<i64: 1, 256>}, {pipeline_mode = #tpu.pipeline_mode<synchronous>, transform_indices = @transform_4, window_bounds = array<i64: 1, 256>}, {pipeline_mode = #tpu.pipeline_mode<synchronous>, transform_indices = @transform_5, window_bounds = array<i64: 32, 256>}]} {
    %c0 = arith.constant 0 : index
    %c0_0 = arith.constant 0 : index
    %0 = vector.load %arg1[%c0, %c0_0] : memref<32x2048xbf16, #tpu.memory_space<vmem>>, vector<32x2048xbf16>
    %c0_1 = arith.constant 0 : index
    %c0_2 = arith.constant 0 : index
    %1 = vector.load %arg2[%c0_1, %c0_2] : memref<2048x256xbf16, #tpu.memory_space<vmem>>, vector<2048x256xbf16>
    %cst = arith.constant dense<0.000000e+00> : vector<32x256xf32>
    %2 = tpu.matmul %0, %1, %cst {dimension_numbers = #tpu.dot_dimension_numbers<[1], [0], [0], [1], [0, 0, 1, 1], [], []>} : vector<32x2048xbf16>, vector<2048x256xbf16>, vector<32x256xf32> -> vector<32x256xf32>
    %c0_3 = arith.constant 0 : index
    %c0_4 = arith.constant 0 : index
    %3 = vector.load %arg3[%c0_3, %c0_4] : memref<1x256xf32, #tpu.memory_space<vmem>>, vector<1x256xf32>
    %4 = vector.broadcast %3 : vector<1x256xf32> to vector<32x256xf32>
    %5 = arith.addf %2, %4 : vector<32x256xf32>
    %cst_5 = arith.constant dense<0.000000e+00> : vector<256xf32>
    %6 = vector.multi_reduction <add>, %5, %cst_5 [0] : vector<32x256xf32> to vector<256xf32>
    %7 = vector.shape_cast %6 : vector<256xf32> to vector<1x256xf32>
    %cst_6 = arith.constant 3.125000e-02 : f32
    %8 = vector.broadcast %cst_6 : f32 to vector<1x256xf32>
    %9 = arith.mulf %7, %8 : vector<1x256xf32>
    %10 = vector.broadcast %9 : vector<1x256xf32> to vector<32x256xf32>
    %11 = arith.subf %5, %10 : vector<32x256xf32>
    %12 = arith.mulf %11, %11 : vector<32x256xf32>
    %cst_7 = arith.constant dense<0.000000e+00> : vector<256xf32>
    %13 = vector.multi_reduction <add>, %12, %cst_7 [0] : vector<32x256xf32> to vector<256xf32>
    %14 = vector.shape_cast %13 : vector<256xf32> to vector<1x256xf32>
    %cst_8 = arith.constant 3.125000e-02 : f32
    %15 = vector.broadcast %cst_8 : f32 to vector<1x256xf32>
    %16 = arith.mulf %14, %15 : vector<1x256xf32>
    %cst_9 = arith.constant 9.99999974E-6 : f32
    %17 = vector.broadcast %cst_9 : f32 to vector<1x256xf32>
    %18 = arith.addf %16, %17 : vector<1x256xf32>
    %19 = math.rsqrt %18 : vector<1x256xf32>
    %20 = vector.broadcast %19 : vector<1x256xf32> to vector<32x256xf32>
    %21 = arith.mulf %11, %20 : vector<32x256xf32>
    %c0_10 = arith.constant 0 : index
    %c0_11 = arith.constant 0 : index
    %22 = vector.load %arg4[%c0_10, %c0_11] : memref<1x256xf32, #tpu.memory_space<vmem>>, vector<1x256xf32>
    %23 = vector.broadcast %22 : vector<1x256xf32> to vector<32x256xf32>
    %24 = arith.mulf %21, %23 : vector<32x256xf32>
    %c0_12 = arith.constant 0 : index
    %c0_13 = arith.constant 0 : index
    %25 = vector.load %arg5[%c0_12, %c0_13] : memref<1x256xf32, #tpu.memory_space<vmem>>, vector<1x256xf32>
    %26 = vector.broadcast %25 : vector<1x256xf32> to vector<32x256xf32>
    %27 = arith.addf %24, %26 : vector<32x256xf32>
    %cst_14 = arith.constant 0.000000e+00 : f32
    %28 = vector.broadcast %cst_14 : f32 to vector<32x256xf32>
    %29 = arith.cmpf ogt, %27, %28 : vector<32x256xf32>
    %cst_15 = arith.constant 2.000000e-01 : f32
    %30 = vector.broadcast %cst_15 : f32 to vector<32x256xf32>
    %31 = arith.mulf %30, %27 : vector<32x256xf32>
    %32 = arith.select %29, %27, %31 : vector<32x256xi1>, vector<32x256xf32>
    %33 = arith.truncf %32 : vector<32x256xf32> to vector<32x256xbf16>
    %c0_16 = arith.constant 0 : index
    %c0_17 = arith.constant 0 : index
    %34 = vector.load %arg6[%c0_16, %c0_17] : memref<32x256xbf16, #tpu.memory_space<vmem>>, vector<32x256xbf16>
    tpu.vector_store %arg6[%c0_16, %c0_17], %33 {strides = array<i32>} : memref<32x256xbf16, #tpu.memory_space<vmem>>, vector<32x256xbf16>,
    return
  }
  func.func @transform_0(%arg0: i32) -> (i32, i32) {
    %c0_i32 = arith.constant 0 : i32
    %c0_i32_0 = arith.constant 0 : i32
    %c0_i32_1 = arith.constant 0 : i32
    return %c0_i32, %c0_i32_0 : i32, i32
  }
  func.func @transform_1(%arg0: i32) -> (i32, i32) {
    %c0_i32 = arith.constant 0 : i32
    %c0_i32_0 = arith.constant 0 : i32
    %c0_i32_1 = arith.constant 0 : i32
    return %c0_i32, %c0_i32_0 : i32, i32
  }
  func.func @transform_2(%arg0: i32) -> (i32, i32) {
    %c0_i32 = arith.constant 0 : i32
    %c0_i32_0 = arith.constant 0 : i32
    %c0_i32_1 = arith.constant 0 : i32
    return %c0_i32, %c0_i32_0 : i32, i32
  }
  func.func @transform_3(%arg0: i32) -> (i32, i32) {
    %c0_i32 = arith.constant 0 : i32
    %c0_i32_0 = arith.constant 0 : i32
    %c0_i32_1 = arith.constant 0 : i32
    return %c0_i32, %c0_i32_0 : i32, i32
  }
  func.func @transform_4(%arg0: i32) -> (i32, i32) {
    %c0_i32 = arith.constant 0 : i32
    %c0_i32_0 = arith.constant 0 : i32
    %c0_i32_1 = arith.constant 0 : i32
    return %c0_i32, %c0_i32_0 : i32, i32
  }
  func.func @transform_5(%arg0: i32) -> (i32, i32) {
    %c0_i32 = arith.constant 0 : i32
    %c0_i32_0 = arith.constant 0 : i32
    %c0_i32_1 = arith.constant 0 : i32
    return %c0_i32, %c0_i32_0 : i32, i32
  }
}

module attributes {stable_mosaic.version = 11 : i64} {
  func.func @_conv_bn_lrelu_kernel(%arg0: i32, %arg1: memref<18x4096xbf16, #tpu.memory_space<vmem>>, %arg2: memref<4096x512xbf16, #tpu.memory_space<vmem>>, %arg3: memref<1x512xf32, #tpu.memory_space<vmem>>, %arg4: memref<1x512xf32, #tpu.memory_space<vmem>>, %arg5: memref<1x512xf32, #tpu.memory_space<vmem>>, %arg6: memref<18x512xbf16, #tpu.memory_space<vmem>>) attributes {dimension_semantics = [#tpu.dimension_semantics<arbitrary>], iteration_bounds = array<i64: 1>, scalar_prefetch = 0 : i64, scratch_operands = 0 : i64, tpu.core_type = #tpu.core_type<tc>, window_params = [{pipeline_mode = #tpu.pipeline_mode<synchronous>, transform_indices = @transform_0, window_bounds = array<i64: 18, 4096>}, {pipeline_mode = #tpu.pipeline_mode<synchronous>, transform_indices = @transform_1, window_bounds = array<i64: 4096, 512>}, {pipeline_mode = #tpu.pipeline_mode<synchronous>, transform_indices = @transform_2, window_bounds = array<i64: 1, 512>}, {pipeline_mode = #tpu.pipeline_mode<synchronous>, transform_indices = @transform_3, window_bounds = array<i64: 1, 512>}, {pipeline_mode = #tpu.pipeline_mode<synchronous>, transform_indices = @transform_4, window_bounds = array<i64: 1, 512>}, {pipeline_mode = #tpu.pipeline_mode<synchronous>, transform_indices = @transform_5, window_bounds = array<i64: 18, 512>}]} {
    %c0 = arith.constant 0 : index
    %c0_0 = arith.constant 0 : index
    %0 = vector.load %arg1[%c0, %c0_0] : memref<18x4096xbf16, #tpu.memory_space<vmem>>, vector<18x4096xbf16>
    %c0_1 = arith.constant 0 : index
    %c0_2 = arith.constant 0 : index
    %1 = vector.load %arg2[%c0_1, %c0_2] : memref<4096x512xbf16, #tpu.memory_space<vmem>>, vector<4096x512xbf16>
    %cst = arith.constant dense<0.000000e+00> : vector<18x512xf32>
    %2 = tpu.matmul %0, %1, %cst {dimension_numbers = #tpu.dot_dimension_numbers<[1], [0], [0], [1], [0, 0, 1, 1], [], []>} : vector<18x4096xbf16>, vector<4096x512xbf16>, vector<18x512xf32> -> vector<18x512xf32>
    %c0_3 = arith.constant 0 : index
    %c0_4 = arith.constant 0 : index
    %3 = vector.load %arg3[%c0_3, %c0_4] : memref<1x512xf32, #tpu.memory_space<vmem>>, vector<1x512xf32>
    %4 = vector.broadcast %3 : vector<1x512xf32> to vector<18x512xf32>
    %5 = arith.addf %2, %4 : vector<18x512xf32>
    %cst_5 = arith.constant dense<0.000000e+00> : vector<512xf32>
    %6 = vector.multi_reduction <add>, %5, %cst_5 [0] : vector<18x512xf32> to vector<512xf32>
    %7 = vector.shape_cast %6 : vector<512xf32> to vector<1x512xf32>
    %cst_6 = arith.constant 0.055555556 : f32
    %8 = vector.broadcast %cst_6 : f32 to vector<1x512xf32>
    %9 = arith.mulf %7, %8 : vector<1x512xf32>
    %10 = vector.broadcast %9 : vector<1x512xf32> to vector<18x512xf32>
    %11 = arith.subf %5, %10 : vector<18x512xf32>
    %12 = arith.mulf %11, %11 : vector<18x512xf32>
    %cst_7 = arith.constant dense<0.000000e+00> : vector<512xf32>
    %13 = vector.multi_reduction <add>, %12, %cst_7 [0] : vector<18x512xf32> to vector<512xf32>
    %14 = vector.shape_cast %13 : vector<512xf32> to vector<1x512xf32>
    %cst_8 = arith.constant 0.055555556 : f32
    %15 = vector.broadcast %cst_8 : f32 to vector<1x512xf32>
    %16 = arith.mulf %14, %15 : vector<1x512xf32>
    %cst_9 = arith.constant 9.99999974E-6 : f32
    %17 = vector.broadcast %cst_9 : f32 to vector<1x512xf32>
    %18 = arith.addf %16, %17 : vector<1x512xf32>
    %19 = math.rsqrt %18 : vector<1x512xf32>
    %20 = vector.broadcast %19 : vector<1x512xf32> to vector<18x512xf32>
    %21 = arith.mulf %11, %20 : vector<18x512xf32>
    %c0_10 = arith.constant 0 : index
    %c0_11 = arith.constant 0 : index
    %22 = vector.load %arg4[%c0_10, %c0_11] : memref<1x512xf32, #tpu.memory_space<vmem>>, vector<1x512xf32>
    %23 = vector.broadcast %22 : vector<1x512xf32> to vector<18x512xf32>
    %24 = arith.mulf %21, %23 : vector<18x512xf32>
    %c0_12 = arith.constant 0 : index
    %c0_13 = arith.constant 0 : index
    %25 = vector.load %arg5[%c0_12, %c0_13] : memref<1x512xf32, #tpu.memory_space<vmem>>, vector<1x512xf32>
    %26 = vector.broadcast %25 : vector<1x512xf32> to vector<18x512xf32>
    %27 = arith.addf %24, %26 : vector<18x512xf32>
    %cst_14 = arith.constant 0.000000e+00 : f32
    %28 = vector.broadcast %cst_14 : f32 to vector<18x512xf32>
    %29 = arith.cmpf ogt, %27, %28 : vector<18x512xf32>
    %cst_15 = arith.constant 2.000000e-01 : f32
    %30 = vector.broadcast %cst_15 : f32 to vector<18x512xf32>
    %31 = arith.mulf %30, %27 : vector<18x512xf32>
    %32 = arith.select %29, %27, %31 : vector<18x512xi1>, vector<18x512xf32>
    %33 = arith.truncf %32 : vector<18x512xf32> to vector<18x512xbf16>
    %c0_16 = arith.constant 0 : index
    %c0_17 = arith.constant 0 : index
    %34 = vector.load %arg6[%c0_16, %c0_17] : memref<18x512xbf16, #tpu.memory_space<vmem>>, vector<18x512xbf16>
    tpu.vector_store %arg6[%c0_16, %c0_17], %33 {strides = array<i32>} : memref<18x512xbf16, #tpu.memory_space<vmem>>, vector<18x512xbf16>,
    return
  }
  func.func @transform_0(%arg0: i32) -> (i32, i32) {
    %c0_i32 = arith.constant 0 : i32
    %c0_i32_0 = arith.constant 0 : i32
    %c0_i32_1 = arith.constant 0 : i32
    return %c0_i32, %c0_i32_0 : i32, i32
  }
  func.func @transform_1(%arg0: i32) -> (i32, i32) {
    %c0_i32 = arith.constant 0 : i32
    %c0_i32_0 = arith.constant 0 : i32
    %c0_i32_1 = arith.constant 0 : i32
    return %c0_i32, %c0_i32_0 : i32, i32
  }
  func.func @transform_2(%arg0: i32) -> (i32, i32) {
    %c0_i32 = arith.constant 0 : i32
    %c0_i32_0 = arith.constant 0 : i32
    %c0_i32_1 = arith.constant 0 : i32
    return %c0_i32, %c0_i32_0 : i32, i32
  }
  func.func @transform_3(%arg0: i32) -> (i32, i32) {
    %c0_i32 = arith.constant 0 : i32
    %c0_i32_0 = arith.constant 0 : i32
    %c0_i32_1 = arith.constant 0 : i32
    return %c0_i32, %c0_i32_0 : i32, i32
  }
  func.func @transform_4(%arg0: i32) -> (i32, i32) {
    %c0_i32 = arith.constant 0 : i32
    %c0_i32_0 = arith.constant 0 : i32
    %c0_i32_1 = arith.constant 0 : i32
    return %c0_i32, %c0_i32_0 : i32, i32
  }
  func.func @transform_5(%arg0: i32) -> (i32, i32) {
    %c0_i32 = arith.constant 0 : i32
    %c0_i32_0 = arith.constant 0 : i32
    %c0_i32_1 = arith.constant 0 : i32
    return %c0_i32, %c0_i32_0 : i32, i32
  }
}

module attributes {stable_mosaic.version = 11 : i64} {
  func.func @_conv_cout1_sigmoid_kernel(%arg0: i32, %arg1: memref<8x8192xbf16, #tpu.memory_space<vmem>>, %arg2: memref<1x8192xf32, #tpu.memory_space<vmem>>, %arg3: memref<1x1xf32, #tpu.memory_space<vmem>>, %arg4: memref<8x1xf32, #tpu.memory_space<vmem>>) attributes {dimension_semantics = [#tpu.dimension_semantics<arbitrary>], iteration_bounds = array<i64: 1>, scalar_prefetch = 0 : i64, scratch_operands = 0 : i64, tpu.core_type = #tpu.core_type<tc>, window_params = [{pipeline_mode = #tpu.pipeline_mode<synchronous>, transform_indices = @transform_0, window_bounds = array<i64: 8, 8192>}, {pipeline_mode = #tpu.pipeline_mode<synchronous>, transform_indices = @transform_1, window_bounds = array<i64: 1, 8192>}, {pipeline_mode = #tpu.pipeline_mode<synchronous>, transform_indices = @transform_2, window_bounds = array<i64: 1, 1>}, {pipeline_mode = #tpu.pipeline_mode<synchronous>, transform_indices = @transform_3, window_bounds = array<i64: 8, 1>}]} {
    %c0 = arith.constant 0 : index
    %c0_0 = arith.constant 0 : index
    %0 = vector.load %arg1[%c0, %c0_0] : memref<8x8192xbf16, #tpu.memory_space<vmem>>, vector<8x8192xbf16>
    %1 = arith.extf %0 : vector<8x8192xbf16> to vector<8x8192xf32>
    %c0_1 = arith.constant 0 : index
    %c0_2 = arith.constant 0 : index
    %2 = vector.load %arg2[%c0_1, %c0_2] : memref<1x8192xf32, #tpu.memory_space<vmem>>, vector<1x8192xf32>
    %3 = vector.broadcast %2 : vector<1x8192xf32> to vector<8x8192xf32>
    %4 = arith.mulf %1, %3 : vector<8x8192xf32>
    %cst = arith.constant dense<0.000000e+00> : vector<8xf32>
    %5 = vector.multi_reduction <add>, %4, %cst [1] : vector<8x8192xf32> to vector<8xf32>
    %6 = vector.shape_cast %5 : vector<8xf32> to vector<8x1xf32>
    %c0_3 = arith.constant 0 : index
    %c0_4 = arith.constant 0 : index
    %7 = vector.load %arg3[%c0_3, %c0_4] : memref<1x1xf32, #tpu.memory_space<vmem>>, vector<1x1xf32>
    %8 = vector.broadcast %7 : vector<1x1xf32> to vector<8x1xf32>
    %9 = arith.addf %6, %8 : vector<8x1xf32>
    %cst_5 = arith.constant 0.000000e+00 : f32
    %10 = vector.broadcast %cst_5 : f32 to vector<8x1xf32>
    %11 = arith.subf %10, %9 : vector<8x1xf32>
    %12 = math.exp %11 : vector<8x1xf32>
    %cst_6 = arith.constant 1.000000e+00 : f32
    %13 = vector.broadcast %cst_6 : f32 to vector<8x1xf32>
    %14 = arith.addf %13, %12 : vector<8x1xf32>
    %cst_7 = arith.constant 1.000000e+00 : f32
    %15 = vector.broadcast %cst_7 : f32 to vector<8x1xf32>
    %16 = arith.divf %15, %14 : vector<8x1xf32>
    %c0_8 = arith.constant 0 : index
    %c0_9 = arith.constant 0 : index
    %17 = vector.load %arg4[%c0_8, %c0_9] : memref<8x1xf32, #tpu.memory_space<vmem>>, vector<8x1xf32>
    tpu.vector_store %arg4[%c0_8, %c0_9], %16 {strides = array<i32>} : memref<8x1xf32, #tpu.memory_space<vmem>>, vector<8x1xf32>,
    return
  }
  func.func @transform_0(%arg0: i32) -> (i32, i32) {
    %c0_i32 = arith.constant 0 : i32
    %c0_i32_0 = arith.constant 0 : i32
    %c0_i32_1 = arith.constant 0 : i32
    return %c0_i32, %c0_i32_0 : i32, i32
  }
  func.func @transform_1(%arg0: i32) -> (i32, i32) {
    %c0_i32 = arith.constant 0 : i32
    %c0_i32_0 = arith.constant 0 : i32
    %c0_i32_1 = arith.constant 0 : i32
    return %c0_i32, %c0_i32_0 : i32, i32
  }
  func.func @transform_2(%arg0: i32) -> (i32, i32) {
    %c0_i32 = arith.constant 0 : i32
    %c0_i32_0 = arith.constant 0 : i32
    %c0_i32_1 = arith.constant 0 : i32
    return %c0_i32, %c0_i32_0 : i32, i32
  }
  func.func @transform_3(%arg0: i32) -> (i32, i32) {
    %c0_i32 = arith.constant 0 : i32
    %c0_i32_0 = arith.constant 0 : i32
    %c0_i32_1 = arith.constant 0 : i32
    return %c0_i32, %c0_i32_0 : i32, i32
  }
}

</mosaic_0001>

<llo_original>
// kernel: discriminator_forward.5
$region0: #{discriminator_forward.5}
  #allocation0 [shape = 'u32[]', space=smem, size = 0x4, offset = 0x4, fixed_abs, tag = 'smem constant byte address 0x4 - core index']
  #allocation1 [shape = 'u32[144,128]{1,0:T(1,128)}', space=vmem, size = 0x12000, scoped, tag = 'internal scratch']
  %s0 = inlined_call_operand.vmem [shape: f32[512,16], index: 0, kind: input, shape index: {}]
  %s1 = inlined_call_operand.vmem [shape: bf16[16,64], index: 1, kind: input, shape index: {}]
  %s2 = inlined_call_operand.hbm [shape: f32[1,64], index: 2, kind: input, shape index: {}]
  %s3 = inlined_call_operand.vmem [shape: bf16[512,64], index: 3, kind: output, shape index: {}]
  %s4 = sld [smem:[#allocation0]]
  $region49: #{discriminator_forward.5} parent=0
    _
  %s6 = ssub.s32 1, %s4
  %s7 = scalar_select 0, %s6, %s4
  $region1: #{discriminator_forward.5} parent=0
    #allocation2 [shape = 'u8[512]{0}', space=vmem, size = 0x400, scoped, tag = 'input window, operand 2, single buffered']
    #allocation3 [shape = 's32[2]{0}', space=sflag, size = 0x8, scoped, tag = 'scoped memory for discriminator_forward.5']
    %8 = vsyncpa [#allocation3], 0
    loop: start=0, step=1, limit=4
    $region2: #{discriminator_forward.5} parent=1 // loop_pre_header
      _
    $region3: #{discriminator_forward.5} parent=1 // loop_header
      %s10 = sphi 0, %s14
      %p11 = scmp.ge.s32.totalorder %s10, 4
      %s20 = sphi 0, %s22
      %s23 = sphi 0, %s20
      %s24 = sphi 0, %s23
      %s40 = sphi 0, %s24
      %s44 = sphi 0, %s44
      %s46 = sphi 0, %s44
      %s47 = sphi 0, %s46
      %s61 = sphi 0, %s47
      %s65 = sphi 0, %s65
      %s67 = sphi 0, %s65
      %s68 = sphi 0, %s67
      %s82 = sphi 0, %s68
      %s88 = sphi 0, %s90
      %s91 = sphi 0, %s88
      %s92 = sphi 0, %s91
      %s108 = sphi 0, %s92
    $region4: #{discriminator_forward.5} parent=1 // loop_header_branch
      %13 = sbr.rel (%p11) target = $region8
    $region5: #{discriminator_forward.5} parent=1 // loop_body
      %s15 = ssub.s32 %s10, 1
      %s16 = ssub.s32 %s10, 2
      %s17 = sadd.s32 %s10, 1
      %s18 = ssub.s32 %s10, %s17
      %p19 = scmp.eq.s32.totalorder %s18, 0
      %s21 = sadd.s32 %s20, 1
      %s22 = scalar_select %p19, %s20, %s21
      %p25 = pneg %p19
      %p26 = scmp.eq.s32.totalorder %s10, 1
      %p27 = por %p25, %p26
      %p28 = scmp.ne.s32.totalorder %s20, %s23
      %p29 = scmp.eq.s32.totalorder %s10, 0
      %p30 = por %p28, %p29
      %p31 = scmp.ne.s32.totalorder %s20, %s23
      %p32 = scmp.eq.s32.totalorder %s15, 1
      %p33 = por %p31, %p32
      %p34 = scmp.ne.s32.totalorder %s23, %s24
      %p35 = scmp.eq.s32.totalorder %s15, 0
      %p36 = por %p34, %p35
      %p37 = scmp.ne.s32.totalorder %s23, %s24
      %p38 = scmp.eq.s32.totalorder %s16, 1
      %p39 = por %p37, %p38
      %p41 = scmp.ne.s32.totalorder %s24, %s40
      %p42 = scmp.eq.s32.totalorder %s16, 0
      %p43 = por %p41, %p42
      %s45 = sadd.s32 %s44, 1
      %p48 = scmp.eq.s32.totalorder %s10, 1
      %p49 = scmp.ne.s32.totalorder %s44, %s46
      %p50 = scmp.eq.s32.totalorder %s10, 0
      %p51 = por %p49, %p50
      %p52 = scmp.ne.s32.totalorder %s44, %s46
      %p53 = scmp.eq.s32.totalorder %s15, 1
      %p54 = por %p52, %p53
      %p55 = scmp.ne.s32.totalorder %s46, %s47
      %p56 = scmp.eq.s32.totalorder %s15, 0
      %p57 = por %p55, %p56
      %p58 = scmp.ne.s32.totalorder %s46, %s47
      %p59 = scmp.eq.s32.totalorder %s16, 1
      %p60 = por %p58, %p59
      %p62 = scmp.ne.s32.totalorder %s47, %s61
      %p63 = scmp.eq.s32.totalorder %s16, 0
      %p64 = por %p62, %p63
      %s66 = sadd.s32 %s65, 1
      %p69 = scmp.eq.s32.totalorder %s10, 1
      %p70 = scmp.ne.s32.totalorder %s65, %s67
      %p71 = scmp.eq.s32.totalorder %s10, 0
      %p72 = por %p70, %p71
      %p73 = scmp.ne.s32.totalorder %s65, %s67
      %p74 = scmp.eq.s32.totalorder %s15, 1
      %p75 = por %p73, %p74
      %p76 = scmp.ne.s32.totalorder %s67, %s68
      %p77 = scmp.eq.s32.totalorder %s15, 0
      %p78 = por %p76, %p77
      %p79 = scmp.ne.s32.totalorder %s67, %s68
      %p80 = scmp.eq.s32.totalorder %s16, 1
      %p81 = por %p79, %p80
      %p83 = scmp.ne.s32.totalorder %s68, %s82
      %p84 = scmp.eq.s32.totalorder %s16, 0
      %p85 = por %p83, %p84
      %s86 = ssub.s32 %s10, %s17
      %p87 = scmp.eq.s32.totalorder %s86, 0
      %s89 = sadd.s32 %s88, 1
      %s90 = scalar_select %p87, %s88, %s89
      %p93 = pneg %p87
      %p94 = scmp.eq.s32.totalorder %s10, 1
      %p95 = por %p93, %p94
      %p96 = scmp.ne.s32.totalorder %s88, %s91
      %p97 = scmp.eq.s32.totalorder %s10, 0
      %p98 = por %p96, %p97
      %p99 = scmp.ne.s32.totalorder %s88, %s91
      %p100 = scmp.eq.s32.totalorder %s15, 1
      %p101 = por %p99, %p100
      %p102 = scmp.ne.s32.totalorder %s91, %s92
      %p103 = scmp.eq.s32.totalorder %s15, 0
      %p104 = por %p102, %p103
      %p105 = scmp.ne.s32.totalorder %s91, %s92
      %p106 = scmp.eq.s32.totalorder %s16, 1
      %p107 = por %p105, %p106
      %p109 = scmp.ne.s32.totalorder %s92, %s108
      %p110 = scmp.eq.s32.totalorder %s16, 0
      %p111 = por %p109, %p110
      %p112 = scmp.le.s32.totalorder 1, %s10
      %p113 = scmp.lt.s32.totalorder %s10, 3
      %p114 = pnand %p112, %p113
      %p115 = pneg %p114
      // Predicated region
      $region9: #{discriminator_forward.5} parent=5 // pred_check
        _
      $region10: #{discriminator_forward.5} parent=5 // pred_check_branch
        %117 = sbr.rel (%p114) target = $region12
      $region11: #{discriminator_forward.5} parent=5 // pred_region
        %s118 = ssub.s32 %s10, 1
        // Predicated region
        $region13: #{discriminator_forward.5} parent=11 // pred_check
          %p119 = pneg %p57
        $region14: #{discriminator_forward.5} parent=11 // pred_check_branch
          %121 = sbr.rel (%p119) target = $region16
        $region15: #{discriminator_forward.5} parent=11 // pred_region
          _
        $region16: #{discriminator_forward.5} parent=11 // pred_fallthru
          _
        // Predicated region
        $region17: #{discriminator_forward.5} parent=11 // pred_check
          %p122 = pneg %p78
        $region18: #{discriminator_forward.5} parent=11 // pred_check_branch
          %124 = sbr.rel (%p122) target = $region20
        $region19: #{discriminator_forward.5} parent=11 // pred_region
          %s126 = ssub.s32 16, 16
          %127 = vsyncadd [#allocation3], %s126
          %s129 = sshll.u32 [#allocation2], 4
          %s130 = int_to_ptr.vmem [resolvable:$true] %s129
          %132 = dma.hbm_to_vmem [thread:$0]  %s2, 16, %s130, [#allocation3]
        $region20: #{discriminator_forward.5} parent=11 // pred_fallthru
          _
      $region12: #{discriminator_forward.5} parent=5 // pred_fallthru
        _
      %p133 = scmp.lt.s32.totalorder %s10, 2
      // Predicated region
      $region21: #{discriminator_forward.5} parent=5 // pred_check
        %p134 = pneg %p133
      $region22: #{discriminator_forward.5} parent=5 // pred_check_branch
        %136 = sbr.rel (%p134) target = $region24
      $region23: #{discriminator_forward.5} parent=5 // pred_region
        // Predicated region
        $region25: #{discriminator_forward.5} parent=23 // pred_check
          %p137 = pneg %p30
        $region26: #{discriminator_forward.5} parent=23 // pred_check_branch
          %139 = sbr.rel (%p137) target = $region28
        $region27: #{discriminator_forward.5} parent=23 // pred_region
          %s140 = smul.u32 32, %s10
          %p141 = scmp.lt.s32.totalorder %s140, 63
          %s142 = scalar_select %p141, %s140, 63
          %s143 = smul.addr %s142, 8
          %s144 = scalar_lea.vmem %s0, %s143
          %s145 = smul.u32 32, %s10
        $region28: #{discriminator_forward.5} parent=23 // pred_fallthru
          _
      $region24: #{discriminator_forward.5} parent=5 // pred_fallthru
        _
      %p146 = scmp.le.s32.totalorder 1, %s10
      %p147 = scmp.lt.s32.totalorder %s10, 3
      %p148 = pnand %p146, %p147
      %p149 = pneg %p148
      // Predicated region
      $region29: #{discriminator_forward.5} parent=5 // pred_check
        _
      $region30: #{discriminator_forward.5} parent=5 // pred_check_branch
        %151 = sbr.rel (%p148) target = $region32
      $region31: #{discriminator_forward.5} parent=5 // pred_region
        %s152 = ssub.s32 %s10, 1
        // Predicated region
        $region33: #{discriminator_forward.5} parent=31 // pred_check
          %p153 = pneg %p78
        $region34: #{discriminator_forward.5} parent=31 // pred_check_branch
          %155 = sbr.rel (%p153) target = $region36
        $region35: #{discriminator_forward.5} parent=31 // pred_region
          %156 = dma.done [#allocation3], 16
        $region36: #{discriminator_forward.5} parent=31 // pred_fallthru
          _
        %s157 = smul.u32 32, %s15
        %p158 = scmp.lt.s32.totalorder %s157, 63
        %s159 = scalar_select %p158, %s157, 63
        %s160 = smul.addr %s159, 8
        %s161 = scalar_lea.vmem %s0, %s160
        %p162 = pneg %p36
        %p163 = pneg %p33
        %p164 = pneg %p57
        %p165 = pneg %p54
        %p166 = pneg %p78
        %p167 = pneg %p75
        %p168 = pneg %p104
        %p169 = pneg %p101
        %s170 = smul.u32 32, %s15
        %p171 = scmp.lt.s32.totalorder %s170, 63
        %s172 = scalar_select %p171, %s170, 63
        %s173 = smul.addr %s172, 4
        %s174 = scalar_lea.vmem %s3, %s173
        %s175 = smul.u32 32, %s15
        %p176 = scmp.lt.s32.totalorder %s175, 63
        %s177 = scalar_select %p176, %s175, 63
        %s178 = smul.addr %s177, 8
        %s179 = scalar_lea.vmem %s0, %s178
        %s180 = smul.u32 32, %s15
        %s181 = smul.u32 32, %s15
        %p182 = scmp.lt.s32.totalorder %s181, 63
        %s183 = scalar_select %p182, %s181, 63
        %s184 = smul.addr %s183, 4
        %s185 = scalar_lea.vmem %s3, %s184
        %s186 = smul.u32 32, %s15
        %v188 = vld [vmem:[%s179] sm:$0xff]
        %v189 = vld [vmem:[%s179 + $0x8] sm:$0xff]
        %v190 = vld [vmem:[%s179 + $0x10] sm:$0xff]
        %v191 = vld [vmem:[%s179 + $0x18] sm:$0xff]
        %v192 = vld [vmem:[%s179 + $0x20] sm:$0xff]
        %v193 = vld [vmem:[%s179 + $0x28] sm:$0xff]
        %v194 = vld [vmem:[%s179 + $0x30] sm:$0xff]
        %v195 = vld [vmem:[%s179 + $0x38] sm:$0xff]
        %v196 = vld [vmem:[%s179 + $0x40] sm:$0xff]
        %v197 = vld [vmem:[%s179 + $0x48] sm:$0xff]
        %v198 = vld [vmem:[%s179 + $0x50] sm:$0xff]
        %v199 = vld [vmem:[%s179 + $0x58] sm:$0xff]
        %v200 = vld [vmem:[%s179 + $0x60] sm:$0xff]
        %v201 = vld [vmem:[%s179 + $0x68] sm:$0xff]
        %v202 = vld [vmem:[%s179 + $0x70] sm:$0xff]
        %v203 = vld [vmem:[%s179 + $0x78] sm:$0xff]
        %v204 = vld [vmem:[%s179 + $0x80] sm:$0xff]
        %v205 = vld [vmem:[%s179 + $0x88] sm:$0xff]
        %v206 = vld [vmem:[%s179 + $0x90] sm:$0xff]
        %v207 = vld [vmem:[%s179 + $0x98] sm:$0xff]
        %v208 = vld [vmem:[%s179 + $0xa0] sm:$0xff]
        %v209 = vld [vmem:[%s179 + $0xa8] sm:$0xff]
        %v210 = vld [vmem:[%s179 + $0xb0] sm:$0xff]
        %v211 = vld [vmem:[%s179 + $0xb8] sm:$0xff]
        %v212 = vld [vmem:[%s179 + $0xc0] sm:$0xff]
        %v213 = vld [vmem:[%s179 + $0xc8] sm:$0xff]
        %v214 = vld [vmem:[%s179 + $0xd0] sm:$0xff]
        %v215 = vld [vmem:[%s179 + $0xd8] sm:$0xff]
        %v216 = vld [vmem:[%s179 + $0xe0] sm:$0xff]
        %v217 = vld [vmem:[%s179 + $0xe8] sm:$0xff]
        %v218 = vld [vmem:[%s179 + $0xf0] sm:$0xff]
        %v219 = vld [vmem:[%s179 + $0xf8] sm:$0xff]
        %v220 = vpack.c.bf16 %v189, %v188
        %v221 = vpack.c.bf16 %v191, %v190
        %v222 = vpack.c.bf16 %v193, %v192
        %v223 = vpack.c.bf16 %v195, %v194
        %v224 = vpack.c.bf16 %v197, %v196
        %v225 = vpack.c.bf16 %v199, %v198
        %v226 = vpack.c.bf16 %v201, %v200
        %v227 = vpack.c.bf16 %v203, %v202
        %v228 = vpack.c.bf16 %v205, %v204
        %v229 = vpack.c.bf16 %v207, %v206
        %v230 = vpack.c.bf16 %v209, %v208
        %v231 = vpack.c.bf16 %v211, %v210
        %v232 = vpack.c.bf16 %v213, %v212
        %v233 = vpack.c.bf16 %v215, %v214
        %v234 = vpack.c.bf16 %v217, %v216
        %v235 = vpack.c.bf16 %v219, %v218
        %v236 = vld [vmem:[%s1] sm:$0xf]
        %v237 = vld [vmem:[%s1 + $0x4] sm:$0xf]
        %v238 = vld [vmem:[#allocation2] sm:$0x1]
        %v240 = vlaneseq
        %v241 = vshrl.u32 %v240, 7
        %v242 = vsub.s32 0, %v241
        %v243 = vrot.slane %v238, %v242
        %v247 = vunpack.c.l.b16 %v236
        %v248 = vunpack.c.l.b16 %v237
        %v249 = vpack.c.b16 %v248, %v247
        %vm251 = vcmask 130048
        %v253 = vsel %vm251, %v220, 0
        %v256 = vsel %vm251, %v221, 0
        %v259 = vsel %vm251, %v222, 0
        %v262 = vsel %vm251, %v223, 0
        %v265 = vsel %vm251, %v224, 0
        %v268 = vsel %vm251, %v225, 0
        %v271 = vsel %vm251, %v226, 0
        %v274 = vsel %vm251, %v227, 0
        %v277 = vsel %vm251, %v228, 0
        %v280 = vsel %vm251, %v229, 0
        %v283 = vsel %vm251, %v230, 0
        %v286 = vsel %vm251, %v231, 0
        %v289 = vsel %vm251, %v232, 0
        %v292 = vsel %vm251, %v233, 0
        %v295 = vsel %vm251, %v234, 0
        %v298 = vsel %vm251, %v235, 0
        %300 = vmatprep.subr.bf16.mxu0 0
        %301 = vmatpush1.bf16.msra.mxu0 %v249
        %302 = vmatprep.subr.bf16.mxu0 0
        %303 = vmatpush1.bf16.msra.mxu0 0
        %304 = vmatprep.subr.bf16.mxu0 0
        %305 = vmatpush1.bf16.msra.mxu0 0
        %306 = vmatprep.subr.bf16.mxu0 0
        %307 = vmatpush1.bf16.msra.mxu0 0
        %308 = vmatprep.subr.bf16.mxu0 0
        %309 = vmatpush1.bf16.msra.mxu0 0
        %310 = vmatprep.subr.bf16.mxu0 0
        %311 = vmatpush1.bf16.msra.mxu0 0
        %312 = vmatprep.subr.bf16.mxu0 0
        %313 = vmatpush1.bf16.msra.mxu0 0
        %314 = vmatprep.subr.bf16.mxu0 0
        %315 = vmatpush1.bf16.msra.mxu0 0
        %316 = vmatprep.subr.bf16.mxu0 0
        %317 = vmatpush1.bf16.msra.mxu0 0
        %318 = vmatprep.subr.bf16.mxu0 0
        %319 = vmatpush1.bf16.msra.mxu0 0
        %320 = vmatprep.subr.bf16.mxu0 0
        %321 = vmatpush1.bf16.msra.mxu0 0
        %322 = vmatprep.subr.bf16.mxu0 0
        %323 = vmatpush1.bf16.msra.mxu0 0
        %324 = vmatprep.subr.bf16.mxu0 0
        %325 = vmatpush1.bf16.msra.mxu0 0
        %326 = vmatprep.subr.bf16.mxu0 0
        %327 = vmatpush1.bf16.msra.mxu0 0
        %328 = vmatprep.subr.bf16.mxu0 0
        %329 = vmatpush1.bf16.msra.mxu0 0
        %330 = vmatprep.subr.bf16.mxu0 0
        %331 = vmatpush1.bf16.msra.mxu0 0
        %332 = vmatprep.mubr.bf16.mxu0 0
        %333 = vmatmul.mubr.bf16.gmra.mrb[0].mxu0 %v253
        %v334 = vpop.f32.mrb[0].mxu0
        %v335 = vadd.f32 %v243, %v334
        %v336 = vpop.f32.mrb[0].mxu0
        %v337 = vpop.f32.mrb[0].mxu0
        %v338 = vadd.f32 %v243, %v337
        %v339 = vpop.f32.mrb[0].mxu0
        %340 = vmatprep.mubr.bf16.mxu0 0
        %341 = vmatmul.mubr.bf16.gmra.mrb[0].mxu0 %v256
        %v342 = vpop.f32.mrb[0].mxu0
        %v343 = vadd.f32 %v243, %v342
        %v344 = vpop.f32.mrb[0].mxu0
        %v345 = vpop.f32.mrb[0].mxu0
        %v346 = vadd.f32 %v243, %v345
        %v347 = vpop.f32.mrb[0].mxu0
        %348 = vmatprep.mubr.bf16.mxu0 0
        %349 = vmatmul.mubr.bf16.gmra.mrb[0].mxu0 %v259
        %v350 = vpop.f32.mrb[0].mxu0
        %v351 = vadd.f32 %v243, %v350
        %v352 = vpop.f32.mrb[0].mxu0
        %v353 = vpop.f32.mrb[0].mxu0
        %v354 = vadd.f32 %v243, %v353
        %v355 = vpop.f32.mrb[0].mxu0
        %356 = vmatprep.mubr.bf16.mxu0 0
        %357 = vmatmul.mubr.bf16.gmra.mrb[0].mxu0 %v262
        %v358 = vpop.f32.mrb[0].mxu0
        %v359 = vadd.f32 %v243, %v358
        %v360 = vpop.f32.mrb[0].mxu0
        %v361 = vpop.f32.mrb[0].mxu0
        %v362 = vadd.f32 %v243, %v361
        %v363 = vpop.f32.mrb[0].mxu0
        %364 = vmatprep.mubr.bf16.mxu0 0
        %365 = vmatmul.mubr.bf16.gmra.mrb[0].mxu0 %v265
        %v366 = vpop.f32.mrb[0].mxu0
        %v367 = vadd.f32 %v243, %v366
        %v368 = vpop.f32.mrb[0].mxu0
        %v369 = vpop.f32.mrb[0].mxu0
        %v370 = vadd.f32 %v243, %v369
        %v371 = vpop.f32.mrb[0].mxu0
        %372 = vmatprep.mubr.bf16.mxu0 0
        %373 = vmatmul.mubr.bf16.gmra.mrb[0].mxu0 %v268
        %v374 = vpop.f32.mrb[0].mxu0
        %v375 = vadd.f32 %v243, %v374
        %v376 = vpop.f32.mrb[0].mxu0
        %v377 = vpop.f32.mrb[0].mxu0
        %v378 = vadd.f32 %v243, %v377
        %v379 = vpop.f32.mrb[0].mxu0
        %380 = vmatprep.mubr.bf16.mxu0 0
        %381 = vmatmul.mubr.bf16.gmra.mrb[0].mxu0 %v271
        %v382 = vpop.f32.mrb[0].mxu0
        %v383 = vadd.f32 %v243, %v382
        %v384 = vpop.f32.mrb[0].mxu0
        %v385 = vpop.f32.mrb[0].mxu0
        %v386 = vadd.f32 %v243, %v385
        %v387 = vpop.f32.mrb[0].mxu0
        %388 = vmatprep.mubr.bf16.mxu0 0
        %389 = vmatmul.mubr.bf16.gmra.mrb[0].mxu0 %v274
        %v390 = vpop.f32.mrb[0].mxu0
        %v391 = vadd.f32 %v243, %v390
        %v392 = vpop.f32.mrb[0].mxu0
        %v393 = vpop.f32.mrb[0].mxu0
        %v394 = vadd.f32 %v243, %v393
        %v395 = vpop.f32.mrb[0].mxu0
        %396 = vmatprep.mubr.bf16.mxu0 0
        %397 = vmatmul.mubr.bf16.gmra.mrb[0].mxu0 %v277
        %v398 = vpop.f32.mrb[0].mxu0
        %v399 = vadd.f32 %v243, %v398
        %v400 = vpop.f32.mrb[0].mxu0
        %v401 = vpop.f32.mrb[0].mxu0
        %v402 = vadd.f32 %v243, %v401
        %v403 = vpop.f32.mrb[0].mxu0
        %404 = vmatprep.mubr.bf16.mxu0 0
        %405 = vmatmul.mubr.bf16.gmra.mrb[0].mxu0 %v280
        %v406 = vpop.f32.mrb[0].mxu0
        %v407 = vadd.f32 %v243, %v406
        %v408 = vpop.f32.mrb[0].mxu0
        %v409 = vpop.f32.mrb[0].mxu0
        %v410 = vadd.f32 %v243, %v409
        %v411 = vpop.f32.mrb[0].mxu0
        %412 = vmatprep.mubr.bf16.mxu0 0
        %413 = vmatmul.mubr.bf16.gmra.mrb[0].mxu0 %v283
        %v414 = vpop.f32.mrb[0].mxu0
        %v415 = vadd.f32 %v243, %v414
        %v416 = vpop.f32.mrb[0].mxu0
        %v417 = vpop.f32.mrb[0].mxu0
        %v418 = vadd.f32 %v243, %v417
        %v419 = vpop.f32.mrb[0].mxu0
        %420 = vmatprep.mubr.bf16.mxu0 0
        %421 = vmatmul.mubr.bf16.gmra.mrb[0].mxu0 %v286
        %v422 = vpop.f32.mrb[0].mxu0
        %v423 = vadd.f32 %v243, %v422
        %v424 = vpop.f32.mrb[0].mxu0
        %v425 = vpop.f32.mrb[0].mxu0
        %v426 = vadd.f32 %v243, %v425
        %v427 = vpop.f32.mrb[0].mxu0
        %428 = vmatprep.mubr.bf16.mxu0 0
        %429 = vmatmul.mubr.bf16.gmra.mrb[0].mxu0 %v289
        %v430 = vpop.f32.mrb[0].mxu0
        %v431 = vadd.f32 %v243, %v430
        %v432 = vpop.f32.mrb[0].mxu0
        %v433 = vpop.f32.mrb[0].mxu0
        %v434 = vadd.f32 %v243, %v433
        %v435 = vpop.f32.mrb[0].mxu0
        %436 = vmatprep.mubr.bf16.mxu0 0
        %437 = vmatmul.mubr.bf16.gmra.mrb[0].mxu0 %v292
        %v438 = vpop.f32.mrb[0].mxu0
        %v439 = vadd.f32 %v243, %v438
        %v440 = vpop.f32.mrb[0].mxu0
        %v441 = vpop.f32.mrb[0].mxu0
        %v442 = vadd.f32 %v243, %v441
        %v443 = vpop.f32.mrb[0].mxu0
        %444 = vmatprep.mubr.bf16.mxu0 0
        %445 = vmatmul.mubr.bf16.gmra.mrb[0].mxu0 %v295
        %v446 = vpop.f32.mrb[0].mxu0
        %v447 = vadd.f32 %v243, %v446
        %v448 = vpop.f32.mrb[0].mxu0
        %v449 = vpop.f32.mrb[0].mxu0
        %v450 = vadd.f32 %v243, %v449
        %v451 = vpop.f32.mrb[0].mxu0
        %452 = vmatprep.mubr.bf16.mxu0 0
        %453 = vmatmul.mubr.bf16.gmra.mrb[0].mxu0 %v298
        %v454 = vpop.f32.mrb[0].mxu0
        %v455 = vadd.f32 %v243, %v454
        %v456 = vpop.f32.mrb[0].mxu0
        %v457 = vpop.f32.mrb[0].mxu0
        %v458 = vadd.f32 %v243, %v457
        %v459 = vpop.f32.mrb[0].mxu0
        %460 = vdwg.mxu0
        %vm461 = vcmp.gt.f32.partialorder %v335, 0.0
        %vm462 = vcmp.gt.f32.partialorder %v338, 0.0
        %vm463 = vcmp.gt.f32.partialorder %v343, 0.0
        %vm464 = vcmp.gt.f32.partialorder %v346, 0.0
        %vm465 = vcmp.gt.f32.partialorder %v351, 0.0
        %vm466 = vcmp.gt.f32.partialorder %v354, 0.0
        %vm467 = vcmp.gt.f32.partialorder %v359, 0.0
        %vm468 = vcmp.gt.f32.partialorder %v362, 0.0
        %vm469 = vcmp.gt.f32.partialorder %v367, 0.0
        %vm470 = vcmp.gt.f32.partialorder %v370, 0.0
        %vm471 = vcmp.gt.f32.partialorder %v375, 0.0
        %vm472 = vcmp.gt.f32.partialorder %v378, 0.0
        %vm473 = vcmp.gt.f32.partialorder %v383, 0.0
        %vm474 = vcmp.gt.f32.partialorder %v386, 0.0
        %vm475 = vcmp.gt.f32.partialorder %v391, 0.0
        %vm476 = vcmp.gt.f32.partialorder %v394, 0.0
        %vm477 = vcmp.gt.f32.partialorder %v399, 0.0
        %vm478 = vcmp.gt.f32.partialorder %v402, 0.0
        %vm479 = vcmp.gt.f32.partialorder %v407, 0.0
        %vm480 = vcmp.gt.f32.partialorder %v410, 0.0
        %vm481 = vcmp.gt.f32.partialorder %v415, 0.0
        %vm482 = vcmp.gt.f32.partialorder %v418, 0.0
        %vm483 = vcmp.gt.f32.partialorder %v423, 0.0
        %vm484 = vcmp.gt.f32.partialorder %v426, 0.0
        %vm485 = vcmp.gt.f32.partialorder %v431, 0.0
        %vm486 = vcmp.gt.f32.partialorder %v434, 0.0
        %vm487 = vcmp.gt.f32.partialorder %v439, 0.0
        %vm488 = vcmp.gt.f32.partialorder %v442, 0.0
        %vm489 = vcmp.gt.f32.partialorder %v447, 0.0
        %vm490 = vcmp.gt.f32.partialorder %v450, 0.0
        %vm491 = vcmp.gt.f32.partialorder %v455, 0.0
        %vm492 = vcmp.gt.f32.partialorder %v458, 0.0
        %v493 = vmul.f32 %v335, 0.2
        %v494 = vmul.f32 %v338, 0.2
        %v495 = vmul.f32 %v343, 0.2
        %v496 = vmul.f32 %v346, 0.2
        %v497 = vmul.f32 %v351, 0.2
        %v498 = vmul.f32 %v354, 0.2
        %v499 = vmul.f32 %v359, 0.2
        %v500 = vmul.f32 %v362, 0.2
        %v501 = vmul.f32 %v367, 0.2
        %v502 = vmul.f32 %v370, 0.2
        %v503 = vmul.f32 %v375, 0.2
        %v504 = vmul.f32 %v378, 0.2
        %v505 = vmul.f32 %v383, 0.2
        %v506 = vmul.f32 %v386, 0.2
        %v507 = vmul.f32 %v391, 0.2
        %v508 = vmul.f32 %v394, 0.2
        %v509 = vmul.f32 %v399, 0.2
        %v510 = vmul.f32 %v402, 0.2
        %v511 = vmul.f32 %v407, 0.2
        %v512 = vmul.f32 %v410, 0.2
        %v513 = vmul.f32 %v415, 0.2
        %v514 = vmul.f32 %v418, 0.2
        %v515 = vmul.f32 %v423, 0.2
        %v516 = vmul.f32 %v426, 0.2
        %v517 = vmul.f32 %v431, 0.2
        %v518 = vmul.f32 %v434, 0.2
        %v519 = vmul.f32 %v439, 0.2
        %v520 = vmul.f32 %v442, 0.2
        %v521 = vmul.f32 %v447, 0.2
        %v522 = vmul.f32 %v450, 0.2
        %v523 = vmul.f32 %v455, 0.2
        %v524 = vmul.f32 %v458, 0.2
        %v525 = vsel %vm461, %v335, %v493
        %v526 = vsel %vm462, %v338, %v494
        %v527 = vsel %vm463, %v343, %v495
        %v528 = vsel %vm464, %v346, %v496
        %v529 = vsel %vm465, %v351, %v497
        %v530 = vsel %vm466, %v354, %v498
        %v531 = vsel %vm467, %v359, %v499
        %v532 = vsel %vm468, %v362, %v500
        %v533 = vsel %vm469, %v367, %v501
        %v534 = vsel %vm470, %v370, %v502
        %v535 = vsel %vm471, %v375, %v503
        %v536 = vsel %vm472, %v378, %v504
        %v537 = vsel %vm473, %v383, %v505
        %v538 = vsel %vm474, %v386, %v506
        %v539 = vsel %vm475, %v391, %v507
        %v540 = vsel %vm476, %v394, %v508
        %v541 = vsel %vm477, %v399, %v509
        %v542 = vsel %vm478, %v402, %v510
        %v543 = vsel %vm479, %v407, %v511
        %v544 = vsel %vm480, %v410, %v512
        %v545 = vsel %vm481, %v415, %v513
        %v546 = vsel %vm482, %v418, %v514
        %v547 = vsel %vm483, %v423, %v515
        %v548 = vsel %vm484, %v426, %v516
        %v549 = vsel %vm485, %v431, %v517
        %v550 = vsel %vm486, %v434, %v518
        %v551 = vsel %vm487, %v439, %v519
        %v552 = vsel %vm488, %v442, %v520
        %v553 = vsel %vm489, %v447, %v521
        %v554 = vsel %vm490, %v450, %v522
        %v555 = vsel %vm491, %v455, %v523
        %v556 = vsel %vm492, %v458, %v524
        %v557 = vpack.c.bf16 %v526, %v525
        %v558 = vpack.c.bf16 %v528, %v527
        %v559 = vpack.c.bf16 %v530, %v529
        %v560 = vpack.c.bf16 %v532, %v531
        %v561 = vpack.c.bf16 %v534, %v533
        %v562 = vpack.c.bf16 %v536, %v535
        %v563 = vpack.c.bf16 %v538, %v537
        %v564 = vpack.c.bf16 %v540, %v539
        %v565 = vpack.c.bf16 %v542, %v541
        %v566 = vpack.c.bf16 %v544, %v543
        %v567 = vpack.c.bf16 %v546, %v545
        %v568 = vpack.c.bf16 %v548, %v547
        %v569 = vpack.c.bf16 %v550, %v549
        %v570 = vpack.c.bf16 %v552, %v551
        %v571 = vpack.c.bf16 %v554, %v553
        %v572 = vpack.c.bf16 %v556, %v555
        %v589 = vunpack.c.l.b16 %v557
        %v590 = vunpack.c.h.b16 %v557
        %v591 = vunpack.c.l.b16 %v558
        %v592 = vunpack.c.h.b16 %v558
        %v593 = vunpack.c.l.b16 %v559
        %v594 = vunpack.c.h.b16 %v559
        %v595 = vunpack.c.l.b16 %v560
        %v596 = vunpack.c.h.b16 %v560
        %v597 = vunpack.c.l.b16 %v561
        %v598 = vunpack.c.h.b16 %v561
        %v599 = vunpack.c.l.b16 %v562
        %v600 = vunpack.c.h.b16 %v562
        %v601 = vunpack.c.l.b16 %v563
        %v602 = vunpack.c.h.b16 %v563
        %v603 = vunpack.c.l.b16 %v564
        %v604 = vunpack.c.h.b16 %v564
        %v605 = vunpack.c.l.b16 %v565
        %v606 = vunpack.c.h.b16 %v565
        %v607 = vunpack.c.l.b16 %v566
        %v608 = vunpack.c.h.b16 %v566
        %v609 = vunpack.c.l.b16 %v567
        %v610 = vunpack.c.h.b16 %v567
        %v611 = vunpack.c.l.b16 %v568
        %v612 = vunpack.c.h.b16 %v568
        %v613 = vunpack.c.l.b16 %v569
        %v614 = vunpack.c.h.b16 %v569
        %v615 = vunpack.c.l.b16 %v570
        %v616 = vunpack.c.h.b16 %v570
        %v617 = vunpack.c.l.b16 %v571
        %v618 = vunpack.c.h.b16 %v571
        %v619 = vunpack.c.l.b16 %v572
        %v620 = vunpack.c.h.b16 %v572
        %v621 = vpack.c.b16 %v589, %v589
        %v622 = vpack.c.b16 %v590, %v590
        %v623 = vpack.c.b16 %v591, %v591
        %v624 = vpack.c.b16 %v592, %v592
        %v625 = vpack.c.b16 %v593, %v593
        %v626 = vpack.c.b16 %v594, %v594
        %v627 = vpack.c.b16 %v595, %v595
        %v628 = vpack.c.b16 %v596, %v596
        %v629 = vpack.c.b16 %v597, %v597
        %v630 = vpack.c.b16 %v598, %v598
        %v631 = vpack.c.b16 %v599, %v599
        %v632 = vpack.c.b16 %v600, %v600
        %v633 = vpack.c.b16 %v601, %v601
        %v634 = vpack.c.b16 %v602, %v602
        %v635 = vpack.c.b16 %v603, %v603
        %v636 = vpack.c.b16 %v604, %v604
        %v637 = vpack.c.b16 %v605, %v605
        %v638 = vpack.c.b16 %v606, %v606
        %v639 = vpack.c.b16 %v607, %v607
        %v640 = vpack.c.b16 %v608, %v608
        %v641 = vpack.c.b16 %v609, %v609
        %v642 = vpack.c.b16 %v610, %v610
        %v643 = vpack.c.b16 %v611, %v611
        %v644 = vpack.c.b16 %v612, %v612
        %v645 = vpack.c.b16 %v613, %v613
        %v646 = vpack.c.b16 %v614, %v614
        %v647 = vpack.c.b16 %v615, %v615
        %v648 = vpack.c.b16 %v616, %v616
        %v649 = vpack.c.b16 %v617, %v617
        %v650 = vpack.c.b16 %v618, %v618
        %v651 = vpack.c.b16 %v619, %v619
        %v652 = vpack.c.b16 %v620, %v620
        %vm685 = vcmask 519168
        %686 = vst.msk [vmem:[%s185] sm:$0xf] %vm685, %v621
        %687 = vst.msk [vmem:[%s185 + $0x4] sm:$0xf] %vm685, %v622
        %688 = vst.msk [vmem:[%s185 + $0x8] sm:$0xf] %vm685, %v623
        %689 = vst.msk [vmem:[%s185 + $0xc] sm:$0xf] %vm685, %v624
        %690 = vst.msk [vmem:[%s185 + $0x10] sm:$0xf] %vm685, %v625
        %691 = vst.msk [vmem:[%s185 + $0x14] sm:$0xf] %vm685, %v626
        %692 = vst.msk [vmem:[%s185 + $0x18] sm:$0xf] %vm685, %v627
        %693 = vst.msk [vmem:[%s185 + $0x1c] sm:$0xf] %vm685, %v628
        %694 = vst.msk [vmem:[%s185 + $0x20] sm:$0xf] %vm685, %v629
        %695 = vst.msk [vmem:[%s185 + $0x24] sm:$0xf] %vm685, %v630
        %696 = vst.msk [vmem:[%s185 + $0x28] sm:$0xf] %vm685, %v631
        %697 = vst.msk [vmem:[%s185 + $0x2c] sm:$0xf] %vm685, %v632
        %698 = vst.msk [vmem:[%s185 + $0x30] sm:$0xf] %vm685, %v633
        %699 = vst.msk [vmem:[%s185 + $0x34] sm:$0xf] %vm685, %v634
        %700 = vst.msk [vmem:[%s185 + $0x38] sm:$0xf] %vm685, %v635
        %701 = vst.msk [vmem:[%s185 + $0x3c] sm:$0xf] %vm685, %v636
        %702 = vst.msk [vmem:[%s185 + $0x40] sm:$0xf] %vm685, %v637
        %703 = vst.msk [vmem:[%s185 + $0x44] sm:$0xf] %vm685, %v638
        %704 = vst.msk [vmem:[%s185 + $0x48] sm:$0xf] %vm685, %v639
        %705 = vst.msk [vmem:[%s185 + $0x4c] sm:$0xf] %vm685, %v640
        %706 = vst.msk [vmem:[%s185 + $0x50] sm:$0xf] %vm685, %v641
        %707 = vst.msk [vmem:[%s185 + $0x54] sm:$0xf] %vm685, %v642
        %708 = vst.msk [vmem:[%s185 + $0x58] sm:$0xf] %vm685, %v643
        %709 = vst.msk [vmem:[%s185 + $0x5c] sm:$0xf] %vm685, %v644
        %710 = vst.msk [vmem:[%s185 + $0x60] sm:$0xf] %vm685, %v645
        %711 = vst.msk [vmem:[%s185 + $0x64] sm:$0xf] %vm685, %v646
        %712 = vst.msk [vmem:[%s185 + $0x68] sm:$0xf] %vm685, %v647
        %713 = vst.msk [vmem:[%s185 + $0x6c] sm:$0xf] %vm685, %v648
        %714 = vst.msk [vmem:[%s185 + $0x70] sm:$0xf] %vm685, %v649
        %715 = vst.msk [vmem:[%s185 + $0x74] sm:$0xf] %vm685, %v650
        %716 = vst.msk [vmem:[%s185 + $0x78] sm:$0xf] %vm685, %v651
        %717 = vst.msk [vmem:[%s185 + $0x7c] sm:$0xf] %vm685, %v652
        %s718 = smul.u32 32, %s15
        %p719 = scmp.lt.s32.totalorder %s718, 63
        %s720 = scalar_select %p719, %s718, 63
        %s721 = smul.addr %s720, 4
        %s722 = scalar_lea.vmem %s3, %s721
        // Predicated region
        $region37: #{discriminator_forward.5} parent=31 // pred_check
          %p723 = pneg %p101
        $region38: #{discriminator_forward.5} parent=31 // pred_check_branch
          %725 = sbr.rel (%p723) target = $region40
        $region39: #{discriminator_forward.5} parent=31 // pred_region
          %s726 = smul.u32 32, %s15
        $region40: #{discriminator_forward.5} parent=31 // pred_fallthru
          _
      $region32: #{discriminator_forward.5} parent=5 // pred_fallthru
        _
      %p727 = scmp.le.s32.totalorder 2, %s10
      // Predicated region
      $region41: #{discriminator_forward.5} parent=5 // pred_check
        %p728 = pneg %p727
      $region42: #{discriminator_forward.5} parent=5 // pred_check_branch
        %730 = sbr.rel (%p728) target = $region44
      $region43: #{discriminator_forward.5} parent=5 // pred_region
        %s731 = ssub.s32 %s10, 2
        // Predicated region
        $region45: #{discriminator_forward.5} parent=43 // pred_check
          %p732 = pneg %p107
        $region46: #{discriminator_forward.5} parent=43 // pred_check_branch
          %734 = sbr.rel (%p732) target = $region48
        $region47: #{discriminator_forward.5} parent=43 // pred_region
          %s735 = smul.u32 32, %s16
          %p736 = scmp.lt.s32.totalorder %s735, 63
          %s737 = scalar_select %p736, %s735, 63
          %s738 = smul.addr %s737, 4
          %s739 = scalar_lea.vmem %s3, %s738
        $region48: #{discriminator_forward.5} parent=43 // pred_fallthru
          _
      $region44: #{discriminator_forward.5} parent=5 // pred_fallthru
        _
    $region6: #{discriminator_forward.5} parent=1 // loop_footer
      %s14 = sadd.s32 1, %s10
    $region7: #{discriminator_forward.5} parent=1 // loop_footer_branch
      %9 = sbr.rel target = $region3
    $region8: #{discriminator_forward.5} parent=1 // loop_exit
      _
    %740 = vsyncpa [#allocation3], 1
    %s741 = scalar_lea.sflag [#allocation3], 1
    %742 = vsyncpa %s741, 1

// kernel: discriminator_forward.6
$region0: #{discriminator_forward.6}
  #allocation0 [shape = 'u32[]', space=smem, size = 0x4, offset = 0x4, fixed_abs, tag = 'smem constant byte address 0x4 - core index']
  #allocation1 [shape = 'u32[144,128]{1,0:T(1,128)}', space=vmem, size = 0x12000, scoped, tag = 'internal scratch']
  %s0 = inlined_call_operand.vmem [shape: bf16[128,1024], index: 0, kind: input, shape index: {}]
  %s1 = inlined_call_operand.vmem [shape: bf16[1024,128], index: 1, kind: input, shape index: {}]
  %s2 = inlined_call_operand.vmem [shape: f32[1,128], index: 2, kind: input, shape index: {}]
  %s3 = inlined_call_operand.vmem [shape: f32[1,128], index: 3, kind: input, shape index: {}]
  %s4 = inlined_call_operand.vmem [shape: f32[1,128], index: 4, kind: input, shape index: {}]
  %s5 = inlined_call_operand.vmem [shape: bf16[128,128], index: 5, kind: output, shape index: {}]
  %s6 = sld [smem:[#allocation0]]
  $region30: #{discriminator_forward.6} parent=0
    _
  %s8 = ssub.s32 1, %s6
  %s9 = scalar_select 0, %s8, %s6
  // Predicated region
  $region2: #{discriminator_forward.6} parent=0 // pred_check
    _
  $region3: #{discriminator_forward.6} parent=0 // pred_check_branch
    %11 = sbr.rel (0) target = $region5
  $region4: #{discriminator_forward.6} parent=0 // pred_region
    _
  $region5: #{discriminator_forward.6} parent=0 // pred_fallthru
    _
  // Predicated region
  $region6: #{discriminator_forward.6} parent=0 // pred_check
    _
  $region7: #{discriminator_forward.6} parent=0 // pred_check_branch
    %13 = sbr.rel (0) target = $region9
  $region8: #{discriminator_forward.6} parent=0 // pred_region
    _
  $region9: #{discriminator_forward.6} parent=0 // pred_fallthru
    _
  // Predicated region
  $region10: #{discriminator_forward.6} parent=0 // pred_check
    _
  $region11: #{discriminator_forward.6} parent=0 // pred_check_branch
    %15 = sbr.rel (0) target = $region13
  $region12: #{discriminator_forward.6} parent=0 // pred_region
    _
  $region13: #{discriminator_forward.6} parent=0 // pred_fallthru
    _
  // Predicated region
  $region14: #{discriminator_forward.6} parent=0 // pred_check
    _
  $region15: #{discriminator_forward.6} parent=0 // pred_check_branch
    %17 = sbr.rel (0) target = $region17
  $region16: #{discriminator_forward.6} parent=0 // pred_region
    _
  $region17: #{discriminator_forward.6} parent=0 // pred_fallthru
    _
  // Predicated region
  $region18: #{discriminator_forward.6} parent=0 // pred_check
    _
  $region19: #{discriminator_forward.6} parent=0 // pred_check_branch
    %19 = sbr.rel (0) target = $region21
  $region20: #{discriminator_forward.6} parent=0 // pred_region
    _
  $region21: #{discriminator_forward.6} parent=0 // pred_fallthru
    _
  %v21 = vld [vmem:[%s0] sm:$0xff]
  %v22 = vld [vmem:[%s0 + $0x8] sm:$0xff]
  %v23 = vld [vmem:[%s0 + $0x10] sm:$0xff]
  %v24 = vld [vmem:[%s0 + $0x18] sm:$0xff]
  %v25 = vld [vmem:[%s0 + $0x20] sm:$0xff]
  %v26 = vld [vmem:[%s0 + $0x28] sm:$0xff]
  %v27 = vld [vmem:[%s0 + $0x30] sm:$0xff]
  %v28 = vld [vmem:[%s0 + $0x38] sm:$0xff]
  %v29 = vld [vmem:[%s0 + $0x40] sm:$0xff]
  %v30 = vld [vmem:[%s0 + $0x48] sm:$0xff]
  %v31 = vld [vmem:[%s0 + $0x50] sm:$0xff]
  %v32 = vld [vmem:[%s0 + $0x58] sm:$0xff]
  %v33 = vld [vmem:[%s0 + $0x60] sm:$0xff]
  %v34 = vld [vmem:[%s0 + $0x68] sm:$0xff]
  %v35 = vld [vmem:[%s0 + $0x70] sm:$0xff]
  %v36 = vld [vmem:[%s0 + $0x78] sm:$0xff]
  %v37 = vld [vmem:[%s0 + $0x80] sm:$0xff]
  %v38 = vld [vmem:[%s0 + $0x88] sm:$0xff]
  %v39 = vld [vmem:[%s0 + $0x90] sm:$0xff]
  %v40 = vld [vmem:[%s0 + $0x98] sm:$0xff]
  %v41 = vld [vmem:[%s0 + $0xa0] sm:$0xff]
  %v42 = vld [vmem:[%s0 + $0xa8] sm:$0xff]
  %v43 = vld [vmem:[%s0 + $0xb0] sm:$0xff]
  %v44 = vld [vmem:[%s0 + $0xb8] sm:$0xff]
  %v45 = vld [vmem:[%s0 + $0xc0] sm:$0xff]
  %v46 = vld [vmem:[%s0 + $0xc8] sm:$0xff]
  %v47 = vld [vmem:[%s0 + $0xd0] sm:$0xff]
  %v48 = vld [vmem:[%s0 + $0xd8] sm:$0xff]
  %v49 = vld [vmem:[%s0 + $0xe0] sm:$0xff]
  %v50 = vld [vmem:[%s0 + $0xe8] sm:$0xff]
  %v51 = vld [vmem:[%s0 + $0xf0] sm:$0xff]
  %v52 = vld [vmem:[%s0 + $0xf8] sm:$0xff]
  %v53 = vld [vmem:[%s0 + $0x100] sm:$0xff]
  %v54 = vld [vmem:[%s0 + $0x108] sm:$0xff]
  %v55 = vld [vmem:[%s0 + $0x110] sm:$0xff]
  %v56 = vld [vmem:[%s0 + $0x118] sm:$0xff]
  %v57 = vld [vmem:[%s0 + $0x120] sm:$0xff]
  %v58 = vld [vmem:[%s0 + $0x128] sm:$0xff]
  %v59 = vld [vmem:[%s0 + $0x130] sm:$0xff]
  %v60 = vld [vmem:[%s0 + $0x138] sm:$0xff]
  %v61 = vld [vmem:[%s0 + $0x140] sm:$0xff]
  %v62 = vld [vmem:[%s0 + $0x148] sm:$0xff]
  %v63 = vld [vmem:[%s0 + $0x150] sm:$0xff]
  %v64 = vld [vmem:[%s0 + $0x158] sm:$0xff]
  %v65 = vld [vmem:[%s0 + $0x160] sm:$0xff]
  %v66 = vld [vmem:[%s0 + $0x168] sm:$0xff]
  %v67 = vld [vmem:[%s0 + $0x170] sm:$0xff]
  %v68 = vld [vmem:[%s0 + $0x178] sm:$0xff]
  %v69 = vld [vmem:[%s0 + $0x180] sm:$0xff]
  %v70 = vld [vmem:[%s0 + $0x188] sm:$0xff]
  %v71 = vld [vmem:[%s0 + $0x190] sm:$0xff]
  %v72 = vld [vmem:[%s0 + $0x198] sm:$0xff]
  %v73 = vld [vmem:[%s0 + $0x1a0] sm:$0xff]
  %v74 = vld [vmem:[%s0 + $0x1a8] sm:$0xff]
  %v75 = vld [vmem:[%s0 + $0x1b0] sm:$0xff]
  %v76 = vld [vmem:[%s0 + $0x1b8] sm:$0xff]
  %v77 = vld [vmem:[%s0 + $0x1c0] sm:$0xff]
  %v78 = vld [vmem:[%s0 + $0x1c8] sm:$0xff]
  %v79 = vld [vmem:[%s0 + $0x1d0] sm:$0xff]
  %v80 = vld [vmem:[%s0 + $0x1d8] sm:$0xff]
  %v81 = vld [vmem:[%s0 + $0x1e0] sm:$0xff]
  %v82 = vld [vmem:[%s0 + $0x1e8] sm:$0xff]
  %v83 = vld [vmem:[%s0 + $0x1f0] sm:$0xff]
  %v84 = vld [vmem:[%s0 + $0x1f8] sm:$0xff]
  %v85 = vld [vmem:[%s1] sm:$0xf]
  %v86 = vld [vmem:[%s1 + $0x4] sm:$0xf]
  %v87 = vld [vmem:[%s1 + $0x8] sm:$0xf]
  %v88 = vld [vmem:[%s1 + $0xc] sm:$0xf]
  %v89 = vld [vmem:[%s1 + $0x10] sm:$0xf]
  %v90 = vld [vmem:[%s1 + $0x14] sm:$0xf]
  %v91 = vld [vmem:[%s1 + $0x18] sm:$0xf]
  %v92 = vld [vmem:[%s1 + $0x1c] sm:$0xf]
  %v93 = vld [vmem:[%s1 + $0x20] sm:$0xf]
  %v94 = vld [vmem:[%s1 + $0x24] sm:$0xf]
  %v95 = vld [vmem:[%s1 + $0x28] sm:$0xf]
  %v96 = vld [vmem:[%s1 + $0x2c] sm:$0xf]
  %v97 = vld [vmem:[%s1 + $0x30] sm:$0xf]
  %v98 = vld [vmem:[%s1 + $0x34] sm:$0xf]
  %v99 = vld [vmem:[%s1 + $0x38] sm:$0xf]
  %v100 = vld [vmem:[%s1 + $0x3c] sm:$0xf]
  %v101 = vld [vmem:[%s1 + $0x40] sm:$0xf]
  %v102 = vld [vmem:[%s1 + $0x44] sm:$0xf]
  %v103 = vld [vmem:[%s1 + $0x48] sm:$0xf]
  %v104 = vld [vmem:[%s1 + $0x4c] sm:$0xf]
  %v105 = vld [vmem:[%s1 + $0x50] sm:$0xf]
  %v106 = vld [vmem:[%s1 + $0x54] sm:$0xf]
  %v107 = vld [vmem:[%s1 + $0x58] sm:$0xf]
  %v108 = vld [vmem:[%s1 + $0x5c] sm:$0xf]
  %v109 = vld [vmem:[%s1 + $0x60] sm:$0xf]
  %v110 = vld [vmem:[%s1 + $0x64] sm:$0xf]
  %v111 = vld [vmem:[%s1 + $0x68] sm:$0xf]
  %v112 = vld [vmem:[%s1 + $0x6c] sm:$0xf]
  %v113 = vld [vmem:[%s1 + $0x70] sm:$0xf]
  %v114 = vld [vmem:[%s1 + $0x74] sm:$0xf]
  %v115 = vld [vmem:[%s1 + $0x78] sm:$0xf]
  %v116 = vld [vmem:[%s1 + $0x7c] sm:$0xf]
  %v117 = vld [vmem:[%s1 + $0x80] sm:$0xf]
  %v118 = vld [vmem:[%s1 + $0x84] sm:$0xf]
  %v119 = vld [vmem:[%s1 + $0x88] sm:$0xf]
  %v120 = vld [vmem:[%s1 + $0x8c] sm:$0xf]
  %v121 = vld [vmem:[%s1 + $0x90] sm:$0xf]
  %v122 = vld [vmem:[%s1 + $0x94] sm:$0xf]
  %v123 = vld [vmem:[%s1 + $0x98] sm:$0xf]
  %v124 = vld [vmem:[%s1 + $0x9c] sm:$0xf]
  %v125 = vld [vmem:[%s1 + $0xa0] sm:$0xf]
  %v126 = vld [vmem:[%s1 + $0xa4] sm:$0xf]
  %v127 = vld [vmem:[%s1 + $0xa8] sm:$0xf]
  %v128 = vld [vmem:[%s1 + $0xac] sm:$0xf]
  %v129 = vld [vmem:[%s1 + $0xb0] sm:$0xf]
  %v130 = vld [vmem:[%s1 + $0xb4] sm:$0xf]
  %v131 = vld [vmem:[%s1 + $0xb8] sm:$0xf]
  %v132 = vld [vmem:[%s1 + $0xbc] sm:$0xf]
  %v133 = vld [vmem:[%s1 + $0xc0] sm:$0xf]
  %v134 = vld [vmem:[%s1 + $0xc4] sm:$0xf]
  %v135 = vld [vmem:[%s1 + $0xc8] sm:$0xf]
  %v136 = vld [vmem:[%s1 + $0xcc] sm:$0xf]
  %v137 = vld [vmem:[%s1 + $0xd0] sm:$0xf]
  %v138 = vld [vmem:[%s1 + $0xd4] sm:$0xf]
  %v139 = vld [vmem:[%s1 + $0xd8] sm:$0xf]
  %v140 = vld [vmem:[%s1 + $0xdc] sm:$0xf]
  %v141 = vld [vmem:[%s1 + $0xe0] sm:$0xf]
  %v142 = vld [vmem:[%s1 + $0xe4] sm:$0xf]
  %v143 = vld [vmem:[%s1 + $0xe8] sm:$0xf]
  %v144 = vld [vmem:[%s1 + $0xec] sm:$0xf]
  %v145 = vld [vmem:[%s1 + $0xf0] sm:$0xf]
  %v146 = vld [vmem:[%s1 + $0xf4] sm:$0xf]
  %v147 = vld [vmem:[%s1 + $0xf8] sm:$0xf]
  %v148 = vld [vmem:[%s1 + $0xfc] sm:$0xf]
  %v149 = vld [vmem:[%s1 + $0x100] sm:$0xf]
  %v150 = vld [vmem:[%s1 + $0x104] sm:$0xf]
  %v151 = vld [vmem:[%s1 + $0x108] sm:$0xf]
  %v152 = vld [vmem:[%s1 + $0x10c] sm:$0xf]
  %v153 = vld [vmem:[%s1 + $0x110] sm:$0xf]
  %v154 = vld [vmem:[%s1 + $0x114] sm:$0xf]
  %v155 = vld [vmem:[%s1 + $0x118] sm:$0xf]
  %v156 = vld [vmem:[%s1 + $0x11c] sm:$0xf]
  %v157 = vld [vmem:[%s1 + $0x120] sm:$0xf]
  %v158 = vld [vmem:[%s1 + $0x124] sm:$0xf]
  %v159 = vld [vmem:[%s1 + $0x128] sm:$0xf]
  %v160 = vld [vmem:[%s1 + $0x12c] sm:$0xf]
  %v161 = vld [vmem:[%s1 + $0x130] sm:$0xf]
  %v162 = vld [vmem:[%s1 + $0x134] sm:$0xf]
  %v163 = vld [vmem:[%s1 + $0x138] sm:$0xf]
  %v164 = vld [vmem:[%s1 + $0x13c] sm:$0xf]
  %v165 = vld [vmem:[%s1 + $0x140] sm:$0xf]
  %v166 = vld [vmem:[%s1 + $0x144] sm:$0xf]
  %v167 = vld [vmem:[%s1 + $0x148] sm:$0xf]
  %v168 = vld [vmem:[%s1 + $0x14c] sm:$0xf]
  %v169 = vld [vmem:[%s1 + $0x150] sm:$0xf]
  %v170 = vld [vmem:[%s1 + $0x154] sm:$0xf]
  %v171 = vld [vmem:[%s1 + $0x158] sm:$0xf]
  %v172 = vld [vmem:[%s1 + $0x15c] sm:$0xf]
  %v173 = vld [vmem:[%s1 + $0x160] sm:$0xf]
  %v174 = vld [vmem:[%s1 + $0x164] sm:$0xf]
  %v175 = vld [vmem:[%s1 + $0x168] sm:$0xf]
  %v176 = vld [vmem:[%s1 + $0x16c] sm:$0xf]
  %v177 = vld [vmem:[%s1 + $0x170] sm:$0xf]
  %v178 = vld [vmem:[%s1 + $0x174] sm:$0xf]
  %v179 = vld [vmem:[%s1 + $0x178] sm:$0xf]
  %v180 = vld [vmem:[%s1 + $0x17c] sm:$0xf]
  %v181 = vld [vmem:[%s1 + $0x180] sm:$0xf]
  %v182 = vld [vmem:[%s1 + $0x184] sm:$0xf]
  %v183 = vld [vmem:[%s1 + $0x188] sm:$0xf]
  %v184 = vld [vmem:[%s1 + $0x18c] sm:$0xf]
  %v185 = vld [vmem:[%s1 + $0x190] sm:$0xf]
  %v186 = vld [vmem:[%s1 + $0x194] sm:$0xf]
  %v187 = vld [vmem:[%s1 + $0x198] sm:$0xf]
  %v188 = vld [vmem:[%s1 + $0x19c] sm:$0xf]
  %v189 = vld [vmem:[%s1 + $0x1a0] sm:$0xf]
  %v190 = vld [vmem:[%s1 + $0x1a4] sm:$0xf]
  %v191 = vld [vmem:[%s1 + $0x1a8] sm:$0xf]
  %v192 = vld [vmem:[%s1 + $0x1ac] sm:$0xf]
  %v193 = vld [vmem:[%s1 + $0x1b0] sm:$0xf]
  %v194 = vld [vmem:[%s1 + $0x1b4] sm:$0xf]
  %v195 = vld [vmem:[%s1 + $0x1b8] sm:$0xf]
  %v196 = vld [vmem:[%s1 + $0x1bc] sm:$0xf]
  %v197 = vld [vmem:[%s1 + $0x1c0] sm:$0xf]
  %v198 = vld [vmem:[%s1 + $0x1c4] sm:$0xf]
  %v199 = vld [vmem:[%s1 + $0x1c8] sm:$0xf]
  %v200 = vld [vmem:[%s1 + $0x1cc] sm:$0xf]
  %v201 = vld [vmem:[%s1 + $0x1d0] sm:$0xf]
  %v202 = vld [vmem:[%s1 + $0x1d4] sm:$0xf]
  %v203 = vld [vmem:[%s1 + $0x1d8] sm:$0xf]
  %v204 = vld [vmem:[%s1 + $0x1dc] sm:$0xf]
  %v205 = vld [vmem:[%s1 + $0x1e0] sm:$0xf]
  %v206 = vld [vmem:[%s1 + $0x1e4] sm:$0xf]
  %v207 = vld [vmem:[%s1 + $0x1e8] sm:$0xf]
  %v208 = vld [vmem:[%s1 + $0x1ec] sm:$0xf]
  %v209 = vld [vmem:[%s1 + $0x1f0] sm:$0xf]
  %v210 = vld [vmem:[%s1 + $0x1f4] sm:$0xf]
  %v211 = vld [vmem:[%s1 + $0x1f8] sm:$0xf]
  %v212 = vld [vmem:[%s1 + $0x1fc] sm:$0xf]
  %v213 = vld [vmem:[%s2] sm:$0x1]
  %v215 = vlaneseq
  %v216 = vshrl.u32 %v215, 7
  %v217 = vsub.s32 0, %v216
  %v218 = vrot.slane %v213, %v217
  %v284 = vunpack.c.l.b16 %v21
  %v285 = vunpack.c.h.b16 %v21
  %v286 = vunpack.c.l.b16 %v22
  %v287 = vunpack.c.h.b16 %v22
  %v288 = vunpack.c.l.b16 %v23
  %v289 = vunpack.c.h.b16 %v23
  %v290 = vunpack.c.l.b16 %v24
  %v291 = vunpack.c.h.b16 %v24
  %v292 = vunpack.c.l.b16 %v25
  %v293 = vunpack.c.h.b16 %v25
  %v294 = vunpack.c.l.b16 %v26
  %v295 = vunpack.c.h.b16 %v26
  %v296 = vunpack.c.l.b16 %v27
  %v297 = vunpack.c.h.b16 %v27
  %v298 = vunpack.c.l.b16 %v28
  %v299 = vunpack.c.h.b16 %v28
  %v300 = vunpack.c.l.b16 %v29
  %v301 = vunpack.c.h.b16 %v29
  %v302 = vunpack.c.l.b16 %v30
  %v303 = vunpack.c.h.b16 %v30
  %v304 = vunpack.c.l.b16 %v31
  %v305 = vunpack.c.h.b16 %v31
  %v306 = vunpack.c.l.b16 %v32
  %v307 = vunpack.c.h.b16 %v32
  %v308 = vunpack.c.l.b16 %v33
  %v309 = vunpack.c.h.b16 %v33
  %v310 = vunpack.c.l.b16 %v34
  %v311 = vunpack.c.h.b16 %v34
  %v312 = vunpack.c.l.b16 %v35
  %v313 = vunpack.c.h.b16 %v35
  %v314 = vunpack.c.l.b16 %v36
  %v315 = vunpack.c.h.b16 %v36
  %v316 = vunpack.c.l.b16 %v37
  %v317 = vunpack.c.h.b16 %v37
  %v318 = vunpack.c.l.b16 %v38
  %v319 = vunpack.c.h.b16 %v38
  %v320 = vunpack.c.l.b16 %v39
  %v321 = vunpack.c.h.b16 %v39
  %v322 = vunpack.c.l.b16 %v40
  %v323 = vunpack.c.h.b16 %v40
  %v324 = vunpack.c.l.b16 %v41
  %v325 = vunpack.c.h.b16 %v41
  %v326 = vunpack.c.l.b16 %v42
  %v327 = vunpack.c.h.b16 %v42
  %v328 = vunpack.c.l.b16 %v43
  %v329 = vunpack.c.h.b16 %v43
  %v330 = vunpack.c.l.b16 %v44
  %v331 = vunpack.c.h.b16 %v44
  %v332 = vunpack.c.l.b16 %v45
  %v333 = vunpack.c.h.b16 %v45
  %v334 = vunpack.c.l.b16 %v46
  %v335 = vunpack.c.h.b16 %v46
  %v336 = vunpack.c.l.b16 %v47
  %v337 = vunpack.c.h.b16 %v47
  %v338 = vunpack.c.l.b16 %v48
  %v339 = vunpack.c.h.b16 %v48
  %v340 = vunpack.c.l.b16 %v49
  %v341 = vunpack.c.h.b16 %v49
  %v342 = vunpack.c.l.b16 %v50
  %v343 = vunpack.c.h.b16 %v50
  %v344 = vunpack.c.l.b16 %v51
  %v345 = vunpack.c.h.b16 %v51
  %v346 = vunpack.c.l.b16 %v52
  %v347 = vunpack.c.h.b16 %v52
  %v348 = vunpack.c.l.b16 %v53
  %v349 = vunpack.c.h.b16 %v53
  %v350 = vunpack.c.l.b16 %v54
  %v351 = vunpack.c.h.b16 %v54
  %v352 = vunpack.c.l.b16 %v55
  %v353 = vunpack.c.h.b16 %v55
  %v354 = vunpack.c.l.b16 %v56
  %v355 = vunpack.c.h.b16 %v56
  %v356 = vunpack.c.l.b16 %v57
  %v357 = vunpack.c.h.b16 %v57
  %v358 = vunpack.c.l.b16 %v58
  %v359 = vunpack.c.h.b16 %v58
  %v360 = vunpack.c.l.b16 %v59
  %v361 = vunpack.c.h.b16 %v59
  %v362 = vunpack.c.l.b16 %v60
  %v363 = vunpack.c.h.b16 %v60
  %v364 = vunpack.c.l.b16 %v61
  %v365 = vunpack.c.h.b16 %v61
  %v366 = vunpack.c.l.b16 %v62
  %v367 = vunpack.c.h.b16 %v62
  %v368 = vunpack.c.l.b16 %v63
  %v369 = vunpack.c.h.b16 %v63
  %v370 = vunpack.c.l.b16 %v64
  %v371 = vunpack.c.h.b16 %v64
  %v372 = vunpack.c.l.b16 %v65
  %v373 = vunpack.c.h.b16 %v65
  %v374 = vunpack.c.l.b16 %v66
  %v375 = vunpack.c.h.b16 %v66
  %v376 = vunpack.c.l.b16 %v67
  %v377 = vunpack.c.h.b16 %v67
  %v378 = vunpack.c.l.b16 %v68
  %v379 = vunpack.c.h.b16 %v68
  %v380 = vunpack.c.l.b16 %v69
  %v381 = vunpack.c.h.b16 %v69
  %v382 = vunpack.c.l.b16 %v70
  %v383 = vunpack.c.h.b16 %v70
  %v384 = vunpack.c.l.b16 %v71
  %v385 = vunpack.c.h.b16 %v71
  %v386 = vunpack.c.l.b16 %v72
  %v387 = vunpack.c.h.b16 %v72
  %v388 = vunpack.c.l.b16 %v73
  %v389 = vunpack.c.h.b16 %v73
  %v390 = vunpack.c.l.b16 %v74
  %v391 = vunpack.c.h.b16 %v74
  %v392 = vunpack.c.l.b16 %v75
  %v393 = vunpack.c.h.b16 %v75
  %v394 = vunpack.c.l.b16 %v76
  %v395 = vunpack.c.h.b16 %v76
  %v396 = vunpack.c.l.b16 %v77
  %v397 = vunpack.c.h.b16 %v77
  %v398 = vunpack.c.l.b16 %v78
  %v399 = vunpack.c.h.b16 %v78
  %v400 = vunpack.c.l.b16 %v79
  %v401 = vunpack.c.h.b16 %v79
  %v402 = vunpack.c.l.b16 %v80
  %v403 = vunpack.c.h.b16 %v80
  %v404 = vunpack.c.l.b16 %v81
  %v405 = vunpack.c.h.b16 %v81
  %v406 = vunpack.c.l.b16 %v82
  %v407 = vunpack.c.h.b16 %v82
  %v408 = vunpack.c.l.b16 %v83
  %v409 = vunpack.c.h.b16 %v83
  %v410 = vunpack.c.l.b16 %v84
  %v411 = vunpack.c.h.b16 %v84
  %v412 = vpack.c.b16 %v292, %v284
  %v413 = vpack.c.b16 %v293, %v285
  %v414 = vpack.c.b16 %v294, %v286
  %v415 = vpack.c.b16 %v295, %v287
  %v416 = vpack.c.b16 %v296, %v288
  %v417 = vpack.c.b16 %v297, %v289
  %v418 = vpack.c.b16 %v298, %v290
  %v419 = vpack.c.b16 %v299, %v291
  %v420 = vpack.c.b16 %v308, %v300
  %v421 = vpack.c.b16 %v309, %v301
  %v422 = vpack.c.b16 %v310, %v302
  %v423 = vpack.c.b16 %v311, %v303
  %v424 = vpack.c.b16 %v312, %v304
  %v425 = vpack.c.b16 %v313, %v305
  %v426 = vpack.c.b16 %v314, %v306
  %v427 = vpack.c.b16 %v315, %v307
  %v428 = vpack.c.b16 %v324, %v316
  %v429 = vpack.c.b16 %v325, %v317
  %v430 = vpack.c.b16 %v326, %v318
  %v431 = vpack.c.b16 %v327, %v319
  %v432 = vpack.c.b16 %v328, %v320
  %v433 = vpack.c.b16 %v329, %v321
  %v434 = vpack.c.b16 %v330, %v322
  %v435 = vpack.c.b16 %v331, %v323
  %v436 = vpack.c.b16 %v340, %v332
  %v437 = vpack.c.b16 %v341, %v333
  %v438 = vpack.c.b16 %v342, %v334
  %v439 = vpack.c.b16 %v343, %v335
  %v440 = vpack.c.b16 %v344, %v336
  %v441 = vpack.c.b16 %v345, %v337
  %v442 = vpack.c.b16 %v346, %v338
  %v443 = vpack.c.b16 %v347, %v339
  %v444 = vpack.c.b16 %v356, %v348
  %v445 = vpack.c.b16 %v357, %v349
  %v446 = vpack.c.b16 %v358, %v350
  %v447 = vpack.c.b16 %v359, %v351
  %v448 = vpack.c.b16 %v360, %v352
  %v449 = vpack.c.b16 %v361, %v353
  %v450 = vpack.c.b16 %v362, %v354
  %v451 = vpack.c.b16 %v363, %v355
  %v452 = vpack.c.b16 %v372, %v364
  %v453 = vpack.c.b16 %v373, %v365
  %v454 = vpack.c.b16 %v374, %v366
  %v455 = vpack.c.b16 %v375, %v367
  %v456 = vpack.c.b16 %v376, %v368
  %v457 = vpack.c.b16 %v377, %v369
  %v458 = vpack.c.b16 %v378, %v370
  %v459 = vpack.c.b16 %v379, %v371
  %v460 = vpack.c.b16 %v388, %v380
  %v461 = vpack.c.b16 %v389, %v381
  %v462 = vpack.c.b16 %v390, %v382
  %v463 = vpack.c.b16 %v391, %v383
  %v464 = vpack.c.b16 %v392, %v384
  %v465 = vpack.c.b16 %v393, %v385
  %v466 = vpack.c.b16 %v394, %v386
  %v467 = vpack.c.b16 %v395, %v387
  %v468 = vpack.c.b16 %v404, %v396
  %v469 = vpack.c.b16 %v405, %v397
  %v470 = vpack.c.b16 %v406, %v398
  %v471 = vpack.c.b16 %v407, %v399
  %v472 = vpack.c.b16 %v408, %v400
  %v473 = vpack.c.b16 %v409, %v401
  %v474 = vpack.c.b16 %v410, %v402
  %v475 = vpack.c.b16 %v411, %v403
  %v668 = vunpack.c.l.b16 %v85
  %v669 = vunpack.c.l.b16 %v86
  %v670 = vunpack.c.l.b16 %v87
  %v671 = vunpack.c.l.b16 %v88
  %v672 = vunpack.c.l.b16 %v89
  %v673 = vunpack.c.l.b16 %v90
  %v674 = vunpack.c.l.b16 %v91
  %v675 = vunpack.c.l.b16 %v92
  %v676 = vunpack.c.l.b16 %v93
  %v677 = vunpack.c.l.b16 %v94
  %v678 = vunpack.c.l.b16 %v95
  %v679 = vunpack.c.l.b16 %v96
  %v680 = vunpack.c.l.b16 %v97
  %v681 = vunpack.c.l.b16 %v98
  %v682 = vunpack.c.l.b16 %v99
  %v683 = vunpack.c.l.b16 %v100
  %v684 = vunpack.c.l.b16 %v101
  %v685 = vunpack.c.l.b16 %v102
  %v686 = vunpack.c.l.b16 %v103
  %v687 = vunpack.c.l.b16 %v104
  %v688 = vunpack.c.l.b16 %v105
  %v689 = vunpack.c.l.b16 %v106
  %v690 = vunpack.c.l.b16 %v107
  %v691 = vunpack.c.l.b16 %v108
  %v692 = vunpack.c.l.b16 %v109
  %v693 = vunpack.c.l.b16 %v110
  %v694 = vunpack.c.l.b16 %v111
  %v695 = vunpack.c.l.b16 %v112
  %v696 = vunpack.c.l.b16 %v113
  %v697 = vunpack.c.l.b16 %v114
  %v698 = vunpack.c.l.b16 %v115
  %v699 = vunpack.c.l.b16 %v116
  %v700 = vunpack.c.l.b16 %v117
  %v701 = vunpack.c.l.b16 %v118
  %v702 = vunpack.c.l.b16 %v119
  %v703 = vunpack.c.l.b16 %v120
  %v704 = vunpack.c.l.b16 %v121
  %v705 = vunpack.c.l.b16 %v122
  %v706 = vunpack.c.l.b16 %v123
  %v707 = vunpack.c.l.b16 %v124
  %v708 = vunpack.c.l.b16 %v125
  %v709 = vunpack.c.l.b16 %v126
  %v710 = vunpack.c.l.b16 %v127
  %v711 = vunpack.c.l.b16 %v128
  %v712 = vunpack.c.l.b16 %v129
  %v713 = vunpack.c.l.b16 %v130
  %v714 = vunpack.c.l.b16 %v131
  %v715 = vunpack.c.l.b16 %v132
  %v716 = vunpack.c.l.b16 %v133
  %v717 = vunpack.c.l.b16 %v134
  %v718 = vunpack.c.l.b16 %v135
  %v719 = vunpack.c.l.b16 %v136
  %v720 = vunpack.c.l.b16 %v137
  %v721 = vunpack.c.l.b16 %v138
  %v722 = vunpack.c.l.b16 %v139
  %v723 = vunpack.c.l.b16 %v140
  %v724 = vunpack.c.l.b16 %v141
  %v725 = vunpack.c.l.b16 %v142
  %v726 = vunpack.c.l.b16 %v143
  %v727 = vunpack.c.l.b16 %v144
  %v728 = vunpack.c.l.b16 %v145
  %v729 = vunpack.c.l.b16 %v146
  %v730 = vunpack.c.l.b16 %v147
  %v731 = vunpack.c.l.b16 %v148
  %v732 = vunpack.c.l.b16 %v149
  %v733 = vunpack.c.l.b16 %v150
  %v734 = vunpack.c.l.b16 %v151
  %v735 = vunpack.c.l.b16 %v152
  %v736 = vunpack.c.l.b16 %v153
  %v737 = vunpack.c.l.b16 %v154
  %v738 = vunpack.c.l.b16 %v155
  %v739 = vunpack.c.l.b16 %v156
  %v740 = vunpack.c.l.b16 %v157
  %v741 = vunpack.c.l.b16 %v158
  %v742 = vunpack.c.l.b16 %v159
  %v743 = vunpack.c.l.b16 %v160
  %v744 = vunpack.c.l.b16 %v161
  %v745 = vunpack.c.l.b16 %v162
  %v746 = vunpack.c.l.b16 %v163
  %v747 = vunpack.c.l.b16 %v164
  %v748 = vunpack.c.l.b16 %v165
  %v749 = vunpack.c.l.b16 %v166
  %v750 = vunpack.c.l.b16 %v167
  %v751 = vunpack.c.l.b16 %v168
  %v752 = vunpack.c.l.b16 %v169
  %v753 = vunpack.c.l.b16 %v170
  %v754 = vunpack.c.l.b16 %v171
  %v755 = vunpack.c.l.b16 %v172
  %v756 = vunpack.c.l.b16 %v173
  %v757 = vunpack.c.l.b16 %v174
  %v758 = vunpack.c.l.b16 %v175
  %v759 = vunpack.c.l.b16 %v176
  %v760 = vunpack.c.l.b16 %v177
  %v761 = vunpack.c.l.b16 %v178
  %v762 = vunpack.c.l.b16 %v179
  %v763 = vunpack.c.l.b16 %v180
  %v764 = vunpack.c.l.b16 %v181
  %v765 = vunpack.c.l.b16 %v182
  %v766 = vunpack.c.l.b16 %v183
  %v767 = vunpack.c.l.b16 %v184
  %v768 = vunpack.c.l.b16 %v185
  %v769 = vunpack.c.l.b16 %v186
  %v770 = vunpack.c.l.b16 %v187
  %v771 = vunpack.c.l.b16 %v188
  %v772 = vunpack.c.l.b16 %v189
  %v773 = vunpack.c.l.b16 %v190
  %v774 = vunpack.c.l.b16 %v191
  %v775 = vunpack.c.l.b16 %v192
  %v776 = vunpack.c.l.b16 %v193
  %v777 = vunpack.c.l.b16 %v194
  %v778 = vunpack.c.l.b16 %v195
  %v779 = vunpack.c.l.b16 %v196
  %v780 = vunpack.c.l.b16 %v197
  %v781 = vunpack.c.l.b16 %v198
  %v782 = vunpack.c.l.b16 %v199
  %v783 = vunpack.c.l.b16 %v200
  %v784 = vunpack.c.l.b16 %v201
  %v785 = vunpack.c.l.b16 %v202
  %v786 = vunpack.c.l.b16 %v203
  %v787 = vunpack.c.l.b16 %v204
  %v788 = vunpack.c.l.b16 %v205
  %v789 = vunpack.c.l.b16 %v206
  %v790 = vunpack.c.l.b16 %v207
  %v791 = vunpack.c.l.b16 %v208
  %v792 = vunpack.c.l.b16 %v209
  %v793 = vunpack.c.l.b16 %v210
  %v794 = vunpack.c.l.b16 %v211
  %v795 = vunpack.c.l.b16 %v212
  %v796 = vpack.c.b16 %v669, %v668
  %v797 = vpack.c.b16 %v671, %v670
  %v798 = vpack.c.b16 %v673, %v672
  %v799 = vpack.c.b16 %v675, %v674
  %v800 = vpack.c.b16 %v677, %v676
  %v801 = vpack.c.b16 %v679, %v678
  %v802 = vpack.c.b16 %v681, %v680
  %v803 = vpack.c.b16 %v683, %v682
  %v804 = vpack.c.b16 %v685, %v684
  %v805 = vpack.c.b16 %v687, %v686
  %v806 = vpack.c.b16 %v689, %v688
  %v807 = vpack.c.b16 %v691, %v690
  %v808 = vpack.c.b16 %v693, %v692
  %v809 = vpack.c.b16 %v695, %v694
  %v810 = vpack.c.b16 %v697, %v696
  %v811 = vpack.c.b16 %v699, %v698
  %v812 = vpack.c.b16 %v701, %v700
  %v813 = vpack.c.b16 %v703, %v702
  %v814 = vpack.c.b16 %v705, %v704
  %v815 = vpack.c.b16 %v707, %v706
  %v816 = vpack.c.b16 %v709, %v708
  %v817 = vpack.c.b16 %v711, %v710
  %v818 = vpack.c.b16 %v713, %v712
  %v819 = vpack.c.b16 %v715, %v714
  %v820 = vpack.c.b16 %v717, %v716
  %v821 = vpack.c.b16 %v719, %v718
  %v822 = vpack.c.b16 %v721, %v720
  %v823 = vpack.c.b16 %v723, %v722
  %v824 = vpack.c.b16 %v725, %v724
  %v825 = vpack.c.b16 %v727, %v726
  %v826 = vpack.c.b16 %v729, %v728
  %v827 = vpack.c.b16 %v731, %v730
  %v828 = vpack.c.b16 %v733, %v732
  %v829 = vpack.c.b16 %v735, %v734
  %v830 = vpack.c.b16 %v737, %v736
  %v831 = vpack.c.b16 %v739, %v738
  %v832 = vpack.c.b16 %v741, %v740
  %v833 = vpack.c.b16 %v743, %v742
  %v834 = vpack.c.b16 %v745, %v744
  %v835 = vpack.c.b16 %v747, %v746
  %v836 = vpack.c.b16 %v749, %v748
  %v837 = vpack.c.b16 %v751, %v750
  %v838 = vpack.c.b16 %v753, %v752
  %v839 = vpack.c.b16 %v755, %v754
  %v840 = vpack.c.b16 %v757, %v756
  %v841 = vpack.c.b16 %v759, %v758
  %v842 = vpack.c.b16 %v761, %v760
  %v843 = vpack.c.b16 %v763, %v762
  %v844 = vpack.c.b16 %v765, %v764
  %v845 = vpack.c.b16 %v767, %v766
  %v846 = vpack.c.b16 %v769, %v768
  %v847 = vpack.c.b16 %v771, %v770
  %v848 = vpack.c.b16 %v773, %v772
  %v849 = vpack.c.b16 %v775, %v774
  %v850 = vpack.c.b16 %v777, %v776
  %v851 = vpack.c.b16 %v779, %v778
  %v852 = vpack.c.b16 %v781, %v780
  %v853 = vpack.c.b16 %v783, %v782
  %v854 = vpack.c.b16 %v785, %v784
  %v855 = vpack.c.b16 %v787, %v786
  %v856 = vpack.c.b16 %v789, %v788
  %v857 = vpack.c.b16 %v791, %v790
  %v858 = vpack.c.b16 %v793, %v792
  %v859 = vpack.c.b16 %v795, %v794
  %924 = vmatprep.subr.bf16.mxu0 0
  %925 = vmatpush1.bf16.msra.mxu0 %v796
  %926 = vmatprep.subr.bf16.mxu0 0
  %927 = vmatpush1.bf16.msra.mxu0 %v797
  %928 = vmatprep.subr.bf16.mxu0 0
  %929 = vmatpush1.bf16.msra.mxu0 %v798
  %930 = vmatprep.subr.bf16.mxu0 0
  %931 = vmatpush1.bf16.msra.mxu0 %v799
  %932 = vmatprep.subr.bf16.mxu0 0
  %933 = vmatpush1.bf16.msra.mxu0 %v800
  %934 = vmatprep.subr.bf16.mxu0 0
  %935 = vmatpush1.bf16.msra.mxu0 %v801
  %936 = vmatprep.subr.bf16.mxu0 0
  %937 = vmatpush1.bf16.msra.mxu0 %v802
  %938 = vmatprep.subr.bf16.mxu0 0
  %939 = vmatpush1.bf16.msra.mxu0 %v803
  %940 = vmatprep.subr.bf16.mxu0 0
  %941 = vmatpush1.bf16.msra.mxu0 %v804
  %942 = vmatprep.subr.bf16.mxu0 0
  %943 = vmatpush1.bf16.msra.mxu0 %v805
  %944 = vmatprep.subr.bf16.mxu0 0
  %945 = vmatpush1.bf16.msra.mxu0 %v806
  %946 = vmatprep.subr.bf16.mxu0 0
  %947 = vmatpush1.bf16.msra.mxu0 %v807
  %948 = vmatprep.subr.bf16.mxu0 0
  %949 = vmatpush1.bf16.msra.mxu0 %v808
  %950 = vmatprep.subr.bf16.mxu0 0
  %951 = vmatpush1.bf16.msra.mxu0 %v809
  %952 = vmatprep.subr.bf16.mxu0 0
  %953 = vmatpush1.bf16.msra.mxu0 %v810
  %954 = vmatprep.subr.bf16.mxu0 0
  %955 = vmatpush1.bf16.msra.mxu0 %v811
  %956 = vmatprep.mubr.bf16.mxu0 %v413
  %957 = vmatmul.mubr.bf16.gmra.mrb[0].mxu0 %v412
  %v958 = vpop.f32.mrb[0].mxu0
  %v959 = vadd.f32 %v218, %v958
  %v960 = vpop.f32.mrb[0].mxu0
  %v961 = vpop.f32.mrb[0].mxu0
  %v962 = vadd.f32 %v218, %v961
  %v963 = vpop.f32.mrb[0].mxu0
  %964 = vmatprep.mubr.bf16.mxu0 %v421
  %965 = vmatmul.mubr.bf16.gmra.mrb[0].mxu0 %v420
  %v966 = vpop.f32.mrb[0].mxu0
  %v967 = vadd.f32 %v218, %v966
  %v968 = vpop.f32.mrb[0].mxu0
  %v969 = vpop.f32.mrb[0].mxu0
  %v970 = vadd.f32 %v218, %v969
  %v971 = vpop.f32.mrb[0].mxu0
  %972 = vmatprep.mubr.bf16.mxu0 %v429
  %973 = vmatmul.mubr.bf16.gmra.mrb[0].mxu0 %v428
  %v974 = vpop.f32.mrb[0].mxu0
  %v975 = vadd.f32 %v218, %v974
  %v976 = vpop.f32.mrb[0].mxu0
  %v977 = vpop.f32.mrb[0].mxu0
  %v978 = vadd.f32 %v218, %v977
  %v979 = vpop.f32.mrb[0].mxu0
  %980 = vmatprep.mubr.bf16.mxu0 %v437
  %981 = vmatmul.mubr.bf16.gmra.mrb[0].mxu0 %v436
  %v982 = vpop.f32.mrb[0].mxu0
  %v983 = vadd.f32 %v218, %v982
  %v984 = vpop.f32.mrb[0].mxu0
  %v985 = vpop.f32.mrb[0].mxu0
  %v986 = vadd.f32 %v218, %v985
  %v987 = vpop.f32.mrb[0].mxu0
  %988 = vmatprep.mubr.bf16.mxu0 %v445
  %989 = vmatmul.mubr.bf16.gmra.mrb[0].mxu0 %v444
  %v990 = vpop.f32.mrb[0].mxu0
  %v991 = vadd.f32 %v218, %v990
  %v992 = vpop.f32.mrb[0].mxu0
  %v993 = vpop.f32.mrb[0].mxu0
  %v994 = vadd.f32 %v218, %v993
  %v995 = vpop.f32.mrb[0].mxu0
  %996 = vmatprep.mubr.bf16.mxu0 %v453
  %997 = vmatmul.mubr.bf16.gmra.mrb[0].mxu0 %v452
  %v998 = vpop.f32.mrb[0].mxu0
  %v999 = vadd.f32 %v218, %v998
  %v1000 = vpop.f32.mrb[0].mxu0
  %v1001 = vpop.f32.mrb[0].mxu0
  %v1002 = vadd.f32 %v218, %v1001
  %v1003 = vpop.f32.mrb[0].mxu0
  %1004 = vmatprep.mubr.bf16.mxu0 %v461
  %1005 = vmatmul.mubr.bf16.gmra.mrb[0].mxu0 %v460
  %v1006 = vpop.f32.mrb[0].mxu0
  %v1007 = vadd.f32 %v218, %v1006
  %v1008 = vpop.f32.mrb[0].mxu0
  %v1009 = vpop.f32.mrb[0].mxu0
  %v1010 = vadd.f32 %v218, %v1009
  %v1011 = vpop.f32.mrb[0].mxu0
  %1012 = vmatprep.mubr.bf16.mxu0 %v469
  %1013 = vmatmul.mubr.bf16.gmra.mrb[0].mxu0 %v468
  %v1014 = vpop.f32.mrb[0].mxu0
  %v1015 = vadd.f32 %v218, %v1014
  %v1016 = vpop.f32.mrb[0].mxu0
  %v1017 = vpop.f32.mrb[0].mxu0
  %v1018 = vadd.f32 %v218, %v1017
  %v1019 = vpop.f32.mrb[0].mxu0
  %1020 = vdwg.mxu0
  %1021 = vmatprep.subr.bf16.mxu0 0
  %1022 = vmatpush1.bf16.msra.mxu0 %v812
  %1023 = vmatprep.subr.bf16.mxu0 0
  %1024 = vmatpush1.bf16.msra.mxu0 %v813
  %1025 = vmatprep.subr.bf16.mxu0 0
  %1026 = vmatpush1.bf16.msra.mxu0 %v814
  %1027 = vmatprep.subr.bf16.mxu0 0
  %1028 = vmatpush1.bf16.msra.mxu0 %v815
  %1029 = vmatprep.subr.bf16.mxu0 0
  %1030 = vmatpush1.bf16.msra.mxu0 %v816
  %1031 = vmatprep.subr.bf16.mxu0 0
  %1032 = vmatpush1.bf16.msra.mxu0 %v817
  %1033 = vmatprep.subr.bf16.mxu0 0
  %1034 = vmatpush1.bf16.msra.mxu0 %v818
  %1035 = vmatprep.subr.bf16.mxu0 0
  %1036 = vmatpush1.bf16.msra.mxu0 %v819
  %1037 = vmatprep.subr.bf16.mxu0 0
  %1038 = vmatpush1.bf16.msra.mxu0 %v820
  %1039 = vmatprep.subr.bf16.mxu0 0
  %1040 = vmatpush1.bf16.msra.mxu0 %v821
  %1041 = vmatprep.subr.bf16.mxu0 0
  %1042 = vmatpush1.bf16.msra.mxu0 %v822
  %1043 = vmatprep.subr.bf16.mxu0 0
  %1044 = vmatpush1.bf16.msra.mxu0 %v823
  %1045 = vmatprep.subr.bf16.mxu0 0
  %1046 = vmatpush1.bf16.msra.mxu0 %v824
  %1047 = vmatprep.subr.bf16.mxu0 0
  %1048 = vmatpush1.bf16.msra.mxu0 %v825
  %1049 = vmatprep.subr.bf16.mxu0 0
  %1050 = vmatpush1.bf16.msra.mxu0 %v826
  %1051 = vmatprep.subr.bf16.mxu0 0
  %1052 = vmatpush1.bf16.msra.mxu0 %v827
  %1053 = vmatprep.mubr.bf16.mxu0 %v415
  %1054 = vmatmul.mubr.bf16.gmra.mrb[0].mxu0 %v414
  %v1055 = vpop.f32.mrb[0].mxu0
  %v1056 = vadd.f32 %v959, %v1055
  %v1057 = vpop.f32.mrb[0].mxu0
  %v1058 = vpop.f32.mrb[0].mxu0
  %v1059 = vadd.f32 %v962, %v1058
  %v1060 = vpop.f32.mrb[0].mxu0
  %1061 = vmatprep.mubr.bf16.mxu0 %v423
  %1062 = vmatmul.mubr.bf16.gmra.mrb[0].mxu0 %v422
  %v1063 = vpop.f32.mrb[0].mxu0
  %v1064 = vadd.f32 %v967, %v1063
  %v1065 = vpop.f32.mrb[0].mxu0
  %v1066 = vpop.f32.mrb[0].mxu0
  %v1067 = vadd.f32 %v970, %v1066
  %v1068 = vpop.f32.mrb[0].mxu0
  %1069 = vmatprep.mubr.bf16.mxu0 %v431
  %1070 = vmatmul.mubr.bf16.gmra.mrb[0].mxu0 %v430
  %v1071 = vpop.f32.mrb[0].mxu0
  %v1072 = vadd.f32 %v975, %v1071
  %v1073 = vpop.f32.mrb[0].mxu0
  %v1074 = vpop.f32.mrb[0].mxu0
  %v1075 = vadd.f32 %v978, %v1074
  %v1076 = vpop.f32.mrb[0].mxu0
  %1077 = vmatprep.mubr.bf16.mxu0 %v439
  %1078 = vmatmul.mubr.bf16.gmra.mrb[0].mxu0 %v438
  %v1079 = vpop.f32.mrb[0].mxu0
  %v1080 = vadd.f32 %v983, %v1079
  %v1081 = vpop.f32.mrb[0].mxu0
  %v1082 = vpop.f32.mrb[0].mxu0
  %v1083 = vadd.f32 %v986, %v1082
  %v1084 = vpop.f32.mrb[0].mxu0
  %1085 = vmatprep.mubr.bf16.mxu0 %v447
  %1086 = vmatmul.mubr.bf16.gmra.mrb[0].mxu0 %v446
  %v1087 = vpop.f32.mrb[0].mxu0
  %v1088 = vadd.f32 %v991, %v1087
  %v1089 = vpop.f32.mrb[0].mxu0
  %v1090 = vpop.f32.mrb[0].mxu0
  %v1091 = vadd.f32 %v994, %v1090
  %v1092 = vpop.f32.mrb[0].mxu0
  %1093 = vmatprep.mubr.bf16.mxu0 %v455
  %1094 = vmatmul.mubr.bf16.gmra.mrb[0].mxu0 %v454
  %v1095 = vpop.f32.mrb[0].mxu0
  %v1096 = vadd.f32 %v999, %v1095
  %v1097 = vpop.f32.mrb[0].mxu0
  %v1098 = vpop.f32.mrb[0].mxu0
  %v1099 = vadd.f32 %v1002, %v1098
  %v1100 = vpop.f32.mrb[0].mxu0
  %1101 = vmatprep.mubr.bf16.mxu0 %v463
  %1102 = vmatmul.mubr.bf16.gmra.mrb[0].mxu0 %v462
  %v1103 = vpop.f32.mrb[0].mxu0
  %v1104 = vadd.f32 %v1007, %v1103
  %v1105 = vpop.f32.mrb[0].mxu0
  %v1106 = vpop.f32.mrb[0].mxu0
  %v1107 = vadd.f32 %v1010, %v1106
  %v1108 = vpop.f32.mrb[0].mxu0
  %1109 = vmatprep.mubr.bf16.mxu0 %v471
  %1110 = vmatmul.mubr.bf16.gmra.mrb[0].mxu0 %v470
  %v1111 = vpop.f32.mrb[0].mxu0
  %v1112 = vadd.f32 %v1015, %v1111
  %v1113 = vpop.f32.mrb[0].mxu0
  %v1114 = vpop.f32.mrb[0].mxu0
  %v1115 = vadd.f32 %v1018, %v1114
  %v1116 = vpop.f32.mrb[0].mxu0
  %1117 = vdwg.mxu0
  %1118 = vmatprep.subr.bf16.mxu0 0
  %1119 = vmatpush1.bf16.msra.mxu0 %v828
  %1120 = vmatprep.subr.bf16.mxu0 0
  %1121 = vmatpush1.bf16.msra.mxu0 %v829
  %1122 = vmatprep.subr.bf16.mxu0 0
  %1123 = vmatpush1.bf16.msra.mxu0 %v830
  %1124 = vmatprep.subr.bf16.mxu0 0
  %1125 = vmatpush1.bf16.msra.mxu0 %v831
  %1126 = vmatprep.subr.bf16.mxu0 0
  %1127 = vmatpush1.bf16.msra.mxu0 %v832
  %1128 = vmatprep.subr.bf16.mxu0 0
  %1129 = vmatpush1.bf16.msra.mxu0 %v833
  %1130 = vmatprep.subr.bf16.mxu0 0
  %1131 = vmatpush1.bf16.msra.mxu0 %v834
  %1132 = vmatprep.subr.bf16.mxu0 0
  %1133 = vmatpush1.bf16.msra.mxu0 %v835
  %1134 = vmatprep.subr.bf16.mxu0 0
  %1135 = vmatpush1.bf16.msra.mxu0 %v836
  %1136 = vmatprep.subr.bf16.mxu0 0
  %1137 = vmatpush1.bf16.msra.mxu0 %v837
  %1138 = vmatprep.subr.bf16.mxu0 0
  %1139 = vmatpush1.bf16.msra.mxu0 %v838
  %1140 = vmatprep.subr.bf16.mxu0 0
  %1141 = vmatpush1.bf16.msra.mxu0 %v839
  %1142 = vmatprep.subr.bf16.mxu0 0
  %1143 = vmatpush1.bf16.msra.mxu0 %v840
  %1144 = vmatprep.subr.bf16.mxu0 0
  %1145 = vmatpush1.bf16.msra.mxu0 %v841
  %1146 = vmatprep.subr.bf16.mxu0 0
  %1147 = vmatpush1.bf16.msra.mxu0 %v842
  %1148 = vmatprep.subr.bf16.mxu0 0
  %1149 = vmatpush1.bf16.msra.mxu0 %v843
  %1150 = vmatprep.mubr.bf16.mxu0 %v417
  %1151 = vmatmul.mubr.bf16.gmra.mrb[0].mxu0 %v416
  %v1152 = vpop.f32.mrb[0].mxu0
  %v1153 = vadd.f32 %v1056, %v1152
  %v1154 = vpop.f32.mrb[0].mxu0
  %v1155 = vpop.f32.mrb[0].mxu0
  %v1156 = vadd.f32 %v1059, %v1155
  %v1157 = vpop.f32.mrb[0].mxu0
  %1158 = vmatprep.mubr.bf16.mxu0 %v425
  %1159 = vmatmul.mubr.bf16.gmra.mrb[0].mxu0 %v424
  %v1160 = vpop.f32.mrb[0].mxu0
  %v1161 = vadd.f32 %v1064, %v1160
  %v1162 = vpop.f32.mrb[0].mxu0
  %v1163 = vpop.f32.mrb[0].mxu0
  %v1164 = vadd.f32 %v1067, %v1163
  %v1165 = vpop.f32.mrb[0].mxu0
  %1166 = vmatprep.mubr.bf16.mxu0 %v433
  %1167 = vmatmul.mubr.bf16.gmra.mrb[0].mxu0 %v432
  %v1168 = vpop.f32.mrb[0].mxu0
  %v1169 = vadd.f32 %v1072, %v1168
  %v1170 = vpop.f32.mrb[0].mxu0
  %v1171 = vpop.f32.mrb[0].mxu0
  %v1172 = vadd.f32 %v1075, %v1171
  %v1173 = vpop.f32.mrb[0].mxu0
  %1174 = vmatprep.mubr.bf16.mxu0 %v441
  %1175 = vmatmul.mubr.bf16.gmra.mrb[0].mxu0 %v440
  %v1176 = vpop.f32.mrb[0].mxu0
  %v1177 = vadd.f32 %v1080, %v1176
  %v1178 = vpop.f32.mrb[0].mxu0
  %v1179 = vpop.f32.mrb[0].mxu0
  %v1180 = vadd.f32 %v1083, %v1179
  %v1181 = vpop.f32.mrb[0].mxu0
  %1182 = vmatprep.mubr.bf16.mxu0 %v449
  %1183 = vmatmul.mubr.bf16.gmra.mrb[0].mxu0 %v448
  %v1184 = vpop.f32.mrb[0].mxu0
  %v1185 = vadd.f32 %v1088, %v1184
  %v1186 = vpop.f32.mrb[0].mxu0
  %v1187 = vpop.f32.mrb[0].mxu0
  %v1188 = vadd.f32 %v1091, %v1187
  %v1189 = vpop.f32.mrb[0].mxu0
  %1190 = vmatprep.mubr.bf16.mxu0 %v457
  %1191 = vmatmul.mubr.bf16.gmra.mrb[0].mxu0 %v456
  %v1192 = vpop.f32.mrb[0].mxu0
  %v1193 = vadd.f32 %v1096, %v1192
  %v1194 = vpop.f32.mrb[0].mxu0
  %v1195 = vpop.f32.mrb[0].mxu0
  %v1196 = vadd.f32 %v1099, %v1195
  %v1197 = vpop.f32.mrb[0].mxu0
  %1198 = vmatprep.mubr.bf16.mxu0 %v465
  %1199 = vmatmul.mubr.bf16.gmra.mrb[0].mxu0 %v464
  %v1200 = vpop.f32.mrb[0].mxu0
  %v1201 = vadd.f32 %v1104, %v1200
  %v1202 = vpop.f32.mrb[0].mxu0
  %v1203 = vpop.f32.mrb[0].mxu0
  %v1204 = vadd.f32 %v1107, %v1203
  %v1205 = vpop.f32.mrb[0].mxu0
  %1206 = vmatprep.mubr.bf16.mxu0 %v473
  %1207 = vmatmul.mubr.bf16.gmra.mrb[0].mxu0 %v472
  %v1208 = vpop.f32.mrb[0].mxu0
  %v1209 = vadd.f32 %v1112, %v1208
  %v1210 = vpop.f32.mrb[0].mxu0
  %v1211 = vpop.f32.mrb[0].mxu0
  %v1212 = vadd.f32 %v1115, %v1211
  %v1213 = vpop.f32.mrb[0].mxu0
  %1214 = vdwg.mxu0
  %1215 = vmatprep.subr.bf16.mxu0 0
  %1216 = vmatpush1.bf16.msra.mxu0 %v844
  %1217 = vmatprep.subr.bf16.mxu0 0
  %1218 = vmatpush1.bf16.msra.mxu0 %v845
  %1219 = vmatprep.subr.bf16.mxu0 0
  %1220 = vmatpush1.bf16.msra.mxu0 %v846
  %1221 = vmatprep.subr.bf16.mxu0 0
  %1222 = vmatpush1.bf16.msra.mxu0 %v847
  %1223 = vmatprep.subr.bf16.mxu0 0
  %1224 = vmatpush1.bf16.msra.mxu0 %v848
  %1225 = vmatprep.subr.bf16.mxu0 0
  %1226 = vmatpush1.bf16.msra.mxu0 %v849
  %1227 = vmatprep.subr.bf16.mxu0 0
  %1228 = vmatpush1.bf16.msra.mxu0 %v850
  %1229 = vmatprep.subr.bf16.mxu0 0
  %1230 = vmatpush1.bf16.msra.mxu0 %v851
  %1231 = vmatprep.subr.bf16.mxu0 0
  %1232 = vmatpush1.bf16.msra.mxu0 %v852
  %1233 = vmatprep.subr.bf16.mxu0 0
  %1234 = vmatpush1.bf16.msra.mxu0 %v853
  %1235 = vmatprep.subr.bf16.mxu0 0
  %1236 = vmatpush1.bf16.msra.mxu0 %v854
  %1237 = vmatprep.subr.bf16.mxu0 0
  %1238 = vmatpush1.bf16.msra.mxu0 %v855
  %1239 = vmatprep.subr.bf16.mxu0 0
  %1240 = vmatpush1.bf16.msra.mxu0 %v856
  %1241 = vmatprep.subr.bf16.mxu0 0
  %1242 = vmatpush1.bf16.msra.mxu0 %v857
  %1243 = vmatprep.subr.bf16.mxu0 0
  %1244 = vmatpush1.bf16.msra.mxu0 %v858
  %1245 = vmatprep.subr.bf16.mxu0 0
  %1246 = vmatpush1.bf16.msra.mxu0 %v859
  %1247 = vmatprep.mubr.bf16.mxu0 %v419
  %1248 = vmatmul.mubr.bf16.gmra.mrb[0].mxu0 %v418
  %v1249 = vpop.f32.mrb[0].mxu0
  %v1250 = vadd.f32 %v1153, %v1249
  %v1251 = vpop.f32.mrb[0].mxu0
  %v1252 = vpop.f32.mrb[0].mxu0
  %v1253 = vadd.f32 %v1156, %v1252
  %v1254 = vpop.f32.mrb[0].mxu0
  %1255 = vmatprep.mubr.bf16.mxu0 %v427
  %1256 = vmatmul.mubr.bf16.gmra.mrb[0].mxu0 %v426
  %v1257 = vpop.f32.mrb[0].mxu0
  %v1258 = vadd.f32 %v1161, %v1257
  %v1259 = vpop.f32.mrb[0].mxu0
  %v1260 = vpop.f32.mrb[0].mxu0
  %v1261 = vadd.f32 %v1164, %v1260
  %v1262 = vpop.f32.mrb[0].mxu0
  %1263 = vmatprep.mubr.bf16.mxu0 %v435
  %1264 = vmatmul.mubr.bf16.gmra.mrb[0].mxu0 %v434
  %v1265 = vpop.f32.mrb[0].mxu0
  %v1266 = vadd.f32 %v1169, %v1265
  %v1267 = vpop.f32.mrb[0].mxu0
  %v1268 = vpop.f32.mrb[0].mxu0
  %v1269 = vadd.f32 %v1172, %v1268
  %v1270 = vpop.f32.mrb[0].mxu0
  %1271 = vmatprep.mubr.bf16.mxu0 %v443
  %1272 = vmatmul.mubr.bf16.gmra.mrb[0].mxu0 %v442
  %v1273 = vpop.f32.mrb[0].mxu0
  %v1274 = vadd.f32 %v1177, %v1273
  %v1275 = vpop.f32.mrb[0].mxu0
  %v1276 = vpop.f32.mrb[0].mxu0
  %v1277 = vadd.f32 %v1180, %v1276
  %v1278 = vpop.f32.mrb[0].mxu0
  %1279 = vmatprep.mubr.bf16.mxu0 %v451
  %1280 = vmatmul.mubr.bf16.gmra.mrb[0].mxu0 %v450
  %v1281 = vpop.f32.mrb[0].mxu0
  %v1282 = vadd.f32 %v1185, %v1281
  %v1283 = vpop.f32.mrb[0].mxu0
  %v1284 = vpop.f32.mrb[0].mxu0
  %v1285 = vadd.f32 %v1188, %v1284
  %v1286 = vpop.f32.mrb[0].mxu0
  %1287 = vmatprep.mubr.bf16.mxu0 %v459
  %1288 = vmatmul.mubr.bf16.gmra.mrb[0].mxu0 %v458
  %v1289 = vpop.f32.mrb[0].mxu0
  %v1290 = vadd.f32 %v1193, %v1289
  %v1291 = vpop.f32.mrb[0].mxu0
  %v1292 = vpop.f32.mrb[0].mxu0
  %v1293 = vadd.f32 %v1196, %v1292
  %v1294 = vpop.f32.mrb[0].mxu0
  %1295 = vmatprep.mubr.bf16.mxu0 %v467
  %1296 = vmatmul.mubr.bf16.gmra.mrb[0].mxu0 %v466
  %v1297 = vpop.f32.mrb[0].mxu0
  %v1298 = vadd.f32 %v1201, %v1297
  %v1299 = vpop.f32.mrb[0].mxu0
  %v1300 = vpop.f32.mrb[0].mxu0
  %v1301 = vadd.f32 %v1204, %v1300
  %v1302 = vpop.f32.mrb[0].mxu0
  %1303 = vmatprep.mubr.bf16.mxu0 %v475
  %1304 = vmatmul.mubr.bf16.gmra.mrb[0].mxu0 %v474
  %v1305 = vpop.f32.mrb[0].mxu0
  %v1306 = vadd.f32 %v1209, %v1305
  %v1307 = vpop.f32.mrb[0].mxu0
  %v1308 = vpop.f32.mrb[0].mxu0
  %v1309 = vadd.f32 %v1212, %v1308
  %v1310 = vpop.f32.mrb[0].mxu0
  %1311 = vdwg.mxu0
  %v1312 = vadd.f32 %v1250, %v1253
  %v1313 = vadd.f32 %v1312, %v1258
  %v1314 = vadd.f32 %v1313, %v1261
  %v1315 = vadd.f32 %v1314, %v1266
  %v1316 = vadd.f32 %v1315, %v1269
  %v1317 = vadd.f32 %v1316, %v1274
  %v1318 = vadd.f32 %v1317, %v1277
  %v1319 = vadd.f32 %v1318, %v1282
  %v1320 = vadd.f32 %v1319, %v1285
  %v1321 = vadd.f32 %v1320, %v1290
  %v1322 = vadd.f32 %v1321, %v1293
  %v1323 = vadd.f32 %v1322, %v1298
  %v1324 = vadd.f32 %v1323, %v1301
  %v1325 = vadd.f32 %v1324, %v1306
  %v1326 = vadd.f32 %v1325, %v1309
  %v1327 = vrot.slane %v1326, 4
  %v1328 = vadd.f32 %v1326, %v1327
  %v1329 = vrot.slane %v1328, 2
  %v1330 = vadd.f32 %v1328, %v1329
  %v1331 = vrot.slane %v1330, 1
  %v1332 = vadd.f32 %v1330, %v1331
  %v1333 = vmul.f32 %v1332, 0.0078125
  %v1334 = vsub.f32 %v1250, %v1333
  %v1335 = vsub.f32 %v1253, %v1333
  %v1336 = vsub.f32 %v1258, %v1333
  %v1337 = vsub.f32 %v1261, %v1333
  %v1338 = vsub.f32 %v1266, %v1333
  %v1339 = vsub.f32 %v1269, %v1333
  %v1340 = vsub.f32 %v1274, %v1333
  %v1341 = vsub.f32 %v1277, %v1333
  %v1342 = vsub.f32 %v1282, %v1333
  %v1343 = vsub.f32 %v1285, %v1333
  %v1344 = vsub.f32 %v1290, %v1333
  %v1345 = vsub.f32 %v1293, %v1333
  %v1346 = vsub.f32 %v1298, %v1333
  %v1347 = vsub.f32 %v1301, %v1333
  %v1348 = vsub.f32 %v1306, %v1333
  %v1349 = vsub.f32 %v1309, %v1333
  %v1350 = vmul.f32 %v1334, %v1334
  %v1351 = vmul.f32 %v1335, %v1335
  %v1352 = vmul.f32 %v1336, %v1336
  %v1353 = vmul.f32 %v1337, %v1337
  %v1354 = vmul.f32 %v1338, %v1338
  %v1355 = vmul.f32 %v1339, %v1339
  %v1356 = vmul.f32 %v1340, %v1340
  %v1357 = vmul.f32 %v1341, %v1341
  %v1358 = vmul.f32 %v1342, %v1342
  %v1359 = vmul.f32 %v1343, %v1343
  %v1360 = vmul.f32 %v1344, %v1344
  %v1361 = vmul.f32 %v1345, %v1345
  %v1362 = vmul.f32 %v1346, %v1346
  %v1363 = vmul.f32 %v1347, %v1347
  %v1364 = vmul.f32 %v1348, %v1348
  %v1365 = vmul.f32 %v1349, %v1349
  %v1366 = vadd.f32 %v1350, %v1351
  %v1367 = vadd.f32 %v1366, %v1352
  %v1368 = vadd.f32 %v1367, %v1353
  %v1369 = vadd.f32 %v1368, %v1354
  %v1370 = vadd.f32 %v1369, %v1355
  %v1371 = vadd.f32 %v1370, %v1356
  %v1372 = vadd.f32 %v1371, %v1357
  %v1373 = vadd.f32 %v1372, %v1358
  %v1374 = vadd.f32 %v1373, %v1359
  %v1375 = vadd.f32 %v1374, %v1360
  %v1376 = vadd.f32 %v1375, %v1361
  %v1377 = vadd.f32 %v1376, %v1362
  %v1378 = vadd.f32 %v1377, %v1363
  %v1379 = vadd.f32 %v1378, %v1364
  %v1380 = vadd.f32 %v1379, %v1365
  %v1381 = vrot.slane %v1380, 4
  %v1382 = vadd.f32 %v1380, %v1381
  %v1383 = vrot.slane %v1382, 2
  %v1384 = vadd.f32 %v1382, %v1383
  %v1385 = vrot.slane %v1384, 1
  %v1386 = vadd.f32 %v1384, %v1385
  %v1387 = vmul.f32 %v1386, 0.0078125
  %v1388 = vadd.f32 %v1387, 1e-05
  %v1389 = vrsqrt.pop %v1388
  %v1390 = vmul.f32 %v1334, %v1389
  %v1391 = vmul.f32 %v1335, %v1389
  %v1392 = vmul.f32 %v1336, %v1389
  %v1393 = vmul.f32 %v1337, %v1389
  %v1394 = vmul.f32 %v1338, %v1389
  %v1395 = vmul.f32 %v1339, %v1389
  %v1396 = vmul.f32 %v1340, %v1389
  %v1397 = vmul.f32 %v1341, %v1389
  %v1398 = vmul.f32 %v1342, %v1389
  %v1399 = vmul.f32 %v1343, %v1389
  %v1400 = vmul.f32 %v1344, %v1389
  %v1401 = vmul.f32 %v1345, %v1389
  %v1402 = vmul.f32 %v1346, %v1389
  %v1403 = vmul.f32 %v1347, %v1389
  %v1404 = vmul.f32 %v1348, %v1389
  %v1405 = vmul.f32 %v1349, %v1389
  %v1406 = vld [vmem:[%s3] sm:$0x1]
  %v1408 = vlaneseq
  %v1409 = vshrl.u32 %v1408, 7
  %v1410 = vsub.s32 0, %v1409
  %v1411 = vrot.slane %v1406, %v1410
  %v1413 = vmul.f32 %v1390, %v1411
  %v1414 = vmul.f32 %v1391, %v1411
  %v1415 = vmul.f32 %v1392, %v1411
  %v1416 = vmul.f32 %v1393, %v1411
  %v1417 = vmul.f32 %v1394, %v1411
  %v1418 = vmul.f32 %v1395, %v1411
  %v1419 = vmul.f32 %v1396, %v1411
  %v1420 = vmul.f32 %v1397, %v1411
  %v1421 = vmul.f32 %v1398, %v1411
  %v1422 = vmul.f32 %v1399, %v1411
  %v1423 = vmul.f32 %v1400, %v1411
  %v1424 = vmul.f32 %v1401, %v1411
  %v1425 = vmul.f32 %v1402, %v1411
  %v1426 = vmul.f32 %v1403, %v1411
  %v1427 = vmul.f32 %v1404, %v1411
  %v1428 = vmul.f32 %v1405, %v1411
  %v1429 = vld [vmem:[%s4] sm:$0x1]
  %v1431 = vlaneseq
  %v1432 = vshrl.u32 %v1431, 7
  %v1433 = vsub.s32 0, %v1432
  %v1434 = vrot.slane %v1429, %v1433
  %v1436 = vadd.f32 %v1413, %v1434
  %v1437 = vadd.f32 %v1414, %v1434
  %v1438 = vadd.f32 %v1415, %v1434
  %v1439 = vadd.f32 %v1416, %v1434
  %v1440 = vadd.f32 %v1417, %v1434
  %v1441 = vadd.f32 %v1418, %v1434
  %v1442 = vadd.f32 %v1419, %v1434
  %v1443 = vadd.f32 %v1420, %v1434
  %v1444 = vadd.f32 %v1421, %v1434
  %v1445 = vadd.f32 %v1422, %v1434
  %v1446 = vadd.f32 %v1423, %v1434
  %v1447 = vadd.f32 %v1424, %v1434
  %v1448 = vadd.f32 %v1425, %v1434
  %v1449 = vadd.f32 %v1426, %v1434
  %v1450 = vadd.f32 %v1427, %v1434
  %v1451 = vadd.f32 %v1428, %v1434
  %vm1452 = vcmp.gt.f32.partialorder %v1436, 0.0
  %vm1453 = vcmp.gt.f32.partialorder %v1437, 0.0
  %vm1454 = vcmp.gt.f32.partialorder %v1438, 0.0
  %vm1455 = vcmp.gt.f32.partialorder %v1439, 0.0
  %vm1456 = vcmp.gt.f32.partialorder %v1440, 0.0
  %vm1457 = vcmp.gt.f32.partialorder %v1441, 0.0
  %vm1458 = vcmp.gt.f32.partialorder %v1442, 0.0
  %vm1459 = vcmp.gt.f32.partialorder %v1443, 0.0
  %vm1460 = vcmp.gt.f32.partialorder %v1444, 0.0
  %vm1461 = vcmp.gt.f32.partialorder %v1445, 0.0
  %vm1462 = vcmp.gt.f32.partialorder %v1446, 0.0
  %vm1463 = vcmp.gt.f32.partialorder %v1447, 0.0
  %vm1464 = vcmp.gt.f32.partialorder %v1448, 0.0
  %vm1465 = vcmp.gt.f32.partialorder %v1449, 0.0
  %vm1466 = vcmp.gt.f32.partialorder %v1450, 0.0
  %vm1467 = vcmp.gt.f32.partialorder %v1451, 0.0
  %v1468 = vmul.f32 %v1436, 0.2
  %v1469 = vmul.f32 %v1437, 0.2
  %v1470 = vmul.f32 %v1438, 0.2
  %v1471 = vmul.f32 %v1439, 0.2
  %v1472 = vmul.f32 %v1440, 0.2
  %v1473 = vmul.f32 %v1441, 0.2
  %v1474 = vmul.f32 %v1442, 0.2
  %v1475 = vmul.f32 %v1443, 0.2
  %v1476 = vmul.f32 %v1444, 0.2
  %v1477 = vmul.f32 %v1445, 0.2
  %v1478 = vmul.f32 %v1446, 0.2
  %v1479 = vmul.f32 %v1447, 0.2
  %v1480 = vmul.f32 %v1448, 0.2
  %v1481 = vmul.f32 %v1449, 0.2
  %v1482 = vmul.f32 %v1450, 0.2
  %v1483 = vmul.f32 %v1451, 0.2
  %v1484 = vsel %vm1452, %v1436, %v1468
  %v1485 = vsel %vm1453, %v1437, %v1469
  %v1486 = vsel %vm1454, %v1438, %v1470
  %v1487 = vsel %vm1455, %v1439, %v1471
  %v1488 = vsel %vm1456, %v1440, %v1472
  %v1489 = vsel %vm1457, %v1441, %v1473
  %v1490 = vsel %vm1458, %v1442, %v1474
  %v1491 = vsel %vm1459, %v1443, %v1475
  %v1492 = vsel %vm1460, %v1444, %v1476
  %v1493 = vsel %vm1461, %v1445, %v1477
  %v1494 = vsel %vm1462, %v1446, %v1478
  %v1495 = vsel %vm1463, %v1447, %v1479
  %v1496 = vsel %vm1464, %v1448, %v1480
  %v1497 = vsel %vm1465, %v1449, %v1481
  %v1498 = vsel %vm1466, %v1450, %v1482
  %v1499 = vsel %vm1467, %v1451, %v1483
  %v1500 = vpack.c.bf16 %v1485, %v1484
  %v1501 = vpack.c.bf16 %v1487, %v1486
  %v1502 = vpack.c.bf16 %v1489, %v1488
  %v1503 = vpack.c.bf16 %v1491, %v1490
  %v1504 = vpack.c.bf16 %v1493, %v1492
  %v1505 = vpack.c.bf16 %v1495, %v1494
  %v1506 = vpack.c.bf16 %v1497, %v1496
  %v1507 = vpack.c.bf16 %v1499, %v1498
  %v1516 = vunpack.c.l.b16 %v1500
  %v1517 = vunpack.c.h.b16 %v1500
  %v1518 = vunpack.c.l.b16 %v1501
  %v1519 = vunpack.c.h.b16 %v1501
  %v1520 = vunpack.c.l.b16 %v1502
  %v1521 = vunpack.c.h.b16 %v1502
  %v1522 = vunpack.c.l.b16 %v1503
  %v1523 = vunpack.c.h.b16 %v1503
  %v1524 = vunpack.c.l.b16 %v1504
  %v1525 = vunpack.c.h.b16 %v1504
  %v1526 = vunpack.c.l.b16 %v1505
  %v1527 = vunpack.c.h.b16 %v1505
  %v1528 = vunpack.c.l.b16 %v1506
  %v1529 = vunpack.c.h.b16 %v1506
  %v1530 = vunpack.c.l.b16 %v1507
  %v1531 = vunpack.c.h.b16 %v1507
  %v1532 = vpack.c.b16 %v1516, %v1516
  %v1533 = vpack.c.b16 %v1517, %v1517
  %v1534 = vpack.c.b16 %v1518, %v1518
  %v1535 = vpack.c.b16 %v1519, %v1519
  %v1536 = vpack.c.b16 %v1520, %v1520
  %v1537 = vpack.c.b16 %v1521, %v1521
  %v1538 = vpack.c.b16 %v1522, %v1522
  %v1539 = vpack.c.b16 %v1523, %v1523
  %v1540 = vpack.c.b16 %v1524, %v1524
  %v1541 = vpack.c.b16 %v1525, %v1525
  %v1542 = vpack.c.b16 %v1526, %v1526
  %v1543 = vpack.c.b16 %v1527, %v1527
  %v1544 = vpack.c.b16 %v1528, %v1528
  %v1545 = vpack.c.b16 %v1529, %v1529
  %v1546 = vpack.c.b16 %v1530, %v1530
  %v1547 = vpack.c.b16 %v1531, %v1531
  %1564 = vst [vmem:[%s5] sm:$0xf] %v1532
  %1565 = vst [vmem:[%s5 + $0x4] sm:$0xf] %v1533
  %1566 = vst [vmem:[%s5 + $0x8] sm:$0xf] %v1534
  %1567 = vst [vmem:[%s5 + $0xc] sm:$0xf] %v1535
  %1568 = vst [vmem:[%s5 + $0x10] sm:$0xf] %v1536
  %1569 = vst [vmem:[%s5 + $0x14] sm:$0xf] %v1537
  %1570 = vst [vmem:[%s5 + $0x18] sm:$0xf] %v1538
  %1571 = vst [vmem:[%s5 + $0x1c] sm:$0xf] %v1539
  %1572 = vst [vmem:[%s5 + $0x20] sm:$0xf] %v1540
  %1573 = vst [vmem:[%s5 + $0x24] sm:$0xf] %v1541
  %1574 = vst [vmem:[%s5 + $0x28] sm:$0xf] %v1542
  %1575 = vst [vmem:[%s5 + $0x2c] sm:$0xf] %v1543
  %1576 = vst [vmem:[%s5 + $0x30] sm:$0xf] %v1544
  %1577 = vst [vmem:[%s5 + $0x34] sm:$0xf] %v1545
  %1578 = vst [vmem:[%s5 + $0x38] sm:$0xf] %v1546
  %1579 = vst [vmem:[%s5 + $0x3c] sm:$0xf] %v1547
  // Predicated region
  $region22: #{discriminator_forward.6} parent=0 // pred_check
    _
  $region23: #{discriminator_forward.6} parent=0 // pred_check_branch
    %1581 = sbr.rel (0) target = $region25
  $region24: #{discriminator_forward.6} parent=0 // pred_region
    _
  $region25: #{discriminator_forward.6} parent=0 // pred_fallthru
    _
  // Predicated region
  $region26: #{discriminator_forward.6} parent=0 // pred_check
    _
  $region27: #{discriminator_forward.6} parent=0 // pred_check_branch
    %1583 = sbr.rel (0) target = $region29
  $region28: #{discriminator_forward.6} parent=0 // pred_region
    _
  $region29: #{discriminator_forward.6} parent=0 // pred_fallthru
    _

// kernel: discriminator_forward.7
$region0: #{discriminator_forward.7}
  #allocation0 [shape = 'u32[]', space=smem, size = 0x4, offset = 0x4, fixed_abs, tag = 'smem constant byte address 0x4 - core index']
  #allocation1 [shape = 'u32[144,128]{1,0:T(1,128)}', space=vmem, size = 0x12000, scoped, tag = 'internal scratch']
  %s0 = inlined_call_operand.vmem [shape: bf16[32,2048], index: 0, kind: input, shape index: {}]
  %s1 = inlined_call_operand.vmem [shape: bf16[2048,256], index: 1, kind: input, shape index: {}]
  %s2 = inlined_call_operand.vmem [shape: f32[1,256], index: 2, kind: input, shape index: {}]
  %s3 = inlined_call_operand.vmem [shape: f32[1,256], index: 3, kind: input, shape index: {}]
  %s4 = inlined_call_operand.vmem [shape: f32[1,256], index: 4, kind: input, shape index: {}]
  %s5 = inlined_call_operand.vmem [shape: bf16[32,256], index: 5, kind: output, shape index: {}]
  %s6 = sld [smem:[#allocation0]]
  $region30: #{discriminator_forward.7} parent=0
    _
  %s8 = ssub.s32 1, %s6
  %s9 = scalar_select 0, %s8, %s6
  // Predicated region
  $region2: #{discriminator_forward.7} parent=0 // pred_check
    _
  $region3: #{discriminator_forward.7} parent=0 // pred_check_branch
    %11 = sbr.rel (0) target = $region5
  $region4: #{discriminator_forward.7} parent=0 // pred_region
    _
  $region5: #{discriminator_forward.7} parent=0 // pred_fallthru
    _
  // Predicated region
  $region6: #{discriminator_forward.7} parent=0 // pred_check
    _
  $region7: #{discriminator_forward.7} parent=0 // pred_check_branch
    %13 = sbr.rel (0) target = $region9
  $region8: #{discriminator_forward.7} parent=0 // pred_region
    _
  $region9: #{discriminator_forward.7} parent=0 // pred_fallthru
    _
  // Predicated region
  $region10: #{discriminator_forward.7} parent=0 // pred_check
    _
  $region11: #{discriminator_forward.7} parent=0 // pred_check_branch
    %15 = sbr.rel (0) target = $region13
  $region12: #{discriminator_forward.7} parent=0 // pred_region
    _
  $region13: #{discriminator_forward.7} parent=0 // pred_fallthru
    _
  // Predicated region
  $region14: #{discriminator_forward.7} parent=0 // pred_check
    _
  $region15: #{discriminator_forward.7} parent=0 // pred_check_branch
    %17 = sbr.rel (0) target = $region17
  $region16: #{discriminator_forward.7} parent=0 // pred_region
    _
  $region17: #{discriminator_forward.7} parent=0 // pred_fallthru
    _
  // Predicated region
  $region18: #{discriminator_forward.7} parent=0 // pred_check
    _
  $region19: #{discriminator_forward.7} parent=0 // pred_check_branch
    %19 = sbr.rel (0) target = $region21
  $region20: #{discriminator_forward.7} parent=0 // pred_region
    _
  $region21: #{discriminator_forward.7} parent=0 // pred_fallthru
    _
  %v20 = vld [vmem:[%s0] sm:$0xff]
  %v21 = vld [vmem:[%s0 + $0x8] sm:$0xff]
  %v22 = vld [vmem:[%s0 + $0x10] sm:$0xff]
  %v23 = vld [vmem:[%s0 + $0x18] sm:$0xff]
  %v24 = vld [vmem:[%s0 + $0x20] sm:$0xff]
  %v25 = vld [vmem:[%s0 + $0x28] sm:$0xff]
  %v26 = vld [vmem:[%s0 + $0x30] sm:$0xff]
  %v27 = vld [vmem:[%s0 + $0x38] sm:$0xff]
  %v28 = vld [vmem:[%s0 + $0x40] sm:$0xff]
  %v29 = vld [vmem:[%s0 + $0x48] sm:$0xff]
  %v30 = vld [vmem:[%s0 + $0x50] sm:$0xff]
  %v31 = vld [vmem:[%s0 + $0x58] sm:$0xff]
  %v32 = vld [vmem:[%s0 + $0x60] sm:$0xff]
  %v33 = vld [vmem:[%s0 + $0x68] sm:$0xff]
  %v34 = vld [vmem:[%s0 + $0x70] sm:$0xff]
  %v35 = vld [vmem:[%s0 + $0x78] sm:$0xff]
  %v36 = vld [vmem:[%s0 + $0x80] sm:$0xff]
  %v37 = vld [vmem:[%s0 + $0x88] sm:$0xff]
  %v38 = vld [vmem:[%s0 + $0x90] sm:$0xff]
  %v39 = vld [vmem:[%s0 + $0x98] sm:$0xff]
  %v40 = vld [vmem:[%s0 + $0xa0] sm:$0xff]
  %v41 = vld [vmem:[%s0 + $0xa8] sm:$0xff]
  %v42 = vld [vmem:[%s0 + $0xb0] sm:$0xff]
  %v43 = vld [vmem:[%s0 + $0xb8] sm:$0xff]
  %v44 = vld [vmem:[%s0 + $0xc0] sm:$0xff]
  %v45 = vld [vmem:[%s0 + $0xc8] sm:$0xff]
  %v46 = vld [vmem:[%s0 + $0xd0] sm:$0xff]
  %v47 = vld [vmem:[%s0 + $0xd8] sm:$0xff]
  %v48 = vld [vmem:[%s0 + $0xe0] sm:$0xff]
  %v49 = vld [vmem:[%s0 + $0xe8] sm:$0xff]
  %v50 = vld [vmem:[%s0 + $0xf0] sm:$0xff]
  %v51 = vld [vmem:[%s0 + $0xf8] sm:$0xff]
  %v52 = vld [vmem:[%s1] sm:$0xff]
  %v53 = vld [vmem:[%s1 + $0x8] sm:$0xff]
  %v54 = vld [vmem:[%s1 + $0x10] sm:$0xff]
  %v55 = vld [vmem:[%s1 + $0x18] sm:$0xff]
  %v56 = vld [vmem:[%s1 + $0x20] sm:$0xff]
  %v57 = vld [vmem:[%s1 + $0x28] sm:$0xff]
  %v58 = vld [vmem:[%s1 + $0x30] sm:$0xff]
  %v59 = vld [vmem:[%s1 + $0x38] sm:$0xff]
  %v60 = vld [vmem:[%s1 + $0x40] sm:$0xff]
  %v61 = vld [vmem:[%s1 + $0x48] sm:$0xff]
  %v62 = vld [vmem:[%s1 + $0x50] sm:$0xff]
  %v63 = vld [vmem:[%s1 + $0x58] sm:$0xff]
  %v64 = vld [vmem:[%s1 + $0x60] sm:$0xff]
  %v65 = vld [vmem:[%s1 + $0x68] sm:$0xff]
  %v66 = vld [vmem:[%s1 + $0x70] sm:$0xff]
  %v67 = vld [vmem:[%s1 + $0x78] sm:$0xff]
  %v68 = vld [vmem:[%s1 + $0x80] sm:$0xff]
  %v69 = vld [vmem:[%s1 + $0x88] sm:$0xff]
  %v70 = vld [vmem:[%s1 + $0x90] sm:$0xff]
  %v71 = vld [vmem:[%s1 + $0x98] sm:$0xff]
  %v72 = vld [vmem:[%s1 + $0xa0] sm:$0xff]
  %v73 = vld [vmem:[%s1 + $0xa8] sm:$0xff]
  %v74 = vld [vmem:[%s1 + $0xb0] sm:$0xff]
  %v75 = vld [vmem:[%s1 + $0xb8] sm:$0xff]
  %v76 = vld [vmem:[%s1 + $0xc0] sm:$0xff]
  %v77 = vld [vmem:[%s1 + $0xc8] sm:$0xff]
  %v78 = vld [vmem:[%s1 + $0xd0] sm:$0xff]
  %v79 = vld [vmem:[%s1 + $0xd8] sm:$0xff]
  %v80 = vld [vmem:[%s1 + $0xe0] sm:$0xff]
  %v81 = vld [vmem:[%s1 + $0xe8] sm:$0xff]
  %v82 = vld [vmem:[%s1 + $0xf0] sm:$0xff]
  %v83 = vld [vmem:[%s1 + $0xf8] sm:$0xff]
  %v84 = vld [vmem:[%s1 + $0x100] sm:$0xff]
  %v85 = vld [vmem:[%s1 + $0x108] sm:$0xff]
  %v86 = vld [vmem:[%s1 + $0x110] sm:$0xff]
  %v87 = vld [vmem:[%s1 + $0x118] sm:$0xff]
  %v88 = vld [vmem:[%s1 + $0x120] sm:$0xff]
  %v89 = vld [vmem:[%s1 + $0x128] sm:$0xff]
  %v90 = vld [vmem:[%s1 + $0x130] sm:$0xff]
  %v91 = vld [vmem:[%s1 + $0x138] sm:$0xff]
  %v92 = vld [vmem:[%s1 + $0x140] sm:$0xff]
  %v93 = vld [vmem:[%s1 + $0x148] sm:$0xff]
  %v94 = vld [vmem:[%s1 + $0x150] sm:$0xff]
  %v95 = vld [vmem:[%s1 + $0x158] sm:$0xff]
  %v96 = vld [vmem:[%s1 + $0x160] sm:$0xff]
  %v97 = vld [vmem:[%s1 + $0x168] sm:$0xff]
  %v98 = vld [vmem:[%s1 + $0x170] sm:$0xff]
  %v99 = vld [vmem:[%s1 + $0x178] sm:$0xff]
  %v100 = vld [vmem:[%s1 + $0x180] sm:$0xff]
  %v101 = vld [vmem:[%s1 + $0x188] sm:$0xff]
  %v102 = vld [vmem:[%s1 + $0x190] sm:$0xff]
  %v103 = vld [vmem:[%s1 + $0x198] sm:$0xff]
  %v104 = vld [vmem:[%s1 + $0x1a0] sm:$0xff]
  %v105 = vld [vmem:[%s1 + $0x1a8] sm:$0xff]
  %v106 = vld [vmem:[%s1 + $0x1b0] sm:$0xff]
  %v107 = vld [vmem:[%s1 + $0x1b8] sm:$0xff]
  %v108 = vld [vmem:[%s1 + $0x1c0] sm:$0xff]
  %v109 = vld [vmem:[%s1 + $0x1c8] sm:$0xff]
  %v110 = vld [vmem:[%s1 + $0x1d0] sm:$0xff]
  %v111 = vld [vmem:[%s1 + $0x1d8] sm:$0xff]
  %v112 = vld [vmem:[%s1 + $0x1e0] sm:$0xff]
  %v113 = vld [vmem:[%s1 + $0x1e8] sm:$0xff]
  %v114 = vld [vmem:[%s1 + $0x1f0] sm:$0xff]
  %v115 = vld [vmem:[%s1 + $0x1f8] sm:$0xff]
  %v116 = vld [vmem:[%s1 + $0x200] sm:$0xff]
  %v117 = vld [vmem:[%s1 + $0x208] sm:$0xff]
  %v118 = vld [vmem:[%s1 + $0x210] sm:$0xff]
  %v119 = vld [vmem:[%s1 + $0x218] sm:$0xff]
  %v120 = vld [vmem:[%s1 + $0x220] sm:$0xff]
  %v121 = vld [vmem:[%s1 + $0x228] sm:$0xff]
  %v122 = vld [vmem:[%s1 + $0x230] sm:$0xff]
  %v123 = vld [vmem:[%s1 + $0x238] sm:$0xff]
  %v124 = vld [vmem:[%s1 + $0x240] sm:$0xff]
  %v125 = vld [vmem:[%s1 + $0x248] sm:$0xff]
  %v126 = vld [vmem:[%s1 + $0x250] sm:$0xff]
  %v127 = vld [vmem:[%s1 + $0x258] sm:$0xff]
  %v128 = vld [vmem:[%s1 + $0x260] sm:$0xff]
  %v129 = vld [vmem:[%s1 + $0x268] sm:$0xff]
  %v130 = vld [vmem:[%s1 + $0x270] sm:$0xff]
  %v131 = vld [vmem:[%s1 + $0x278] sm:$0xff]
  %v132 = vld [vmem:[%s1 + $0x280] sm:$0xff]
  %v133 = vld [vmem:[%s1 + $0x288] sm:$0xff]
  %v134 = vld [vmem:[%s1 + $0x290] sm:$0xff]
  %v135 = vld [vmem:[%s1 + $0x298] sm:$0xff]
  %v136 = vld [vmem:[%s1 + $0x2a0] sm:$0xff]
  %v137 = vld [vmem:[%s1 + $0x2a8] sm:$0xff]
  %v138 = vld [vmem:[%s1 + $0x2b0] sm:$0xff]
  %v139 = vld [vmem:[%s1 + $0x2b8] sm:$0xff]
  %v140 = vld [vmem:[%s1 + $0x2c0] sm:$0xff]
  %v141 = vld [vmem:[%s1 + $0x2c8] sm:$0xff]
  %v142 = vld [vmem:[%s1 + $0x2d0] sm:$0xff]
  %v143 = vld [vmem:[%s1 + $0x2d8] sm:$0xff]
  %v144 = vld [vmem:[%s1 + $0x2e0] sm:$0xff]
  %v145 = vld [vmem:[%s1 + $0x2e8] sm:$0xff]
  %v146 = vld [vmem:[%s1 + $0x2f0] sm:$0xff]
  %v147 = vld [vmem:[%s1 + $0x2f8] sm:$0xff]
  %v148 = vld [vmem:[%s1 + $0x300] sm:$0xff]
  %v149 = vld [vmem:[%s1 + $0x308] sm:$0xff]
  %v150 = vld [vmem:[%s1 + $0x310] sm:$0xff]
  %v151 = vld [vmem:[%s1 + $0x318] sm:$0xff]
  %v152 = vld [vmem:[%s1 + $0x320] sm:$0xff]
  %v153 = vld [vmem:[%s1 + $0x328] sm:$0xff]
  %v154 = vld [vmem:[%s1 + $0x330] sm:$0xff]
  %v155 = vld [vmem:[%s1 + $0x338] sm:$0xff]
  %v156 = vld [vmem:[%s1 + $0x340] sm:$0xff]
  %v157 = vld [vmem:[%s1 + $0x348] sm:$0xff]
  %v158 = vld [vmem:[%s1 + $0x350] sm:$0xff]
  %v159 = vld [vmem:[%s1 + $0x358] sm:$0xff]
  %v160 = vld [vmem:[%s1 + $0x360] sm:$0xff]
  %v161 = vld [vmem:[%s1 + $0x368] sm:$0xff]
  %v162 = vld [vmem:[%s1 + $0x370] sm:$0xff]
  %v163 = vld [vmem:[%s1 + $0x378] sm:$0xff]
  %v164 = vld [vmem:[%s1 + $0x380] sm:$0xff]
  %v165 = vld [vmem:[%s1 + $0x388] sm:$0xff]
  %v166 = vld [vmem:[%s1 + $0x390] sm:$0xff]
  %v167 = vld [vmem:[%s1 + $0x398] sm:$0xff]
  %v168 = vld [vmem:[%s1 + $0x3a0] sm:$0xff]
  %v169 = vld [vmem:[%s1 + $0x3a8] sm:$0xff]
  %v170 = vld [vmem:[%s1 + $0x3b0] sm:$0xff]
  %v171 = vld [vmem:[%s1 + $0x3b8] sm:$0xff]
  %v172 = vld [vmem:[%s1 + $0x3c0] sm:$0xff]
  %v173 = vld [vmem:[%s1 + $0x3c8] sm:$0xff]
  %v174 = vld [vmem:[%s1 + $0x3d0] sm:$0xff]
  %v175 = vld [vmem:[%s1 + $0x3d8] sm:$0xff]
  %v176 = vld [vmem:[%s1 + $0x3e0] sm:$0xff]
  %v177 = vld [vmem:[%s1 + $0x3e8] sm:$0xff]
  %v178 = vld [vmem:[%s1 + $0x3f0] sm:$0xff]
  %v179 = vld [vmem:[%s1 + $0x3f8] sm:$0xff]
  %v180 = vld [vmem:[%s1 + $0x400] sm:$0xff]
  %v181 = vld [vmem:[%s1 + $0x408] sm:$0xff]
  %v182 = vld [vmem:[%s1 + $0x410] sm:$0xff]
  %v183 = vld [vmem:[%s1 + $0x418] sm:$0xff]
  %v184 = vld [vmem:[%s1 + $0x420] sm:$0xff]
  %v185 = vld [vmem:[%s1 + $0x428] sm:$0xff]
  %v186 = vld [vmem:[%s1 + $0x430] sm:$0xff]
  %v187 = vld [vmem:[%s1 + $0x438] sm:$0xff]
  %v188 = vld [vmem:[%s1 + $0x440] sm:$0xff]
  %v189 = vld [vmem:[%s1 + $0x448] sm:$0xff]
  %v190 = vld [vmem:[%s1 + $0x450] sm:$0xff]
  %v191 = vld [vmem:[%s1 + $0x458] sm:$0xff]
  %v192 = vld [vmem:[%s1 + $0x460] sm:$0xff]
  %v193 = vld [vmem:[%s1 + $0x468] sm:$0xff]
  %v194 = vld [vmem:[%s1 + $0x470] sm:$0xff]
  %v195 = vld [vmem:[%s1 + $0x478] sm:$0xff]
  %v196 = vld [vmem:[%s1 + $0x480] sm:$0xff]
  %v197 = vld [vmem:[%s1 + $0x488] sm:$0xff]
  %v198 = vld [vmem:[%s1 + $0x490] sm:$0xff]
  %v199 = vld [vmem:[%s1 + $0x498] sm:$0xff]
  %v200 = vld [vmem:[%s1 + $0x4a0] sm:$0xff]
  %v201 = vld [vmem:[%s1 + $0x4a8] sm:$0xff]
  %v202 = vld [vmem:[%s1 + $0x4b0] sm:$0xff]
  %v203 = vld [vmem:[%s1 + $0x4b8] sm:$0xff]
  %v204 = vld [vmem:[%s1 + $0x4c0] sm:$0xff]
  %v205 = vld [vmem:[%s1 + $0x4c8] sm:$0xff]
  %v206 = vld [vmem:[%s1 + $0x4d0] sm:$0xff]
  %v207 = vld [vmem:[%s1 + $0x4d8] sm:$0xff]
  %v208 = vld [vmem:[%s1 + $0x4e0] sm:$0xff]
  %v209 = vld [vmem:[%s1 + $0x4e8] sm:$0xff]
  %v210 = vld [vmem:[%s1 + $0x4f0] sm:$0xff]
  %v211 = vld [vmem:[%s1 + $0x4f8] sm:$0xff]
  %v212 = vld [vmem:[%s1 + $0x500] sm:$0xff]
  %v213 = vld [vmem:[%s1 + $0x508] sm:$0xff]
  %v214 = vld [vmem:[%s1 + $0x510] sm:$0xff]
  %v215 = vld [vmem:[%s1 + $0x518] sm:$0xff]
  %v216 = vld [vmem:[%s1 + $0x520] sm:$0xff]
  %v217 = vld [vmem:[%s1 + $0x528] sm:$0xff]
  %v218 = vld [vmem:[%s1 + $0x530] sm:$0xff]
  %v219 = vld [vmem:[%s1 + $0x538] sm:$0xff]
  %v220 = vld [vmem:[%s1 + $0x540] sm:$0xff]
  %v221 = vld [vmem:[%s1 + $0x548] sm:$0xff]
  %v222 = vld [vmem:[%s1 + $0x550] sm:$0xff]
  %v223 = vld [vmem:[%s1 + $0x558] sm:$0xff]
  %v224 = vld [vmem:[%s1 + $0x560] sm:$0xff]
  %v225 = vld [vmem:[%s1 + $0x568] sm:$0xff]
  %v226 = vld [vmem:[%s1 + $0x570] sm:$0xff]
  %v227 = vld [vmem:[%s1 + $0x578] sm:$0xff]
  %v228 = vld [vmem:[%s1 + $0x580] sm:$0xff]
  %v229 = vld [vmem:[%s1 + $0x588] sm:$0xff]
  %v230 = vld [vmem:[%s1 + $0x590] sm:$0xff]
  %v231 = vld [vmem:[%s1 + $0x598] sm:$0xff]
  %v232 = vld [vmem:[%s1 + $0x5a0] sm:$0xff]
  %v233 = vld [vmem:[%s1 + $0x5a8] sm:$0xff]
  %v234 = vld [vmem:[%s1 + $0x5b0] sm:$0xff]
  %v235 = vld [vmem:[%s1 + $0x5b8] sm:$0xff]
  %v236 = vld [vmem:[%s1 + $0x5c0] sm:$0xff]
  %v237 = vld [vmem:[%s1 + $0x5c8] sm:$0xff]
  %v238 = vld [vmem:[%s1 + $0x5d0] sm:$0xff]
  %v239 = vld [vmem:[%s1 + $0x5d8] sm:$0xff]
  %v240 = vld [vmem:[%s1 + $0x5e0] sm:$0xff]
  %v241 = vld [vmem:[%s1 + $0x5e8] sm:$0xff]
  %v242 = vld [vmem:[%s1 + $0x5f0] sm:$0xff]
  %v243 = vld [vmem:[%s1 + $0x5f8] sm:$0xff]
  %v244 = vld [vmem:[%s1 + $0x600] sm:$0xff]
  %v245 = vld [vmem:[%s1 + $0x608] sm:$0xff]
  %v246 = vld [vmem:[%s1 + $0x610] sm:$0xff]
  %v247 = vld [vmem:[%s1 + $0x618] sm:$0xff]
  %v248 = vld [vmem:[%s1 + $0x620] sm:$0xff]
  %v249 = vld [vmem:[%s1 + $0x628] sm:$0xff]
  %v250 = vld [vmem:[%s1 + $0x630] sm:$0xff]
  %v251 = vld [vmem:[%s1 + $0x638] sm:$0xff]
  %v252 = vld [vmem:[%s1 + $0x640] sm:$0xff]
  %v253 = vld [vmem:[%s1 + $0x648] sm:$0xff]
  %v254 = vld [vmem:[%s1 + $0x650] sm:$0xff]
  %v255 = vld [vmem:[%s1 + $0x658] sm:$0xff]
  %v256 = vld [vmem:[%s1 + $0x660] sm:$0xff]
  %v257 = vld [vmem:[%s1 + $0x668] sm:$0xff]
  %v258 = vld [vmem:[%s1 + $0x670] sm:$0xff]
  %v259 = vld [vmem:[%s1 + $0x678] sm:$0xff]
  %v260 = vld [vmem:[%s1 + $0x680] sm:$0xff]
  %v261 = vld [vmem:[%s1 + $0x688] sm:$0xff]
  %v262 = vld [vmem:[%s1 + $0x690] sm:$0xff]
  %v263 = vld [vmem:[%s1 + $0x698] sm:$0xff]
  %v264 = vld [vmem:[%s1 + $0x6a0] sm:$0xff]
  %v265 = vld [vmem:[%s1 + $0x6a8] sm:$0xff]
  %v266 = vld [vmem:[%s1 + $0x6b0] sm:$0xff]
  %v267 = vld [vmem:[%s1 + $0x6b8] sm:$0xff]
  %v268 = vld [vmem:[%s1 + $0x6c0] sm:$0xff]
  %v269 = vld [vmem:[%s1 + $0x6c8] sm:$0xff]
  %v270 = vld [vmem:[%s1 + $0x6d0] sm:$0xff]
  %v271 = vld [vmem:[%s1 + $0x6d8] sm:$0xff]
  %v272 = vld [vmem:[%s1 + $0x6e0] sm:$0xff]
  %v273 = vld [vmem:[%s1 + $0x6e8] sm:$0xff]
  %v274 = vld [vmem:[%s1 + $0x6f0] sm:$0xff]
  %v275 = vld [vmem:[%s1 + $0x6f8] sm:$0xff]
  %v276 = vld [vmem:[%s1 + $0x700] sm:$0xff]
  %v277 = vld [vmem:[%s1 + $0x708] sm:$0xff]
  %v278 = vld [vmem:[%s1 + $0x710] sm:$0xff]
  %v279 = vld [vmem:[%s1 + $0x718] sm:$0xff]
  %v280 = vld [vmem:[%s1 + $0x720] sm:$0xff]
  %v281 = vld [vmem:[%s1 + $0x728] sm:$0xff]
  %v282 = vld [vmem:[%s1 + $0x730] sm:$0xff]
  %v283 = vld [vmem:[%s1 + $0x738] sm:$0xff]
  %v284 = vld [vmem:[%s1 + $0x740] sm:$0xff]
  %v285 = vld [vmem:[%s1 + $0x748] sm:$0xff]
  %v286 = vld [vmem:[%s1 + $0x750] sm:$0xff]
  %v287 = vld [vmem:[%s1 + $0x758] sm:$0xff]
  %v288 = vld [vmem:[%s1 + $0x760] sm:$0xff]
  %v289 = vld [vmem:[%s1 + $0x768] sm:$0xff]
  %v290 = vld [vmem:[%s1 + $0x770] sm:$0xff]
  %v291 = vld [vmem:[%s1 + $0x778] sm:$0xff]
  %v292 = vld [vmem:[%s1 + $0x780] sm:$0xff]
  %v293 = vld [vmem:[%s1 + $0x788] sm:$0xff]
  %v294 = vld [vmem:[%s1 + $0x790] sm:$0xff]
  %v295 = vld [vmem:[%s1 + $0x798] sm:$0xff]
  %v296 = vld [vmem:[%s1 + $0x7a0] sm:$0xff]
  %v297 = vld [vmem:[%s1 + $0x7a8] sm:$0xff]
  %v298 = vld [vmem:[%s1 + $0x7b0] sm:$0xff]
  %v299 = vld [vmem:[%s1 + $0x7b8] sm:$0xff]
  %v300 = vld [vmem:[%s1 + $0x7c0] sm:$0xff]
  %v301 = vld [vmem:[%s1 + $0x7c8] sm:$0xff]
  %v302 = vld [vmem:[%s1 + $0x7d0] sm:$0xff]
  %v303 = vld [vmem:[%s1 + $0x7d8] sm:$0xff]
  %v304 = vld [vmem:[%s1 + $0x7e0] sm:$0xff]
  %v305 = vld [vmem:[%s1 + $0x7e8] sm:$0xff]
  %v306 = vld [vmem:[%s1 + $0x7f0] sm:$0xff]
  %v307 = vld [vmem:[%s1 + $0x7f8] sm:$0xff]
  %v308 = vld [vmem:[%s2] sm:$0x3]
  %v310 = vlaneseq
  %v311 = vshrl.u32 %v310, 7
  %v312 = vsub.s32 0, %v311
  %v313 = vrot.slane %v308, %v312
  %v314 = vlaneseq
  %v315 = vshrl.u32 %v314, 7
  %v316 = vsub.s32 1, %v315
  %v317 = vrot.slane %v308, %v316
  %v352 = vunpack.c.l.b16 %v20
  %v353 = vunpack.c.h.b16 %v20
  %v354 = vunpack.c.l.b16 %v21
  %v355 = vunpack.c.h.b16 %v21
  %v356 = vunpack.c.l.b16 %v22
  %v357 = vunpack.c.h.b16 %v22
  %v358 = vunpack.c.l.b16 %v23
  %v359 = vunpack.c.h.b16 %v23
  %v360 = vunpack.c.l.b16 %v24
  %v361 = vunpack.c.h.b16 %v24
  %v362 = vunpack.c.l.b16 %v25
  %v363 = vunpack.c.h.b16 %v25
  %v364 = vunpack.c.l.b16 %v26
  %v365 = vunpack.c.h.b16 %v26
  %v366 = vunpack.c.l.b16 %v27
  %v367 = vunpack.c.h.b16 %v27
  %v368 = vunpack.c.l.b16 %v28
  %v369 = vunpack.c.h.b16 %v28
  %v370 = vunpack.c.l.b16 %v29
  %v371 = vunpack.c.h.b16 %v29
  %v372 = vunpack.c.l.b16 %v30
  %v373 = vunpack.c.h.b16 %v30
  %v374 = vunpack.c.l.b16 %v31
  %v375 = vunpack.c.h.b16 %v31
  %v376 = vunpack.c.l.b16 %v32
  %v377 = vunpack.c.h.b16 %v32
  %v378 = vunpack.c.l.b16 %v33
  %v379 = vunpack.c.h.b16 %v33
  %v380 = vunpack.c.l.b16 %v34
  %v381 = vunpack.c.h.b16 %v34
  %v382 = vunpack.c.l.b16 %v35
  %v383 = vunpack.c.h.b16 %v35
  %v384 = vunpack.c.l.b16 %v36
  %v385 = vunpack.c.h.b16 %v36
  %v386 = vunpack.c.l.b16 %v37
  %v387 = vunpack.c.h.b16 %v37
  %v388 = vunpack.c.l.b16 %v38
  %v389 = vunpack.c.h.b16 %v38
  %v390 = vunpack.c.l.b16 %v39
  %v391 = vunpack.c.h.b16 %v39
  %v392 = vunpack.c.l.b16 %v40
  %v393 = vunpack.c.h.b16 %v40
  %v394 = vunpack.c.l.b16 %v41
  %v395 = vunpack.c.h.b16 %v41
  %v396 = vunpack.c.l.b16 %v42
  %v397 = vunpack.c.h.b16 %v42
  %v398 = vunpack.c.l.b16 %v43
  %v399 = vunpack.c.h.b16 %v43
  %v400 = vunpack.c.l.b16 %v44
  %v401 = vunpack.c.h.b16 %v44
  %v402 = vunpack.c.l.b16 %v45
  %v403 = vunpack.c.h.b16 %v45
  %v404 = vunpack.c.l.b16 %v46
  %v405 = vunpack.c.h.b16 %v46
  %v406 = vunpack.c.l.b16 %v47
  %v407 = vunpack.c.h.b16 %v47
  %v408 = vunpack.c.l.b16 %v48
  %v409 = vunpack.c.h.b16 %v48
  %v410 = vunpack.c.l.b16 %v49
  %v411 = vunpack.c.h.b16 %v49
  %v412 = vunpack.c.l.b16 %v50
  %v413 = vunpack.c.h.b16 %v50
  %v414 = vunpack.c.l.b16 %v51
  %v415 = vunpack.c.h.b16 %v51
  %v416 = vpack.c.b16 %v368, %v352
  %v417 = vpack.c.b16 %v369, %v353
  %v418 = vpack.c.b16 %v370, %v354
  %v419 = vpack.c.b16 %v371, %v355
  %v420 = vpack.c.b16 %v372, %v356
  %v421 = vpack.c.b16 %v373, %v357
  %v422 = vpack.c.b16 %v374, %v358
  %v423 = vpack.c.b16 %v375, %v359
  %v424 = vpack.c.b16 %v376, %v360
  %v425 = vpack.c.b16 %v377, %v361
  %v426 = vpack.c.b16 %v378, %v362
  %v427 = vpack.c.b16 %v379, %v363
  %v428 = vpack.c.b16 %v380, %v364
  %v429 = vpack.c.b16 %v381, %v365
  %v430 = vpack.c.b16 %v382, %v366
  %v431 = vpack.c.b16 %v383, %v367
  %v432 = vpack.c.b16 %v400, %v384
  %v433 = vpack.c.b16 %v401, %v385
  %v434 = vpack.c.b16 %v402, %v386
  %v435 = vpack.c.b16 %v403, %v387
  %v436 = vpack.c.b16 %v404, %v388
  %v437 = vpack.c.b16 %v405, %v389
  %v438 = vpack.c.b16 %v406, %v390
  %v439 = vpack.c.b16 %v407, %v391
  %v440 = vpack.c.b16 %v408, %v392
  %v441 = vpack.c.b16 %v409, %v393
  %v442 = vpack.c.b16 %v410, %v394
  %v443 = vpack.c.b16 %v411, %v395
  %v444 = vpack.c.b16 %v412, %v396
  %v445 = vpack.c.b16 %v413, %v397
  %v446 = vpack.c.b16 %v414, %v398
  %v447 = vpack.c.b16 %v415, %v399
  %v736 = vunpack.c.l.b16 %v52
  %v737 = vunpack.c.h.b16 %v52
  %v738 = vunpack.c.l.b16 %v53
  %v739 = vunpack.c.h.b16 %v53
  %v740 = vunpack.c.l.b16 %v54
  %v741 = vunpack.c.h.b16 %v54
  %v742 = vunpack.c.l.b16 %v55
  %v743 = vunpack.c.h.b16 %v55
  %v744 = vunpack.c.l.b16 %v56
  %v745 = vunpack.c.h.b16 %v56
  %v746 = vunpack.c.l.b16 %v57
  %v747 = vunpack.c.h.b16 %v57
  %v748 = vunpack.c.l.b16 %v58
  %v749 = vunpack.c.h.b16 %v58
  %v750 = vunpack.c.l.b16 %v59
  %v751 = vunpack.c.h.b16 %v59
  %v752 = vunpack.c.l.b16 %v60
  %v753 = vunpack.c.h.b16 %v60
  %v754 = vunpack.c.l.b16 %v61
  %v755 = vunpack.c.h.b16 %v61
  %v756 = vunpack.c.l.b16 %v62
  %v757 = vunpack.c.h.b16 %v62
  %v758 = vunpack.c.l.b16 %v63
  %v759 = vunpack.c.h.b16 %v63
  %v760 = vunpack.c.l.b16 %v64
  %v761 = vunpack.c.h.b16 %v64
  %v762 = vunpack.c.l.b16 %v65
  %v763 = vunpack.c.h.b16 %v65
  %v764 = vunpack.c.l.b16 %v66
  %v765 = vunpack.c.h.b16 %v66
  %v766 = vunpack.c.l.b16 %v67
  %v767 = vunpack.c.h.b16 %v67
  %v768 = vunpack.c.l.b16 %v68
  %v769 = vunpack.c.h.b16 %v68
  %v770 = vunpack.c.l.b16 %v69
  %v771 = vunpack.c.h.b16 %v69
  %v772 = vunpack.c.l.b16 %v70
  %v773 = vunpack.c.h.b16 %v70
  %v774 = vunpack.c.l.b16 %v71
  %v775 = vunpack.c.h.b16 %v71
  %v776 = vunpack.c.l.b16 %v72
  %v777 = vunpack.c.h.b16 %v72
  %v778 = vunpack.c.l.b16 %v73
  %v779 = vunpack.c.h.b16 %v73
  %v780 = vunpack.c.l.b16 %v74
  %v781 = vunpack.c.h.b16 %v74
  %v782 = vunpack.c.l.b16 %v75
  %v783 = vunpack.c.h.b16 %v75
  %v784 = vunpack.c.l.b16 %v76
  %v785 = vunpack.c.h.b16 %v76
  %v786 = vunpack.c.l.b16 %v77
  %v787 = vunpack.c.h.b16 %v77
  %v788 = vunpack.c.l.b16 %v78
  %v789 = vunpack.c.h.b16 %v78
  %v790 = vunpack.c.l.b16 %v79
  %v791 = vunpack.c.h.b16 %v79
  %v792 = vunpack.c.l.b16 %v80
  %v793 = vunpack.c.h.b16 %v80
  %v794 = vunpack.c.l.b16 %v81
  %v795 = vunpack.c.h.b16 %v81
  %v796 = vunpack.c.l.b16 %v82
  %v797 = vunpack.c.h.b16 %v82
  %v798 = vunpack.c.l.b16 %v83
  %v799 = vunpack.c.h.b16 %v83
  %v800 = vunpack.c.l.b16 %v84
  %v801 = vunpack.c.h.b16 %v84
  %v802 = vunpack.c.l.b16 %v85
  %v803 = vunpack.c.h.b16 %v85
  %v804 = vunpack.c.l.b16 %v86
  %v805 = vunpack.c.h.b16 %v86
  %v806 = vunpack.c.l.b16 %v87
  %v807 = vunpack.c.h.b16 %v87
  %v808 = vunpack.c.l.b16 %v88
  %v809 = vunpack.c.h.b16 %v88
  %v810 = vunpack.c.l.b16 %v89
  %v811 = vunpack.c.h.b16 %v89
  %v812 = vunpack.c.l.b16 %v90
  %v813 = vunpack.c.h.b16 %v90
  %v814 = vunpack.c.l.b16 %v91
  %v815 = vunpack.c.h.b16 %v91
  %v816 = vunpack.c.l.b16 %v92
  %v817 = vunpack.c.h.b16 %v92
  %v818 = vunpack.c.l.b16 %v93
  %v819 = vunpack.c.h.b16 %v93
  %v820 = vunpack.c.l.b16 %v94
  %v821 = vunpack.c.h.b16 %v94
  %v822 = vunpack.c.l.b16 %v95
  %v823 = vunpack.c.h.b16 %v95
  %v824 = vunpack.c.l.b16 %v96
  %v825 = vunpack.c.h.b16 %v96
  %v826 = vunpack.c.l.b16 %v97
  %v827 = vunpack.c.h.b16 %v97
  %v828 = vunpack.c.l.b16 %v98
  %v829 = vunpack.c.h.b16 %v98
  %v830 = vunpack.c.l.b16 %v99
  %v831 = vunpack.c.h.b16 %v99
  %v832 = vunpack.c.l.b16 %v100
  %v833 = vunpack.c.h.b16 %v100
  %v834 = vunpack.c.l.b16 %v101
  %v835 = vunpack.c.h.b16 %v101
  %v836 = vunpack.c.l.b16 %v102
  %v837 = vunpack.c.h.b16 %v102
  %v838 = vunpack.c.l.b16 %v103
  %v839 = vunpack.c.h.b16 %v103
  %v840 = vunpack.c.l.b16 %v104
  %v841 = vunpack.c.h.b16 %v104
  %v842 = vunpack.c.l.b16 %v105
  %v843 = vunpack.c.h.b16 %v105
  %v844 = vunpack.c.l.b16 %v106
  %v845 = vunpack.c.h.b16 %v106
  %v846 = vunpack.c.l.b16 %v107
  %v847 = vunpack.c.h.b16 %v107
  %v848 = vunpack.c.l.b16 %v108
  %v849 = vunpack.c.h.b16 %v108
  %v850 = vunpack.c.l.b16 %v109
  %v851 = vunpack.c.h.b16 %v109
  %v852 = vunpack.c.l.b16 %v110
  %v853 = vunpack.c.h.b16 %v110
  %v854 = vunpack.c.l.b16 %v111
  %v855 = vunpack.c.h.b16 %v111
  %v856 = vunpack.c.l.b16 %v112
  %v857 = vunpack.c.h.b16 %v112
  %v858 = vunpack.c.l.b16 %v113
  %v859 = vunpack.c.h.b16 %v113
  %v860 = vunpack.c.l.b16 %v114
  %v861 = vunpack.c.h.b16 %v114
  %v862 = vunpack.c.l.b16 %v115
  %v863 = vunpack.c.h.b16 %v115
  %v864 = vunpack.c.l.b16 %v116
  %v865 = vunpack.c.h.b16 %v116
  %v866 = vunpack.c.l.b16 %v117
  %v867 = vunpack.c.h.b16 %v117
  %v868 = vunpack.c.l.b16 %v118
  %v869 = vunpack.c.h.b16 %v118
  %v870 = vunpack.c.l.b16 %v119
  %v871 = vunpack.c.h.b16 %v119
  %v872 = vunpack.c.l.b16 %v120
  %v873 = vunpack.c.h.b16 %v120
  %v874 = vunpack.c.l.b16 %v121
  %v875 = vunpack.c.h.b16 %v121
  %v876 = vunpack.c.l.b16 %v122
  %v877 = vunpack.c.h.b16 %v122
  %v878 = vunpack.c.l.b16 %v123
  %v879 = vunpack.c.h.b16 %v123
  %v880 = vunpack.c.l.b16 %v124
  %v881 = vunpack.c.h.b16 %v124
  %v882 = vunpack.c.l.b16 %v125
  %v883 = vunpack.c.h.b16 %v125
  %v884 = vunpack.c.l.b16 %v126
  %v885 = vunpack.c.h.b16 %v126
  %v886 = vunpack.c.l.b16 %v127
  %v887 = vunpack.c.h.b16 %v127
  %v888 = vunpack.c.l.b16 %v128
  %v889 = vunpack.c.h.b16 %v128
  %v890 = vunpack.c.l.b16 %v129
  %v891 = vunpack.c.h.b16 %v129
  %v892 = vunpack.c.l.b16 %v130
  %v893 = vunpack.c.h.b16 %v130
  %v894 = vunpack.c.l.b16 %v131
  %v895 = vunpack.c.h.b16 %v131
  %v896 = vunpack.c.l.b16 %v132
  %v897 = vunpack.c.h.b16 %v132
  %v898 = vunpack.c.l.b16 %v133
  %v899 = vunpack.c.h.b16 %v133
  %v900 = vunpack.c.l.b16 %v134
  %v901 = vunpack.c.h.b16 %v134
  %v902 = vunpack.c.l.b16 %v135
  %v903 = vunpack.c.h.b16 %v135
  %v904 = vunpack.c.l.b16 %v136
  %v905 = vunpack.c.h.b16 %v136
  %v906 = vunpack.c.l.b16 %v137
  %v907 = vunpack.c.h.b16 %v137
  %v908 = vunpack.c.l.b16 %v138
  %v909 = vunpack.c.h.b16 %v138
  %v910 = vunpack.c.l.b16 %v139
  %v911 = vunpack.c.h.b16 %v139
  %v912 = vunpack.c.l.b16 %v140
  %v913 = vunpack.c.h.b16 %v140
  %v914 = vunpack.c.l.b16 %v141
  %v915 = vunpack.c.h.b16 %v141
  %v916 = vunpack.c.l.b16 %v142
  %v917 = vunpack.c.h.b16 %v142
  %v918 = vunpack.c.l.b16 %v143
  %v919 = vunpack.c.h.b16 %v143
  %v920 = vunpack.c.l.b16 %v144
  %v921 = vunpack.c.h.b16 %v144
  %v922 = vunpack.c.l.b16 %v145
  %v923 = vunpack.c.h.b16 %v145
  %v924 = vunpack.c.l.b16 %v146
  %v925 = vunpack.c.h.b16 %v146
  %v926 = vunpack.c.l.b16 %v147
  %v927 = vunpack.c.h.b16 %v147
  %v928 = vunpack.c.l.b16 %v148
  %v929 = vunpack.c.h.b16 %v148
  %v930 = vunpack.c.l.b16 %v149
  %v931 = vunpack.c.h.b16 %v149
  %v932 = vunpack.c.l.b16 %v150
  %v933 = vunpack.c.h.b16 %v150
  %v934 = vunpack.c.l.b16 %v151
  %v935 = vunpack.c.h.b16 %v151
  %v936 = vunpack.c.l.b16 %v152
  %v937 = vunpack.c.h.b16 %v152
  %v938 = vunpack.c.l.b16 %v153
  %v939 = vunpack.c.h.b16 %v153
  %v940 = vunpack.c.l.b16 %v154
  %v941 = vunpack.c.h.b16 %v154
  %v942 = vunpack.c.l.b16 %v155
  %v943 = vunpack.c.h.b16 %v155
  %v944 = vunpack.c.l.b16 %v156
  %v945 = vunpack.c.h.b16 %v156
  %v946 = vunpack.c.l.b16 %v157
  %v947 = vunpack.c.h.b16 %v157
  %v948 = vunpack.c.l.b16 %v158
  %v949 = vunpack.c.h.b16 %v158
  %v950 = vunpack.c.l.b16 %v159
  %v951 = vunpack.c.h.b16 %v159
  %v952 = vunpack.c.l.b16 %v160
  %v953 = vunpack.c.h.b16 %v160
  %v954 = vunpack.c.l.b16 %v161
  %v955 = vunpack.c.h.b16 %v161
  %v956 = vunpack.c.l.b16 %v162
  %v957 = vunpack.c.h.b16 %v162
  %v958 = vunpack.c.l.b16 %v163
  %v959 = vunpack.c.h.b16 %v163
  %v960 = vunpack.c.l.b16 %v164
  %v961 = vunpack.c.h.b16 %v164
  %v962 = vunpack.c.l.b16 %v165
  %v963 = vunpack.c.h.b16 %v165
  %v964 = vunpack.c.l.b16 %v166
  %v965 = vunpack.c.h.b16 %v166
  %v966 = vunpack.c.l.b16 %v167
  %v967 = vunpack.c.h.b16 %v167
  %v968 = vunpack.c.l.b16 %v168
  %v969 = vunpack.c.h.b16 %v168
  %v970 = vunpack.c.l.b16 %v169
  %v971 = vunpack.c.h.b16 %v169
  %v972 = vunpack.c.l.b16 %v170
  %v973 = vunpack.c.h.b16 %v170
  %v974 = vunpack.c.l.b16 %v171
  %v975 = vunpack.c.h.b16 %v171
  %v976 = vunpack.c.l.b16 %v172
  %v977 = vunpack.c.h.b16 %v172
  %v978 = vunpack.c.l.b16 %v173
  %v979 = vunpack.c.h.b16 %v173
  %v980 = vunpack.c.l.b16 %v174
  %v981 = vunpack.c.h.b16 %v174
  %v982 = vunpack.c.l.b16 %v175
  %v983 = vunpack.c.h.b16 %v175
  %v984 = vunpack.c.l.b16 %v176
  %v985 = vunpack.c.h.b16 %v176
  %v986 = vunpack.c.l.b16 %v177
  %v987 = vunpack.c.h.b16 %v177
  %v988 = vunpack.c.l.b16 %v178
  %v989 = vunpack.c.h.b16 %v178
  %v990 = vunpack.c.l.b16 %v179
  %v991 = vunpack.c.h.b16 %v179
  %v992 = vunpack.c.l.b16 %v180
  %v993 = vunpack.c.h.b16 %v180
  %v994 = vunpack.c.l.b16 %v181
  %v995 = vunpack.c.h.b16 %v181
  %v996 = vunpack.c.l.b16 %v182
  %v997 = vunpack.c.h.b16 %v182
  %v998 = vunpack.c.l.b16 %v183
  %v999 = vunpack.c.h.b16 %v183
  %v1000 = vunpack.c.l.b16 %v184
  %v1001 = vunpack.c.h.b16 %v184
  %v1002 = vunpack.c.l.b16 %v185
  %v1003 = vunpack.c.h.b16 %v185
  %v1004 = vunpack.c.l.b16 %v186
  %v1005 = vunpack.c.h.b16 %v186
  %v1006 = vunpack.c.l.b16 %v187
  %v1007 = vunpack.c.h.b16 %v187
  %v1008 = vunpack.c.l.b16 %v188
  %v1009 = vunpack.c.h.b16 %v188
  %v1010 = vunpack.c.l.b16 %v189
  %v1011 = vunpack.c.h.b16 %v189
  %v1012 = vunpack.c.l.b16 %v190
  %v1013 = vunpack.c.h.b16 %v190
  %v1014 = vunpack.c.l.b16 %v191
  %v1015 = vunpack.c.h.b16 %v191
  %v1016 = vunpack.c.l.b16 %v192
  %v1017 = vunpack.c.h.b16 %v192
  %v1018 = vunpack.c.l.b16 %v193
  %v1019 = vunpack.c.h.b16 %v193
  %v1020 = vunpack.c.l.b16 %v194
  %v1021 = vunpack.c.h.b16 %v194
  %v1022 = vunpack.c.l.b16 %v195
  %v1023 = vunpack.c.h.b16 %v195
  %v1024 = vunpack.c.l.b16 %v196
  %v1025 = vunpack.c.h.b16 %v196
  %v1026 = vunpack.c.l.b16 %v197
  %v1027 = vunpack.c.h.b16 %v197
  %v1028 = vunpack.c.l.b16 %v198
  %v1029 = vunpack.c.h.b16 %v198
  %v1030 = vunpack.c.l.b16 %v199
  %v1031 = vunpack.c.h.b16 %v199
  %v1032 = vunpack.c.l.b16 %v200
  %v1033 = vunpack.c.h.b16 %v200
  %v1034 = vunpack.c.l.b16 %v201
  %v1035 = vunpack.c.h.b16 %v201
  %v1036 = vunpack.c.l.b16 %v202
  %v1037 = vunpack.c.h.b16 %v202
  %v1038 = vunpack.c.l.b16 %v203
  %v1039 = vunpack.c.h.b16 %v203
  %v1040 = vunpack.c.l.b16 %v204
  %v1041 = vunpack.c.h.b16 %v204
  %v1042 = vunpack.c.l.b16 %v205
  %v1043 = vunpack.c.h.b16 %v205
  %v1044 = vunpack.c.l.b16 %v206
  %v1045 = vunpack.c.h.b16 %v206
  %v1046 = vunpack.c.l.b16 %v207
  %v1047 = vunpack.c.h.b16 %v207
  %v1048 = vunpack.c.l.b16 %v208
  %v1049 = vunpack.c.h.b16 %v208
  %v1050 = vunpack.c.l.b16 %v209
  %v1051 = vunpack.c.h.b16 %v209
  %v1052 = vunpack.c.l.b16 %v210
  %v1053 = vunpack.c.h.b16 %v210
  %v1054 = vunpack.c.l.b16 %v211
  %v1055 = vunpack.c.h.b16 %v211
  %v1056 = vunpack.c.l.b16 %v212
  %v1057 = vunpack.c.h.b16 %v212
  %v1058 = vunpack.c.l.b16 %v213
  %v1059 = vunpack.c.h.b16 %v213
  %v1060 = vunpack.c.l.b16 %v214
  %v1061 = vunpack.c.h.b16 %v214
  %v1062 = vunpack.c.l.b16 %v215
  %v1063 = vunpack.c.h.b16 %v215
  %v1064 = vunpack.c.l.b16 %v216
  %v1065 = vunpack.c.h.b16 %v216
  %v1066 = vunpack.c.l.b16 %v217
  %v1067 = vunpack.c.h.b16 %v217
  %v1068 = vunpack.c.l.b16 %v218
  %v1069 = vunpack.c.h.b16 %v218
  %v1070 = vunpack.c.l.b16 %v219
  %v1071 = vunpack.c.h.b16 %v219
  %v1072 = vunpack.c.l.b16 %v220
  %v1073 = vunpack.c.h.b16 %v220
  %v1074 = vunpack.c.l.b16 %v221
  %v1075 = vunpack.c.h.b16 %v221
  %v1076 = vunpack.c.l.b16 %v222
  %v1077 = vunpack.c.h.b16 %v222
  %v1078 = vunpack.c.l.b16 %v223
  %v1079 = vunpack.c.h.b16 %v223
  %v1080 = vunpack.c.l.b16 %v224
  %v1081 = vunpack.c.h.b16 %v224
  %v1082 = vunpack.c.l.b16 %v225
  %v1083 = vunpack.c.h.b16 %v225
  %v1084 = vunpack.c.l.b16 %v226
  %v1085 = vunpack.c.h.b16 %v226
  %v1086 = vunpack.c.l.b16 %v227
  %v1087 = vunpack.c.h.b16 %v227
  %v1088 = vunpack.c.l.b16 %v228
  %v1089 = vunpack.c.h.b16 %v228
  %v1090 = vunpack.c.l.b16 %v229
  %v1091 = vunpack.c.h.b16 %v229
  %v1092 = vunpack.c.l.b16 %v230
  %v1093 = vunpack.c.h.b16 %v230
  %v1094 = vunpack.c.l.b16 %v231
  %v1095 = vunpack.c.h.b16 %v231
  %v1096 = vunpack.c.l.b16 %v232
  %v1097 = vunpack.c.h.b16 %v232
  %v1098 = vunpack.c.l.b16 %v233
  %v1099 = vunpack.c.h.b16 %v233
  %v1100 = vunpack.c.l.b16 %v234
  %v1101 = vunpack.c.h.b16 %v234
  %v1102 = vunpack.c.l.b16 %v235
  %v1103 = vunpack.c.h.b16 %v235
  %v1104 = vunpack.c.l.b16 %v236
  %v1105 = vunpack.c.h.b16 %v236
  %v1106 = vunpack.c.l.b16 %v237
  %v1107 = vunpack.c.h.b16 %v237
  %v1108 = vunpack.c.l.b16 %v238
  %v1109 = vunpack.c.h.b16 %v238
  %v1110 = vunpack.c.l.b16 %v239
  %v1111 = vunpack.c.h.b16 %v239
  %v1112 = vunpack.c.l.b16 %v240
  %v1113 = vunpack.c.h.b16 %v240
  %v1114 = vunpack.c.l.b16 %v241
  %v1115 = vunpack.c.h.b16 %v241
  %v1116 = vunpack.c.l.b16 %v242
  %v1117 = vunpack.c.h.b16 %v242
  %v1118 = vunpack.c.l.b16 %v243
  %v1119 = vunpack.c.h.b16 %v243
  %v1120 = vunpack.c.l.b16 %v244
  %v1121 = vunpack.c.h.b16 %v244
  %v1122 = vunpack.c.l.b16 %v245
  %v1123 = vunpack.c.h.b16 %v245
  %v1124 = vunpack.c.l.b16 %v246
  %v1125 = vunpack.c.h.b16 %v246
  %v1126 = vunpack.c.l.b16 %v247
  %v1127 = vunpack.c.h.b16 %v247
  %v1128 = vunpack.c.l.b16 %v248
  %v1129 = vunpack.c.h.b16 %v248
  %v1130 = vunpack.c.l.b16 %v249
  %v1131 = vunpack.c.h.b16 %v249
  %v1132 = vunpack.c.l.b16 %v250
  %v1133 = vunpack.c.h.b16 %v250
  %v1134 = vunpack.c.l.b16 %v251
  %v1135 = vunpack.c.h.b16 %v251
  %v1136 = vunpack.c.l.b16 %v252
  %v1137 = vunpack.c.h.b16 %v252
  %v1138 = vunpack.c.l.b16 %v253
  %v1139 = vunpack.c.h.b16 %v253
  %v1140 = vunpack.c.l.b16 %v254
  %v1141 = vunpack.c.h.b16 %v254
  %v1142 = vunpack.c.l.b16 %v255
  %v1143 = vunpack.c.h.b16 %v255
  %v1144 = vunpack.c.l.b16 %v256
  %v1145 = vunpack.c.h.b16 %v256
  %v1146 = vunpack.c.l.b16 %v257
  %v1147 = vunpack.c.h.b16 %v257
  %v1148 = vunpack.c.l.b16 %v258
  %v1149 = vunpack.c.h.b16 %v258
  %v1150 = vunpack.c.l.b16 %v259
  %v1151 = vunpack.c.h.b16 %v259
  %v1152 = vunpack.c.l.b16 %v260
  %v1153 = vunpack.c.h.b16 %v260
  %v1154 = vunpack.c.l.b16 %v261
  %v1155 = vunpack.c.h.b16 %v261
  %v1156 = vunpack.c.l.b16 %v262
  %v1157 = vunpack.c.h.b16 %v262
  %v1158 = vunpack.c.l.b16 %v263
  %v1159 = vunpack.c.h.b16 %v263
  %v1160 = vunpack.c.l.b16 %v264
  %v1161 = vunpack.c.h.b16 %v264
  %v1162 = vunpack.c.l.b16 %v265
  %v1163 = vunpack.c.h.b16 %v265
  %v1164 = vunpack.c.l.b16 %v266
  %v1165 = vunpack.c.h.b16 %v266
  %v1166 = vunpack.c.l.b16 %v267
  %v1167 = vunpack.c.h.b16 %v267
  %v1168 = vunpack.c.l.b16 %v268
  %v1169 = vunpack.c.h.b16 %v268
  %v1170 = vunpack.c.l.b16 %v269
  %v1171 = vunpack.c.h.b16 %v269
  %v1172 = vunpack.c.l.b16 %v270
  %v1173 = vunpack.c.h.b16 %v270
  %v1174 = vunpack.c.l.b16 %v271
  %v1175 = vunpack.c.h.b16 %v271
  %v1176 = vunpack.c.l.b16 %v272
  %v1177 = vunpack.c.h.b16 %v272
  %v1178 = vunpack.c.l.b16 %v273
  %v1179 = vunpack.c.h.b16 %v273
  %v1180 = vunpack.c.l.b16 %v274
  %v1181 = vunpack.c.h.b16 %v274
  %v1182 = vunpack.c.l.b16 %v275
  %v1183 = vunpack.c.h.b16 %v275
  %v1184 = vunpack.c.l.b16 %v276
  %v1185 = vunpack.c.h.b16 %v276
  %v1186 = vunpack.c.l.b16 %v277
  %v1187 = vunpack.c.h.b16 %v277
  %v1188 = vunpack.c.l.b16 %v278
  %v1189 = vunpack.c.h.b16 %v278
  %v1190 = vunpack.c.l.b16 %v279
  %v1191 = vunpack.c.h.b16 %v279
  %v1192 = vunpack.c.l.b16 %v280
  %v1193 = vunpack.c.h.b16 %v280
  %v1194 = vunpack.c.l.b16 %v281
  %v1195 = vunpack.c.h.b16 %v281
  %v1196 = vunpack.c.l.b16 %v282
  %v1197 = vunpack.c.h.b16 %v282
  %v1198 = vunpack.c.l.b16 %v283
  %v1199 = vunpack.c.h.b16 %v283
  %v1200 = vunpack.c.l.b16 %v284
  %v1201 = vunpack.c.h.b16 %v284
  %v1202 = vunpack.c.l.b16 %v285
  %v1203 = vunpack.c.h.b16 %v285
  %v1204 = vunpack.c.l.b16 %v286
  %v1205 = vunpack.c.h.b16 %v286
  %v1206 = vunpack.c.l.b16 %v287
  %v1207 = vunpack.c.h.b16 %v287
  %v1208 = vunpack.c.l.b16 %v288
  %v1209 = vunpack.c.h.b16 %v288
  %v1210 = vunpack.c.l.b16 %v289
  %v1211 = vunpack.c.h.b16 %v289
  %v1212 = vunpack.c.l.b16 %v290
  %v1213 = vunpack.c.h.b16 %v290
  %v1214 = vunpack.c.l.b16 %v291
  %v1215 = vunpack.c.h.b16 %v291
  %v1216 = vunpack.c.l.b16 %v292
  %v1217 = vunpack.c.h.b16 %v292
  %v1218 = vunpack.c.l.b16 %v293
  %v1219 = vunpack.c.h.b16 %v293
  %v1220 = vunpack.c.l.b16 %v294
  %v1221 = vunpack.c.h.b16 %v294
  %v1222 = vunpack.c.l.b16 %v295
  %v1223 = vunpack.c.h.b16 %v295
  %v1224 = vunpack.c.l.b16 %v296
  %v1225 = vunpack.c.h.b16 %v296
  %v1226 = vunpack.c.l.b16 %v297
  %v1227 = vunpack.c.h.b16 %v297
  %v1228 = vunpack.c.l.b16 %v298
  %v1229 = vunpack.c.h.b16 %v298
  %v1230 = vunpack.c.l.b16 %v299
  %v1231 = vunpack.c.h.b16 %v299
  %v1232 = vunpack.c.l.b16 %v300
  %v1233 = vunpack.c.h.b16 %v300
  %v1234 = vunpack.c.l.b16 %v301
  %v1235 = vunpack.c.h.b16 %v301
  %v1236 = vunpack.c.l.b16 %v302
  %v1237 = vunpack.c.h.b16 %v302
  %v1238 = vunpack.c.l.b16 %v303
  %v1239 = vunpack.c.h.b16 %v303
  %v1240 = vunpack.c.l.b16 %v304
  %v1241 = vunpack.c.h.b16 %v304
  %v1242 = vunpack.c.l.b16 %v305
  %v1243 = vunpack.c.h.b16 %v305
  %v1244 = vunpack.c.l.b16 %v306
  %v1245 = vunpack.c.h.b16 %v306
  %v1246 = vunpack.c.l.b16 %v307
  %v1247 = vunpack.c.h.b16 %v307
  %v1248 = vpack.c.b16 %v738, %v736
  %v1249 = vpack.c.b16 %v739, %v737
  %v1250 = vpack.c.b16 %v742, %v740
  %v1251 = vpack.c.b16 %v743, %v741
  %v1252 = vpack.c.b16 %v746, %v744
  %v1253 = vpack.c.b16 %v747, %v745
  %v1254 = vpack.c.b16 %v750, %v748
  %v1255 = vpack.c.b16 %v751, %v749
  %v1256 = vpack.c.b16 %v754, %v752
  %v1257 = vpack.c.b16 %v755, %v753
  %v1258 = vpack.c.b16 %v758, %v756
  %v1259 = vpack.c.b16 %v759, %v757
  %v1260 = vpack.c.b16 %v762, %v760
  %v1261 = vpack.c.b16 %v763, %v761
  %v1262 = vpack.c.b16 %v766, %v764
  %v1263 = vpack.c.b16 %v767, %v765
  %v1264 = vpack.c.b16 %v770, %v768
  %v1265 = vpack.c.b16 %v771, %v769
  %v1266 = vpack.c.b16 %v774, %v772
  %v1267 = vpack.c.b16 %v775, %v773
  %v1268 = vpack.c.b16 %v778, %v776
  %v1269 = vpack.c.b16 %v779, %v777
  %v1270 = vpack.c.b16 %v782, %v780
  %v1271 = vpack.c.b16 %v783, %v781
  %v1272 = vpack.c.b16 %v786, %v784
  %v1273 = vpack.c.b16 %v787, %v785
  %v1274 = vpack.c.b16 %v790, %v788
  %v1275 = vpack.c.b16 %v791, %v789
  %v1276 = vpack.c.b16 %v794, %v792
  %v1277 = vpack.c.b16 %v795, %v793
  %v1278 = vpack.c.b16 %v798, %v796
  %v1279 = vpack.c.b16 %v799, %v797
  %v1280 = vpack.c.b16 %v802, %v800
  %v1281 = vpack.c.b16 %v803, %v801
  %v1282 = vpack.c.b16 %v806, %v804
  %v1283 = vpack.c.b16 %v807, %v805
  %v1284 = vpack.c.b16 %v810, %v808
  %v1285 = vpack.c.b16 %v811, %v809
  %v1286 = vpack.c.b16 %v814, %v812
  %v1287 = vpack.c.b16 %v815, %v813
  %v1288 = vpack.c.b16 %v818, %v816
  %v1289 = vpack.c.b16 %v819, %v817
  %v1290 = vpack.c.b16 %v822, %v820
  %v1291 = vpack.c.b16 %v823, %v821
  %v1292 = vpack.c.b16 %v826, %v824
  %v1293 = vpack.c.b16 %v827, %v825
  %v1294 = vpack.c.b16 %v830, %v828
  %v1295 = vpack.c.b16 %v831, %v829
  %v1296 = vpack.c.b16 %v834, %v832
  %v1297 = vpack.c.b16 %v835, %v833
  %v1298 = vpack.c.b16 %v838, %v836
  %v1299 = vpack.c.b16 %v839, %v837
  %v1300 = vpack.c.b16 %v842, %v840
  %v1301 = vpack.c.b16 %v843, %v841
  %v1302 = vpack.c.b16 %v846, %v844
  %v1303 = vpack.c.b16 %v847, %v845
  %v1304 = vpack.c.b16 %v850, %v848
  %v1305 = vpack.c.b16 %v851, %v849
  %v1306 = vpack.c.b16 %v854, %v852
  %v1307 = vpack.c.b16 %v855, %v853
  %v1308 = vpack.c.b16 %v858, %v856
  %v1309 = vpack.c.b16 %v859, %v857
  %v1310 = vpack.c.b16 %v862, %v860
  %v1311 = vpack.c.b16 %v863, %v861
  %v1312 = vpack.c.b16 %v866, %v864
  %v1313 = vpack.c.b16 %v867, %v865
  %v1314 = vpack.c.b16 %v870, %v868
  %v1315 = vpack.c.b16 %v871, %v869
  %v1316 = vpack.c.b16 %v874, %v872
  %v1317 = vpack.c.b16 %v875, %v873
  %v1318 = vpack.c.b16 %v878, %v876
  %v1319 = vpack.c.b16 %v879, %v877
  %v1320 = vpack.c.b16 %v882, %v880
  %v1321 = vpack.c.b16 %v883, %v881
  %v1322 = vpack.c.b16 %v886, %v884
  %v1323 = vpack.c.b16 %v887, %v885
  %v1324 = vpack.c.b16 %v890, %v888
  %v1325 = vpack.c.b16 %v891, %v889
  %v1326 = vpack.c.b16 %v894, %v892
  %v1327 = vpack.c.b16 %v895, %v893
  %v1328 = vpack.c.b16 %v898, %v896
  %v1329 = vpack.c.b16 %v899, %v897
  %v1330 = vpack.c.b16 %v902, %v900
  %v1331 = vpack.c.b16 %v903, %v901
  %v1332 = vpack.c.b16 %v906, %v904
  %v1333 = vpack.c.b16 %v907, %v905
  %v1334 = vpack.c.b16 %v910, %v908
  %v1335 = vpack.c.b16 %v911, %v909
  %v1336 = vpack.c.b16 %v914, %v912
  %v1337 = vpack.c.b16 %v915, %v913
  %v1338 = vpack.c.b16 %v918, %v916
  %v1339 = vpack.c.b16 %v919, %v917
  %v1340 = vpack.c.b16 %v922, %v920
  %v1341 = vpack.c.b16 %v923, %v921
  %v1342 = vpack.c.b16 %v926, %v924
  %v1343 = vpack.c.b16 %v927, %v925
  %v1344 = vpack.c.b16 %v930, %v928
  %v1345 = vpack.c.b16 %v931, %v929
  %v1346 = vpack.c.b16 %v934, %v932
  %v1347 = vpack.c.b16 %v935, %v933
  %v1348 = vpack.c.b16 %v938, %v936
  %v1349 = vpack.c.b16 %v939, %v937
  %v1350 = vpack.c.b16 %v942, %v940
  %v1351 = vpack.c.b16 %v943, %v941
  %v1352 = vpack.c.b16 %v946, %v944
  %v1353 = vpack.c.b16 %v947, %v945
  %v1354 = vpack.c.b16 %v950, %v948
  %v1355 = vpack.c.b16 %v951, %v949
  %v1356 = vpack.c.b16 %v954, %v952
  %v1357 = vpack.c.b16 %v955, %v953
  %v1358 = vpack.c.b16 %v958, %v956
  %v1359 = vpack.c.b16 %v959, %v957
  %v1360 = vpack.c.b16 %v962, %v960
  %v1361 = vpack.c.b16 %v963, %v961
  %v1362 = vpack.c.b16 %v966, %v964
  %v1363 = vpack.c.b16 %v967, %v965
  %v1364 = vpack.c.b16 %v970, %v968
  %v1365 = vpack.c.b16 %v971, %v969
  %v1366 = vpack.c.b16 %v974, %v972
  %v1367 = vpack.c.b16 %v975, %v973
  %v1368 = vpack.c.b16 %v978, %v976
  %v1369 = vpack.c.b16 %v979, %v977
  %v1370 = vpack.c.b16 %v982, %v980
  %v1371 = vpack.c.b16 %v983, %v981
  %v1372 = vpack.c.b16 %v986, %v984
  %v1373 = vpack.c.b16 %v987, %v985
  %v1374 = vpack.c.b16 %v990, %v988
  %v1375 = vpack.c.b16 %v991, %v989
  %v1376 = vpack.c.b16 %v994, %v992
  %v1377 = vpack.c.b16 %v995, %v993
  %v1378 = vpack.c.b16 %v998, %v996
  %v1379 = vpack.c.b16 %v999, %v997
  %v1380 = vpack.c.b16 %v1002, %v1000
  %v1381 = vpack.c.b16 %v1003, %v1001
  %v1382 = vpack.c.b16 %v1006, %v1004
  %v1383 = vpack.c.b16 %v1007, %v1005
  %v1384 = vpack.c.b16 %v1010, %v1008
  %v1385 = vpack.c.b16 %v1011, %v1009
  %v1386 = vpack.c.b16 %v1014, %v1012
  %v1387 = vpack.c.b16 %v1015, %v1013
  %v1388 = vpack.c.b16 %v1018, %v1016
  %v1389 = vpack.c.b16 %v1019, %v1017
  %v1390 = vpack.c.b16 %v1022, %v1020
  %v1391 = vpack.c.b16 %v1023, %v1021
  %v1392 = vpack.c.b16 %v1026, %v1024
  %v1393 = vpack.c.b16 %v1027, %v1025
  %v1394 = vpack.c.b16 %v1030, %v1028
  %v1395 = vpack.c.b16 %v1031, %v1029
  %v1396 = vpack.c.b16 %v1034, %v1032
  %v1397 = vpack.c.b16 %v1035, %v1033
  %v1398 = vpack.c.b16 %v1038, %v1036
  %v1399 = vpack.c.b16 %v1039, %v1037
  %v1400 = vpack.c.b16 %v1042, %v1040
  %v1401 = vpack.c.b16 %v1043, %v1041
  %v1402 = vpack.c.b16 %v1046, %v1044
  %v1403 = vpack.c.b16 %v1047, %v1045
  %v1404 = vpack.c.b16 %v1050, %v1048
  %v1405 = vpack.c.b16 %v1051, %v1049
  %v1406 = vpack.c.b16 %v1054, %v1052
  %v1407 = vpack.c.b16 %v1055, %v1053
  %v1408 = vpack.c.b16 %v1058, %v1056
  %v1409 = vpack.c.b16 %v1059, %v1057
  %v1410 = vpack.c.b16 %v1062, %v1060
  %v1411 = vpack.c.b16 %v1063, %v1061
  %v1412 = vpack.c.b16 %v1066, %v1064
  %v1413 = vpack.c.b16 %v1067, %v1065
  %v1414 = vpack.c.b16 %v1070, %v1068
  %v1415 = vpack.c.b16 %v1071, %v1069
  %v1416 = vpack.c.b16 %v1074, %v1072
  %v1417 = vpack.c.b16 %v1075, %v1073
  %v1418 = vpack.c.b16 %v1078, %v1076
  %v1419 = vpack.c.b16 %v1079, %v1077
  %v1420 = vpack.c.b16 %v1082, %v1080
  %v1421 = vpack.c.b16 %v1083, %v1081
  %v1422 = vpack.c.b16 %v1086, %v1084
  %v1423 = vpack.c.b16 %v1087, %v1085
  %v1424 = vpack.c.b16 %v1090, %v1088
  %v1425 = vpack.c.b16 %v1091, %v1089
  %v1426 = vpack.c.b16 %v1094, %v1092
  %v1427 = vpack.c.b16 %v1095, %v1093
  %v1428 = vpack.c.b16 %v1098, %v1096
  %v1429 = vpack.c.b16 %v1099, %v1097
  %v1430 = vpack.c.b16 %v1102, %v1100
  %v1431 = vpack.c.b16 %v1103, %v1101
  %v1432 = vpack.c.b16 %v1106, %v1104
  %v1433 = vpack.c.b16 %v1107, %v1105
  %v1434 = vpack.c.b16 %v1110, %v1108
  %v1435 = vpack.c.b16 %v1111, %v1109
  %v1436 = vpack.c.b16 %v1114, %v1112
  %v1437 = vpack.c.b16 %v1115, %v1113
  %v1438 = vpack.c.b16 %v1118, %v1116
  %v1439 = vpack.c.b16 %v1119, %v1117
  %v1440 = vpack.c.b16 %v1122, %v1120
  %v1441 = vpack.c.b16 %v1123, %v1121
  %v1442 = vpack.c.b16 %v1126, %v1124
  %v1443 = vpack.c.b16 %v1127, %v1125
  %v1444 = vpack.c.b16 %v1130, %v1128
  %v1445 = vpack.c.b16 %v1131, %v1129
  %v1446 = vpack.c.b16 %v1134, %v1132
  %v1447 = vpack.c.b16 %v1135, %v1133
  %v1448 = vpack.c.b16 %v1138, %v1136
  %v1449 = vpack.c.b16 %v1139, %v1137
  %v1450 = vpack.c.b16 %v1142, %v1140
  %v1451 = vpack.c.b16 %v1143, %v1141
  %v1452 = vpack.c.b16 %v1146, %v1144
  %v1453 = vpack.c.b16 %v1147, %v1145
  %v1454 = vpack.c.b16 %v1150, %v1148
  %v1455 = vpack.c.b16 %v1151, %v1149
  %v1456 = vpack.c.b16 %v1154, %v1152
  %v1457 = vpack.c.b16 %v1155, %v1153
  %v1458 = vpack.c.b16 %v1158, %v1156
  %v1459 = vpack.c.b16 %v1159, %v1157
  %v1460 = vpack.c.b16 %v1162, %v1160
  %v1461 = vpack.c.b16 %v1163, %v1161
  %v1462 = vpack.c.b16 %v1166, %v1164
  %v1463 = vpack.c.b16 %v1167, %v1165
  %v1464 = vpack.c.b16 %v1170, %v1168
  %v1465 = vpack.c.b16 %v1171, %v1169
  %v1466 = vpack.c.b16 %v1174, %v1172
  %v1467 = vpack.c.b16 %v1175, %v1173
  %v1468 = vpack.c.b16 %v1178, %v1176
  %v1469 = vpack.c.b16 %v1179, %v1177
  %v1470 = vpack.c.b16 %v1182, %v1180
  %v1471 = vpack.c.b16 %v1183, %v1181
  %v1472 = vpack.c.b16 %v1186, %v1184
  %v1473 = vpack.c.b16 %v1187, %v1185
  %v1474 = vpack.c.b16 %v1190, %v1188
  %v1475 = vpack.c.b16 %v1191, %v1189
  %v1476 = vpack.c.b16 %v1194, %v1192
  %v1477 = vpack.c.b16 %v1195, %v1193
  %v1478 = vpack.c.b16 %v1198, %v1196
  %v1479 = vpack.c.b16 %v1199, %v1197
  %v1480 = vpack.c.b16 %v1202, %v1200
  %v1481 = vpack.c.b16 %v1203, %v1201
  %v1482 = vpack.c.b16 %v1206, %v1204
  %v1483 = vpack.c.b16 %v1207, %v1205
  %v1484 = vpack.c.b16 %v1210, %v1208
  %v1485 = vpack.c.b16 %v1211, %v1209
  %v1486 = vpack.c.b16 %v1214, %v1212
  %v1487 = vpack.c.b16 %v1215, %v1213
  %v1488 = vpack.c.b16 %v1218, %v1216
  %v1489 = vpack.c.b16 %v1219, %v1217
  %v1490 = vpack.c.b16 %v1222, %v1220
  %v1491 = vpack.c.b16 %v1223, %v1221
  %v1492 = vpack.c.b16 %v1226, %v1224
  %v1493 = vpack.c.b16 %v1227, %v1225
  %v1494 = vpack.c.b16 %v1230, %v1228
  %v1495 = vpack.c.b16 %v1231, %v1229
  %v1496 = vpack.c.b16 %v1234, %v1232
  %v1497 = vpack.c.b16 %v1235, %v1233
  %v1498 = vpack.c.b16 %v1238, %v1236
  %v1499 = vpack.c.b16 %v1239, %v1237
  %v1500 = vpack.c.b16 %v1242, %v1240
  %v1501 = vpack.c.b16 %v1243, %v1241
  %v1502 = vpack.c.b16 %v1246, %v1244
  %v1503 = vpack.c.b16 %v1247, %v1245
  %1760 = vmatprep.subr.bf16.mxu0 %v1249
  %1761 = vmatpush1.bf16.msra.mxu0 %v1248
  %1762 = vmatprep.subr.bf16.mxu0 %v1251
  %1763 = vmatpush1.bf16.msra.mxu0 %v1250
  %1764 = vmatprep.subr.bf16.mxu0 %v1253
  %1765 = vmatpush1.bf16.msra.mxu0 %v1252
  %1766 = vmatprep.subr.bf16.mxu0 %v1255
  %1767 = vmatpush1.bf16.msra.mxu0 %v1254
  %1768 = vmatprep.subr.bf16.mxu0 %v1257
  %1769 = vmatpush1.bf16.msra.mxu0 %v1256
  %1770 = vmatprep.subr.bf16.mxu0 %v1259
  %1771 = vmatpush1.bf16.msra.mxu0 %v1258
  %1772 = vmatprep.subr.bf16.mxu0 %v1261
  %1773 = vmatpush1.bf16.msra.mxu0 %v1260
  %1774 = vmatprep.subr.bf16.mxu0 %v1263
  %1775 = vmatpush1.bf16.msra.mxu0 %v1262
  %1776 = vmatprep.subr.bf16.mxu0 %v1265
  %1777 = vmatpush1.bf16.msra.mxu0 %v1264
  %1778 = vmatprep.subr.bf16.mxu0 %v1267
  %1779 = vmatpush1.bf16.msra.mxu0 %v1266
  %1780 = vmatprep.subr.bf16.mxu0 %v1269
  %1781 = vmatpush1.bf16.msra.mxu0 %v1268
  %1782 = vmatprep.subr.bf16.mxu0 %v1271
  %1783 = vmatpush1.bf16.msra.mxu0 %v1270
  %1784 = vmatprep.subr.bf16.mxu0 %v1273
  %1785 = vmatpush1.bf16.msra.mxu0 %v1272
  %1786 = vmatprep.subr.bf16.mxu0 %v1275
  %1787 = vmatpush1.bf16.msra.mxu0 %v1274
  %1788 = vmatprep.subr.bf16.mxu0 %v1277
  %1789 = vmatpush1.bf16.msra.mxu0 %v1276
  %1790 = vmatprep.subr.bf16.mxu0 %v1279
  %1791 = vmatpush1.bf16.msra.mxu0 %v1278
  %1792 = vmatprep.mubr.bf16.mxu0 %v417
  %1793 = vmatmul.mubr.bf16.gmra.mrb[0].mxu0 %v416
  %v1794 = vpop.f32.mrb[0].mxu0
  %v1795 = vadd.f32 %v313, %v1794
  %v1796 = vpop.f32.mrb[0].mxu0
  %v1797 = vadd.f32 %v317, %v1796
  %v1798 = vpop.f32.mrb[0].mxu0
  %v1799 = vadd.f32 %v313, %v1798
  %v1800 = vpop.f32.mrb[0].mxu0
  %v1801 = vadd.f32 %v317, %v1800
  %1802 = vmatprep.mubr.bf16.mxu0 %v433
  %1803 = vmatmul.mubr.bf16.gmra.mrb[0].mxu0 %v432
  %v1804 = vpop.f32.mrb[0].mxu0
  %v1805 = vadd.f32 %v313, %v1804
  %v1806 = vpop.f32.mrb[0].mxu0
  %v1807 = vadd.f32 %v317, %v1806
  %v1808 = vpop.f32.mrb[0].mxu0
  %v1809 = vadd.f32 %v313, %v1808
  %v1810 = vpop.f32.mrb[0].mxu0
  %v1811 = vadd.f32 %v317, %v1810
  %1812 = vdwg.mxu0
  %1813 = vmatprep.subr.bf16.mxu0 %v1281
  %1814 = vmatpush1.bf16.msra.mxu0 %v1280
  %1815 = vmatprep.subr.bf16.mxu0 %v1283
  %1816 = vmatpush1.bf16.msra.mxu0 %v1282
  %1817 = vmatprep.subr.bf16.mxu0 %v1285
  %1818 = vmatpush1.bf16.msra.mxu0 %v1284
  %1819 = vmatprep.subr.bf16.mxu0 %v1287
  %1820 = vmatpush1.bf16.msra.mxu0 %v1286
  %1821 = vmatprep.subr.bf16.mxu0 %v1289
  %1822 = vmatpush1.bf16.msra.mxu0 %v1288
  %1823 = vmatprep.subr.bf16.mxu0 %v1291
  %1824 = vmatpush1.bf16.msra.mxu0 %v1290
  %1825 = vmatprep.subr.bf16.mxu0 %v1293
  %1826 = vmatpush1.bf16.msra.mxu0 %v1292
  %1827 = vmatprep.subr.bf16.mxu0 %v1295
  %1828 = vmatpush1.bf16.msra.mxu0 %v1294
  %1829 = vmatprep.subr.bf16.mxu0 %v1297
  %1830 = vmatpush1.bf16.msra.mxu0 %v1296
  %1831 = vmatprep.subr.bf16.mxu0 %v1299
  %1832 = vmatpush1.bf16.msra.mxu0 %v1298
  %1833 = vmatprep.subr.bf16.mxu0 %v1301
  %1834 = vmatpush1.bf16.msra.mxu0 %v1300
  %1835 = vmatprep.subr.bf16.mxu0 %v1303
  %1836 = vmatpush1.bf16.msra.mxu0 %v1302
  %1837 = vmatprep.subr.bf16.mxu0 %v1305
  %1838 = vmatpush1.bf16.msra.mxu0 %v1304
  %1839 = vmatprep.subr.bf16.mxu0 %v1307
  %1840 = vmatpush1.bf16.msra.mxu0 %v1306
  %1841 = vmatprep.subr.bf16.mxu0 %v1309
  %1842 = vmatpush1.bf16.msra.mxu0 %v1308
  %1843 = vmatprep.subr.bf16.mxu0 %v1311
  %1844 = vmatpush1.bf16.msra.mxu0 %v1310
  %1845 = vmatprep.mubr.bf16.mxu0 %v419
  %1846 = vmatmul.mubr.bf16.gmra.mrb[0].mxu0 %v418
  %v1847 = vpop.f32.mrb[0].mxu0
  %v1848 = vadd.f32 %v1795, %v1847
  %v1849 = vpop.f32.mrb[0].mxu0
  %v1850 = vadd.f32 %v1797, %v1849
  %v1851 = vpop.f32.mrb[0].mxu0
  %v1852 = vadd.f32 %v1799, %v1851
  %v1853 = vpop.f32.mrb[0].mxu0
  %v1854 = vadd.f32 %v1801, %v1853
  %1855 = vmatprep.mubr.bf16.mxu0 %v435
  %1856 = vmatmul.mubr.bf16.gmra.mrb[0].mxu0 %v434
  %v1857 = vpop.f32.mrb[0].mxu0
  %v1858 = vadd.f32 %v1805, %v1857
  %v1859 = vpop.f32.mrb[0].mxu0
  %v1860 = vadd.f32 %v1807, %v1859
  %v1861 = vpop.f32.mrb[0].mxu0
  %v1862 = vadd.f32 %v1809, %v1861
  %v1863 = vpop.f32.mrb[0].mxu0
  %v1864 = vadd.f32 %v1811, %v1863
  %1865 = vdwg.mxu0
  %1866 = vmatprep.subr.bf16.mxu0 %v1313
  %1867 = vmatpush1.bf16.msra.mxu0 %v1312
  %1868 = vmatprep.subr.bf16.mxu0 %v1315
  %1869 = vmatpush1.bf16.msra.mxu0 %v1314
  %1870 = vmatprep.subr.bf16.mxu0 %v1317
  %1871 = vmatpush1.bf16.msra.mxu0 %v1316
  %1872 = vmatprep.subr.bf16.mxu0 %v1319
  %1873 = vmatpush1.bf16.msra.mxu0 %v1318
  %1874 = vmatprep.subr.bf16.mxu0 %v1321
  %1875 = vmatpush1.bf16.msra.mxu0 %v1320
  %1876 = vmatprep.subr.bf16.mxu0 %v1323
  %1877 = vmatpush1.bf16.msra.mxu0 %v1322
  %1878 = vmatprep.subr.bf16.mxu0 %v1325
  %1879 = vmatpush1.bf16.msra.mxu0 %v1324
  %1880 = vmatprep.subr.bf16.mxu0 %v1327
  %1881 = vmatpush1.bf16.msra.mxu0 %v1326
  %1882 = vmatprep.subr.bf16.mxu0 %v1329
  %1883 = vmatpush1.bf16.msra.mxu0 %v1328
  %1884 = vmatprep.subr.bf16.mxu0 %v1331
  %1885 = vmatpush1.bf16.msra.mxu0 %v1330
  %1886 = vmatprep.subr.bf16.mxu0 %v1333
  %1887 = vmatpush1.bf16.msra.mxu0 %v1332
  %1888 = vmatprep.subr.bf16.mxu0 %v1335
  %1889 = vmatpush1.bf16.msra.mxu0 %v1334
  %1890 = vmatprep.subr.bf16.mxu0 %v1337
  %1891 = vmatpush1.bf16.msra.mxu0 %v1336
  %1892 = vmatprep.subr.bf16.mxu0 %v1339
  %1893 = vmatpush1.bf16.msra.mxu0 %v1338
  %1894 = vmatprep.subr.bf16.mxu0 %v1341
  %1895 = vmatpush1.bf16.msra.mxu0 %v1340
  %1896 = vmatprep.subr.bf16.mxu0 %v1343
  %1897 = vmatpush1.bf16.msra.mxu0 %v1342
  %1898 = vmatprep.mubr.bf16.mxu0 %v421
  %1899 = vmatmul.mubr.bf16.gmra.mrb[0].mxu0 %v420
  %v1900 = vpop.f32.mrb[0].mxu0
  %v1901 = vadd.f32 %v1848, %v1900
  %v1902 = vpop.f32.mrb[0].mxu0
  %v1903 = vadd.f32 %v1850, %v1902
  %v1904 = vpop.f32.mrb[0].mxu0
  %v1905 = vadd.f32 %v1852, %v1904
  %v1906 = vpop.f32.mrb[0].mxu0
  %v1907 = vadd.f32 %v1854, %v1906
  %1908 = vmatprep.mubr.bf16.mxu0 %v437
  %1909 = vmatmul.mubr.bf16.gmra.mrb[0].mxu0 %v436
  %v1910 = vpop.f32.mrb[0].mxu0
  %v1911 = vadd.f32 %v1858, %v1910
  %v1912 = vpop.f32.mrb[0].mxu0
  %v1913 = vadd.f32 %v1860, %v1912
  %v1914 = vpop.f32.mrb[0].mxu0
  %v1915 = vadd.f32 %v1862, %v1914
  %v1916 = vpop.f32.mrb[0].mxu0
  %v1917 = vadd.f32 %v1864, %v1916
  %1918 = vdwg.mxu0
  %1919 = vmatprep.subr.bf16.mxu0 %v1345
  %1920 = vmatpush1.bf16.msra.mxu0 %v1344
  %1921 = vmatprep.subr.bf16.mxu0 %v1347
  %1922 = vmatpush1.bf16.msra.mxu0 %v1346
  %1923 = vmatprep.subr.bf16.mxu0 %v1349
  %1924 = vmatpush1.bf16.msra.mxu0 %v1348
  %1925 = vmatprep.subr.bf16.mxu0 %v1351
  %1926 = vmatpush1.bf16.msra.mxu0 %v1350
  %1927 = vmatprep.subr.bf16.mxu0 %v1353
  %1928 = vmatpush1.bf16.msra.mxu0 %v1352
  %1929 = vmatprep.subr.bf16.mxu0 %v1355
  %1930 = vmatpush1.bf16.msra.mxu0 %v1354
  %1931 = vmatprep.subr.bf16.mxu0 %v1357
  %1932 = vmatpush1.bf16.msra.mxu0 %v1356
  %1933 = vmatprep.subr.bf16.mxu0 %v1359
  %1934 = vmatpush1.bf16.msra.mxu0 %v1358
  %1935 = vmatprep.subr.bf16.mxu0 %v1361
  %1936 = vmatpush1.bf16.msra.mxu0 %v1360
  %1937 = vmatprep.subr.bf16.mxu0 %v1363
  %1938 = vmatpush1.bf16.msra.mxu0 %v1362
  %1939 = vmatprep.subr.bf16.mxu0 %v1365
  %1940 = vmatpush1.bf16.msra.mxu0 %v1364
  %1941 = vmatprep.subr.bf16.mxu0 %v1367
  %1942 = vmatpush1.bf16.msra.mxu0 %v1366
  %1943 = vmatprep.subr.bf16.mxu0 %v1369
  %1944 = vmatpush1.bf16.msra.mxu0 %v1368
  %1945 = vmatprep.subr.bf16.mxu0 %v1371
  %1946 = vmatpush1.bf16.msra.mxu0 %v1370
  %1947 = vmatprep.subr.bf16.mxu0 %v1373
  %1948 = vmatpush1.bf16.msra.mxu0 %v1372
  %1949 = vmatprep.subr.bf16.mxu0 %v1375
  %1950 = vmatpush1.bf16.msra.mxu0 %v1374
  %1951 = vmatprep.mubr.bf16.mxu0 %v423
  %1952 = vmatmul.mubr.bf16.gmra.mrb[0].mxu0 %v422
  %v1953 = vpop.f32.mrb[0].mxu0
  %v1954 = vadd.f32 %v1901, %v1953
  %v1955 = vpop.f32.mrb[0].mxu0
  %v1956 = vadd.f32 %v1903, %v1955
  %v1957 = vpop.f32.mrb[0].mxu0
  %v1958 = vadd.f32 %v1905, %v1957
  %v1959 = vpop.f32.mrb[0].mxu0
  %v1960 = vadd.f32 %v1907, %v1959
  %1961 = vmatprep.mubr.bf16.mxu0 %v439
  %1962 = vmatmul.mubr.bf16.gmra.mrb[0].mxu0 %v438
  %v1963 = vpop.f32.mrb[0].mxu0
  %v1964 = vadd.f32 %v1911, %v1963
  %v1965 = vpop.f32.mrb[0].mxu0
  %v1966 = vadd.f32 %v1913, %v1965
  %v1967 = vpop.f32.mrb[0].mxu0
  %v1968 = vadd.f32 %v1915, %v1967
  %v1969 = vpop.f32.mrb[0].mxu0
  %v1970 = vadd.f32 %v1917, %v1969
  %1971 = vdwg.mxu0
  %1972 = vmatprep.subr.bf16.mxu0 %v1377
  %1973 = vmatpush1.bf16.msra.mxu0 %v1376
  %1974 = vmatprep.subr.bf16.mxu0 %v1379
  %1975 = vmatpush1.bf16.msra.mxu0 %v1378
  %1976 = vmatprep.subr.bf16.mxu0 %v1381
  %1977 = vmatpush1.bf16.msra.mxu0 %v1380
  %1978 = vmatprep.subr.bf16.mxu0 %v1383
  %1979 = vmatpush1.bf16.msra.mxu0 %v1382
  %1980 = vmatprep.subr.bf16.mxu0 %v1385
  %1981 = vmatpush1.bf16.msra.mxu0 %v1384
  %1982 = vmatprep.subr.bf16.mxu0 %v1387
  %1983 = vmatpush1.bf16.msra.mxu0 %v1386
  %1984 = vmatprep.subr.bf16.mxu0 %v1389
  %1985 = vmatpush1.bf16.msra.mxu0 %v1388
  %1986 = vmatprep.subr.bf16.mxu0 %v1391
  %1987 = vmatpush1.bf16.msra.mxu0 %v1390
  %1988 = vmatprep.subr.bf16.mxu0 %v1393
  %1989 = vmatpush1.bf16.msra.mxu0 %v1392
  %1990 = vmatprep.subr.bf16.mxu0 %v1395
  %1991 = vmatpush1.bf16.msra.mxu0 %v1394
  %1992 = vmatprep.subr.bf16.mxu0 %v1397
  %1993 = vmatpush1.bf16.msra.mxu0 %v1396
  %1994 = vmatprep.subr.bf16.mxu0 %v1399
  %1995 = vmatpush1.bf16.msra.mxu0 %v1398
  %1996 = vmatprep.subr.bf16.mxu0 %v1401
  %1997 = vmatpush1.bf16.msra.mxu0 %v1400
  %1998 = vmatprep.subr.bf16.mxu0 %v1403
  %1999 = vmatpush1.bf16.msra.mxu0 %v1402
  %2000 = vmatprep.subr.bf16.mxu0 %v1405
  %2001 = vmatpush1.bf16.msra.mxu0 %v1404
  %2002 = vmatprep.subr.bf16.mxu0 %v1407
  %2003 = vmatpush1.bf16.msra.mxu0 %v1406
  %2004 = vmatprep.mubr.bf16.mxu0 %v425
  %2005 = vmatmul.mubr.bf16.gmra.mrb[0].mxu0 %v424
  %v2006 = vpop.f32.mrb[0].mxu0
  %v2007 = vadd.f32 %v1954, %v2006
  %v2008 = vpop.f32.mrb[0].mxu0
  %v2009 = vadd.f32 %v1956, %v2008
  %v2010 = vpop.f32.mrb[0].mxu0
  %v2011 = vadd.f32 %v1958, %v2010
  %v2012 = vpop.f32.mrb[0].mxu0
  %v2013 = vadd.f32 %v1960, %v2012
  %2014 = vmatprep.mubr.bf16.mxu0 %v441
  %2015 = vmatmul.mubr.bf16.gmra.mrb[0].mxu0 %v440
  %v2016 = vpop.f32.mrb[0].mxu0
  %v2017 = vadd.f32 %v1964, %v2016
  %v2018 = vpop.f32.mrb[0].mxu0
  %v2019 = vadd.f32 %v1966, %v2018
  %v2020 = vpop.f32.mrb[0].mxu0
  %v2021 = vadd.f32 %v1968, %v2020
  %v2022 = vpop.f32.mrb[0].mxu0
  %v2023 = vadd.f32 %v1970, %v2022
  %2024 = vdwg.mxu0
  %2025 = vmatprep.subr.bf16.mxu0 %v1409
  %2026 = vmatpush1.bf16.msra.mxu0 %v1408
  %2027 = vmatprep.subr.bf16.mxu0 %v1411
  %2028 = vmatpush1.bf16.msra.mxu0 %v1410
  %2029 = vmatprep.subr.bf16.mxu0 %v1413
  %2030 = vmatpush1.bf16.msra.mxu0 %v1412
  %2031 = vmatprep.subr.bf16.mxu0 %v1415
  %2032 = vmatpush1.bf16.msra.mxu0 %v1414
  %2033 = vmatprep.subr.bf16.mxu0 %v1417
  %2034 = vmatpush1.bf16.msra.mxu0 %v1416
  %2035 = vmatprep.subr.bf16.mxu0 %v1419
  %2036 = vmatpush1.bf16.msra.mxu0 %v1418
  %2037 = vmatprep.subr.bf16.mxu0 %v1421
  %2038 = vmatpush1.bf16.msra.mxu0 %v1420
  %2039 = vmatprep.subr.bf16.mxu0 %v1423
  %2040 = vmatpush1.bf16.msra.mxu0 %v1422
  %2041 = vmatprep.subr.bf16.mxu0 %v1425
  %2042 = vmatpush1.bf16.msra.mxu0 %v1424
  %2043 = vmatprep.subr.bf16.mxu0 %v1427
  %2044 = vmatpush1.bf16.msra.mxu0 %v1426
  %2045 = vmatprep.subr.bf16.mxu0 %v1429
  %2046 = vmatpush1.bf16.msra.mxu0 %v1428
  %2047 = vmatprep.subr.bf16.mxu0 %v1431
  %2048 = vmatpush1.bf16.msra.mxu0 %v1430
  %2049 = vmatprep.subr.bf16.mxu0 %v1433
  %2050 = vmatpush1.bf16.msra.mxu0 %v1432
  %2051 = vmatprep.subr.bf16.mxu0 %v1435
  %2052 = vmatpush1.bf16.msra.mxu0 %v1434
  %2053 = vmatprep.subr.bf16.mxu0 %v1437
  %2054 = vmatpush1.bf16.msra.mxu0 %v1436
  %2055 = vmatprep.subr.bf16.mxu0 %v1439
  %2056 = vmatpush1.bf16.msra.mxu0 %v1438
  %2057 = vmatprep.mubr.bf16.mxu0 %v427
  %2058 = vmatmul.mubr.bf16.gmra.mrb[0].mxu0 %v426
  %v2059 = vpop.f32.mrb[0].mxu0
  %v2060 = vadd.f32 %v2007, %v2059
  %v2061 = vpop.f32.mrb[0].mxu0
  %v2062 = vadd.f32 %v2009, %v2061
  %v2063 = vpop.f32.mrb[0].mxu0
  %v2064 = vadd.f32 %v2011, %v2063
  %v2065 = vpop.f32.mrb[0].mxu0
  %v2066 = vadd.f32 %v2013, %v2065
  %2067 = vmatprep.mubr.bf16.mxu0 %v443
  %2068 = vmatmul.mubr.bf16.gmra.mrb[0].mxu0 %v442
  %v2069 = vpop.f32.mrb[0].mxu0
  %v2070 = vadd.f32 %v2017, %v2069
  %v2071 = vpop.f32.mrb[0].mxu0
  %v2072 = vadd.f32 %v2019, %v2071
  %v2073 = vpop.f32.mrb[0].mxu0
  %v2074 = vadd.f32 %v2021, %v2073
  %v2075 = vpop.f32.mrb[0].mxu0
  %v2076 = vadd.f32 %v2023, %v2075
  %2077 = vdwg.mxu0
  %2078 = vmatprep.subr.bf16.mxu0 %v1441
  %2079 = vmatpush1.bf16.msra.mxu0 %v1440
  %2080 = vmatprep.subr.bf16.mxu0 %v1443
  %2081 = vmatpush1.bf16.msra.mxu0 %v1442
  %2082 = vmatprep.subr.bf16.mxu0 %v1445
  %2083 = vmatpush1.bf16.msra.mxu0 %v1444
  %2084 = vmatprep.subr.bf16.mxu0 %v1447
  %2085 = vmatpush1.bf16.msra.mxu0 %v1446
  %2086 = vmatprep.subr.bf16.mxu0 %v1449
  %2087 = vmatpush1.bf16.msra.mxu0 %v1448
  %2088 = vmatprep.subr.bf16.mxu0 %v1451
  %2089 = vmatpush1.bf16.msra.mxu0 %v1450
  %2090 = vmatprep.subr.bf16.mxu0 %v1453
  %2091 = vmatpush1.bf16.msra.mxu0 %v1452
  %2092 = vmatprep.subr.bf16.mxu0 %v1455
  %2093 = vmatpush1.bf16.msra.mxu0 %v1454
  %2094 = vmatprep.subr.bf16.mxu0 %v1457
  %2095 = vmatpush1.bf16.msra.mxu0 %v1456
  %2096 = vmatprep.subr.bf16.mxu0 %v1459
  %2097 = vmatpush1.bf16.msra.mxu0 %v1458
  %2098 = vmatprep.subr.bf16.mxu0 %v1461
  %2099 = vmatpush1.bf16.msra.mxu0 %v1460
  %2100 = vmatprep.subr.bf16.mxu0 %v1463
  %2101 = vmatpush1.bf16.msra.mxu0 %v1462
  %2102 = vmatprep.subr.bf16.mxu0 %v1465
  %2103 = vmatpush1.bf16.msra.mxu0 %v1464
  %2104 = vmatprep.subr.bf16.mxu0 %v1467
  %2105 = vmatpush1.bf16.msra.mxu0 %v1466
  %2106 = vmatprep.subr.bf16.mxu0 %v1469
  %2107 = vmatpush1.bf16.msra.mxu0 %v1468
  %2108 = vmatprep.subr.bf16.mxu0 %v1471
  %2109 = vmatpush1.bf16.msra.mxu0 %v1470
  %2110 = vmatprep.mubr.bf16.mxu0 %v429
  %2111 = vmatmul.mubr.bf16.gmra.mrb[0].mxu0 %v428
  %v2112 = vpop.f32.mrb[0].mxu0
  %v2113 = vadd.f32 %v2060, %v2112
  %v2114 = vpop.f32.mrb[0].mxu0
  %v2115 = vadd.f32 %v2062, %v2114
  %v2116 = vpop.f32.mrb[0].mxu0
  %v2117 = vadd.f32 %v2064, %v2116
  %v2118 = vpop.f32.mrb[0].mxu0
  %v2119 = vadd.f32 %v2066, %v2118
  %2120 = vmatprep.mubr.bf16.mxu0 %v445
  %2121 = vmatmul.mubr.bf16.gmra.mrb[0].mxu0 %v444
  %v2122 = vpop.f32.mrb[0].mxu0
  %v2123 = vadd.f32 %v2070, %v2122
  %v2124 = vpop.f32.mrb[0].mxu0
  %v2125 = vadd.f32 %v2072, %v2124
  %v2126 = vpop.f32.mrb[0].mxu0
  %v2127 = vadd.f32 %v2074, %v2126
  %v2128 = vpop.f32.mrb[0].mxu0
  %v2129 = vadd.f32 %v2076, %v2128
  %2130 = vdwg.mxu0
  %2131 = vmatprep.subr.bf16.mxu0 %v1473
  %2132 = vmatpush1.bf16.msra.mxu0 %v1472
  %2133 = vmatprep.subr.bf16.mxu0 %v1475
  %2134 = vmatpush1.bf16.msra.mxu0 %v1474
  %2135 = vmatprep.subr.bf16.mxu0 %v1477
  %2136 = vmatpush1.bf16.msra.mxu0 %v1476
  %2137 = vmatprep.subr.bf16.mxu0 %v1479
  %2138 = vmatpush1.bf16.msra.mxu0 %v1478
  %2139 = vmatprep.subr.bf16.mxu0 %v1481
  %2140 = vmatpush1.bf16.msra.mxu0 %v1480
  %2141 = vmatprep.subr.bf16.mxu0 %v1483
  %2142 = vmatpush1.bf16.msra.mxu0 %v1482
  %2143 = vmatprep.subr.bf16.mxu0 %v1485
  %2144 = vmatpush1.bf16.msra.mxu0 %v1484
  %2145 = vmatprep.subr.bf16.mxu0 %v1487
  %2146 = vmatpush1.bf16.msra.mxu0 %v1486
  %2147 = vmatprep.subr.bf16.mxu0 %v1489
  %2148 = vmatpush1.bf16.msra.mxu0 %v1488
  %2149 = vmatprep.subr.bf16.mxu0 %v1491
  %2150 = vmatpush1.bf16.msra.mxu0 %v1490
  %2151 = vmatprep.subr.bf16.mxu0 %v1493
  %2152 = vmatpush1.bf16.msra.mxu0 %v1492
  %2153 = vmatprep.subr.bf16.mxu0 %v1495
  %2154 = vmatpush1.bf16.msra.mxu0 %v1494
  %2155 = vmatprep.subr.bf16.mxu0 %v1497
  %2156 = vmatpush1.bf16.msra.mxu0 %v1496
  %2157 = vmatprep.subr.bf16.mxu0 %v1499
  %2158 = vmatpush1.bf16.msra.mxu0 %v1498
  %2159 = vmatprep.subr.bf16.mxu0 %v1501
  %2160 = vmatpush1.bf16.msra.mxu0 %v1500
  %2161 = vmatprep.subr.bf16.mxu0 %v1503
  %2162 = vmatpush1.bf16.msra.mxu0 %v1502
  %2163 = vmatprep.mubr.bf16.mxu0 %v431
  %2164 = vmatmul.mubr.bf16.gmra.mrb[0].mxu0 %v430
  %v2165 = vpop.f32.mrb[0].mxu0
  %v2166 = vadd.f32 %v2113, %v2165
  %v2167 = vpop.f32.mrb[0].mxu0
  %v2168 = vadd.f32 %v2115, %v2167
  %v2169 = vpop.f32.mrb[0].mxu0
  %v2170 = vadd.f32 %v2117, %v2169
  %v2171 = vpop.f32.mrb[0].mxu0
  %v2172 = vadd.f32 %v2119, %v2171
  %2173 = vmatprep.mubr.bf16.mxu0 %v447
  %2174 = vmatmul.mubr.bf16.gmra.mrb[0].mxu0 %v446
  %v2175 = vpop.f32.mrb[0].mxu0
  %v2176 = vadd.f32 %v2123, %v2175
  %v2177 = vpop.f32.mrb[0].mxu0
  %v2178 = vadd.f32 %v2125, %v2177
  %v2179 = vpop.f32.mrb[0].mxu0
  %v2180 = vadd.f32 %v2127, %v2179
  %v2181 = vpop.f32.mrb[0].mxu0
  %v2182 = vadd.f32 %v2129, %v2181
  %2183 = vdwg.mxu0
  %v2184 = vadd.f32 %v2166, %v2170
  %v2185 = vadd.f32 %v2184, %v2176
  %v2186 = vadd.f32 %v2185, %v2180
  %v2187 = vrot.slane %v2186, 4
  %v2188 = vadd.f32 %v2186, %v2187
  %v2189 = vrot.slane %v2188, 2
  %v2190 = vadd.f32 %v2188, %v2189
  %v2191 = vrot.slane %v2190, 1
  %v2192 = vadd.f32 %v2190, %v2191
  %v2193 = vadd.f32 %v2168, %v2172
  %v2194 = vadd.f32 %v2193, %v2178
  %v2195 = vadd.f32 %v2194, %v2182
  %v2196 = vrot.slane %v2195, 4
  %v2197 = vadd.f32 %v2195, %v2196
  %v2198 = vrot.slane %v2197, 2
  %v2199 = vadd.f32 %v2197, %v2198
  %v2200 = vrot.slane %v2199, 1
  %v2201 = vadd.f32 %v2199, %v2200
  %v2202 = vmul.f32 %v2192, 0.03125
  %v2203 = vmul.f32 %v2201, 0.03125
  %v2204 = vsub.f32 %v2166, %v2202
  %v2205 = vsub.f32 %v2168, %v2203
  %v2206 = vsub.f32 %v2170, %v2202
  %v2207 = vsub.f32 %v2172, %v2203
  %v2208 = vsub.f32 %v2176, %v2202
  %v2209 = vsub.f32 %v2178, %v2203
  %v2210 = vsub.f32 %v2180, %v2202
  %v2211 = vsub.f32 %v2182, %v2203
  %v2212 = vmul.f32 %v2204, %v2204
  %v2213 = vmul.f32 %v2205, %v2205
  %v2214 = vmul.f32 %v2206, %v2206
  %v2215 = vmul.f32 %v2207, %v2207
  %v2216 = vmul.f32 %v2208, %v2208
  %v2217 = vmul.f32 %v2209, %v2209
  %v2218 = vmul.f32 %v2210, %v2210
  %v2219 = vmul.f32 %v2211, %v2211
  %v2220 = vadd.f32 %v2212, %v2214
  %v2221 = vadd.f32 %v2220, %v2216
  %v2222 = vadd.f32 %v2221, %v2218
  %v2223 = vrot.slane %v2222, 4
  %v2224 = vadd.f32 %v2222, %v2223
  %v2225 = vrot.slane %v2224, 2
  %v2226 = vadd.f32 %v2224, %v2225
  %v2227 = vrot.slane %v2226, 1
  %v2228 = vadd.f32 %v2226, %v2227
  %v2229 = vadd.f32 %v2213, %v2215
  %v2230 = vadd.f32 %v2229, %v2217
  %v2231 = vadd.f32 %v2230, %v2219
  %v2232 = vrot.slane %v2231, 4
  %v2233 = vadd.f32 %v2231, %v2232
  %v2234 = vrot.slane %v2233, 2
  %v2235 = vadd.f32 %v2233, %v2234
  %v2236 = vrot.slane %v2235, 1
  %v2237 = vadd.f32 %v2235, %v2236
  %v2238 = vmul.f32 %v2228, 0.03125
  %v2239 = vmul.f32 %v2237, 0.03125
  %v2240 = vadd.f32 %v2238, 1e-05
  %v2241 = vadd.f32 %v2239, 1e-05
  %v2242 = vrsqrt.pop %v2240
  %v2243 = vrsqrt.pop %v2241
  %v2244 = vmul.f32 %v2204, %v2242
  %v2245 = vmul.f32 %v2205, %v2243
  %v2246 = vmul.f32 %v2206, %v2242
  %v2247 = vmul.f32 %v2207, %v2243
  %v2248 = vmul.f32 %v2208, %v2242
  %v2249 = vmul.f32 %v2209, %v2243
  %v2250 = vmul.f32 %v2210, %v2242
  %v2251 = vmul.f32 %v2211, %v2243
  %v2252 = vld [vmem:[%s3] sm:$0x3]
  %v2254 = vlaneseq
  %v2255 = vshrl.u32 %v2254, 7
  %v2256 = vsub.s32 0, %v2255
  %v2257 = vrot.slane %v2252, %v2256
  %v2258 = vlaneseq
  %v2259 = vshrl.u32 %v2258, 7
  %v2260 = vsub.s32 1, %v2259
  %v2261 = vrot.slane %v2252, %v2260
  %v2264 = vmul.f32 %v2244, %v2257
  %v2265 = vmul.f32 %v2245, %v2261
  %v2266 = vmul.f32 %v2246, %v2257
  %v2267 = vmul.f32 %v2247, %v2261
  %v2268 = vmul.f32 %v2248, %v2257
  %v2269 = vmul.f32 %v2249, %v2261
  %v2270 = vmul.f32 %v2250, %v2257
  %v2271 = vmul.f32 %v2251, %v2261
  %v2272 = vld [vmem:[%s4] sm:$0x3]
  %v2274 = vlaneseq
  %v2275 = vshrl.u32 %v2274, 7
  %v2276 = vsub.s32 0, %v2275
  %v2277 = vrot.slane %v2272, %v2276
  %v2278 = vlaneseq
  %v2279 = vshrl.u32 %v2278, 7
  %v2280 = vsub.s32 1, %v2279
  %v2281 = vrot.slane %v2272, %v2280
  %v2284 = vadd.f32 %v2264, %v2277
  %v2285 = vadd.f32 %v2265, %v2281
  %v2286 = vadd.f32 %v2266, %v2277
  %v2287 = vadd.f32 %v2267, %v2281
  %v2288 = vadd.f32 %v2268, %v2277
  %v2289 = vadd.f32 %v2269, %v2281
  %v2290 = vadd.f32 %v2270, %v2277
  %v2291 = vadd.f32 %v2271, %v2281
  %vm2292 = vcmp.gt.f32.partialorder %v2284, 0.0
  %vm2293 = vcmp.gt.f32.partialorder %v2285, 0.0
  %vm2294 = vcmp.gt.f32.partialorder %v2286, 0.0
  %vm2295 = vcmp.gt.f32.partialorder %v2287, 0.0
  %vm2296 = vcmp.gt.f32.partialorder %v2288, 0.0
  %vm2297 = vcmp.gt.f32.partialorder %v2289, 0.0
  %vm2298 = vcmp.gt.f32.partialorder %v2290, 0.0
  %vm2299 = vcmp.gt.f32.partialorder %v2291, 0.0
  %v2300 = vmul.f32 %v2284, 0.2
  %v2301 = vmul.f32 %v2285, 0.2
  %v2302 = vmul.f32 %v2286, 0.2
  %v2303 = vmul.f32 %v2287, 0.2
  %v2304 = vmul.f32 %v2288, 0.2
  %v2305 = vmul.f32 %v2289, 0.2
  %v2306 = vmul.f32 %v2290, 0.2
  %v2307 = vmul.f32 %v2291, 0.2
  %v2308 = vsel %vm2292, %v2284, %v2300
  %v2309 = vsel %vm2293, %v2285, %v2301
  %v2310 = vsel %vm2294, %v2286, %v2302
  %v2311 = vsel %vm2295, %v2287, %v2303
  %v2312 = vsel %vm2296, %v2288, %v2304
  %v2313 = vsel %vm2297, %v2289, %v2305
  %v2314 = vsel %vm2298, %v2290, %v2306
  %v2315 = vsel %vm2299, %v2291, %v2307
  %v2316 = vpack.c.bf16 %v2310, %v2308
  %v2317 = vpack.c.bf16 %v2311, %v2309
  %v2318 = vpack.c.bf16 %v2314, %v2312
  %v2319 = vpack.c.bf16 %v2315, %v2313
  %v2324 = vunpack.c.l.b16 %v2316
  %v2325 = vunpack.c.l.b16 %v2317
  %v2326 = vunpack.c.h.b16 %v2316
  %v2327 = vunpack.c.h.b16 %v2317
  %v2328 = vunpack.c.l.b16 %v2318
  %v2329 = vunpack.c.l.b16 %v2319
  %v2330 = vunpack.c.h.b16 %v2318
  %v2331 = vunpack.c.h.b16 %v2319
  %v2332 = vpack.c.b16 %v2325, %v2324
  %v2333 = vpack.c.b16 %v2327, %v2326
  %v2334 = vpack.c.b16 %v2329, %v2328
  %v2335 = vpack.c.b16 %v2331, %v2330
  %2340 = vst [vmem:[%s5] sm:$0xff] %v2332
  %2341 = vst [vmem:[%s5 + $0x8] sm:$0xff] %v2333
  %2342 = vst [vmem:[%s5 + $0x10] sm:$0xff] %v2334
  %2343 = vst [vmem:[%s5 + $0x18] sm:$0xff] %v2335
  // Predicated region
  $region22: #{discriminator_forward.7} parent=0 // pred_check
    _
  $region23: #{discriminator_forward.7} parent=0 // pred_check_branch
    %2345 = sbr.rel (0) target = $region25
  $region24: #{discriminator_forward.7} parent=0 // pred_region
    _
  $region25: #{discriminator_forward.7} parent=0 // pred_fallthru
    _
  // Predicated region
  $region26: #{discriminator_forward.7} parent=0 // pred_check
    _
  $region27: #{discriminator_forward.7} parent=0 // pred_check_branch
    %2347 = sbr.rel (0) target = $region29
  $region28: #{discriminator_forward.7} parent=0 // pred_region
    _
  $region29: #{discriminator_forward.7} parent=0 // pred_fallthru
    _

// kernel: discriminator_forward.9
$region0: #{discriminator_forward.9}
  #allocation0 [shape = 'u32[]', space=smem, size = 0x4, offset = 0x4, fixed_abs, tag = 'smem constant byte address 0x4 - core index']
  #allocation1 [shape = 'u32[144,128]{1,0:T(1,128)}', space=vmem, size = 0x12000, scoped, tag = 'internal scratch']
  #allocation2 [shape = 'f32[1,1]{1,0:T(1,128)S(1)}', space=vmem, size = 0x200, scoped, tag = 'scoped memory for discriminator_forward.9']
  %s0 = inlined_call_operand.vmem [shape: bf16[8,8192], index: 0, kind: input, shape index: {}]
  %s1 = inlined_call_operand.vmem [shape: f32[1,8192], index: 1, kind: input, shape index: {}]
  %s2 = inlined_call_operand.<no memory space> [shape: f32[1,1], index: 2, kind: input, shape index: {}]
  %s3 = inlined_call_operand.vmem [shape: f32[8,1], index: 3, kind: output, shape index: {}]
  %s4 = sld [smem:[#allocation0]]
  $region22: #{discriminator_forward.9} parent=0
    _
  %s6 = ssub.s32 1, %s4
  %s7 = scalar_select 0, %s6, %s4
  %v8 = vstv %s2
  %9 = vst [vmem:[#allocation2] sm:$0x1] %v8
  // Predicated region
  $region2: #{discriminator_forward.9} parent=0 // pred_check
    _
  $region3: #{discriminator_forward.9} parent=0 // pred_check_branch
    %11 = sbr.rel (0) target = $region5
  $region4: #{discriminator_forward.9} parent=0 // pred_region
    _
  $region5: #{discriminator_forward.9} parent=0 // pred_fallthru
    _
  // Predicated region
  $region6: #{discriminator_forward.9} parent=0 // pred_check
    _
  $region7: #{discriminator_forward.9} parent=0 // pred_check_branch
    %13 = sbr.rel (0) target = $region9
  $region8: #{discriminator_forward.9} parent=0 // pred_region
    _
  $region9: #{discriminator_forward.9} parent=0 // pred_fallthru
    _
  // Predicated region
  $region10: #{discriminator_forward.9} parent=0 // pred_check
    _
  $region11: #{discriminator_forward.9} parent=0 // pred_check_branch
    %15 = sbr.rel (0) target = $region13
  $region12: #{discriminator_forward.9} parent=0 // pred_region
    _
  $region13: #{discriminator_forward.9} parent=0 // pred_fallthru
    _
  %v16 = vld [vmem:[%s0] sm:$0xff]
  %v17 = vld [vmem:[%s0 + $0x8] sm:$0xff]
  %v18 = vld [vmem:[%s0 + $0x10] sm:$0xff]
  %v19 = vld [vmem:[%s0 + $0x18] sm:$0xff]
  %v20 = vld [vmem:[%s0 + $0x20] sm:$0xff]
  %v21 = vld [vmem:[%s0 + $0x28] sm:$0xff]
  %v22 = vld [vmem:[%s0 + $0x30] sm:$0xff]
  %v23 = vld [vmem:[%s0 + $0x38] sm:$0xff]
  %v24 = vld [vmem:[%s0 + $0x40] sm:$0xff]
  %v25 = vld [vmem:[%s0 + $0x48] sm:$0xff]
  %v26 = vld [vmem:[%s0 + $0x50] sm:$0xff]
  %v27 = vld [vmem:[%s0 + $0x58] sm:$0xff]
  %v28 = vld [vmem:[%s0 + $0x60] sm:$0xff]
  %v29 = vld [vmem:[%s0 + $0x68] sm:$0xff]
  %v30 = vld [vmem:[%s0 + $0x70] sm:$0xff]
  %v31 = vld [vmem:[%s0 + $0x78] sm:$0xff]
  %v32 = vld [vmem:[%s0 + $0x80] sm:$0xff]
  %v33 = vld [vmem:[%s0 + $0x88] sm:$0xff]
  %v34 = vld [vmem:[%s0 + $0x90] sm:$0xff]
  %v35 = vld [vmem:[%s0 + $0x98] sm:$0xff]
  %v36 = vld [vmem:[%s0 + $0xa0] sm:$0xff]
  %v37 = vld [vmem:[%s0 + $0xa8] sm:$0xff]
  %v38 = vld [vmem:[%s0 + $0xb0] sm:$0xff]
  %v39 = vld [vmem:[%s0 + $0xb8] sm:$0xff]
  %v40 = vld [vmem:[%s0 + $0xc0] sm:$0xff]
  %v41 = vld [vmem:[%s0 + $0xc8] sm:$0xff]
  %v42 = vld [vmem:[%s0 + $0xd0] sm:$0xff]
  %v43 = vld [vmem:[%s0 + $0xd8] sm:$0xff]
  %v44 = vld [vmem:[%s0 + $0xe0] sm:$0xff]
  %v45 = vld [vmem:[%s0 + $0xe8] sm:$0xff]
  %v46 = vld [vmem:[%s0 + $0xf0] sm:$0xff]
  %v47 = vld [vmem:[%s0 + $0xf8] sm:$0xff]
  %v48 = vunpack.c.l.bf16 %v16
  %v49 = vunpack.c.h.bf16 %v16
  %v50 = vunpack.c.l.bf16 %v17
  %v51 = vunpack.c.h.bf16 %v17
  %v52 = vunpack.c.l.bf16 %v18
  %v53 = vunpack.c.h.bf16 %v18
  %v54 = vunpack.c.l.bf16 %v19
  %v55 = vunpack.c.h.bf16 %v19
  %v56 = vunpack.c.l.bf16 %v20
  %v57 = vunpack.c.h.bf16 %v20
  %v58 = vunpack.c.l.bf16 %v21
  %v59 = vunpack.c.h.bf16 %v21
  %v60 = vunpack.c.l.bf16 %v22
  %v61 = vunpack.c.h.bf16 %v22
  %v62 = vunpack.c.l.bf16 %v23
  %v63 = vunpack.c.h.bf16 %v23
  %v64 = vunpack.c.l.bf16 %v24
  %v65 = vunpack.c.h.bf16 %v24
  %v66 = vunpack.c.l.bf16 %v25
  %v67 = vunpack.c.h.bf16 %v25
  %v68 = vunpack.c.l.bf16 %v26
  %v69 = vunpack.c.h.bf16 %v26
  %v70 = vunpack.c.l.bf16 %v27
  %v71 = vunpack.c.h.bf16 %v27
  %v72 = vunpack.c.l.bf16 %v28
  %v73 = vunpack.c.h.bf16 %v28
  %v74 = vunpack.c.l.bf16 %v29
  %v75 = vunpack.c.h.bf16 %v29
  %v76 = vunpack.c.l.bf16 %v30
  %v77 = vunpack.c.h.bf16 %v30
  %v78 = vunpack.c.l.bf16 %v31
  %v79 = vunpack.c.h.bf16 %v31
  %v80 = vunpack.c.l.bf16 %v32
  %v81 = vunpack.c.h.bf16 %v32
  %v82 = vunpack.c.l.bf16 %v33
  %v83 = vunpack.c.h.bf16 %v33
  %v84 = vunpack.c.l.bf16 %v34
  %v85 = vunpack.c.h.bf16 %v34
  %v86 = vunpack.c.l.bf16 %v35
  %v87 = vunpack.c.h.bf16 %v35
  %v88 = vunpack.c.l.bf16 %v36
  %v89 = vunpack.c.h.bf16 %v36
  %v90 = vunpack.c.l.bf16 %v37
  %v91 = vunpack.c.h.bf16 %v37
  %v92 = vunpack.c.l.bf16 %v38
  %v93 = vunpack.c.h.bf16 %v38
  %v94 = vunpack.c.l.bf16 %v39
  %v95 = vunpack.c.h.bf16 %v39
  %v96 = vunpack.c.l.bf16 %v40
  %v97 = vunpack.c.h.bf16 %v40
  %v98 = vunpack.c.l.bf16 %v41
  %v99 = vunpack.c.h.bf16 %v41
  %v100 = vunpack.c.l.bf16 %v42
  %v101 = vunpack.c.h.bf16 %v42
  %v102 = vunpack.c.l.bf16 %v43
  %v103 = vunpack.c.h.bf16 %v43
  %v104 = vunpack.c.l.bf16 %v44
  %v105 = vunpack.c.h.bf16 %v44
  %v106 = vunpack.c.l.bf16 %v45
  %v107 = vunpack.c.h.bf16 %v45
  %v108 = vunpack.c.l.bf16 %v46
  %v109 = vunpack.c.h.bf16 %v46
  %v110 = vunpack.c.l.bf16 %v47
  %v111 = vunpack.c.h.bf16 %v47
  %v112 = vld [vmem:[%s1] sm:$0xff]
  %v113 = vld [vmem:[%s1 + $0x8] sm:$0xff]
  %v114 = vld [vmem:[%s1 + $0x10] sm:$0xff]
  %v115 = vld [vmem:[%s1 + $0x18] sm:$0xff]
  %v116 = vld [vmem:[%s1 + $0x20] sm:$0xff]
  %v117 = vld [vmem:[%s1 + $0x28] sm:$0xff]
  %v118 = vld [vmem:[%s1 + $0x30] sm:$0xff]
  %v119 = vld [vmem:[%s1 + $0x38] sm:$0xff]
  %v128 = vlaneseq
  %v129 = vshrl.u32 %v128, 7
  %v130 = vsub.s32 0, %v129
  %v131 = vrot.slane %v112, %v130
  %v132 = vlaneseq
  %v133 = vshrl.u32 %v132, 7
  %v134 = vsub.s32 1, %v133
  %v135 = vrot.slane %v112, %v134
  %v136 = vlaneseq
  %v137 = vshrl.u32 %v136, 7
  %v138 = vsub.s32 2, %v137
  %v139 = vrot.slane %v112, %v138
  %v140 = vlaneseq
  %v141 = vshrl.u32 %v140, 7
  %v142 = vsub.s32 3, %v141
  %v143 = vrot.slane %v112, %v142
  %v144 = vlaneseq
  %v145 = vshrl.u32 %v144, 7
  %v146 = vsub.s32 4, %v145
  %v147 = vrot.slane %v112, %v146
  %v148 = vlaneseq
  %v149 = vshrl.u32 %v148, 7
  %v150 = vsub.s32 5, %v149
  %v151 = vrot.slane %v112, %v150
  %v152 = vlaneseq
  %v153 = vshrl.u32 %v152, 7
  %v154 = vsub.s32 6, %v153
  %v155 = vrot.slane %v112, %v154
  %v156 = vlaneseq
  %v157 = vshrl.u32 %v156, 7
  %v158 = vsub.s32 7, %v157
  %v159 = vrot.slane %v112, %v158
  %v160 = vlaneseq
  %v161 = vshrl.u32 %v160, 7
  %v162 = vsub.s32 0, %v161
  %v163 = vrot.slane %v113, %v162
  %v164 = vlaneseq
  %v165 = vshrl.u32 %v164, 7
  %v166 = vsub.s32 1, %v165
  %v167 = vrot.slane %v113, %v166
  %v168 = vlaneseq
  %v169 = vshrl.u32 %v168, 7
  %v170 = vsub.s32 2, %v169
  %v171 = vrot.slane %v113, %v170
  %v172 = vlaneseq
  %v173 = vshrl.u32 %v172, 7
  %v174 = vsub.s32 3, %v173
  %v175 = vrot.slane %v113, %v174
  %v176 = vlaneseq
  %v177 = vshrl.u32 %v176, 7
  %v178 = vsub.s32 4, %v177
  %v179 = vrot.slane %v113, %v178
  %v180 = vlaneseq
  %v181 = vshrl.u32 %v180, 7
  %v182 = vsub.s32 5, %v181
  %v183 = vrot.slane %v113, %v182
  %v184 = vlaneseq
  %v185 = vshrl.u32 %v184, 7
  %v186 = vsub.s32 6, %v185
  %v187 = vrot.slane %v113, %v186
  %v188 = vlaneseq
  %v189 = vshrl.u32 %v188, 7
  %v190 = vsub.s32 7, %v189
  %v191 = vrot.slane %v113, %v190
  %v192 = vlaneseq
  %v193 = vshrl.u32 %v192, 7
  %v194 = vsub.s32 0, %v193
  %v195 = vrot.slane %v114, %v194
  %v196 = vlaneseq
  %v197 = vshrl.u32 %v196, 7
  %v198 = vsub.s32 1, %v197
  %v199 = vrot.slane %v114, %v198
  %v200 = vlaneseq
  %v201 = vshrl.u32 %v200, 7
  %v202 = vsub.s32 2, %v201
  %v203 = vrot.slane %v114, %v202
  %v204 = vlaneseq
  %v205 = vshrl.u32 %v204, 7
  %v206 = vsub.s32 3, %v205
  %v207 = vrot.slane %v114, %v206
  %v208 = vlaneseq
  %v209 = vshrl.u32 %v208, 7
  %v210 = vsub.s32 4, %v209
  %v211 = vrot.slane %v114, %v210
  %v212 = vlaneseq
  %v213 = vshrl.u32 %v212, 7
  %v214 = vsub.s32 5, %v213
  %v215 = vrot.slane %v114, %v214
  %v216 = vlaneseq
  %v217 = vshrl.u32 %v216, 7
  %v218 = vsub.s32 6, %v217
  %v219 = vrot.slane %v114, %v218
  %v220 = vlaneseq
  %v221 = vshrl.u32 %v220, 7
  %v222 = vsub.s32 7, %v221
  %v223 = vrot.slane %v114, %v222
  %v224 = vlaneseq
  %v225 = vshrl.u32 %v224, 7
  %v226 = vsub.s32 0, %v225
  %v227 = vrot.slane %v115, %v226
  %v228 = vlaneseq
  %v229 = vshrl.u32 %v228, 7
  %v230 = vsub.s32 1, %v229
  %v231 = vrot.slane %v115, %v230
  %v232 = vlaneseq
  %v233 = vshrl.u32 %v232, 7
  %v234 = vsub.s32 2, %v233
  %v235 = vrot.slane %v115, %v234
  %v236 = vlaneseq
  %v237 = vshrl.u32 %v236, 7
  %v238 = vsub.s32 3, %v237
  %v239 = vrot.slane %v115, %v238
  %v240 = vlaneseq
  %v241 = vshrl.u32 %v240, 7
  %v242 = vsub.s32 4, %v241
  %v243 = vrot.slane %v115, %v242
  %v244 = vlaneseq
  %v245 = vshrl.u32 %v244, 7
  %v246 = vsub.s32 5, %v245
  %v247 = vrot.slane %v115, %v246
  %v248 = vlaneseq
  %v249 = vshrl.u32 %v248, 7
  %v250 = vsub.s32 6, %v249
  %v251 = vrot.slane %v115, %v250
  %v252 = vlaneseq
  %v253 = vshrl.u32 %v252, 7
  %v254 = vsub.s32 7, %v253
  %v255 = vrot.slane %v115, %v254
  %v256 = vlaneseq
  %v257 = vshrl.u32 %v256, 7
  %v258 = vsub.s32 0, %v257
  %v259 = vrot.slane %v116, %v258
  %v260 = vlaneseq
  %v261 = vshrl.u32 %v260, 7
  %v262 = vsub.s32 1, %v261
  %v263 = vrot.slane %v116, %v262
  %v264 = vlaneseq
  %v265 = vshrl.u32 %v264, 7
  %v266 = vsub.s32 2, %v265
  %v267 = vrot.slane %v116, %v266
  %v268 = vlaneseq
  %v269 = vshrl.u32 %v268, 7
  %v270 = vsub.s32 3, %v269
  %v271 = vrot.slane %v116, %v270
  %v272 = vlaneseq
  %v273 = vshrl.u32 %v272, 7
  %v274 = vsub.s32 4, %v273
  %v275 = vrot.slane %v116, %v274
  %v276 = vlaneseq
  %v277 = vshrl.u32 %v276, 7
  %v278 = vsub.s32 5, %v277
  %v279 = vrot.slane %v116, %v278
  %v280 = vlaneseq
  %v281 = vshrl.u32 %v280, 7
  %v282 = vsub.s32 6, %v281
  %v283 = vrot.slane %v116, %v282
  %v284 = vlaneseq
  %v285 = vshrl.u32 %v284, 7
  %v286 = vsub.s32 7, %v285
  %v287 = vrot.slane %v116, %v286
  %v288 = vlaneseq
  %v289 = vshrl.u32 %v288, 7
  %v290 = vsub.s32 0, %v289
  %v291 = vrot.slane %v117, %v290
  %v292 = vlaneseq
  %v293 = vshrl.u32 %v292, 7
  %v294 = vsub.s32 1, %v293
  %v295 = vrot.slane %v117, %v294
  %v296 = vlaneseq
  %v297 = vshrl.u32 %v296, 7
  %v298 = vsub.s32 2, %v297
  %v299 = vrot.slane %v117, %v298
  %v300 = vlaneseq
  %v301 = vshrl.u32 %v300, 7
  %v302 = vsub.s32 3, %v301
  %v303 = vrot.slane %v117, %v302
  %v304 = vlaneseq
  %v305 = vshrl.u32 %v304, 7
  %v306 = vsub.s32 4, %v305
  %v307 = vrot.slane %v117, %v306
  %v308 = vlaneseq
  %v309 = vshrl.u32 %v308, 7
  %v310 = vsub.s32 5, %v309
  %v311 = vrot.slane %v117, %v310
  %v312 = vlaneseq
  %v313 = vshrl.u32 %v312, 7
  %v314 = vsub.s32 6, %v313
  %v315 = vrot.slane %v117, %v314
  %v316 = vlaneseq
  %v317 = vshrl.u32 %v316, 7
  %v318 = vsub.s32 7, %v317
  %v319 = vrot.slane %v117, %v318
  %v320 = vlaneseq
  %v321 = vshrl.u32 %v320, 7
  %v322 = vsub.s32 0, %v321
  %v323 = vrot.slane %v118, %v322
  %v324 = vlaneseq
  %v325 = vshrl.u32 %v324, 7
  %v326 = vsub.s32 1, %v325
  %v327 = vrot.slane %v118, %v326
  %v328 = vlaneseq
  %v329 = vshrl.u32 %v328, 7
  %v330 = vsub.s32 2, %v329
  %v331 = vrot.slane %v118, %v330
  %v332 = vlaneseq
  %v333 = vshrl.u32 %v332, 7
  %v334 = vsub.s32 3, %v333
  %v335 = vrot.slane %v118, %v334
  %v336 = vlaneseq
  %v337 = vshrl.u32 %v336, 7
  %v338 = vsub.s32 4, %v337
  %v339 = vrot.slane %v118, %v338
  %v340 = vlaneseq
  %v341 = vshrl.u32 %v340, 7
  %v342 = vsub.s32 5, %v341
  %v343 = vrot.slane %v118, %v342
  %v344 = vlaneseq
  %v345 = vshrl.u32 %v344, 7
  %v346 = vsub.s32 6, %v345
  %v347 = vrot.slane %v118, %v346
  %v348 = vlaneseq
  %v349 = vshrl.u32 %v348, 7
  %v350 = vsub.s32 7, %v349
  %v351 = vrot.slane %v118, %v350
  %v352 = vlaneseq
  %v353 = vshrl.u32 %v352, 7
  %v354 = vsub.s32 0, %v353
  %v355 = vrot.slane %v119, %v354
  %v356 = vlaneseq
  %v357 = vshrl.u32 %v356, 7
  %v358 = vsub.s32 1, %v357
  %v359 = vrot.slane %v119, %v358
  %v360 = vlaneseq
  %v361 = vshrl.u32 %v360, 7
  %v362 = vsub.s32 2, %v361
  %v363 = vrot.slane %v119, %v362
  %v364 = vlaneseq
  %v365 = vshrl.u32 %v364, 7
  %v366 = vsub.s32 3, %v365
  %v367 = vrot.slane %v119, %v366
  %v368 = vlaneseq
  %v369 = vshrl.u32 %v368, 7
  %v370 = vsub.s32 4, %v369
  %v371 = vrot.slane %v119, %v370
  %v372 = vlaneseq
  %v373 = vshrl.u32 %v372, 7
  %v374 = vsub.s32 5, %v373
  %v375 = vrot.slane %v119, %v374
  %v376 = vlaneseq
  %v377 = vshrl.u32 %v376, 7
  %v378 = vsub.s32 6, %v377
  %v379 = vrot.slane %v119, %v378
  %v380 = vlaneseq
  %v381 = vshrl.u32 %v380, 7
  %v382 = vsub.s32 7, %v381
  %v383 = vrot.slane %v119, %v382
  %v448 = vmul.f32 %v48, %v131
  %v449 = vmul.f32 %v49, %v135
  %v450 = vmul.f32 %v50, %v139
  %v451 = vmul.f32 %v51, %v143
  %v452 = vmul.f32 %v52, %v147
  %v453 = vmul.f32 %v53, %v151
  %v454 = vmul.f32 %v54, %v155
  %v455 = vmul.f32 %v55, %v159
  %v456 = vmul.f32 %v56, %v163
  %v457 = vmul.f32 %v57, %v167
  %v458 = vmul.f32 %v58, %v171
  %v459 = vmul.f32 %v59, %v175
  %v460 = vmul.f32 %v60, %v179
  %v461 = vmul.f32 %v61, %v183
  %v462 = vmul.f32 %v62, %v187
  %v463 = vmul.f32 %v63, %v191
  %v464 = vmul.f32 %v64, %v195
  %v465 = vmul.f32 %v65, %v199
  %v466 = vmul.f32 %v66, %v203
  %v467 = vmul.f32 %v67, %v207
  %v468 = vmul.f32 %v68, %v211
  %v469 = vmul.f32 %v69, %v215
  %v470 = vmul.f32 %v70, %v219
  %v471 = vmul.f32 %v71, %v223
  %v472 = vmul.f32 %v72, %v227
  %v473 = vmul.f32 %v73, %v231
  %v474 = vmul.f32 %v74, %v235
  %v475 = vmul.f32 %v75, %v239
  %v476 = vmul.f32 %v76, %v243
  %v477 = vmul.f32 %v77, %v247
  %v478 = vmul.f32 %v78, %v251
  %v479 = vmul.f32 %v79, %v255
  %v480 = vmul.f32 %v80, %v259
  %v481 = vmul.f32 %v81, %v263
  %v482 = vmul.f32 %v82, %v267
  %v483 = vmul.f32 %v83, %v271
  %v484 = vmul.f32 %v84, %v275
  %v485 = vmul.f32 %v85, %v279
  %v486 = vmul.f32 %v86, %v283
  %v487 = vmul.f32 %v87, %v287
  %v488 = vmul.f32 %v88, %v291
  %v489 = vmul.f32 %v89, %v295
  %v490 = vmul.f32 %v90, %v299
  %v491 = vmul.f32 %v91, %v303
  %v492 = vmul.f32 %v92, %v307
  %v493 = vmul.f32 %v93, %v311
  %v494 = vmul.f32 %v94, %v315
  %v495 = vmul.f32 %v95, %v319
  %v496 = vmul.f32 %v96, %v323
  %v497 = vmul.f32 %v97, %v327
  %v498 = vmul.f32 %v98, %v331
  %v499 = vmul.f32 %v99, %v335
  %v500 = vmul.f32 %v100, %v339
  %v501 = vmul.f32 %v101, %v343
  %v502 = vmul.f32 %v102, %v347
  %v503 = vmul.f32 %v103, %v351
  %v504 = vmul.f32 %v104, %v355
  %v505 = vmul.f32 %v105, %v359
  %v506 = vmul.f32 %v106, %v363
  %v507 = vmul.f32 %v107, %v367
  %v508 = vmul.f32 %v108, %v371
  %v509 = vmul.f32 %v109, %v375
  %v510 = vmul.f32 %v110, %v379
  %v511 = vmul.f32 %v111, %v383
  %v512 = vadd.f32 %v448, %v449
  %v513 = vadd.f32 %v512, %v450
  %v514 = vadd.f32 %v513, %v451
  %v515 = vadd.f32 %v514, %v452
  %v516 = vadd.f32 %v515, %v453
  %v517 = vadd.f32 %v516, %v454
  %v518 = vadd.f32 %v517, %v455
  %v519 = vadd.f32 %v518, %v456
  %v520 = vadd.f32 %v519, %v457
  %v521 = vadd.f32 %v520, %v458
  %v522 = vadd.f32 %v521, %v459
  %v523 = vadd.f32 %v522, %v460
  %v524 = vadd.f32 %v523, %v461
  %v525 = vadd.f32 %v524, %v462
  %v526 = vadd.f32 %v525, %v463
  %v527 = vadd.f32 %v526, %v464
  %v528 = vadd.f32 %v527, %v465
  %v529 = vadd.f32 %v528, %v466
  %v530 = vadd.f32 %v529, %v467
  %v531 = vadd.f32 %v530, %v468
  %v532 = vadd.f32 %v531, %v469
  %v533 = vadd.f32 %v532, %v470
  %v534 = vadd.f32 %v533, %v471
  %v535 = vadd.f32 %v534, %v472
  %v536 = vadd.f32 %v535, %v473
  %v537 = vadd.f32 %v536, %v474
  %v538 = vadd.f32 %v537, %v475
  %v539 = vadd.f32 %v538, %v476
  %v540 = vadd.f32 %v539, %v477
  %v541 = vadd.f32 %v540, %v478
  %v542 = vadd.f32 %v541, %v479
  %v543 = vadd.f32 %v542, %v480
  %v544 = vadd.f32 %v543, %v481
  %v545 = vadd.f32 %v544, %v482
  %v546 = vadd.f32 %v545, %v483
  %v547 = vadd.f32 %v546, %v484
  %v548 = vadd.f32 %v547, %v485
  %v549 = vadd.f32 %v548, %v486
  %v550 = vadd.f32 %v549, %v487
  %v551 = vadd.f32 %v550, %v488
  %v552 = vadd.f32 %v551, %v489
  %v553 = vadd.f32 %v552, %v490
  %v554 = vadd.f32 %v553, %v491
  %v555 = vadd.f32 %v554, %v492
  %v556 = vadd.f32 %v555, %v493
  %v557 = vadd.f32 %v556, %v494
  %v558 = vadd.f32 %v557, %v495
  %v559 = vadd.f32 %v558, %v496
  %v560 = vadd.f32 %v559, %v497
  %v561 = vadd.f32 %v560, %v498
  %v562 = vadd.f32 %v561, %v499
  %v563 = vadd.f32 %v562, %v500
  %v564 = vadd.f32 %v563, %v501
  %v565 = vadd.f32 %v564, %v502
  %v566 = vadd.f32 %v565, %v503
  %v567 = vadd.f32 %v566, %v504
  %v568 = vadd.f32 %v567, %v505
  %v569 = vadd.f32 %v568, %v506
  %v570 = vadd.f32 %v569, %v507
  %v571 = vadd.f32 %v570, %v508
  %v572 = vadd.f32 %v571, %v509
  %v573 = vadd.f32 %v572, %v510
  %v574 = vadd.f32 %v573, %v511
  %575 = vadd.xlane.f32.xlu0 %v574
  %v576 = vpop.xlane.xlu0 %575
  %v577 = vld [vmem:[#allocation2] sm:$0x1]
  %v579 = vlaneseq
  %v580 = vshrl.u32 %v579, 7
  %v581 = vsub.s32 0, %v580
  %v582 = vrot.slane %v577, %v581
  %v584 = vadd.f32 %v576, %v582
  %v585 = vsub.f32 0.0, %v584
  %v586 = vmul.f32 %v585, 1.442695
  %v587 = vpow.pop %v586
  %v588 = vadd.f32 %v587, 1.0
  %v589 = vrcp.pop %v588
  %v590 = vmul.f32 1.0, %v589
  %vm591 = vcmask 7168
  %592 = vst.msk [vmem:[%s3] sm:$0xff] %vm591, %v590
  // Predicated region
  $region14: #{discriminator_forward.9} parent=0 // pred_check
    _
  $region15: #{discriminator_forward.9} parent=0 // pred_check_branch
    %594 = sbr.rel (0) target = $region17
  $region16: #{discriminator_forward.9} parent=0 // pred_region
    _
  $region17: #{discriminator_forward.9} parent=0 // pred_fallthru
    _
  // Predicated region
  $region18: #{discriminator_forward.9} parent=0 // pred_check
    _
  $region19: #{discriminator_forward.9} parent=0 // pred_check_branch
    %596 = sbr.rel (0) target = $region21
  $region20: #{discriminator_forward.9} parent=0 // pred_region
    _
  $region21: #{discriminator_forward.9} parent=0 // pred_fallthru
    _

// kernel: discriminator_forward.8
$region0: #{discriminator_forward.8}
  #allocation0 [shape = 'u32[]', space=smem, size = 0x4, offset = 0x4, fixed_abs, tag = 'smem constant byte address 0x4 - core index']
  #allocation1 [shape = 'u32[144,128]{1,0:T(1,128)}', space=vmem, size = 0x12000, scoped, tag = 'internal scratch']
  %s0 = inlined_call_operand.vmem [shape: bf16[18,4096], index: 0, kind: input, shape index: {}]
  %s1 = inlined_call_operand.vmem [shape: bf16[4096,512], index: 1, kind: input, shape index: {}]
  %s2 = inlined_call_operand.vmem [shape: f32[1,512], index: 2, kind: input, shape index: {}]
  %s3 = inlined_call_operand.vmem [shape: f32[1,512], index: 3, kind: input, shape index: {}]
  %s4 = inlined_call_operand.vmem [shape: f32[1,512], index: 4, kind: input, shape index: {}]
  %s5 = inlined_call_operand.vmem [shape: bf16[18,512], index: 5, kind: output, shape index: {}]
  %s6 = sld [smem:[#allocation0]]
  $region30: #{discriminator_forward.8} parent=0
    _
  %s8 = ssub.s32 1, %s6
  %s9 = scalar_select 0, %s8, %s6
  // Predicated region
  $region2: #{discriminator_forward.8} parent=0 // pred_check
    _
  $region3: #{discriminator_forward.8} parent=0 // pred_check_branch
    %11 = sbr.rel (0) target = $region5
  $region4: #{discriminator_forward.8} parent=0 // pred_region
    _
  $region5: #{discriminator_forward.8} parent=0 // pred_fallthru
    _
  // Predicated region
  $region6: #{discriminator_forward.8} parent=0 // pred_check
    _
  $region7: #{discriminator_forward.8} parent=0 // pred_check_branch
    %13 = sbr.rel (0) target = $region9
  $region8: #{discriminator_forward.8} parent=0 // pred_region
    _
  $region9: #{discriminator_forward.8} parent=0 // pred_fallthru
    _
  // Predicated region
  $region10: #{discriminator_forward.8} parent=0 // pred_check
    _
  $region11: #{discriminator_forward.8} parent=0 // pred_check_branch
    %15 = sbr.rel (0) target = $region13
  $region12: #{discriminator_forward.8} parent=0 // pred_region
    _
  $region13: #{discriminator_forward.8} parent=0 // pred_fallthru
    _
  // Predicated region
  $region14: #{discriminator_forward.8} parent=0 // pred_check
    _
  $region15: #{discriminator_forward.8} parent=0 // pred_check_branch
    %17 = sbr.rel (0) target = $region17
  $region16: #{discriminator_forward.8} parent=0 // pred_region
    _
  $region17: #{discriminator_forward.8} parent=0 // pred_fallthru
    _
  // Predicated region
  $region18: #{discriminator_forward.8} parent=0 // pred_check
    _
  $region19: #{discriminator_forward.8} parent=0 // pred_check_branch
    %19 = sbr.rel (0) target = $region21
  $region20: #{discriminator_forward.8} parent=0 // pred_region
    _
  $region21: #{discriminator_forward.8} parent=0 // pred_fallthru
    _
  %v20 = vld [vmem:[%s0] sm:$0xff]
  %v21 = vld [vmem:[%s0 + $0x8] sm:$0xff]
  %v22 = vld [vmem:[%s0 + $0x10] sm:$0xff]
  %v23 = vld [vmem:[%s0 + $0x18] sm:$0xff]
  %v24 = vld [vmem:[%s0 + $0x20] sm:$0xff]
  %v25 = vld [vmem:[%s0 + $0x28] sm:$0xff]
  %v26 = vld [vmem:[%s0 + $0x30] sm:$0xff]
  %v27 = vld [vmem:[%s0 + $0x38] sm:$0xff]
  %v28 = vld [vmem:[%s0 + $0x40] sm:$0xff]
  %v29 = vld [vmem:[%s0 + $0x48] sm:$0xff]
  %v30 = vld [vmem:[%s0 + $0x50] sm:$0xff]
  %v31 = vld [vmem:[%s0 + $0x58] sm:$0xff]
  %v32 = vld [vmem:[%s0 + $0x60] sm:$0xff]
  %v33 = vld [vmem:[%s0 + $0x68] sm:$0xff]
  %v34 = vld [vmem:[%s0 + $0x70] sm:$0xff]
  %v35 = vld [vmem:[%s0 + $0x78] sm:$0xff]
  %v36 = vld [vmem:[%s0 + $0x80] sm:$0xff]
  %v37 = vld [vmem:[%s0 + $0x88] sm:$0xff]
  %v38 = vld [vmem:[%s0 + $0x90] sm:$0xff]
  %v39 = vld [vmem:[%s0 + $0x98] sm:$0xff]
  %v40 = vld [vmem:[%s0 + $0xa0] sm:$0xff]
  %v41 = vld [vmem:[%s0 + $0xa8] sm:$0xff]
  %v42 = vld [vmem:[%s0 + $0xb0] sm:$0xff]
  %v43 = vld [vmem:[%s0 + $0xb8] sm:$0xff]
  %v44 = vld [vmem:[%s0 + $0xc0] sm:$0xff]
  %v45 = vld [vmem:[%s0 + $0xc8] sm:$0xff]
  %v46 = vld [vmem:[%s0 + $0xd0] sm:$0xff]
  %v47 = vld [vmem:[%s0 + $0xd8] sm:$0xff]
  %v48 = vld [vmem:[%s0 + $0xe0] sm:$0xff]
  %v49 = vld [vmem:[%s0 + $0xe8] sm:$0xff]
  %v50 = vld [vmem:[%s0 + $0xf0] sm:$0xff]
  %v51 = vld [vmem:[%s0 + $0xf8] sm:$0xff]
  %v52 = vld [vmem:[%s0 + $0x100] sm:$0x11]
  %v53 = vld [vmem:[%s0 + $0x108] sm:$0x11]
  %v54 = vld [vmem:[%s0 + $0x110] sm:$0x11]
  %v55 = vld [vmem:[%s0 + $0x118] sm:$0x11]
  %v56 = vld [vmem:[%s0 + $0x120] sm:$0x11]
  %v57 = vld [vmem:[%s0 + $0x128] sm:$0x11]
  %v58 = vld [vmem:[%s0 + $0x130] sm:$0x11]
  %v59 = vld [vmem:[%s0 + $0x138] sm:$0x11]
  %v60 = vld [vmem:[%s0 + $0x140] sm:$0x11]
  %v61 = vld [vmem:[%s0 + $0x148] sm:$0x11]
  %v62 = vld [vmem:[%s0 + $0x150] sm:$0x11]
  %v63 = vld [vmem:[%s0 + $0x158] sm:$0x11]
  %v64 = vld [vmem:[%s0 + $0x160] sm:$0x11]
  %v65 = vld [vmem:[%s0 + $0x168] sm:$0x11]
  %v66 = vld [vmem:[%s0 + $0x170] sm:$0x11]
  %v67 = vld [vmem:[%s0 + $0x178] sm:$0x11]
  %v68 = vld [vmem:[%s1] sm:$0xff]
  %v69 = vld [vmem:[%s1 + $0x8] sm:$0xff]
  %v70 = vld [vmem:[%s1 + $0x10] sm:$0xff]
  %v71 = vld [vmem:[%s1 + $0x18] sm:$0xff]
  %v72 = vld [vmem:[%s1 + $0x20] sm:$0xff]
  %v73 = vld [vmem:[%s1 + $0x28] sm:$0xff]
  %v74 = vld [vmem:[%s1 + $0x30] sm:$0xff]
  %v75 = vld [vmem:[%s1 + $0x38] sm:$0xff]
  %v76 = vld [vmem:[%s1 + $0x40] sm:$0xff]
  %v77 = vld [vmem:[%s1 + $0x48] sm:$0xff]
  %v78 = vld [vmem:[%s1 + $0x50] sm:$0xff]
  %v79 = vld [vmem:[%s1 + $0x58] sm:$0xff]
  %v80 = vld [vmem:[%s1 + $0x60] sm:$0xff]
  %v81 = vld [vmem:[%s1 + $0x68] sm:$0xff]
  %v82 = vld [vmem:[%s1 + $0x70] sm:$0xff]
  %v83 = vld [vmem:[%s1 + $0x78] sm:$0xff]
  %v84 = vld [vmem:[%s1 + $0x80] sm:$0xff]
  %v85 = vld [vmem:[%s1 + $0x88] sm:$0xff]
  %v86 = vld [vmem:[%s1 + $0x90] sm:$0xff]
  %v87 = vld [vmem:[%s1 + $0x98] sm:$0xff]
  %v88 = vld [vmem:[%s1 + $0xa0] sm:$0xff]
  %v89 = vld [vmem:[%s1 + $0xa8] sm:$0xff]
  %v90 = vld [vmem:[%s1 + $0xb0] sm:$0xff]
  %v91 = vld [vmem:[%s1 + $0xb8] sm:$0xff]
  %v92 = vld [vmem:[%s1 + $0xc0] sm:$0xff]
  %v93 = vld [vmem:[%s1 + $0xc8] sm:$0xff]
  %v94 = vld [vmem:[%s1 + $0xd0] sm:$0xff]
  %v95 = vld [vmem:[%s1 + $0xd8] sm:$0xff]
  %v96 = vld [vmem:[%s1 + $0xe0] sm:$0xff]
  %v97 = vld [vmem:[%s1 + $0xe8] sm:$0xff]
  %v98 = vld [vmem:[%s1 + $0xf0] sm:$0xff]
  %v99 = vld [vmem:[%s1 + $0xf8] sm:$0xff]
  %v100 = vld [vmem:[%s1 + $0x100] sm:$0xff]
  %v101 = vld [vmem:[%s1 + $0x108] sm:$0xff]
  %v102 = vld [vmem:[%s1 + $0x110] sm:$0xff]
  %v103 = vld [vmem:[%s1 + $0x118] sm:$0xff]
  %v104 = vld [vmem:[%s1 + $0x120] sm:$0xff]
  %v105 = vld [vmem:[%s1 + $0x128] sm:$0xff]
  %v106 = vld [vmem:[%s1 + $0x130] sm:$0xff]
  %v107 = vld [vmem:[%s1 + $0x138] sm:$0xff]
  %v108 = vld [vmem:[%s1 + $0x140] sm:$0xff]
  %v109 = vld [vmem:[%s1 + $0x148] sm:$0xff]
  %v110 = vld [vmem:[%s1 + $0x150] sm:$0xff]
  %v111 = vld [vmem:[%s1 + $0x158] sm:$0xff]
  %v112 = vld [vmem:[%s1 + $0x160] sm:$0xff]
  %v113 = vld [vmem:[%s1 + $0x168] sm:$0xff]
  %v114 = vld [vmem:[%s1 + $0x170] sm:$0xff]
  %v115 = vld [vmem:[%s1 + $0x178] sm:$0xff]
  %v116 = vld [vmem:[%s1 + $0x180] sm:$0xff]
  %v117 = vld [vmem:[%s1 + $0x188] sm:$0xff]
  %v118 = vld [vmem:[%s1 + $0x190] sm:$0xff]
  %v119 = vld [vmem:[%s1 + $0x198] sm:$0xff]
  %v120 = vld [vmem:[%s1 + $0x1a0] sm:$0xff]
  %v121 = vld [vmem:[%s1 + $0x1a8] sm:$0xff]
  %v122 = vld [vmem:[%s1 + $0x1b0] sm:$0xff]
  %v123 = vld [vmem:[%s1 + $0x1b8] sm:$0xff]
  %v124 = vld [vmem:[%s1 + $0x1c0] sm:$0xff]
  %v125 = vld [vmem:[%s1 + $0x1c8] sm:$0xff]
  %v126 = vld [vmem:[%s1 + $0x1d0] sm:$0xff]
  %v127 = vld [vmem:[%s1 + $0x1d8] sm:$0xff]
  %v128 = vld [vmem:[%s1 + $0x1e0] sm:$0xff]
  %v129 = vld [vmem:[%s1 + $0x1e8] sm:$0xff]
  %v130 = vld [vmem:[%s1 + $0x1f0] sm:$0xff]
  %v131 = vld [vmem:[%s1 + $0x1f8] sm:$0xff]
  %v132 = vld [vmem:[%s1 + $0x200] sm:$0xff]
  %v133 = vld [vmem:[%s1 + $0x208] sm:$0xff]
  %v134 = vld [vmem:[%s1 + $0x210] sm:$0xff]
  %v135 = vld [vmem:[%s1 + $0x218] sm:$0xff]
  %v136 = vld [vmem:[%s1 + $0x220] sm:$0xff]
  %v137 = vld [vmem:[%s1 + $0x228] sm:$0xff]
  %v138 = vld [vmem:[%s1 + $0x230] sm:$0xff]
  %v139 = vld [vmem:[%s1 + $0x238] sm:$0xff]
  %v140 = vld [vmem:[%s1 + $0x240] sm:$0xff]
  %v141 = vld [vmem:[%s1 + $0x248] sm:$0xff]
  %v142 = vld [vmem:[%s1 + $0x250] sm:$0xff]
  %v143 = vld [vmem:[%s1 + $0x258] sm:$0xff]
  %v144 = vld [vmem:[%s1 + $0x260] sm:$0xff]
  %v145 = vld [vmem:[%s1 + $0x268] sm:$0xff]
  %v146 = vld [vmem:[%s1 + $0x270] sm:$0xff]
  %v147 = vld [vmem:[%s1 + $0x278] sm:$0xff]
  %v148 = vld [vmem:[%s1 + $0x280] sm:$0xff]
  %v149 = vld [vmem:[%s1 + $0x288] sm:$0xff]
  %v150 = vld [vmem:[%s1 + $0x290] sm:$0xff]
  %v151 = vld [vmem:[%s1 + $0x298] sm:$0xff]
  %v152 = vld [vmem:[%s1 + $0x2a0] sm:$0xff]
  %v153 = vld [vmem:[%s1 + $0x2a8] sm:$0xff]
  %v154 = vld [vmem:[%s1 + $0x2b0] sm:$0xff]
  %v155 = vld [vmem:[%s1 + $0x2b8] sm:$0xff]
  %v156 = vld [vmem:[%s1 + $0x2c0] sm:$0xff]
  %v157 = vld [vmem:[%s1 + $0x2c8] sm:$0xff]
  %v158 = vld [vmem:[%s1 + $0x2d0] sm:$0xff]
  %v159 = vld [vmem:[%s1 + $0x2d8] sm:$0xff]
  %v160 = vld [vmem:[%s1 + $0x2e0] sm:$0xff]
  %v161 = vld [vmem:[%s1 + $0x2e8] sm:$0xff]
  %v162 = vld [vmem:[%s1 + $0x2f0] sm:$0xff]
  %v163 = vld [vmem:[%s1 + $0x2f8] sm:$0xff]
  %v164 = vld [vmem:[%s1 + $0x300] sm:$0xff]
  %v165 = vld [vmem:[%s1 + $0x308] sm:$0xff]
  %v166 = vld [vmem:[%s1 + $0x310] sm:$0xff]
  %v167 = vld [vmem:[%s1 + $0x318] sm:$0xff]
  %v168 = vld [vmem:[%s1 + $0x320] sm:$0xff]
  %v169 = vld [vmem:[%s1 + $0x328] sm:$0xff]
  %v170 = vld [vmem:[%s1 + $0x330] sm:$0xff]
  %v171 = vld [vmem:[%s1 + $0x338] sm:$0xff]
  %v172 = vld [vmem:[%s1 + $0x340] sm:$0xff]
  %v173 = vld [vmem:[%s1 + $0x348] sm:$0xff]
  %v174 = vld [vmem:[%s1 + $0x350] sm:$0xff]
  %v175 = vld [vmem:[%s1 + $0x358] sm:$0xff]
  %v176 = vld [vmem:[%s1 + $0x360] sm:$0xff]
  %v177 = vld [vmem:[%s1 + $0x368] sm:$0xff]
  %v178 = vld [vmem:[%s1 + $0x370] sm:$0xff]
  %v179 = vld [vmem:[%s1 + $0x378] sm:$0xff]
  %v180 = vld [vmem:[%s1 + $0x380] sm:$0xff]
  %v181 = vld [vmem:[%s1 + $0x388] sm:$0xff]
  %v182 = vld [vmem:[%s1 + $0x390] sm:$0xff]
  %v183 = vld [vmem:[%s1 + $0x398] sm:$0xff]
  %v184 = vld [vmem:[%s1 + $0x3a0] sm:$0xff]
  %v185 = vld [vmem:[%s1 + $0x3a8] sm:$0xff]
  %v186 = vld [vmem:[%s1 + $0x3b0] sm:$0xff]
  %v187 = vld [vmem:[%s1 + $0x3b8] sm:$0xff]
  %v188 = vld [vmem:[%s1 + $0x3c0] sm:$0xff]
  %v189 = vld [vmem:[%s1 + $0x3c8] sm:$0xff]
  %v190 = vld [vmem:[%s1 + $0x3d0] sm:$0xff]
  %v191 = vld [vmem:[%s1 + $0x3d8] sm:$0xff]
  %v192 = vld [vmem:[%s1 + $0x3e0] sm:$0xff]
  %v193 = vld [vmem:[%s1 + $0x3e8] sm:$0xff]
  %v194 = vld [vmem:[%s1 + $0x3f0] sm:$0xff]
  %v195 = vld [vmem:[%s1 + $0x3f8] sm:$0xff]
  %v196 = vld [vmem:[%s1 + $0x400] sm:$0xff]
  %v197 = vld [vmem:[%s1 + $0x408] sm:$0xff]
  %v198 = vld [vmem:[%s1 + $0x410] sm:$0xff]
  %v199 = vld [vmem:[%s1 + $0x418] sm:$0xff]
  %v200 = vld [vmem:[%s1 + $0x420] sm:$0xff]
  %v201 = vld [vmem:[%s1 + $0x428] sm:$0xff]
  %v202 = vld [vmem:[%s1 + $0x430] sm:$0xff]
  %v203 = vld [vmem:[%s1 + $0x438] sm:$0xff]
  %v204 = vld [vmem:[%s1 + $0x440] sm:$0xff]
  %v205 = vld [vmem:[%s1 + $0x448] sm:$0xff]
  %v206 = vld [vmem:[%s1 + $0x450] sm:$0xff]
  %v207 = vld [vmem:[%s1 + $0x458] sm:$0xff]
  %v208 = vld [vmem:[%s1 + $0x460] sm:$0xff]
  %v209 = vld [vmem:[%s1 + $0x468] sm:$0xff]
  %v210 = vld [vmem:[%s1 + $0x470] sm:$0xff]
  %v211 = vld [vmem:[%s1 + $0x478] sm:$0xff]
  %v212 = vld [vmem:[%s1 + $0x480] sm:$0xff]
  %v213 = vld [vmem:[%s1 + $0x488] sm:$0xff]
  %v214 = vld [vmem:[%s1 + $0x490] sm:$0xff]
  %v215 = vld [vmem:[%s1 + $0x498] sm:$0xff]
  %v216 = vld [vmem:[%s1 + $0x4a0] sm:$0xff]
  %v217 = vld [vmem:[%s1 + $0x4a8] sm:$0xff]
  %v218 = vld [vmem:[%s1 + $0x4b0] sm:$0xff]
  %v219 = vld [vmem:[%s1 + $0x4b8] sm:$0xff]
  %v220 = vld [vmem:[%s1 + $0x4c0] sm:$0xff]
  %v221 = vld [vmem:[%s1 + $0x4c8] sm:$0xff]
  %v222 = vld [vmem:[%s1 + $0x4d0] sm:$0xff]
  %v223 = vld [vmem:[%s1 + $0x4d8] sm:$0xff]
  %v224 = vld [vmem:[%s1 + $0x4e0] sm:$0xff]
  %v225 = vld [vmem:[%s1 + $0x4e8] sm:$0xff]
  %v226 = vld [vmem:[%s1 + $0x4f0] sm:$0xff]
  %v227 = vld [vmem:[%s1 + $0x4f8] sm:$0xff]
  %v228 = vld [vmem:[%s1 + $0x500] sm:$0xff]
  %v229 = vld [vmem:[%s1 + $0x508] sm:$0xff]
  %v230 = vld [vmem:[%s1 + $0x510] sm:$0xff]
  %v231 = vld [vmem:[%s1 + $0x518] sm:$0xff]
  %v232 = vld [vmem:[%s1 + $0x520] sm:$0xff]
  %v233 = vld [vmem:[%s1 + $0x528] sm:$0xff]
  %v234 = vld [vmem:[%s1 + $0x530] sm:$0xff]
  %v235 = vld [vmem:[%s1 + $0x538] sm:$0xff]
  %v236 = vld [vmem:[%s1 + $0x540] sm:$0xff]
  %v237 = vld [vmem:[%s1 + $0x548] sm:$0xff]
  %v238 = vld [vmem:[%s1 + $0x550] sm:$0xff]
  %v239 = vld [vmem:[%s1 + $0x558] sm:$0xff]
  %v240 = vld [vmem:[%s1 + $0x560] sm:$0xff]
  %v241 = vld [vmem:[%s1 + $0x568] sm:$0xff]
  %v242 = vld [vmem:[%s1 + $0x570] sm:$0xff]
  %v243 = vld [vmem:[%s1 + $0x578] sm:$0xff]
  %v244 = vld [vmem:[%s1 + $0x580] sm:$0xff]
  %v245 = vld [vmem:[%s1 + $0x588] sm:$0xff]
  %v246 = vld [vmem:[%s1 + $0x590] sm:$0xff]
  %v247 = vld [vmem:[%s1 + $0x598] sm:$0xff]
  %v248 = vld [vmem:[%s1 + $0x5a0] sm:$0xff]
  %v249 = vld [vmem:[%s1 + $0x5a8] sm:$0xff]
  %v250 = vld [vmem:[%s1 + $0x5b0] sm:$0xff]
  %v251 = vld [vmem:[%s1 + $0x5b8] sm:$0xff]
  %v252 = vld [vmem:[%s1 + $0x5c0] sm:$0xff]
  %v253 = vld [vmem:[%s1 + $0x5c8] sm:$0xff]
  %v254 = vld [vmem:[%s1 + $0x5d0] sm:$0xff]
  %v255 = vld [vmem:[%s1 + $0x5d8] sm:$0xff]
  %v256 = vld [vmem:[%s1 + $0x5e0] sm:$0xff]
  %v257 = vld [vmem:[%s1 + $0x5e8] sm:$0xff]
  %v258 = vld [vmem:[%s1 + $0x5f0] sm:$0xff]
  %v259 = vld [vmem:[%s1 + $0x5f8] sm:$0xff]
  %v260 = vld [vmem:[%s1 + $0x600] sm:$0xff]
  %v261 = vld [vmem:[%s1 + $0x608] sm:$0xff]
  %v262 = vld [vmem:[%s1 + $0x610] sm:$0xff]
  %v263 = vld [vmem:[%s1 + $0x618] sm:$0xff]
  %v264 = vld [vmem:[%s1 + $0x620] sm:$0xff]
  %v265 = vld [vmem:[%s1 + $0x628] sm:$0xff]
  %v266 = vld [vmem:[%s1 + $0x630] sm:$0xff]
  %v267 = vld [vmem:[%s1 + $0x638] sm:$0xff]
  %v268 = vld [vmem:[%s1 + $0x640] sm:$0xff]
  %v269 = vld [vmem:[%s1 + $0x648] sm:$0xff]
  %v270 = vld [vmem:[%s1 + $0x650] sm:$0xff]
  %v271 = vld [vmem:[%s1 + $0x658] sm:$0xff]
  %v272 = vld [vmem:[%s1 + $0x660] sm:$0xff]
  %v273 = vld [vmem:[%s1 + $0x668] sm:$0xff]
  %v274 = vld [vmem:[%s1 + $0x670] sm:$0xff]
  %v275 = vld [vmem:[%s1 + $0x678] sm:$0xff]
  %v276 = vld [vmem:[%s1 + $0x680] sm:$0xff]
  %v277 = vld [vmem:[%s1 + $0x688] sm:$0xff]
  %v278 = vld [vmem:[%s1 + $0x690] sm:$0xff]
  %v279 = vld [vmem:[%s1 + $0x698] sm:$0xff]
  %v280 = vld [vmem:[%s1 + $0x6a0] sm:$0xff]
  %v281 = vld [vmem:[%s1 + $0x6a8] sm:$0xff]
  %v282 = vld [vmem:[%s1 + $0x6b0] sm:$0xff]
  %v283 = vld [vmem:[%s1 + $0x6b8] sm:$0xff]
  %v284 = vld [vmem:[%s1 + $0x6c0] sm:$0xff]
  %v285 = vld [vmem:[%s1 + $0x6c8] sm:$0xff]
  %v286 = vld [vmem:[%s1 + $0x6d0] sm:$0xff]
  %v287 = vld [vmem:[%s1 + $0x6d8] sm:$0xff]
  %v288 = vld [vmem:[%s1 + $0x6e0] sm:$0xff]
  %v289 = vld [vmem:[%s1 + $0x6e8] sm:$0xff]
  %v290 = vld [vmem:[%s1 + $0x6f0] sm:$0xff]
  %v291 = vld [vmem:[%s1 + $0x6f8] sm:$0xff]
  %v292 = vld [vmem:[%s1 + $0x700] sm:$0xff]
  %v293 = vld [vmem:[%s1 + $0x708] sm:$0xff]
  %v294 = vld [vmem:[%s1 + $0x710] sm:$0xff]
  %v295 = vld [vmem:[%s1 + $0x718] sm:$0xff]
  %v296 = vld [vmem:[%s1 + $0x720] sm:$0xff]
  %v297 = vld [vmem:[%s1 + $0x728] sm:$0xff]
  %v298 = vld [vmem:[%s1 + $0x730] sm:$0xff]
  %v299 = vld [vmem:[%s1 + $0x738] sm:$0xff]
  %v300 = vld [vmem:[%s1 + $0x740] sm:$0xff]
  %v301 = vld [vmem:[%s1 + $0x748] sm:$0xff]
  %v302 = vld [vmem:[%s1 + $0x750] sm:$0xff]
  %v303 = vld [vmem:[%s1 + $0x758] sm:$0xff]
  %v304 = vld [vmem:[%s1 + $0x760] sm:$0xff]
  %v305 = vld [vmem:[%s1 + $0x768] sm:$0xff]
  %v306 = vld [vmem:[%s1 + $0x770] sm:$0xff]
  %v307 = vld [vmem:[%s1 + $0x778] sm:$0xff]
  %v308 = vld [vmem:[%s1 + $0x780] sm:$0xff]
  %v309 = vld [vmem:[%s1 + $0x788] sm:$0xff]
  %v310 = vld [vmem:[%s1 + $0x790] sm:$0xff]
  %v311 = vld [vmem:[%s1 + $0x798] sm:$0xff]
  %v312 = vld [vmem:[%s1 + $0x7a0] sm:$0xff]
  %v313 = vld [vmem:[%s1 + $0x7a8] sm:$0xff]
  %v314 = vld [vmem:[%s1 + $0x7b0] sm:$0xff]
  %v315 = vld [vmem:[%s1 + $0x7b8] sm:$0xff]
  %v316 = vld [vmem:[%s1 + $0x7c0] sm:$0xff]
  %v317 = vld [vmem:[%s1 + $0x7c8] sm:$0xff]
  %v318 = vld [vmem:[%s1 + $0x7d0] sm:$0xff]
  %v319 = vld [vmem:[%s1 + $0x7d8] sm:$0xff]
  %v320 = vld [vmem:[%s1 + $0x7e0] sm:$0xff]
  %v321 = vld [vmem:[%s1 + $0x7e8] sm:$0xff]
  %v322 = vld [vmem:[%s1 + $0x7f0] sm:$0xff]
  %v323 = vld [vmem:[%s1 + $0x7f8] sm:$0xff]
  %v324 = vld [vmem:[%s1 + $0x800] sm:$0xff]
  %v325 = vld [vmem:[%s1 + $0x808] sm:$0xff]
  %v326 = vld [vmem:[%s1 + $0x810] sm:$0xff]
  %v327 = vld [vmem:[%s1 + $0x818] sm:$0xff]
  %v328 = vld [vmem:[%s1 + $0x820] sm:$0xff]
  %v329 = vld [vmem:[%s1 + $0x828] sm:$0xff]
  %v330 = vld [vmem:[%s1 + $0x830] sm:$0xff]
  %v331 = vld [vmem:[%s1 + $0x838] sm:$0xff]
  %v332 = vld [vmem:[%s1 + $0x840] sm:$0xff]
  %v333 = vld [vmem:[%s1 + $0x848] sm:$0xff]
  %v334 = vld [vmem:[%s1 + $0x850] sm:$0xff]
  %v335 = vld [vmem:[%s1 + $0x858] sm:$0xff]
  %v336 = vld [vmem:[%s1 + $0x860] sm:$0xff]
  %v337 = vld [vmem:[%s1 + $0x868] sm:$0xff]
  %v338 = vld [vmem:[%s1 + $0x870] sm:$0xff]
  %v339 = vld [vmem:[%s1 + $0x878] sm:$0xff]
  %v340 = vld [vmem:[%s1 + $0x880] sm:$0xff]
  %v341 = vld [vmem:[%s1 + $0x888] sm:$0xff]
  %v342 = vld [vmem:[%s1 + $0x890] sm:$0xff]
  %v343 = vld [vmem:[%s1 + $0x898] sm:$0xff]
  %v344 = vld [vmem:[%s1 + $0x8a0] sm:$0xff]
  %v345 = vld [vmem:[%s1 + $0x8a8] sm:$0xff]
  %v346 = vld [vmem:[%s1 + $0x8b0] sm:$0xff]
  %v347 = vld [vmem:[%s1 + $0x8b8] sm:$0xff]
  %v348 = vld [vmem:[%s1 + $0x8c0] sm:$0xff]
  %v349 = vld [vmem:[%s1 + $0x8c8] sm:$0xff]
  %v350 = vld [vmem:[%s1 + $0x8d0] sm:$0xff]
  %v351 = vld [vmem:[%s1 + $0x8d8] sm:$0xff]
  %v352 = vld [vmem:[%s1 + $0x8e0] sm:$0xff]
  %v353 = vld [vmem:[%s1 + $0x8e8] sm:$0xff]
  %v354 = vld [vmem:[%s1 + $0x8f0] sm:$0xff]
  %v355 = vld [vmem:[%s1 + $0x8f8] sm:$0xff]
  %v356 = vld [vmem:[%s1 + $0x900] sm:$0xff]
  %v357 = vld [vmem:[%s1 + $0x908] sm:$0xff]
  %v358 = vld [vmem:[%s1 + $0x910] sm:$0xff]
  %v359 = vld [vmem:[%s1 + $0x918] sm:$0xff]
  %v360 = vld [vmem:[%s1 + $0x920] sm:$0xff]
  %v361 = vld [vmem:[%s1 + $0x928] sm:$0xff]
  %v362 = vld [vmem:[%s1 + $0x930] sm:$0xff]
  %v363 = vld [vmem:[%s1 + $0x938] sm:$0xff]
  %v364 = vld [vmem:[%s1 + $0x940] sm:$0xff]
  %v365 = vld [vmem:[%s1 + $0x948] sm:$0xff]
  %v366 = vld [vmem:[%s1 + $0x950] sm:$0xff]
  %v367 = vld [vmem:[%s1 + $0x958] sm:$0xff]
  %v368 = vld [vmem:[%s1 + $0x960] sm:$0xff]
  %v369 = vld [vmem:[%s1 + $0x968] sm:$0xff]
  %v370 = vld [vmem:[%s1 + $0x970] sm:$0xff]
  %v371 = vld [vmem:[%s1 + $0x978] sm:$0xff]
  %v372 = vld [vmem:[%s1 + $0x980] sm:$0xff]
  %v373 = vld [vmem:[%s1 + $0x988] sm:$0xff]
  %v374 = vld [vmem:[%s1 + $0x990] sm:$0xff]
  %v375 = vld [vmem:[%s1 + $0x998] sm:$0xff]
  %v376 = vld [vmem:[%s1 + $0x9a0] sm:$0xff]
  %v377 = vld [vmem:[%s1 + $0x9a8] sm:$0xff]
  %v378 = vld [vmem:[%s1 + $0x9b0] sm:$0xff]
  %v379 = vld [vmem:[%s1 + $0x9b8] sm:$0xff]
  %v380 = vld [vmem:[%s1 + $0x9c0] sm:$0xff]
  %v381 = vld [vmem:[%s1 + $0x9c8] sm:$0xff]
  %v382 = vld [vmem:[%s1 + $0x9d0] sm:$0xff]
  %v383 = vld [vmem:[%s1 + $0x9d8] sm:$0xff]
  %v384 = vld [vmem:[%s1 + $0x9e0] sm:$0xff]
  %v385 = vld [vmem:[%s1 + $0x9e8] sm:$0xff]
  %v386 = vld [vmem:[%s1 + $0x9f0] sm:$0xff]
  %v387 = vld [vmem:[%s1 + $0x9f8] sm:$0xff]
  %v388 = vld [vmem:[%s1 + $0xa00] sm:$0xff]
  %v389 = vld [vmem:[%s1 + $0xa08] sm:$0xff]
  %v390 = vld [vmem:[%s1 + $0xa10] sm:$0xff]
  %v391 = vld [vmem:[%s1 + $0xa18] sm:$0xff]
  %v392 = vld [vmem:[%s1 + $0xa20] sm:$0xff]
  %v393 = vld [vmem:[%s1 + $0xa28] sm:$0xff]
  %v394 = vld [vmem:[%s1 + $0xa30] sm:$0xff]
  %v395 = vld [vmem:[%s1 + $0xa38] sm:$0xff]
  %v396 = vld [vmem:[%s1 + $0xa40] sm:$0xff]
  %v397 = vld [vmem:[%s1 + $0xa48] sm:$0xff]
  %v398 = vld [vmem:[%s1 + $0xa50] sm:$0xff]
  %v399 = vld [vmem:[%s1 + $0xa58] sm:$0xff]
  %v400 = vld [vmem:[%s1 + $0xa60] sm:$0xff]
  %v401 = vld [vmem:[%s1 + $0xa68] sm:$0xff]
  %v402 = vld [vmem:[%s1 + $0xa70] sm:$0xff]
  %v403 = vld [vmem:[%s1 + $0xa78] sm:$0xff]
  %v404 = vld [vmem:[%s1 + $0xa80] sm:$0xff]
  %v405 = vld [vmem:[%s1 + $0xa88] sm:$0xff]
  %v406 = vld [vmem:[%s1 + $0xa90] sm:$0xff]
  %v407 = vld [vmem:[%s1 + $0xa98] sm:$0xff]
  %v408 = vld [vmem:[%s1 + $0xaa0] sm:$0xff]
  %v409 = vld [vmem:[%s1 + $0xaa8] sm:$0xff]
  %v410 = vld [vmem:[%s1 + $0xab0] sm:$0xff]
  %v411 = vld [vmem:[%s1 + $0xab8] sm:$0xff]
  %v412 = vld [vmem:[%s1 + $0xac0] sm:$0xff]
  %v413 = vld [vmem:[%s1 + $0xac8] sm:$0xff]
  %v414 = vld [vmem:[%s1 + $0xad0] sm:$0xff]
  %v415 = vld [vmem:[%s1 + $0xad8] sm:$0xff]
  %v416 = vld [vmem:[%s1 + $0xae0] sm:$0xff]
  %v417 = vld [vmem:[%s1 + $0xae8] sm:$0xff]
  %v418 = vld [vmem:[%s1 + $0xaf0] sm:$0xff]
  %v419 = vld [vmem:[%s1 + $0xaf8] sm:$0xff]
  %v420 = vld [vmem:[%s1 + $0xb00] sm:$0xff]
  %v421 = vld [vmem:[%s1 + $0xb08] sm:$0xff]
  %v422 = vld [vmem:[%s1 + $0xb10] sm:$0xff]
  %v423 = vld [vmem:[%s1 + $0xb18] sm:$0xff]
  %v424 = vld [vmem:[%s1 + $0xb20] sm:$0xff]
  %v425 = vld [vmem:[%s1 + $0xb28] sm:$0xff]
  %v426 = vld [vmem:[%s1 + $0xb30] sm:$0xff]
  %v427 = vld [vmem:[%s1 + $0xb38] sm:$0xff]
  %v428 = vld [vmem:[%s1 + $0xb40] sm:$0xff]
  %v429 = vld [vmem:[%s1 + $0xb48] sm:$0xff]
  %v430 = vld [vmem:[%s1 + $0xb50] sm:$0xff]
  %v431 = vld [vmem:[%s1 + $0xb58] sm:$0xff]
  %v432 = vld [vmem:[%s1 + $0xb60] sm:$0xff]
  %v433 = vld [vmem:[%s1 + $0xb68] sm:$0xff]
  %v434 = vld [vmem:[%s1 + $0xb70] sm:$0xff]
  %v435 = vld [vmem:[%s1 + $0xb78] sm:$0xff]
  %v436 = vld [vmem:[%s1 + $0xb80] sm:$0xff]
  %v437 = vld [vmem:[%s1 + $0xb88] sm:$0xff]
  %v438 = vld [vmem:[%s1 + $0xb90] sm:$0xff]
  %v439 = vld [vmem:[%s1 + $0xb98] sm:$0xff]
  %v440 = vld [vmem:[%s1 + $0xba0] sm:$0xff]
  %v441 = vld [vmem:[%s1 + $0xba8] sm:$0xff]
  %v442 = vld [vmem:[%s1 + $0xbb0] sm:$0xff]
  %v443 = vld [vmem:[%s1 + $0xbb8] sm:$0xff]
  %v444 = vld [vmem:[%s1 + $0xbc0] sm:$0xff]
  %v445 = vld [vmem:[%s1 + $0xbc8] sm:$0xff]
  %v446 = vld [vmem:[%s1 + $0xbd0] sm:$0xff]
  %v447 = vld [vmem:[%s1 + $0xbd8] sm:$0xff]
  %v448 = vld [vmem:[%s1 + $0xbe0] sm:$0xff]
  %v449 = vld [vmem:[%s1 + $0xbe8] sm:$0xff]
  %v450 = vld [vmem:[%s1 + $0xbf0] sm:$0xff]
  %v451 = vld [vmem:[%s1 + $0xbf8] sm:$0xff]
  %v452 = vld [vmem:[%s1 + $0xc00] sm:$0xff]
  %v453 = vld [vmem:[%s1 + $0xc08] sm:$0xff]
  %v454 = vld [vmem:[%s1 + $0xc10] sm:$0xff]
  %v455 = vld [vmem:[%s1 + $0xc18] sm:$0xff]
  %v456 = vld [vmem:[%s1 + $0xc20] sm:$0xff]
  %v457 = vld [vmem:[%s1 + $0xc28] sm:$0xff]
  %v458 = vld [vmem:[%s1 + $0xc30] sm:$0xff]
  %v459 = vld [vmem:[%s1 + $0xc38] sm:$0xff]
  %v460 = vld [vmem:[%s1 + $0xc40] sm:$0xff]
  %v461 = vld [vmem:[%s1 + $0xc48] sm:$0xff]
  %v462 = vld [vmem:[%s1 + $0xc50] sm:$0xff]
  %v463 = vld [vmem:[%s1 + $0xc58] sm:$0xff]
  %v464 = vld [vmem:[%s1 + $0xc60] sm:$0xff]
  %v465 = vld [vmem:[%s1 + $0xc68] sm:$0xff]
  %v466 = vld [vmem:[%s1 + $0xc70] sm:$0xff]
  %v467 = vld [vmem:[%s1 + $0xc78] sm:$0xff]
  %v468 = vld [vmem:[%s1 + $0xc80] sm:$0xff]
  %v469 = vld [vmem:[%s1 + $0xc88] sm:$0xff]
  %v470 = vld [vmem:[%s1 + $0xc90] sm:$0xff]
  %v471 = vld [vmem:[%s1 + $0xc98] sm:$0xff]
  %v472 = vld [vmem:[%s1 + $0xca0] sm:$0xff]
  %v473 = vld [vmem:[%s1 + $0xca8] sm:$0xff]
  %v474 = vld [vmem:[%s1 + $0xcb0] sm:$0xff]
  %v475 = vld [vmem:[%s1 + $0xcb8] sm:$0xff]
  %v476 = vld [vmem:[%s1 + $0xcc0] sm:$0xff]
  %v477 = vld [vmem:[%s1 + $0xcc8] sm:$0xff]
  %v478 = vld [vmem:[%s1 + $0xcd0] sm:$0xff]
  %v479 = vld [vmem:[%s1 + $0xcd8] sm:$0xff]
  %v480 = vld [vmem:[%s1 + $0xce0] sm:$0xff]
  %v481 = vld [vmem:[%s1 + $0xce8] sm:$0xff]
  %v482 = vld [vmem:[%s1 + $0xcf0] sm:$0xff]
  %v483 = vld [vmem:[%s1 + $0xcf8] sm:$0xff]
  %v484 = vld [vmem:[%s1 + $0xd00] sm:$0xff]
  %v485 = vld [vmem:[%s1 + $0xd08] sm:$0xff]
  %v486 = vld [vmem:[%s1 + $0xd10] sm:$0xff]
  %v487 = vld [vmem:[%s1 + $0xd18] sm:$0xff]
  %v488 = vld [vmem:[%s1 + $0xd20] sm:$0xff]
  %v489 = vld [vmem:[%s1 + $0xd28] sm:$0xff]
  %v490 = vld [vmem:[%s1 + $0xd30] sm:$0xff]
  %v491 = vld [vmem:[%s1 + $0xd38] sm:$0xff]
  %v492 = vld [vmem:[%s1 + $0xd40] sm:$0xff]
  %v493 = vld [vmem:[%s1 + $0xd48] sm:$0xff]
  %v494 = vld [vmem:[%s1 + $0xd50] sm:$0xff]
  %v495 = vld [vmem:[%s1 + $0xd58] sm:$0xff]
  %v496 = vld [vmem:[%s1 + $0xd60] sm:$0xff]
  %v497 = vld [vmem:[%s1 + $0xd68] sm:$0xff]
  %v498 = vld [vmem:[%s1 + $0xd70] sm:$0xff]
  %v499 = vld [vmem:[%s1 + $0xd78] sm:$0xff]
  %v500 = vld [vmem:[%s1 + $0xd80] sm:$0xff]
  %v501 = vld [vmem:[%s1 + $0xd88] sm:$0xff]
  %v502 = vld [vmem:[%s1 + $0xd90] sm:$0xff]
  %v503 = vld [vmem:[%s1 + $0xd98] sm:$0xff]
  %v504 = vld [vmem:[%s1 + $0xda0] sm:$0xff]
  %v505 = vld [vmem:[%s1 + $0xda8] sm:$0xff]
  %v506 = vld [vmem:[%s1 + $0xdb0] sm:$0xff]
  %v507 = vld [vmem:[%s1 + $0xdb8] sm:$0xff]
  %v508 = vld [vmem:[%s1 + $0xdc0] sm:$0xff]
  %v509 = vld [vmem:[%s1 + $0xdc8] sm:$0xff]
  %v510 = vld [vmem:[%s1 + $0xdd0] sm:$0xff]
  %v511 = vld [vmem:[%s1 + $0xdd8] sm:$0xff]
  %v512 = vld [vmem:[%s1 + $0xde0] sm:$0xff]
  %v513 = vld [vmem:[%s1 + $0xde8] sm:$0xff]
  %v514 = vld [vmem:[%s1 + $0xdf0] sm:$0xff]
  %v515 = vld [vmem:[%s1 + $0xdf8] sm:$0xff]
  %v516 = vld [vmem:[%s1 + $0xe00] sm:$0xff]
  %v517 = vld [vmem:[%s1 + $0xe08] sm:$0xff]
  %v518 = vld [vmem:[%s1 + $0xe10] sm:$0xff]
  %v519 = vld [vmem:[%s1 + $0xe18] sm:$0xff]
  %v520 = vld [vmem:[%s1 + $0xe20] sm:$0xff]
  %v521 = vld [vmem:[%s1 + $0xe28] sm:$0xff]
  %v522 = vld [vmem:[%s1 + $0xe30] sm:$0xff]
  %v523 = vld [vmem:[%s1 + $0xe38] sm:$0xff]
  %v524 = vld [vmem:[%s1 + $0xe40] sm:$0xff]
  %v525 = vld [vmem:[%s1 + $0xe48] sm:$0xff]
  %v526 = vld [vmem:[%s1 + $0xe50] sm:$0xff]
  %v527 = vld [vmem:[%s1 + $0xe58] sm:$0xff]
  %v528 = vld [vmem:[%s1 + $0xe60] sm:$0xff]
  %v529 = vld [vmem:[%s1 + $0xe68] sm:$0xff]
  %v530 = vld [vmem:[%s1 + $0xe70] sm:$0xff]
  %v531 = vld [vmem:[%s1 + $0xe78] sm:$0xff]
  %v532 = vld [vmem:[%s1 + $0xe80] sm:$0xff]
  %v533 = vld [vmem:[%s1 + $0xe88] sm:$0xff]
  %v534 = vld [vmem:[%s1 + $0xe90] sm:$0xff]
  %v535 = vld [vmem:[%s1 + $0xe98] sm:$0xff]
  %v536 = vld [vmem:[%s1 + $0xea0] sm:$0xff]
  %v537 = vld [vmem:[%s1 + $0xea8] sm:$0xff]
  %v538 = vld [vmem:[%s1 + $0xeb0] sm:$0xff]
  %v539 = vld [vmem:[%s1 + $0xeb8] sm:$0xff]
  %v540 = vld [vmem:[%s1 + $0xec0] sm:$0xff]
  %v541 = vld [vmem:[%s1 + $0xec8] sm:$0xff]
  %v542 = vld [vmem:[%s1 + $0xed0] sm:$0xff]
  %v543 = vld [vmem:[%s1 + $0xed8] sm:$0xff]
  %v544 = vld [vmem:[%s1 + $0xee0] sm:$0xff]
  %v545 = vld [vmem:[%s1 + $0xee8] sm:$0xff]
  %v546 = vld [vmem:[%s1 + $0xef0] sm:$0xff]
  %v547 = vld [vmem:[%s1 + $0xef8] sm:$0xff]
  %v548 = vld [vmem:[%s1 + $0xf00] sm:$0xff]
  %v549 = vld [vmem:[%s1 + $0xf08] sm:$0xff]
  %v550 = vld [vmem:[%s1 + $0xf10] sm:$0xff]
  %v551 = vld [vmem:[%s1 + $0xf18] sm:$0xff]
  %v552 = vld [vmem:[%s1 + $0xf20] sm:$0xff]
  %v553 = vld [vmem:[%s1 + $0xf28] sm:$0xff]
  %v554 = vld [vmem:[%s1 + $0xf30] sm:$0xff]
  %v555 = vld [vmem:[%s1 + $0xf38] sm:$0xff]
  %v556 = vld [vmem:[%s1 + $0xf40] sm:$0xff]
  %v557 = vld [vmem:[%s1 + $0xf48] sm:$0xff]
  %v558 = vld [vmem:[%s1 + $0xf50] sm:$0xff]
  %v559 = vld [vmem:[%s1 + $0xf58] sm:$0xff]
  %v560 = vld [vmem:[%s1 + $0xf60] sm:$0xff]
  %v561 = vld [vmem:[%s1 + $0xf68] sm:$0xff]
  %v562 = vld [vmem:[%s1 + $0xf70] sm:$0xff]
  %v563 = vld [vmem:[%s1 + $0xf78] sm:$0xff]
  %v564 = vld [vmem:[%s1 + $0xf80] sm:$0xff]
  %v565 = vld [vmem:[%s1 + $0xf88] sm:$0xff]
  %v566 = vld [vmem:[%s1 + $0xf90] sm:$0xff]
  %v567 = vld [vmem:[%s1 + $0xf98] sm:$0xff]
  %v568 = vld [vmem:[%s1 + $0xfa0] sm:$0xff]
  %v569 = vld [vmem:[%s1 + $0xfa8] sm:$0xff]
  %v570 = vld [vmem:[%s1 + $0xfb0] sm:$0xff]
  %v571 = vld [vmem:[%s1 + $0xfb8] sm:$0xff]
  %v572 = vld [vmem:[%s1 + $0xfc0] sm:$0xff]
  %v573 = vld [vmem:[%s1 + $0xfc8] sm:$0xff]
  %v574 = vld [vmem:[%s1 + $0xfd0] sm:$0xff]
  %v575 = vld [vmem:[%s1 + $0xfd8] sm:$0xff]
  %v576 = vld [vmem:[%s1 + $0xfe0] sm:$0xff]
  %v577 = vld [vmem:[%s1 + $0xfe8] sm:$0xff]
  %v578 = vld [vmem:[%s1 + $0xff0] sm:$0xff]
  %v579 = vld [vmem:[%s1 + $0xff8] sm:$0xff]
  %v580 = vld [vmem:[%s1 + $0x1000] sm:$0xff]
  %v581 = vld [vmem:[%s1 + $0x1008] sm:$0xff]
  %v582 = vld [vmem:[%s1 + $0x1010] sm:$0xff]
  %v583 = vld [vmem:[%s1 + $0x1018] sm:$0xff]
  %v584 = vld [vmem:[%s1 + $0x1020] sm:$0xff]
  %v585 = vld [vmem:[%s1 + $0x1028] sm:$0xff]
  %v586 = vld [vmem:[%s1 + $0x1030] sm:$0xff]
  %v587 = vld [vmem:[%s1 + $0x1038] sm:$0xff]
  %v588 = vld [vmem:[%s1 + $0x1040] sm:$0xff]
  %v589 = vld [vmem:[%s1 + $0x1048] sm:$0xff]
  %v590 = vld [vmem:[%s1 + $0x1050] sm:$0xff]
  %v591 = vld [vmem:[%s1 + $0x1058] sm:$0xff]
  %v592 = vld [vmem:[%s1 + $0x1060] sm:$0xff]
  %v593 = vld [vmem:[%s1 + $0x1068] sm:$0xff]
  %v594 = vld [vmem:[%s1 + $0x1070] sm:$0xff]
  %v595 = vld [vmem:[%s1 + $0x1078] sm:$0xff]
  %v596 = vld [vmem:[%s1 + $0x1080] sm:$0xff]
  %v597 = vld [vmem:[%s1 + $0x1088] sm:$0xff]
  %v598 = vld [vmem:[%s1 + $0x1090] sm:$0xff]
  %v599 = vld [vmem:[%s1 + $0x1098] sm:$0xff]
  %v600 = vld [vmem:[%s1 + $0x10a0] sm:$0xff]
  %v601 = vld [vmem:[%s1 + $0x10a8] sm:$0xff]
  %v602 = vld [vmem:[%s1 + $0x10b0] sm:$0xff]
  %v603 = vld [vmem:[%s1 + $0x10b8] sm:$0xff]
  %v604 = vld [vmem:[%s1 + $0x10c0] sm:$0xff]
  %v605 = vld [vmem:[%s1 + $0x10c8] sm:$0xff]
  %v606 = vld [vmem:[%s1 + $0x10d0] sm:$0xff]
  %v607 = vld [vmem:[%s1 + $0x10d8] sm:$0xff]
  %v608 = vld [vmem:[%s1 + $0x10e0] sm:$0xff]
  %v609 = vld [vmem:[%s1 + $0x10e8] sm:$0xff]
  %v610 = vld [vmem:[%s1 + $0x10f0] sm:$0xff]
  %v611 = vld [vmem:[%s1 + $0x10f8] sm:$0xff]
  %v612 = vld [vmem:[%s1 + $0x1100] sm:$0xff]
  %v613 = vld [vmem:[%s1 + $0x1108] sm:$0xff]
  %v614 = vld [vmem:[%s1 + $0x1110] sm:$0xff]
  %v615 = vld [vmem:[%s1 + $0x1118] sm:$0xff]
  %v616 = vld [vmem:[%s1 + $0x1120] sm:$0xff]
  %v617 = vld [vmem:[%s1 + $0x1128] sm:$0xff]
  %v618 = vld [vmem:[%s1 + $0x1130] sm:$0xff]
  %v619 = vld [vmem:[%s1 + $0x1138] sm:$0xff]
  %v620 = vld [vmem:[%s1 + $0x1140] sm:$0xff]
  %v621 = vld [vmem:[%s1 + $0x1148] sm:$0xff]
  %v622 = vld [vmem:[%s1 + $0x1150] sm:$0xff]
  %v623 = vld [vmem:[%s1 + $0x1158] sm:$0xff]
  %v624 = vld [vmem:[%s1 + $0x1160] sm:$0xff]
  %v625 = vld [vmem:[%s1 + $0x1168] sm:$0xff]
  %v626 = vld [vmem:[%s1 + $0x1170] sm:$0xff]
  %v627 = vld [vmem:[%s1 + $0x1178] sm:$0xff]
  %v628 = vld [vmem:[%s1 + $0x1180] sm:$0xff]
  %v629 = vld [vmem:[%s1 + $0x1188] sm:$0xff]
  %v630 = vld [vmem:[%s1 + $0x1190] sm:$0xff]
  %v631 = vld [vmem:[%s1 + $0x1198] sm:$0xff]
  %v632 = vld [vmem:[%s1 + $0x11a0] sm:$0xff]
  %v633 = vld [vmem:[%s1 + $0x11a8] sm:$0xff]
  %v634 = vld [vmem:[%s1 + $0x11b0] sm:$0xff]
  %v635 = vld [vmem:[%s1 + $0x11b8] sm:$0xff]
  %v636 = vld [vmem:[%s1 + $0x11c0] sm:$0xff]
  %v637 = vld [vmem:[%s1 + $0x11c8] sm:$0xff]
  %v638 = vld [vmem:[%s1 + $0x11d0] sm:$0xff]
  %v639 = vld [vmem:[%s1 + $0x11d8] sm:$0xff]
  %v640 = vld [vmem:[%s1 + $0x11e0] sm:$0xff]
  %v641 = vld [vmem:[%s1 + $0x11e8] sm:$0xff]
  %v642 = vld [vmem:[%s1 + $0x11f0] sm:$0xff]
  %v643 = vld [vmem:[%s1 + $0x11f8] sm:$0xff]
  %v644 = vld [vmem:[%s1 + $0x1200] sm:$0xff]
  %v645 = vld [vmem:[%s1 + $0x1208] sm:$0xff]
  %v646 = vld [vmem:[%s1 + $0x1210] sm:$0xff]
  %v647 = vld [vmem:[%s1 + $0x1218] sm:$0xff]
  %v648 = vld [vmem:[%s1 + $0x1220] sm:$0xff]
  %v649 = vld [vmem:[%s1 + $0x1228] sm:$0xff]
  %v650 = vld [vmem:[%s1 + $0x1230] sm:$0xff]
  %v651 = vld [vmem:[%s1 + $0x1238] sm:$0xff]
  %v652 = vld [vmem:[%s1 + $0x1240] sm:$0xff]
  %v653 = vld [vmem:[%s1 + $0x1248] sm:$0xff]
  %v654 = vld [vmem:[%s1 + $0x1250] sm:$0xff]
  %v655 = vld [vmem:[%s1 + $0x1258] sm:$0xff]
  %v656 = vld [vmem:[%s1 + $0x1260] sm:$0xff]
  %v657 = vld [vmem:[%s1 + $0x1268] sm:$0xff]
  %v658 = vld [vmem:[%s1 + $0x1270] sm:$0xff]
  %v659 = vld [vmem:[%s1 + $0x1278] sm:$0xff]
  %v660 = vld [vmem:[%s1 + $0x1280] sm:$0xff]
  %v661 = vld [vmem:[%s1 + $0x1288] sm:$0xff]
  %v662 = vld [vmem:[%s1 + $0x1290] sm:$0xff]
  %v663 = vld [vmem:[%s1 + $0x1298] sm:$0xff]
  %v664 = vld [vmem:[%s1 + $0x12a0] sm:$0xff]
  %v665 = vld [vmem:[%s1 + $0x12a8] sm:$0xff]
  %v666 = vld [vmem:[%s1 + $0x12b0] sm:$0xff]
  %v667 = vld [vmem:[%s1 + $0x12b8] sm:$0xff]
  %v668 = vld [vmem:[%s1 + $0x12c0] sm:$0xff]
  %v669 = vld [vmem:[%s1 + $0x12c8] sm:$0xff]
  %v670 = vld [vmem:[%s1 + $0x12d0] sm:$0xff]
  %v671 = vld [vmem:[%s1 + $0x12d8] sm:$0xff]
  %v672 = vld [vmem:[%s1 + $0x12e0] sm:$0xff]
  %v673 = vld [vmem:[%s1 + $0x12e8] sm:$0xff]
  %v674 = vld [vmem:[%s1 + $0x12f0] sm:$0xff]
  %v675 = vld [vmem:[%s1 + $0x12f8] sm:$0xff]
  %v676 = vld [vmem:[%s1 + $0x1300] sm:$0xff]
  %v677 = vld [vmem:[%s1 + $0x1308] sm:$0xff]
  %v678 = vld [vmem:[%s1 + $0x1310] sm:$0xff]
  %v679 = vld [vmem:[%s1 + $0x1318] sm:$0xff]
  %v680 = vld [vmem:[%s1 + $0x1320] sm:$0xff]
  %v681 = vld [vmem:[%s1 + $0x1328] sm:$0xff]
  %v682 = vld [vmem:[%s1 + $0x1330] sm:$0xff]
  %v683 = vld [vmem:[%s1 + $0x1338] sm:$0xff]
  %v684 = vld [vmem:[%s1 + $0x1340] sm:$0xff]
  %v685 = vld [vmem:[%s1 + $0x1348] sm:$0xff]
  %v686 = vld [vmem:[%s1 + $0x1350] sm:$0xff]
  %v687 = vld [vmem:[%s1 + $0x1358] sm:$0xff]
  %v688 = vld [vmem:[%s1 + $0x1360] sm:$0xff]
  %v689 = vld [vmem:[%s1 + $0x1368] sm:$0xff]
  %v690 = vld [vmem:[%s1 + $0x1370] sm:$0xff]
  %v691 = vld [vmem:[%s1 + $0x1378] sm:$0xff]
  %v692 = vld [vmem:[%s1 + $0x1380] sm:$0xff]
  %v693 = vld [vmem:[%s1 + $0x1388] sm:$0xff]
  %v694 = vld [vmem:[%s1 + $0x1390] sm:$0xff]
  %v695 = vld [vmem:[%s1 + $0x1398] sm:$0xff]
  %v696 = vld [vmem:[%s1 + $0x13a0] sm:$0xff]
  %v697 = vld [vmem:[%s1 + $0x13a8] sm:$0xff]
  %v698 = vld [vmem:[%s1 + $0x13b0] sm:$0xff]
  %v699 = vld [vmem:[%s1 + $0x13b8] sm:$0xff]
  %v700 = vld [vmem:[%s1 + $0x13c0] sm:$0xff]
  %v701 = vld [vmem:[%s1 + $0x13c8] sm:$0xff]
  %v702 = vld [vmem:[%s1 + $0x13d0] sm:$0xff]
  %v703 = vld [vmem:[%s1 + $0x13d8] sm:$0xff]
  %v704 = vld [vmem:[%s1 + $0x13e0] sm:$0xff]
  %v705 = vld [vmem:[%s1 + $0x13e8] sm:$0xff]
  %v706 = vld [vmem:[%s1 + $0x13f0] sm:$0xff]
  %v707 = vld [vmem:[%s1 + $0x13f8] sm:$0xff]
  %v708 = vld [vmem:[%s1 + $0x1400] sm:$0xff]
  %v709 = vld [vmem:[%s1 + $0x1408] sm:$0xff]
  %v710 = vld [vmem:[%s1 + $0x1410] sm:$0xff]
  %v711 = vld [vmem:[%s1 + $0x1418] sm:$0xff]
  %v712 = vld [vmem:[%s1 + $0x1420] sm:$0xff]
  %v713 = vld [vmem:[%s1 + $0x1428] sm:$0xff]
  %v714 = vld [vmem:[%s1 + $0x1430] sm:$0xff]
  %v715 = vld [vmem:[%s1 + $0x1438] sm:$0xff]
  %v716 = vld [vmem:[%s1 + $0x1440] sm:$0xff]
  %v717 = vld [vmem:[%s1 + $0x1448] sm:$0xff]
  %v718 = vld [vmem:[%s1 + $0x1450] sm:$0xff]
  %v719 = vld [vmem:[%s1 + $0x1458] sm:$0xff]
  %v720 = vld [vmem:[%s1 + $0x1460] sm:$0xff]
  %v721 = vld [vmem:[%s1 + $0x1468] sm:$0xff]
  %v722 = vld [vmem:[%s1 + $0x1470] sm:$0xff]
  %v723 = vld [vmem:[%s1 + $0x1478] sm:$0xff]
  %v724 = vld [vmem:[%s1 + $0x1480] sm:$0xff]
  %v725 = vld [vmem:[%s1 + $0x1488] sm:$0xff]
  %v726 = vld [vmem:[%s1 + $0x1490] sm:$0xff]
  %v727 = vld [vmem:[%s1 + $0x1498] sm:$0xff]
  %v728 = vld [vmem:[%s1 + $0x14a0] sm:$0xff]
  %v729 = vld [vmem:[%s1 + $0x14a8] sm:$0xff]
  %v730 = vld [vmem:[%s1 + $0x14b0] sm:$0xff]
  %v731 = vld [vmem:[%s1 + $0x14b8] sm:$0xff]
  %v732 = vld [vmem:[%s1 + $0x14c0] sm:$0xff]
  %v733 = vld [vmem:[%s1 + $0x14c8] sm:$0xff]
  %v734 = vld [vmem:[%s1 + $0x14d0] sm:$0xff]
  %v735 = vld [vmem:[%s1 + $0x14d8] sm:$0xff]
  %v736 = vld [vmem:[%s1 + $0x14e0] sm:$0xff]
  %v737 = vld [vmem:[%s1 + $0x14e8] sm:$0xff]
  %v738 = vld [vmem:[%s1 + $0x14f0] sm:$0xff]
  %v739 = vld [vmem:[%s1 + $0x14f8] sm:$0xff]
  %v740 = vld [vmem:[%s1 + $0x1500] sm:$0xff]
  %v741 = vld [vmem:[%s1 + $0x1508] sm:$0xff]
  %v742 = vld [vmem:[%s1 + $0x1510] sm:$0xff]
  %v743 = vld [vmem:[%s1 + $0x1518] sm:$0xff]
  %v744 = vld [vmem:[%s1 + $0x1520] sm:$0xff]
  %v745 = vld [vmem:[%s1 + $0x1528] sm:$0xff]
  %v746 = vld [vmem:[%s1 + $0x1530] sm:$0xff]
  %v747 = vld [vmem:[%s1 + $0x1538] sm:$0xff]
  %v748 = vld [vmem:[%s1 + $0x1540] sm:$0xff]
  %v749 = vld [vmem:[%s1 + $0x1548] sm:$0xff]
  %v750 = vld [vmem:[%s1 + $0x1550] sm:$0xff]
  %v751 = vld [vmem:[%s1 + $0x1558] sm:$0xff]
  %v752 = vld [vmem:[%s1 + $0x1560] sm:$0xff]
  %v753 = vld [vmem:[%s1 + $0x1568] sm:$0xff]
  %v754 = vld [vmem:[%s1 + $0x1570] sm:$0xff]
  %v755 = vld [vmem:[%s1 + $0x1578] sm:$0xff]
  %v756 = vld [vmem:[%s1 + $0x1580] sm:$0xff]
  %v757 = vld [vmem:[%s1 + $0x1588] sm:$0xff]
  %v758 = vld [vmem:[%s1 + $0x1590] sm:$0xff]
  %v759 = vld [vmem:[%s1 + $0x1598] sm:$0xff]
  %v760 = vld [vmem:[%s1 + $0x15a0] sm:$0xff]
  %v761 = vld [vmem:[%s1 + $0x15a8] sm:$0xff]
  %v762 = vld [vmem:[%s1 + $0x15b0] sm:$0xff]
  %v763 = vld [vmem:[%s1 + $0x15b8] sm:$0xff]
  %v764 = vld [vmem:[%s1 + $0x15c0] sm:$0xff]
  %v765 = vld [vmem:[%s1 + $0x15c8] sm:$0xff]
  %v766 = vld [vmem:[%s1 + $0x15d0] sm:$0xff]
  %v767 = vld [vmem:[%s1 + $0x15d8] sm:$0xff]
  %v768 = vld [vmem:[%s1 + $0x15e0] sm:$0xff]
  %v769 = vld [vmem:[%s1 + $0x15e8] sm:$0xff]
  %v770 = vld [vmem:[%s1 + $0x15f0] sm:$0xff]
  %v771 = vld [vmem:[%s1 + $0x15f8] sm:$0xff]
  %v772 = vld [vmem:[%s1 + $0x1600] sm:$0xff]
  %v773 = vld [vmem:[%s1 + $0x1608] sm:$0xff]
  %v774 = vld [vmem:[%s1 + $0x1610] sm:$0xff]
  %v775 = vld [vmem:[%s1 + $0x1618] sm:$0xff]
  %v776 = vld [vmem:[%s1 + $0x1620] sm:$0xff]
  %v777 = vld [vmem:[%s1 + $0x1628] sm:$0xff]
  %v778 = vld [vmem:[%s1 + $0x1630] sm:$0xff]
  %v779 = vld [vmem:[%s1 + $0x1638] sm:$0xff]
  %v780 = vld [vmem:[%s1 + $0x1640] sm:$0xff]
  %v781 = vld [vmem:[%s1 + $0x1648] sm:$0xff]
  %v782 = vld [vmem:[%s1 + $0x1650] sm:$0xff]
  %v783 = vld [vmem:[%s1 + $0x1658] sm:$0xff]
  %v784 = vld [vmem:[%s1 + $0x1660] sm:$0xff]
  %v785 = vld [vmem:[%s1 + $0x1668] sm:$0xff]
  %v786 = vld [vmem:[%s1 + $0x1670] sm:$0xff]
  %v787 = vld [vmem:[%s1 + $0x1678] sm:$0xff]
  %v788 = vld [vmem:[%s1 + $0x1680] sm:$0xff]
  %v789 = vld [vmem:[%s1 + $0x1688] sm:$0xff]
  %v790 = vld [vmem:[%s1 + $0x1690] sm:$0xff]
  %v791 = vld [vmem:[%s1 + $0x1698] sm:$0xff]
  %v792 = vld [vmem:[%s1 + $0x16a0] sm:$0xff]
  %v793 = vld [vmem:[%s1 + $0x16a8] sm:$0xff]
  %v794 = vld [vmem:[%s1 + $0x16b0] sm:$0xff]
  %v795 = vld [vmem:[%s1 + $0x16b8] sm:$0xff]
  %v796 = vld [vmem:[%s1 + $0x16c0] sm:$0xff]
  %v797 = vld [vmem:[%s1 + $0x16c8] sm:$0xff]
  %v798 = vld [vmem:[%s1 + $0x16d0] sm:$0xff]
  %v799 = vld [vmem:[%s1 + $0x16d8] sm:$0xff]
  %v800 = vld [vmem:[%s1 + $0x16e0] sm:$0xff]
  %v801 = vld [vmem:[%s1 + $0x16e8] sm:$0xff]
  %v802 = vld [vmem:[%s1 + $0x16f0] sm:$0xff]
  %v803 = vld [vmem:[%s1 + $0x16f8] sm:$0xff]
  %v804 = vld [vmem:[%s1 + $0x1700] sm:$0xff]
  %v805 = vld [vmem:[%s1 + $0x1708] sm:$0xff]
  %v806 = vld [vmem:[%s1 + $0x1710] sm:$0xff]
  %v807 = vld [vmem:[%s1 + $0x1718] sm:$0xff]
  %v808 = vld [vmem:[%s1 + $0x1720] sm:$0xff]
  %v809 = vld [vmem:[%s1 + $0x1728] sm:$0xff]
  %v810 = vld [vmem:[%s1 + $0x1730] sm:$0xff]
  %v811 = vld [vmem:[%s1 + $0x1738] sm:$0xff]
  %v812 = vld [vmem:[%s1 + $0x1740] sm:$0xff]
  %v813 = vld [vmem:[%s1 + $0x1748] sm:$0xff]
  %v814 = vld [vmem:[%s1 + $0x1750] sm:$0xff]
  %v815 = vld [vmem:[%s1 + $0x1758] sm:$0xff]
  %v816 = vld [vmem:[%s1 + $0x1760] sm:$0xff]
  %v817 = vld [vmem:[%s1 + $0x1768] sm:$0xff]
  %v818 = vld [vmem:[%s1 + $0x1770] sm:$0xff]
  %v819 = vld [vmem:[%s1 + $0x1778] sm:$0xff]
  %v820 = vld [vmem:[%s1 + $0x1780] sm:$0xff]
  %v821 = vld [vmem:[%s1 + $0x1788] sm:$0xff]
  %v822 = vld [vmem:[%s1 + $0x1790] sm:$0xff]
  %v823 = vld [vmem:[%s1 + $0x1798] sm:$0xff]
  %v824 = vld [vmem:[%s1 + $0x17a0] sm:$0xff]
  %v825 = vld [vmem:[%s1 + $0x17a8] sm:$0xff]
  %v826 = vld [vmem:[%s1 + $0x17b0] sm:$0xff]
  %v827 = vld [vmem:[%s1 + $0x17b8] sm:$0xff]
  %v828 = vld [vmem:[%s1 + $0x17c0] sm:$0xff]
  %v829 = vld [vmem:[%s1 + $0x17c8] sm:$0xff]
  %v830 = vld [vmem:[%s1 + $0x17d0] sm:$0xff]
  %v831 = vld [vmem:[%s1 + $0x17d8] sm:$0xff]
  %v832 = vld [vmem:[%s1 + $0x17e0] sm:$0xff]
  %v833 = vld [vmem:[%s1 + $0x17e8] sm:$0xff]
  %v834 = vld [vmem:[%s1 + $0x17f0] sm:$0xff]
  %v835 = vld [vmem:[%s1 + $0x17f8] sm:$0xff]
  %v836 = vld [vmem:[%s1 + $0x1800] sm:$0xff]
  %v837 = vld [vmem:[%s1 + $0x1808] sm:$0xff]
  %v838 = vld [vmem:[%s1 + $0x1810] sm:$0xff]
  %v839 = vld [vmem:[%s1 + $0x1818] sm:$0xff]
  %v840 = vld [vmem:[%s1 + $0x1820] sm:$0xff]
  %v841 = vld [vmem:[%s1 + $0x1828] sm:$0xff]
  %v842 = vld [vmem:[%s1 + $0x1830] sm:$0xff]
  %v843 = vld [vmem:[%s1 + $0x1838] sm:$0xff]
  %v844 = vld [vmem:[%s1 + $0x1840] sm:$0xff]
  %v845 = vld [vmem:[%s1 + $0x1848] sm:$0xff]
  %v846 = vld [vmem:[%s1 + $0x1850] sm:$0xff]
  %v847 = vld [vmem:[%s1 + $0x1858] sm:$0xff]
  %v848 = vld [vmem:[%s1 + $0x1860] sm:$0xff]
  %v849 = vld [vmem:[%s1 + $0x1868] sm:$0xff]
  %v850 = vld [vmem:[%s1 + $0x1870] sm:$0xff]
  %v851 = vld [vmem:[%s1 + $0x1878] sm:$0xff]
  %v852 = vld [vmem:[%s1 + $0x1880] sm:$0xff]
  %v853 = vld [vmem:[%s1 + $0x1888] sm:$0xff]
  %v854 = vld [vmem:[%s1 + $0x1890] sm:$0xff]
  %v855 = vld [vmem:[%s1 + $0x1898] sm:$0xff]
  %v856 = vld [vmem:[%s1 + $0x18a0] sm:$0xff]
  %v857 = vld [vmem:[%s1 + $0x18a8] sm:$0xff]
  %v858 = vld [vmem:[%s1 + $0x18b0] sm:$0xff]
  %v859 = vld [vmem:[%s1 + $0x18b8] sm:$0xff]
  %v860 = vld [vmem:[%s1 + $0x18c0] sm:$0xff]
  %v861 = vld [vmem:[%s1 + $0x18c8] sm:$0xff]
  %v862 = vld [vmem:[%s1 + $0x18d0] sm:$0xff]
  %v863 = vld [vmem:[%s1 + $0x18d8] sm:$0xff]
  %v864 = vld [vmem:[%s1 + $0x18e0] sm:$0xff]
  %v865 = vld [vmem:[%s1 + $0x18e8] sm:$0xff]
  %v866 = vld [vmem:[%s1 + $0x18f0] sm:$0xff]
  %v867 = vld [vmem:[%s1 + $0x18f8] sm:$0xff]
  %v868 = vld [vmem:[%s1 + $0x1900] sm:$0xff]
  %v869 = vld [vmem:[%s1 + $0x1908] sm:$0xff]
  %v870 = vld [vmem:[%s1 + $0x1910] sm:$0xff]
  %v871 = vld [vmem:[%s1 + $0x1918] sm:$0xff]
  %v872 = vld [vmem:[%s1 + $0x1920] sm:$0xff]
  %v873 = vld [vmem:[%s1 + $0x1928] sm:$0xff]
  %v874 = vld [vmem:[%s1 + $0x1930] sm:$0xff]
  %v875 = vld [vmem:[%s1 + $0x1938] sm:$0xff]
  %v876 = vld [vmem:[%s1 + $0x1940] sm:$0xff]
  %v877 = vld [vmem:[%s1 + $0x1948] sm:$0xff]
  %v878 = vld [vmem:[%s1 + $0x1950] sm:$0xff]
  %v879 = vld [vmem:[%s1 + $0x1958] sm:$0xff]
  %v880 = vld [vmem:[%s1 + $0x1960] sm:$0xff]
  %v881 = vld [vmem:[%s1 + $0x1968] sm:$0xff]
  %v882 = vld [vmem:[%s1 + $0x1970] sm:$0xff]
  %v883 = vld [vmem:[%s1 + $0x1978] sm:$0xff]
  %v884 = vld [vmem:[%s1 + $0x1980] sm:$0xff]
  %v885 = vld [vmem:[%s1 + $0x1988] sm:$0xff]
  %v886 = vld [vmem:[%s1 + $0x1990] sm:$0xff]
  %v887 = vld [vmem:[%s1 + $0x1998] sm:$0xff]
  %v888 = vld [vmem:[%s1 + $0x19a0] sm:$0xff]
  %v889 = vld [vmem:[%s1 + $0x19a8] sm:$0xff]
  %v890 = vld [vmem:[%s1 + $0x19b0] sm:$0xff]
  %v891 = vld [vmem:[%s1 + $0x19b8] sm:$0xff]
  %v892 = vld [vmem:[%s1 + $0x19c0] sm:$0xff]
  %v893 = vld [vmem:[%s1 + $0x19c8] sm:$0xff]
  %v894 = vld [vmem:[%s1 + $0x19d0] sm:$0xff]
  %v895 = vld [vmem:[%s1 + $0x19d8] sm:$0xff]
  %v896 = vld [vmem:[%s1 + $0x19e0] sm:$0xff]
  %v897 = vld [vmem:[%s1 + $0x19e8] sm:$0xff]
  %v898 = vld [vmem:[%s1 + $0x19f0] sm:$0xff]
  %v899 = vld [vmem:[%s1 + $0x19f8] sm:$0xff]
  %v900 = vld [vmem:[%s1 + $0x1a00] sm:$0xff]
  %v901 = vld [vmem:[%s1 + $0x1a08] sm:$0xff]
  %v902 = vld [vmem:[%s1 + $0x1a10] sm:$0xff]
  %v903 = vld [vmem:[%s1 + $0x1a18] sm:$0xff]
  %v904 = vld [vmem:[%s1 + $0x1a20] sm:$0xff]
  %v905 = vld [vmem:[%s1 + $0x1a28] sm:$0xff]
  %v906 = vld [vmem:[%s1 + $0x1a30] sm:$0xff]
  %v907 = vld [vmem:[%s1 + $0x1a38] sm:$0xff]
  %v908 = vld [vmem:[%s1 + $0x1a40] sm:$0xff]
  %v909 = vld [vmem:[%s1 + $0x1a48] sm:$0xff]
  %v910 = vld [vmem:[%s1 + $0x1a50] sm:$0xff]
  %v911 = vld [vmem:[%s1 + $0x1a58] sm:$0xff]
  %v912 = vld [vmem:[%s1 + $0x1a60] sm:$0xff]
  %v913 = vld [vmem:[%s1 + $0x1a68] sm:$0xff]
  %v914 = vld [vmem:[%s1 + $0x1a70] sm:$0xff]
  %v915 = vld [vmem:[%s1 + $0x1a78] sm:$0xff]
  %v916 = vld [vmem:[%s1 + $0x1a80] sm:$0xff]
  %v917 = vld [vmem:[%s1 + $0x1a88] sm:$0xff]
  %v918 = vld [vmem:[%s1 + $0x1a90] sm:$0xff]
  %v919 = vld [vmem:[%s1 + $0x1a98] sm:$0xff]
  %v920 = vld [vmem:[%s1 + $0x1aa0] sm:$0xff]
  %v921 = vld [vmem:[%s1 + $0x1aa8] sm:$0xff]
  %v922 = vld [vmem:[%s1 + $0x1ab0] sm:$0xff]
  %v923 = vld [vmem:[%s1 + $0x1ab8] sm:$0xff]
  %v924 = vld [vmem:[%s1 + $0x1ac0] sm:$0xff]
  %v925 = vld [vmem:[%s1 + $0x1ac8] sm:$0xff]
  %v926 = vld [vmem:[%s1 + $0x1ad0] sm:$0xff]
  %v927 = vld [vmem:[%s1 + $0x1ad8] sm:$0xff]
  %v928 = vld [vmem:[%s1 + $0x1ae0] sm:$0xff]
  %v929 = vld [vmem:[%s1 + $0x1ae8] sm:$0xff]
  %v930 = vld [vmem:[%s1 + $0x1af0] sm:$0xff]
  %v931 = vld [vmem:[%s1 + $0x1af8] sm:$0xff]
  %v932 = vld [vmem:[%s1 + $0x1b00] sm:$0xff]
  %v933 = vld [vmem:[%s1 + $0x1b08] sm:$0xff]
  %v934 = vld [vmem:[%s1 + $0x1b10] sm:$0xff]
  %v935 = vld [vmem:[%s1 + $0x1b18] sm:$0xff]
  %v936 = vld [vmem:[%s1 + $0x1b20] sm:$0xff]
  %v937 = vld [vmem:[%s1 + $0x1b28] sm:$0xff]
  %v938 = vld [vmem:[%s1 + $0x1b30] sm:$0xff]
  %v939 = vld [vmem:[%s1 + $0x1b38] sm:$0xff]
  %v940 = vld [vmem:[%s1 + $0x1b40] sm:$0xff]
  %v941 = vld [vmem:[%s1 + $0x1b48] sm:$0xff]
  %v942 = vld [vmem:[%s1 + $0x1b50] sm:$0xff]
  %v943 = vld [vmem:[%s1 + $0x1b58] sm:$0xff]
  %v944 = vld [vmem:[%s1 + $0x1b60] sm:$0xff]
  %v945 = vld [vmem:[%s1 + $0x1b68] sm:$0xff]
  %v946 = vld [vmem:[%s1 + $0x1b70] sm:$0xff]
  %v947 = vld [vmem:[%s1 + $0x1b78] sm:$0xff]
  %v948 = vld [vmem:[%s1 + $0x1b80] sm:$0xff]
  %v949 = vld [vmem:[%s1 + $0x1b88] sm:$0xff]
  %v950 = vld [vmem:[%s1 + $0x1b90] sm:$0xff]
  %v951 = vld [vmem:[%s1 + $0x1b98] sm:$0xff]
  %v952 = vld [vmem:[%s1 + $0x1ba0] sm:$0xff]
  %v953 = vld [vmem:[%s1 + $0x1ba8] sm:$0xff]
  %v954 = vld [vmem:[%s1 + $0x1bb0] sm:$0xff]
  %v955 = vld [vmem:[%s1 + $0x1bb8] sm:$0xff]
  %v956 = vld [vmem:[%s1 + $0x1bc0] sm:$0xff]
  %v957 = vld [vmem:[%s1 + $0x1bc8] sm:$0xff]
  %v958 = vld [vmem:[%s1 + $0x1bd0] sm:$0xff]
  %v959 = vld [vmem:[%s1 + $0x1bd8] sm:$0xff]
  %v960 = vld [vmem:[%s1 + $0x1be0] sm:$0xff]
  %v961 = vld [vmem:[%s1 + $0x1be8] sm:$0xff]
  %v962 = vld [vmem:[%s1 + $0x1bf0] sm:$0xff]
  %v963 = vld [vmem:[%s1 + $0x1bf8] sm:$0xff]
  %v964 = vld [vmem:[%s1 + $0x1c00] sm:$0xff]
  %v965 = vld [vmem:[%s1 + $0x1c08] sm:$0xff]
  %v966 = vld [vmem:[%s1 + $0x1c10] sm:$0xff]
  %v967 = vld [vmem:[%s1 + $0x1c18] sm:$0xff]
  %v968 = vld [vmem:[%s1 + $0x1c20] sm:$0xff]
  %v969 = vld [vmem:[%s1 + $0x1c28] sm:$0xff]
  %v970 = vld [vmem:[%s1 + $0x1c30] sm:$0xff]
  %v971 = vld [vmem:[%s1 + $0x1c38] sm:$0xff]
  %v972 = vld [vmem:[%s1 + $0x1c40] sm:$0xff]
  %v973 = vld [vmem:[%s1 + $0x1c48] sm:$0xff]
  %v974 = vld [vmem:[%s1 + $0x1c50] sm:$0xff]
  %v975 = vld [vmem:[%s1 + $0x1c58] sm:$0xff]
  %v976 = vld [vmem:[%s1 + $0x1c60] sm:$0xff]
  %v977 = vld [vmem:[%s1 + $0x1c68] sm:$0xff]
  %v978 = vld [vmem:[%s1 + $0x1c70] sm:$0xff]
  %v979 = vld [vmem:[%s1 + $0x1c78] sm:$0xff]
  %v980 = vld [vmem:[%s1 + $0x1c80] sm:$0xff]
  %v981 = vld [vmem:[%s1 + $0x1c88] sm:$0xff]
  %v982 = vld [vmem:[%s1 + $0x1c90] sm:$0xff]
  %v983 = vld [vmem:[%s1 + $0x1c98] sm:$0xff]
  %v984 = vld [vmem:[%s1 + $0x1ca0] sm:$0xff]
  %v985 = vld [vmem:[%s1 + $0x1ca8] sm:$0xff]
  %v986 = vld [vmem:[%s1 + $0x1cb0] sm:$0xff]
  %v987 = vld [vmem:[%s1 + $0x1cb8] sm:$0xff]
  %v988 = vld [vmem:[%s1 + $0x1cc0] sm:$0xff]
  %v989 = vld [vmem:[%s1 + $0x1cc8] sm:$0xff]
  %v990 = vld [vmem:[%s1 + $0x1cd0] sm:$0xff]
  %v991 = vld [vmem:[%s1 + $0x1cd8] sm:$0xff]
  %v992 = vld [vmem:[%s1 + $0x1ce0] sm:$0xff]
  %v993 = vld [vmem:[%s1 + $0x1ce8] sm:$0xff]
  %v994 = vld [vmem:[%s1 + $0x1cf0] sm:$0xff]
  %v995 = vld [vmem:[%s1 + $0x1cf8] sm:$0xff]
  %v996 = vld [vmem:[%s1 + $0x1d00] sm:$0xff]
  %v997 = vld [vmem:[%s1 + $0x1d08] sm:$0xff]
  %v998 = vld [vmem:[%s1 + $0x1d10] sm:$0xff]
  %v999 = vld [vmem:[%s1 + $0x1d18] sm:$0xff]
  %v1000 = vld [vmem:[%s1 + $0x1d20] sm:$0xff]
  %v1001 = vld [vmem:[%s1 + $0x1d28] sm:$0xff]
  %v1002 = vld [vmem:[%s1 + $0x1d30] sm:$0xff]
  %v1003 = vld [vmem:[%s1 + $0x1d38] sm:$0xff]
  %v1004 = vld [vmem:[%s1 + $0x1d40] sm:$0xff]
  %v1005 = vld [vmem:[%s1 + $0x1d48] sm:$0xff]
  %v1006 = vld [vmem:[%s1 + $0x1d50] sm:$0xff]
  %v1007 = vld [vmem:[%s1 + $0x1d58] sm:$0xff]
  %v1008 = vld [vmem:[%s1 + $0x1d60] sm:$0xff]
  %v1009 = vld [vmem:[%s1 + $0x1d68] sm:$0xff]
  %v1010 = vld [vmem:[%s1 + $0x1d70] sm:$0xff]
  %v1011 = vld [vmem:[%s1 + $0x1d78] sm:$0xff]
  %v1012 = vld [vmem:[%s1 + $0x1d80] sm:$0xff]
  %v1013 = vld [vmem:[%s1 + $0x1d88] sm:$0xff]
  %v1014 = vld [vmem:[%s1 + $0x1d90] sm:$0xff]
  %v1015 = vld [vmem:[%s1 + $0x1d98] sm:$0xff]
  %v1016 = vld [vmem:[%s1 + $0x1da0] sm:$0xff]
  %v1017 = vld [vmem:[%s1 + $0x1da8] sm:$0xff]
  %v1018 = vld [vmem:[%s1 + $0x1db0] sm:$0xff]
  %v1019 = vld [vmem:[%s1 + $0x1db8] sm:$0xff]
  %v1020 = vld [vmem:[%s1 + $0x1dc0] sm:$0xff]
  %v1021 = vld [vmem:[%s1 + $0x1dc8] sm:$0xff]
  %v1022 = vld [vmem:[%s1 + $0x1dd0] sm:$0xff]
  %v1023 = vld [vmem:[%s1 + $0x1dd8] sm:$0xff]
  %v1024 = vld [vmem:[%s1 + $0x1de0] sm:$0xff]
  %v1025 = vld [vmem:[%s1 + $0x1de8] sm:$0xff]
  %v1026 = vld [vmem:[%s1 + $0x1df0] sm:$0xff]
  %v1027 = vld [vmem:[%s1 + $0x1df8] sm:$0xff]
  %v1028 = vld [vmem:[%s1 + $0x1e00] sm:$0xff]
  %v1029 = vld [vmem:[%s1 + $0x1e08] sm:$0xff]
  %v1030 = vld [vmem:[%s1 + $0x1e10] sm:$0xff]
  %v1031 = vld [vmem:[%s1 + $0x1e18] sm:$0xff]
  %v1032 = vld [vmem:[%s1 + $0x1e20] sm:$0xff]
  %v1033 = vld [vmem:[%s1 + $0x1e28] sm:$0xff]
  %v1034 = vld [vmem:[%s1 + $0x1e30] sm:$0xff]
  %v1035 = vld [vmem:[%s1 + $0x1e38] sm:$0xff]
  %v1036 = vld [vmem:[%s1 + $0x1e40] sm:$0xff]
  %v1037 = vld [vmem:[%s1 + $0x1e48] sm:$0xff]
  %v1038 = vld [vmem:[%s1 + $0x1e50] sm:$0xff]
  %v1039 = vld [vmem:[%s1 + $0x1e58] sm:$0xff]
  %v1040 = vld [vmem:[%s1 + $0x1e60] sm:$0xff]
  %v1041 = vld [vmem:[%s1 + $0x1e68] sm:$0xff]
  %v1042 = vld [vmem:[%s1 + $0x1e70] sm:$0xff]
  %v1043 = vld [vmem:[%s1 + $0x1e78] sm:$0xff]
  %v1044 = vld [vmem:[%s1 + $0x1e80] sm:$0xff]
  %v1045 = vld [vmem:[%s1 + $0x1e88] sm:$0xff]
  %v1046 = vld [vmem:[%s1 + $0x1e90] sm:$0xff]
  %v1047 = vld [vmem:[%s1 + $0x1e98] sm:$0xff]
  %v1048 = vld [vmem:[%s1 + $0x1ea0] sm:$0xff]
  %v1049 = vld [vmem:[%s1 + $0x1ea8] sm:$0xff]
  %v1050 = vld [vmem:[%s1 + $0x1eb0] sm:$0xff]
  %v1051 = vld [vmem:[%s1 + $0x1eb8] sm:$0xff]
  %v1052 = vld [vmem:[%s1 + $0x1ec0] sm:$0xff]
  %v1053 = vld [vmem:[%s1 + $0x1ec8] sm:$0xff]
  %v1054 = vld [vmem:[%s1 + $0x1ed0] sm:$0xff]
  %v1055 = vld [vmem:[%s1 + $0x1ed8] sm:$0xff]
  %v1056 = vld [vmem:[%s1 + $0x1ee0] sm:$0xff]
  %v1057 = vld [vmem:[%s1 + $0x1ee8] sm:$0xff]
  %v1058 = vld [vmem:[%s1 + $0x1ef0] sm:$0xff]
  %v1059 = vld [vmem:[%s1 + $0x1ef8] sm:$0xff]
  %v1060 = vld [vmem:[%s1 + $0x1f00] sm:$0xff]
  %v1061 = vld [vmem:[%s1 + $0x1f08] sm:$0xff]
  %v1062 = vld [vmem:[%s1 + $0x1f10] sm:$0xff]
  %v1063 = vld [vmem:[%s1 + $0x1f18] sm:$0xff]
  %v1064 = vld [vmem:[%s1 + $0x1f20] sm:$0xff]
  %v1065 = vld [vmem:[%s1 + $0x1f28] sm:$0xff]
  %v1066 = vld [vmem:[%s1 + $0x1f30] sm:$0xff]
  %v1067 = vld [vmem:[%s1 + $0x1f38] sm:$0xff]
  %v1068 = vld [vmem:[%s1 + $0x1f40] sm:$0xff]
  %v1069 = vld [vmem:[%s1 + $0x1f48] sm:$0xff]
  %v1070 = vld [vmem:[%s1 + $0x1f50] sm:$0xff]
  %v1071 = vld [vmem:[%s1 + $0x1f58] sm:$0xff]
  %v1072 = vld [vmem:[%s1 + $0x1f60] sm:$0xff]
  %v1073 = vld [vmem:[%s1 + $0x1f68] sm:$0xff]
  %v1074 = vld [vmem:[%s1 + $0x1f70] sm:$0xff]
  %v1075 = vld [vmem:[%s1 + $0x1f78] sm:$0xff]
  %v1076 = vld [vmem:[%s1 + $0x1f80] sm:$0xff]
  %v1077 = vld [vmem:[%s1 + $0x1f88] sm:$0xff]
  %v1078 = vld [vmem:[%s1 + $0x1f90] sm:$0xff]
  %v1079 = vld [vmem:[%s1 + $0x1f98] sm:$0xff]
  %v1080 = vld [vmem:[%s1 + $0x1fa0] sm:$0xff]
  %v1081 = vld [vmem:[%s1 + $0x1fa8] sm:$0xff]
  %v1082 = vld [vmem:[%s1 + $0x1fb0] sm:$0xff]
  %v1083 = vld [vmem:[%s1 + $0x1fb8] sm:$0xff]
  %v1084 = vld [vmem:[%s1 + $0x1fc0] sm:$0xff]
  %v1085 = vld [vmem:[%s1 + $0x1fc8] sm:$0xff]
  %v1086 = vld [vmem:[%s1 + $0x1fd0] sm:$0xff]
  %v1087 = vld [vmem:[%s1 + $0x1fd8] sm:$0xff]
  %v1088 = vld [vmem:[%s1 + $0x1fe0] sm:$0xff]
  %v1089 = vld [vmem:[%s1 + $0x1fe8] sm:$0xff]
  %v1090 = vld [vmem:[%s1 + $0x1ff0] sm:$0xff]
  %v1091 = vld [vmem:[%s1 + $0x1ff8] sm:$0xff]
  %v1092 = vld [vmem:[%s2] sm:$0xf]
  %v1094 = vlaneseq
  %v1095 = vshrl.u32 %v1094, 7
  %v1096 = vsub.s32 0, %v1095
  %v1097 = vrot.slane %v1092, %v1096
  %v1098 = vlaneseq
  %v1099 = vshrl.u32 %v1098, 7
  %v1100 = vsub.s32 1, %v1099
  %v1101 = vrot.slane %v1092, %v1100
  %v1102 = vlaneseq
  %v1103 = vshrl.u32 %v1102, 7
  %v1104 = vsub.s32 2, %v1103
  %v1105 = vrot.slane %v1092, %v1104
  %v1106 = vlaneseq
  %v1107 = vshrl.u32 %v1106, 7
  %v1108 = vsub.s32 3, %v1107
  %v1109 = vrot.slane %v1092, %v1108
  %v1162 = vunpack.c.l.b16 %v20
  %v1163 = vunpack.c.h.b16 %v20
  %v1164 = vunpack.c.l.b16 %v21
  %v1165 = vunpack.c.h.b16 %v21
  %v1166 = vunpack.c.l.b16 %v22
  %v1167 = vunpack.c.h.b16 %v22
  %v1168 = vunpack.c.l.b16 %v23
  %v1169 = vunpack.c.h.b16 %v23
  %v1170 = vunpack.c.l.b16 %v24
  %v1171 = vunpack.c.h.b16 %v24
  %v1172 = vunpack.c.l.b16 %v25
  %v1173 = vunpack.c.h.b16 %v25
  %v1174 = vunpack.c.l.b16 %v26
  %v1175 = vunpack.c.h.b16 %v26
  %v1176 = vunpack.c.l.b16 %v27
  %v1177 = vunpack.c.h.b16 %v27
  %v1178 = vunpack.c.l.b16 %v28
  %v1179 = vunpack.c.h.b16 %v28
  %v1180 = vunpack.c.l.b16 %v29
  %v1181 = vunpack.c.h.b16 %v29
  %v1182 = vunpack.c.l.b16 %v30
  %v1183 = vunpack.c.h.b16 %v30
  %v1184 = vunpack.c.l.b16 %v31
  %v1185 = vunpack.c.h.b16 %v31
  %v1186 = vunpack.c.l.b16 %v32
  %v1187 = vunpack.c.h.b16 %v32
  %v1188 = vunpack.c.l.b16 %v33
  %v1189 = vunpack.c.h.b16 %v33
  %v1190 = vunpack.c.l.b16 %v34
  %v1191 = vunpack.c.h.b16 %v34
  %v1192 = vunpack.c.l.b16 %v35
  %v1193 = vunpack.c.h.b16 %v35
  %v1194 = vunpack.c.l.b16 %v36
  %v1195 = vunpack.c.h.b16 %v36
  %v1196 = vunpack.c.l.b16 %v37
  %v1197 = vunpack.c.h.b16 %v37
  %v1198 = vunpack.c.l.b16 %v38
  %v1199 = vunpack.c.h.b16 %v38
  %v1200 = vunpack.c.l.b16 %v39
  %v1201 = vunpack.c.h.b16 %v39
  %v1202 = vunpack.c.l.b16 %v40
  %v1203 = vunpack.c.h.b16 %v40
  %v1204 = vunpack.c.l.b16 %v41
  %v1205 = vunpack.c.h.b16 %v41
  %v1206 = vunpack.c.l.b16 %v42
  %v1207 = vunpack.c.h.b16 %v42
  %v1208 = vunpack.c.l.b16 %v43
  %v1209 = vunpack.c.h.b16 %v43
  %v1210 = vunpack.c.l.b16 %v44
  %v1211 = vunpack.c.h.b16 %v44
  %v1212 = vunpack.c.l.b16 %v45
  %v1213 = vunpack.c.h.b16 %v45
  %v1214 = vunpack.c.l.b16 %v46
  %v1215 = vunpack.c.h.b16 %v46
  %v1216 = vunpack.c.l.b16 %v47
  %v1217 = vunpack.c.h.b16 %v47
  %v1218 = vunpack.c.l.b16 %v48
  %v1219 = vunpack.c.h.b16 %v48
  %v1220 = vunpack.c.l.b16 %v49
  %v1221 = vunpack.c.h.b16 %v49
  %v1222 = vunpack.c.l.b16 %v50
  %v1223 = vunpack.c.h.b16 %v50
  %v1224 = vunpack.c.l.b16 %v51
  %v1225 = vunpack.c.h.b16 %v51
  %v1226 = vunpack.c.l.b16 %v52
  %v1227 = vunpack.c.h.b16 %v52
  %v1228 = vunpack.c.l.b16 %v53
  %v1229 = vunpack.c.h.b16 %v53
  %v1230 = vunpack.c.l.b16 %v54
  %v1231 = vunpack.c.h.b16 %v54
  %v1232 = vunpack.c.l.b16 %v55
  %v1233 = vunpack.c.h.b16 %v55
  %v1234 = vunpack.c.l.b16 %v56
  %v1235 = vunpack.c.h.b16 %v56
  %v1236 = vunpack.c.l.b16 %v57
  %v1237 = vunpack.c.h.b16 %v57
  %v1238 = vunpack.c.l.b16 %v58
  %v1239 = vunpack.c.h.b16 %v58
  %v1240 = vunpack.c.l.b16 %v59
  %v1241 = vunpack.c.h.b16 %v59
  %v1242 = vunpack.c.l.b16 %v60
  %v1243 = vunpack.c.h.b16 %v60
  %v1244 = vunpack.c.l.b16 %v61
  %v1245 = vunpack.c.h.b16 %v61
  %v1246 = vunpack.c.l.b16 %v62
  %v1247 = vunpack.c.h.b16 %v62
  %v1248 = vunpack.c.l.b16 %v63
  %v1249 = vunpack.c.h.b16 %v63
  %v1250 = vunpack.c.l.b16 %v64
  %v1251 = vunpack.c.h.b16 %v64
  %v1252 = vunpack.c.l.b16 %v65
  %v1253 = vunpack.c.h.b16 %v65
  %v1254 = vunpack.c.l.b16 %v66
  %v1255 = vunpack.c.h.b16 %v66
  %v1256 = vunpack.c.l.b16 %v67
  %v1257 = vunpack.c.h.b16 %v67
  %v1258 = vpack.c.b16 %v1194, %v1162
  %v1259 = vpack.c.b16 %v1195, %v1163
  %v1260 = vpack.c.b16 %v1196, %v1164
  %v1261 = vpack.c.b16 %v1197, %v1165
  %v1262 = vpack.c.b16 %v1198, %v1166
  %v1263 = vpack.c.b16 %v1199, %v1167
  %v1264 = vpack.c.b16 %v1200, %v1168
  %v1265 = vpack.c.b16 %v1201, %v1169
  %v1266 = vpack.c.b16 %v1202, %v1170
  %v1267 = vpack.c.b16 %v1203, %v1171
  %v1268 = vpack.c.b16 %v1204, %v1172
  %v1269 = vpack.c.b16 %v1205, %v1173
  %v1270 = vpack.c.b16 %v1206, %v1174
  %v1271 = vpack.c.b16 %v1207, %v1175
  %v1272 = vpack.c.b16 %v1208, %v1176
  %v1273 = vpack.c.b16 %v1209, %v1177
  %v1274 = vpack.c.b16 %v1210, %v1178
  %v1275 = vpack.c.b16 %v1211, %v1179
  %v1276 = vpack.c.b16 %v1212, %v1180
  %v1277 = vpack.c.b16 %v1213, %v1181
  %v1278 = vpack.c.b16 %v1214, %v1182
  %v1279 = vpack.c.b16 %v1215, %v1183
  %v1280 = vpack.c.b16 %v1216, %v1184
  %v1281 = vpack.c.b16 %v1217, %v1185
  %v1282 = vpack.c.b16 %v1218, %v1186
  %v1283 = vpack.c.b16 %v1219, %v1187
  %v1284 = vpack.c.b16 %v1220, %v1188
  %v1285 = vpack.c.b16 %v1221, %v1189
  %v1286 = vpack.c.b16 %v1222, %v1190
  %v1287 = vpack.c.b16 %v1223, %v1191
  %v1288 = vpack.c.b16 %v1224, %v1192
  %v1289 = vpack.c.b16 %v1225, %v1193
  %v1290 = vpack.c.b16 %v1226, %v1226
  %v1291 = vpack.c.b16 %v1227, %v1227
  %v1292 = vpack.c.b16 %v1228, %v1228
  %v1293 = vpack.c.b16 %v1229, %v1229
  %v1294 = vpack.c.b16 %v1230, %v1230
  %v1295 = vpack.c.b16 %v1231, %v1231
  %v1296 = vpack.c.b16 %v1232, %v1232
  %v1297 = vpack.c.b16 %v1233, %v1233
  %v1298 = vpack.c.b16 %v1234, %v1234
  %v1299 = vpack.c.b16 %v1235, %v1235
  %v1300 = vpack.c.b16 %v1236, %v1236
  %v1301 = vpack.c.b16 %v1237, %v1237
  %v1302 = vpack.c.b16 %v1238, %v1238
  %v1303 = vpack.c.b16 %v1239, %v1239
  %v1304 = vpack.c.b16 %v1240, %v1240
  %v1305 = vpack.c.b16 %v1241, %v1241
  %v1306 = vpack.c.b16 %v1242, %v1242
  %v1307 = vpack.c.b16 %v1243, %v1243
  %v1308 = vpack.c.b16 %v1244, %v1244
  %v1309 = vpack.c.b16 %v1245, %v1245
  %v1310 = vpack.c.b16 %v1246, %v1246
  %v1311 = vpack.c.b16 %v1247, %v1247
  %v1312 = vpack.c.b16 %v1248, %v1248
  %v1313 = vpack.c.b16 %v1249, %v1249
  %v1314 = vpack.c.b16 %v1250, %v1250
  %v1315 = vpack.c.b16 %v1251, %v1251
  %v1316 = vpack.c.b16 %v1252, %v1252
  %v1317 = vpack.c.b16 %v1253, %v1253
  %v1318 = vpack.c.b16 %v1254, %v1254
  %v1319 = vpack.c.b16 %v1255, %v1255
  %v1320 = vpack.c.b16 %v1256, %v1256
  %v1321 = vpack.c.b16 %v1257, %v1257
  %v2410 = vunpack.c.l.b16 %v68
  %v2411 = vunpack.c.h.b16 %v68
  %v2412 = vunpack.c.l.b16 %v69
  %v2413 = vunpack.c.h.b16 %v69
  %v2414 = vunpack.c.l.b16 %v70
  %v2415 = vunpack.c.h.b16 %v70
  %v2416 = vunpack.c.l.b16 %v71
  %v2417 = vunpack.c.h.b16 %v71
  %v2418 = vunpack.c.l.b16 %v72
  %v2419 = vunpack.c.h.b16 %v72
  %v2420 = vunpack.c.l.b16 %v73
  %v2421 = vunpack.c.h.b16 %v73
  %v2422 = vunpack.c.l.b16 %v74
  %v2423 = vunpack.c.h.b16 %v74
  %v2424 = vunpack.c.l.b16 %v75
  %v2425 = vunpack.c.h.b16 %v75
  %v2426 = vunpack.c.l.b16 %v76
  %v2427 = vunpack.c.h.b16 %v76
  %v2428 = vunpack.c.l.b16 %v77
  %v2429 = vunpack.c.h.b16 %v77
  %v2430 = vunpack.c.l.b16 %v78
  %v2431 = vunpack.c.h.b16 %v78
  %v2432 = vunpack.c.l.b16 %v79
  %v2433 = vunpack.c.h.b16 %v79
  %v2434 = vunpack.c.l.b16 %v80
  %v2435 = vunpack.c.h.b16 %v80
  %v2436 = vunpack.c.l.b16 %v81
  %v2437 = vunpack.c.h.b16 %v81
  %v2438 = vunpack.c.l.b16 %v82
  %v2439 = vunpack.c.h.b16 %v82
  %v2440 = vunpack.c.l.b16 %v83
  %v2441 = vunpack.c.h.b16 %v83
  %v2442 = vunpack.c.l.b16 %v84
  %v2443 = vunpack.c.h.b16 %v84
  %v2444 = vunpack.c.l.b16 %v85
  %v2445 = vunpack.c.h.b16 %v85
  %v2446 = vunpack.c.l.b16 %v86
  %v2447 = vunpack.c.h.b16 %v86
  %v2448 = vunpack.c.l.b16 %v87
  %v2449 = vunpack.c.h.b16 %v87
  %v2450 = vunpack.c.l.b16 %v88
  %v2451 = vunpack.c.h.b16 %v88
  %v2452 = vunpack.c.l.b16 %v89
  %v2453 = vunpack.c.h.b16 %v89
  %v2454 = vunpack.c.l.b16 %v90
  %v2455 = vunpack.c.h.b16 %v90
  %v2456 = vunpack.c.l.b16 %v91
  %v2457 = vunpack.c.h.b16 %v91
  %v2458 = vunpack.c.l.b16 %v92
  %v2459 = vunpack.c.h.b16 %v92
  %v2460 = vunpack.c.l.b16 %v93
  %v2461 = vunpack.c.h.b16 %v93
  %v2462 = vunpack.c.l.b16 %v94
  %v2463 = vunpack.c.h.b16 %v94
  %v2464 = vunpack.c.l.b16 %v95
  %v2465 = vunpack.c.h.b16 %v95
  %v2466 = vunpack.c.l.b16 %v96
  %v2467 = vunpack.c.h.b16 %v96
  %v2468 = vunpack.c.l.b16 %v97
  %v2469 = vunpack.c.h.b16 %v97
  %v2470 = vunpack.c.l.b16 %v98
  %v2471 = vunpack.c.h.b16 %v98
  %v2472 = vunpack.c.l.b16 %v99
  %v2473 = vunpack.c.h.b16 %v99
  %v2474 = vunpack.c.l.b16 %v100
  %v2475 = vunpack.c.h.b16 %v100
  %v2476 = vunpack.c.l.b16 %v101
  %v2477 = vunpack.c.h.b16 %v101
  %v2478 = vunpack.c.l.b16 %v102
  %v2479 = vunpack.c.h.b16 %v102
  %v2480 = vunpack.c.l.b16 %v103
  %v2481 = vunpack.c.h.b16 %v103
  %v2482 = vunpack.c.l.b16 %v104
  %v2483 = vunpack.c.h.b16 %v104
  %v2484 = vunpack.c.l.b16 %v105
  %v2485 = vunpack.c.h.b16 %v105
  %v2486 = vunpack.c.l.b16 %v106
  %v2487 = vunpack.c.h.b16 %v106
  %v2488 = vunpack.c.l.b16 %v107
  %v2489 = vunpack.c.h.b16 %v107
  %v2490 = vunpack.c.l.b16 %v108
  %v2491 = vunpack.c.h.b16 %v108
  %v2492 = vunpack.c.l.b16 %v109
  %v2493 = vunpack.c.h.b16 %v109
  %v2494 = vunpack.c.l.b16 %v110
  %v2495 = vunpack.c.h.b16 %v110
  %v2496 = vunpack.c.l.b16 %v111
  %v2497 = vunpack.c.h.b16 %v111
  %v2498 = vunpack.c.l.b16 %v112
  %v2499 = vunpack.c.h.b16 %v112
  %v2500 = vunpack.c.l.b16 %v113
  %v2501 = vunpack.c.h.b16 %v113
  %v2502 = vunpack.c.l.b16 %v114
  %v2503 = vunpack.c.h.b16 %v114
  %v2504 = vunpack.c.l.b16 %v115
  %v2505 = vunpack.c.h.b16 %v115
  %v2506 = vunpack.c.l.b16 %v116
  %v2507 = vunpack.c.h.b16 %v116
  %v2508 = vunpack.c.l.b16 %v117
  %v2509 = vunpack.c.h.b16 %v117
  %v2510 = vunpack.c.l.b16 %v118
  %v2511 = vunpack.c.h.b16 %v118
  %v2512 = vunpack.c.l.b16 %v119
  %v2513 = vunpack.c.h.b16 %v119
  %v2514 = vunpack.c.l.b16 %v120
  %v2515 = vunpack.c.h.b16 %v120
  %v2516 = vunpack.c.l.b16 %v121
  %v2517 = vunpack.c.h.b16 %v121
  %v2518 = vunpack.c.l.b16 %v122
  %v2519 = vunpack.c.h.b16 %v122
  %v2520 = vunpack.c.l.b16 %v123
  %v2521 = vunpack.c.h.b16 %v123
  %v2522 = vunpack.c.l.b16 %v124
  %v2523 = vunpack.c.h.b16 %v124
  %v2524 = vunpack.c.l.b16 %v125
  %v2525 = vunpack.c.h.b16 %v125
  %v2526 = vunpack.c.l.b16 %v126
  %v2527 = vunpack.c.h.b16 %v126
  %v2528 = vunpack.c.l.b16 %v127
  %v2529 = vunpack.c.h.b16 %v127
  %v2530 = vunpack.c.l.b16 %v128
  %v2531 = vunpack.c.h.b16 %v128
  %v2532 = vunpack.c.l.b16 %v129
  %v2533 = vunpack.c.h.b16 %v129
  %v2534 = vunpack.c.l.b16 %v130
  %v2535 = vunpack.c.h.b16 %v130
  %v2536 = vunpack.c.l.b16 %v131
  %v2537 = vunpack.c.h.b16 %v131
  %v2538 = vunpack.c.l.b16 %v132
  %v2539 = vunpack.c.h.b16 %v132
  %v2540 = vunpack.c.l.b16 %v133
  %v2541 = vunpack.c.h.b16 %v133
  %v2542 = vunpack.c.l.b16 %v134
  %v2543 = vunpack.c.h.b16 %v134
  %v2544 = vunpack.c.l.b16 %v135
  %v2545 = vunpack.c.h.b16 %v135
  %v2546 = vunpack.c.l.b16 %v136
  %v2547 = vunpack.c.h.b16 %v136
  %v2548 = vunpack.c.l.b16 %v137
  %v2549 = vunpack.c.h.b16 %v137
  %v2550 = vunpack.c.l.b16 %v138
  %v2551 = vunpack.c.h.b16 %v138
  %v2552 = vunpack.c.l.b16 %v139
  %v2553 = vunpack.c.h.b16 %v139
  %v2554 = vunpack.c.l.b16 %v140
  %v2555 = vunpack.c.h.b16 %v140
  %v2556 = vunpack.c.l.b16 %v141
  %v2557 = vunpack.c.h.b16 %v141
  %v2558 = vunpack.c.l.b16 %v142
  %v2559 = vunpack.c.h.b16 %v142
  %v2560 = vunpack.c.l.b16 %v143
  %v2561 = vunpack.c.h.b16 %v143
  %v2562 = vunpack.c.l.b16 %v144
  %v2563 = vunpack.c.h.b16 %v144
  %v2564 = vunpack.c.l.b16 %v145
  %v2565 = vunpack.c.h.b16 %v145
  %v2566 = vunpack.c.l.b16 %v146
  %v2567 = vunpack.c.h.b16 %v146
  %v2568 = vunpack.c.l.b16 %v147
  %v2569 = vunpack.c.h.b16 %v147
  %v2570 = vunpack.c.l.b16 %v148
  %v2571 = vunpack.c.h.b16 %v148
  %v2572 = vunpack.c.l.b16 %v149
  %v2573 = vunpack.c.h.b16 %v149
  %v2574 = vunpack.c.l.b16 %v150
  %v2575 = vunpack.c.h.b16 %v150
  %v2576 = vunpack.c.l.b16 %v151
  %v2577 = vunpack.c.h.b16 %v151
  %v2578 = vunpack.c.l.b16 %v152
  %v2579 = vunpack.c.h.b16 %v152
  %v2580 = vunpack.c.l.b16 %v153
  %v2581 = vunpack.c.h.b16 %v153
  %v2582 = vunpack.c.l.b16 %v154
  %v2583 = vunpack.c.h.b16 %v154
  %v2584 = vunpack.c.l.b16 %v155
  %v2585 = vunpack.c.h.b16 %v155
  %v2586 = vunpack.c.l.b16 %v156
  %v2587 = vunpack.c.h.b16 %v156
  %v2588 = vunpack.c.l.b16 %v157
  %v2589 = vunpack.c.h.b16 %v157
  %v2590 = vunpack.c.l.b16 %v158
  %v2591 = vunpack.c.h.b16 %v158
  %v2592 = vunpack.c.l.b16 %v159
  %v2593 = vunpack.c.h.b16 %v159
  %v2594 = vunpack.c.l.b16 %v160
  %v2595 = vunpack.c.h.b16 %v160
  %v2596 = vunpack.c.l.b16 %v161
  %v2597 = vunpack.c.h.b16 %v161
  %v2598 = vunpack.c.l.b16 %v162
  %v2599 = vunpack.c.h.b16 %v162
  %v2600 = vunpack.c.l.b16 %v163
  %v2601 = vunpack.c.h.b16 %v163
  %v2602 = vunpack.c.l.b16 %v164
  %v2603 = vunpack.c.h.b16 %v164
  %v2604 = vunpack.c.l.b16 %v165
  %v2605 = vunpack.c.h.b16 %v165
  %v2606 = vunpack.c.l.b16 %v166
  %v2607 = vunpack.c.h.b16 %v166
  %v2608 = vunpack.c.l.b16 %v167
  %v2609 = vunpack.c.h.b16 %v167
  %v2610 = vunpack.c.l.b16 %v168
  %v2611 = vunpack.c.h.b16 %v168
  %v2612 = vunpack.c.l.b16 %v169
  %v2613 = vunpack.c.h.b16 %v169
  %v2614 = vunpack.c.l.b16 %v170
  %v2615 = vunpack.c.h.b16 %v170
  %v2616 = vunpack.c.l.b16 %v171
  %v2617 = vunpack.c.h.b16 %v171
  %v2618 = vunpack.c.l.b16 %v172
  %v2619 = vunpack.c.h.b16 %v172
  %v2620 = vunpack.c.l.b16 %v173
  %v2621 = vunpack.c.h.b16 %v173
  %v2622 = vunpack.c.l.b16 %v174
  %v2623 = vunpack.c.h.b16 %v174
  %v2624 = vunpack.c.l.b16 %v175
  %v2625 = vunpack.c.h.b16 %v175
  %v2626 = vunpack.c.l.b16 %v176
  %v2627 = vunpack.c.h.b16 %v176
  %v2628 = vunpack.c.l.b16 %v177
  %v2629 = vunpack.c.h.b16 %v177
  %v2630 = vunpack.c.l.b16 %v178
  %v2631 = vunpack.c.h.b16 %v178
  %v2632 = vunpack.c.l.b16 %v179
  %v2633 = vunpack.c.h.b16 %v179
  %v2634 = vunpack.c.l.b16 %v180
  %v2635 = vunpack.c.h.b16 %v180
  %v2636 = vunpack.c.l.b16 %v181
  %v2637 = vunpack.c.h.b16 %v181
  %v2638 = vunpack.c.l.b16 %v182
  %v2639 = vunpack.c.h.b16 %v182
  %v2640 = vunpack.c.l.b16 %v183
  %v2641 = vunpack.c.h.b16 %v183
  %v2642 = vunpack.c.l.b16 %v184
  %v2643 = vunpack.c.h.b16 %v184
  %v2644 = vunpack.c.l.b16 %v185
  %v2645 = vunpack.c.h.b16 %v185
  %v2646 = vunpack.c.l.b16 %v186
  %v2647 = vunpack.c.h.b16 %v186
  %v2648 = vunpack.c.l.b16 %v187
  %v2649 = vunpack.c.h.b16 %v187
  %v2650 = vunpack.c.l.b16 %v188
  %v2651 = vunpack.c.h.b16 %v188
  %v2652 = vunpack.c.l.b16 %v189
  %v2653 = vunpack.c.h.b16 %v189
  %v2654 = vunpack.c.l.b16 %v190
  %v2655 = vunpack.c.h.b16 %v190
  %v2656 = vunpack.c.l.b16 %v191
  %v2657 = vunpack.c.h.b16 %v191
  %v2658 = vunpack.c.l.b16 %v192
  %v2659 = vunpack.c.h.b16 %v192
  %v2660 = vunpack.c.l.b16 %v193
  %v2661 = vunpack.c.h.b16 %v193
  %v2662 = vunpack.c.l.b16 %v194
  %v2663 = vunpack.c.h.b16 %v194
  %v2664 = vunpack.c.l.b16 %v195
  %v2665 = vunpack.c.h.b16 %v195
  %v2666 = vunpack.c.l.b16 %v196
  %v2667 = vunpack.c.h.b16 %v196
  %v2668 = vunpack.c.l.b16 %v197
  %v2669 = vunpack.c.h.b16 %v197
  %v2670 = vunpack.c.l.b16 %v198
  %v2671 = vunpack.c.h.b16 %v198
  %v2672 = vunpack.c.l.b16 %v199
  %v2673 = vunpack.c.h.b16 %v199
  %v2674 = vunpack.c.l.b16 %v200
  %v2675 = vunpack.c.h.b16 %v200
  %v2676 = vunpack.c.l.b16 %v201
  %v2677 = vunpack.c.h.b16 %v201
  %v2678 = vunpack.c.l.b16 %v202
  %v2679 = vunpack.c.h.b16 %v202
  %v2680 = vunpack.c.l.b16 %v203
  %v2681 = vunpack.c.h.b16 %v203
  %v2682 = vunpack.c.l.b16 %v204
  %v2683 = vunpack.c.h.b16 %v204
  %v2684 = vunpack.c.l.b16 %v205
  %v2685 = vunpack.c.h.b16 %v205
  %v2686 = vunpack.c.l.b16 %v206
  %v2687 = vunpack.c.h.b16 %v206
  %v2688 = vunpack.c.l.b16 %v207
  %v2689 = vunpack.c.h.b16 %v207
  %v2690 = vunpack.c.l.b16 %v208
  %v2691 = vunpack.c.h.b16 %v208
  %v2692 = vunpack.c.l.b16 %v209
  %v2693 = vunpack.c.h.b16 %v209
  %v2694 = vunpack.c.l.b16 %v210
  %v2695 = vunpack.c.h.b16 %v210
  %v2696 = vunpack.c.l.b16 %v211
  %v2697 = vunpack.c.h.b16 %v211
  %v2698 = vunpack.c.l.b16 %v212
  %v2699 = vunpack.c.h.b16 %v212
  %v2700 = vunpack.c.l.b16 %v213
  %v2701 = vunpack.c.h.b16 %v213
  %v2702 = vunpack.c.l.b16 %v214
  %v2703 = vunpack.c.h.b16 %v214
  %v2704 = vunpack.c.l.b16 %v215
  %v2705 = vunpack.c.h.b16 %v215
  %v2706 = vunpack.c.l.b16 %v216
  %v2707 = vunpack.c.h.b16 %v216
  %v2708 = vunpack.c.l.b16 %v217
  %v2709 = vunpack.c.h.b16 %v217
  %v2710 = vunpack.c.l.b16 %v218
  %v2711 = vunpack.c.h.b16 %v218
  %v2712 = vunpack.c.l.b16 %v219
  %v2713 = vunpack.c.h.b16 %v219
  %v2714 = vunpack.c.l.b16 %v220
  %v2715 = vunpack.c.h.b16 %v220
  %v2716 = vunpack.c.l.b16 %v221
  %v2717 = vunpack.c.h.b16 %v221
  %v2718 = vunpack.c.l.b16 %v222
  %v2719 = vunpack.c.h.b16 %v222
  %v2720 = vunpack.c.l.b16 %v223
  %v2721 = vunpack.c.h.b16 %v223
  %v2722 = vunpack.c.l.b16 %v224
  %v2723 = vunpack.c.h.b16 %v224
  %v2724 = vunpack.c.l.b16 %v225
  %v2725 = vunpack.c.h.b16 %v225
  %v2726 = vunpack.c.l.b16 %v226
  %v2727 = vunpack.c.h.b16 %v226
  %v2728 = vunpack.c.l.b16 %v227
  %v2729 = vunpack.c.h.b16 %v227
  %v2730 = vunpack.c.l.b16 %v228
  %v2731 = vunpack.c.h.b16 %v228
  %v2732 = vunpack.c.l.b16 %v229
  %v2733 = vunpack.c.h.b16 %v229
  %v2734 = vunpack.c.l.b16 %v230
  %v2735 = vunpack.c.h.b16 %v230
  %v2736 = vunpack.c.l.b16 %v231
  %v2737 = vunpack.c.h.b16 %v231
  %v2738 = vunpack.c.l.b16 %v232
  %v2739 = vunpack.c.h.b16 %v232
  %v2740 = vunpack.c.l.b16 %v233
  %v2741 = vunpack.c.h.b16 %v233
  %v2742 = vunpack.c.l.b16 %v234
  %v2743 = vunpack.c.h.b16 %v234
  %v2744 = vunpack.c.l.b16 %v235
  %v2745 = vunpack.c.h.b16 %v235
  %v2746 = vunpack.c.l.b16 %v236
  %v2747 = vunpack.c.h.b16 %v236
  %v2748 = vunpack.c.l.b16 %v237
  %v2749 = vunpack.c.h.b16 %v237
  %v2750 = vunpack.c.l.b16 %v238
  %v2751 = vunpack.c.h.b16 %v238
  %v2752 = vunpack.c.l.b16 %v239
  %v2753 = vunpack.c.h.b16 %v239
  %v2754 = vunpack.c.l.b16 %v240
  %v2755 = vunpack.c.h.b16 %v240
  %v2756 = vunpack.c.l.b16 %v241
  %v2757 = vunpack.c.h.b16 %v241
  %v2758 = vunpack.c.l.b16 %v242
  %v2759 = vunpack.c.h.b16 %v242
  %v2760 = vunpack.c.l.b16 %v243
  %v2761 = vunpack.c.h.b16 %v243
  %v2762 = vunpack.c.l.b16 %v244
  %v2763 = vunpack.c.h.b16 %v244
  %v2764 = vunpack.c.l.b16 %v245
  %v2765 = vunpack.c.h.b16 %v245
  %v2766 = vunpack.c.l.b16 %v246
  %v2767 = vunpack.c.h.b16 %v246
  %v2768 = vunpack.c.l.b16 %v247
  %v2769 = vunpack.c.h.b16 %v247
  %v2770 = vunpack.c.l.b16 %v248
  %v2771 = vunpack.c.h.b16 %v248
  %v2772 = vunpack.c.l.b16 %v249
  %v2773 = vunpack.c.h.b16 %v249
  %v2774 = vunpack.c.l.b16 %v250
  %v2775 = vunpack.c.h.b16 %v250
  %v2776 = vunpack.c.l.b16 %v251
  %v2777 = vunpack.c.h.b16 %v251
  %v2778 = vunpack.c.l.b16 %v252
  %v2779 = vunpack.c.h.b16 %v252
  %v2780 = vunpack.c.l.b16 %v253
  %v2781 = vunpack.c.h.b16 %v253
  %v2782 = vunpack.c.l.b16 %v254
  %v2783 = vunpack.c.h.b16 %v254
  %v2784 = vunpack.c.l.b16 %v255
  %v2785 = vunpack.c.h.b16 %v255
  %v2786 = vunpack.c.l.b16 %v256
  %v2787 = vunpack.c.h.b16 %v256
  %v2788 = vunpack.c.l.b16 %v257
  %v2789 = vunpack.c.h.b16 %v257
  %v2790 = vunpack.c.l.b16 %v258
  %v2791 = vunpack.c.h.b16 %v258
  %v2792 = vunpack.c.l.b16 %v259
  %v2793 = vunpack.c.h.b16 %v259
  %v2794 = vunpack.c.l.b16 %v260
  %v2795 = vunpack.c.h.b16 %v260
  %v2796 = vunpack.c.l.b16 %v261
  %v2797 = vunpack.c.h.b16 %v261
  %v2798 = vunpack.c.l.b16 %v262
  %v2799 = vunpack.c.h.b16 %v262
  %v2800 = vunpack.c.l.b16 %v263
  %v2801 = vunpack.c.h.b16 %v263
  %v2802 = vunpack.c.l.b16 %v264
  %v2803 = vunpack.c.h.b16 %v264
  %v2804 = vunpack.c.l.b16 %v265
  %v2805 = vunpack.c.h.b16 %v265
  %v2806 = vunpack.c.l.b16 %v266
  %v2807 = vunpack.c.h.b16 %v266
  %v2808 = vunpack.c.l.b16 %v267
  %v2809 = vunpack.c.h.b16 %v267
  %v2810 = vunpack.c.l.b16 %v268
  %v2811 = vunpack.c.h.b16 %v268
  %v2812 = vunpack.c.l.b16 %v269
  %v2813 = vunpack.c.h.b16 %v269
  %v2814 = vunpack.c.l.b16 %v270
  %v2815 = vunpack.c.h.b16 %v270
  %v2816 = vunpack.c.l.b16 %v271
  %v2817 = vunpack.c.h.b16 %v271
  %v2818 = vunpack.c.l.b16 %v272
  %v2819 = vunpack.c.h.b16 %v272
  %v2820 = vunpack.c.l.b16 %v273
  %v2821 = vunpack.c.h.b16 %v273
  %v2822 = vunpack.c.l.b16 %v274
  %v2823 = vunpack.c.h.b16 %v274
  %v2824 = vunpack.c.l.b16 %v275
  %v2825 = vunpack.c.h.b16 %v275
  %v2826 = vunpack.c.l.b16 %v276
  %v2827 = vunpack.c.h.b16 %v276
  %v2828 = vunpack.c.l.b16 %v277
  %v2829 = vunpack.c.h.b16 %v277
  %v2830 = vunpack.c.l.b16 %v278
  %v2831 = vunpack.c.h.b16 %v278
  %v2832 = vunpack.c.l.b16 %v279
  %v2833 = vunpack.c.h.b16 %v279
  %v2834 = vunpack.c.l.b16 %v280
  %v2835 = vunpack.c.h.b16 %v280
  %v2836 = vunpack.c.l.b16 %v281
  %v2837 = vunpack.c.h.b16 %v281
  %v2838 = vunpack.c.l.b16 %v282
  %v2839 = vunpack.c.h.b16 %v282
  %v2840 = vunpack.c.l.b16 %v283
  %v2841 = vunpack.c.h.b16 %v283
  %v2842 = vunpack.c.l.b16 %v284
  %v2843 = vunpack.c.h.b16 %v284
  %v2844 = vunpack.c.l.b16 %v285
  %v2845 = vunpack.c.h.b16 %v285
  %v2846 = vunpack.c.l.b16 %v286
  %v2847 = vunpack.c.h.b16 %v286
  %v2848 = vunpack.c.l.b16 %v287
  %v2849 = vunpack.c.h.b16 %v287
  %v2850 = vunpack.c.l.b16 %v288
  %v2851 = vunpack.c.h.b16 %v288
  %v2852 = vunpack.c.l.b16 %v289
  %v2853 = vunpack.c.h.b16 %v289
  %v2854 = vunpack.c.l.b16 %v290
  %v2855 = vunpack.c.h.b16 %v290
  %v2856 = vunpack.c.l.b16 %v291
  %v2857 = vunpack.c.h.b16 %v291
  %v2858 = vunpack.c.l.b16 %v292
  %v2859 = vunpack.c.h.b16 %v292
  %v2860 = vunpack.c.l.b16 %v293
  %v2861 = vunpack.c.h.b16 %v293
  %v2862 = vunpack.c.l.b16 %v294
  %v2863 = vunpack.c.h.b16 %v294
  %v2864 = vunpack.c.l.b16 %v295
  %v2865 = vunpack.c.h.b16 %v295
  %v2866 = vunpack.c.l.b16 %v296
  %v2867 = vunpack.c.h.b16 %v296
  %v2868 = vunpack.c.l.b16 %v297
  %v2869 = vunpack.c.h.b16 %v297
  %v2870 = vunpack.c.l.b16 %v298
  %v2871 = vunpack.c.h.b16 %v298
  %v2872 = vunpack.c.l.b16 %v299
  %v2873 = vunpack.c.h.b16 %v299
  %v2874 = vunpack.c.l.b16 %v300
  %v2875 = vunpack.c.h.b16 %v300
  %v2876 = vunpack.c.l.b16 %v301
  %v2877 = vunpack.c.h.b16 %v301
  %v2878 = vunpack.c.l.b16 %v302
  %v2879 = vunpack.c.h.b16 %v302
  %v2880 = vunpack.c.l.b16 %v303
  %v2881 = vunpack.c.h.b16 %v303
  %v2882 = vunpack.c.l.b16 %v304
  %v2883 = vunpack.c.h.b16 %v304
  %v2884 = vunpack.c.l.b16 %v305
  %v2885 = vunpack.c.h.b16 %v305
  %v2886 = vunpack.c.l.b16 %v306
  %v2887 = vunpack.c.h.b16 %v306
  %v2888 = vunpack.c.l.b16 %v307
  %v2889 = vunpack.c.h.b16 %v307
  %v2890 = vunpack.c.l.b16 %v308
  %v2891 = vunpack.c.h.b16 %v308
  %v2892 = vunpack.c.l.b16 %v309
  %v2893 = vunpack.c.h.b16 %v309
  %v2894 = vunpack.c.l.b16 %v310
  %v2895 = vunpack.c.h.b16 %v310
  %v2896 = vunpack.c.l.b16 %v311
  %v2897 = vunpack.c.h.b16 %v311
  %v2898 = vunpack.c.l.b16 %v312
  %v2899 = vunpack.c.h.b16 %v312
  %v2900 = vunpack.c.l.b16 %v313
  %v2901 = vunpack.c.h.b16 %v313
  %v2902 = vunpack.c.l.b16 %v314
  %v2903 = vunpack.c.h.b16 %v314
  %v2904 = vunpack.c.l.b16 %v315
  %v2905 = vunpack.c.h.b16 %v315
  %v2906 = vunpack.c.l.b16 %v316
  %v2907 = vunpack.c.h.b16 %v316
  %v2908 = vunpack.c.l.b16 %v317
  %v2909 = vunpack.c.h.b16 %v317
  %v2910 = vunpack.c.l.b16 %v318
  %v2911 = vunpack.c.h.b16 %v318
  %v2912 = vunpack.c.l.b16 %v319
  %v2913 = vunpack.c.h.b16 %v319
  %v2914 = vunpack.c.l.b16 %v320
  %v2915 = vunpack.c.h.b16 %v320
  %v2916 = vunpack.c.l.b16 %v321
  %v2917 = vunpack.c.h.b16 %v321
  %v2918 = vunpack.c.l.b16 %v322
  %v2919 = vunpack.c.h.b16 %v322
  %v2920 = vunpack.c.l.b16 %v323
  %v2921 = vunpack.c.h.b16 %v323
  %v2922 = vunpack.c.l.b16 %v324
  %v2923 = vunpack.c.h.b16 %v324
  %v2924 = vunpack.c.l.b16 %v325
  %v2925 = vunpack.c.h.b16 %v325
  %v2926 = vunpack.c.l.b16 %v326
  %v2927 = vunpack.c.h.b16 %v326
  %v2928 = vunpack.c.l.b16 %v327
  %v2929 = vunpack.c.h.b16 %v327
  %v2930 = vunpack.c.l.b16 %v328
  %v2931 = vunpack.c.h.b16 %v328
  %v2932 = vunpack.c.l.b16 %v329
  %v2933 = vunpack.c.h.b16 %v329
  %v2934 = vunpack.c.l.b16 %v330
  %v2935 = vunpack.c.h.b16 %v330
  %v2936 = vunpack.c.l.b16 %v331
  %v2937 = vunpack.c.h.b16 %v331
  %v2938 = vunpack.c.l.b16 %v332
  %v2939 = vunpack.c.h.b16 %v332
  %v2940 = vunpack.c.l.b16 %v333
  %v2941 = vunpack.c.h.b16 %v333
  %v2942 = vunpack.c.l.b16 %v334
  %v2943 = vunpack.c.h.b16 %v334
  %v2944 = vunpack.c.l.b16 %v335
  %v2945 = vunpack.c.h.b16 %v335
  %v2946 = vunpack.c.l.b16 %v336
  %v2947 = vunpack.c.h.b16 %v336
  %v2948 = vunpack.c.l.b16 %v337
  %v2949 = vunpack.c.h.b16 %v337
  %v2950 = vunpack.c.l.b16 %v338
  %v2951 = vunpack.c.h.b16 %v338
  %v2952 = vunpack.c.l.b16 %v339
  %v2953 = vunpack.c.h.b16 %v339
  %v2954 = vunpack.c.l.b16 %v340
  %v2955 = vunpack.c.h.b16 %v340
  %v2956 = vunpack.c.l.b16 %v341
  %v2957 = vunpack.c.h.b16 %v341
  %v2958 = vunpack.c.l.b16 %v342
  %v2959 = vunpack.c.h.b16 %v342
  %v2960 = vunpack.c.l.b16 %v343
  %v2961 = vunpack.c.h.b16 %v343
  %v2962 = vunpack.c.l.b16 %v344
  %v2963 = vunpack.c.h.b16 %v344
  %v2964 = vunpack.c.l.b16 %v345
  %v2965 = vunpack.c.h.b16 %v345
  %v2966 = vunpack.c.l.b16 %v346
  %v2967 = vunpack.c.h.b16 %v346
  %v2968 = vunpack.c.l.b16 %v347
  %v2969 = vunpack.c.h.b16 %v347
  %v2970 = vunpack.c.l.b16 %v348
  %v2971 = vunpack.c.h.b16 %v348
  %v2972 = vunpack.c.l.b16 %v349
  %v2973 = vunpack.c.h.b16 %v349
  %v2974 = vunpack.c.l.b16 %v350
  %v2975 = vunpack.c.h.b16 %v350
  %v2976 = vunpack.c.l.b16 %v351
  %v2977 = vunpack.c.h.b16 %v351
  %v2978 = vunpack.c.l.b16 %v352
  %v2979 = vunpack.c.h.b16 %v352
  %v2980 = vunpack.c.l.b16 %v353
  %v2981 = vunpack.c.h.b16 %v353
  %v2982 = vunpack.c.l.b16 %v354
  %v2983 = vunpack.c.h.b16 %v354
  %v2984 = vunpack.c.l.b16 %v355
  %v2985 = vunpack.c.h.b16 %v355
  %v2986 = vunpack.c.l.b16 %v356
  %v2987 = vunpack.c.h.b16 %v356
  %v2988 = vunpack.c.l.b16 %v357
  %v2989 = vunpack.c.h.b16 %v357
  %v2990 = vunpack.c.l.b16 %v358
  %v2991 = vunpack.c.h.b16 %v358
  %v2992 = vunpack.c.l.b16 %v359
  %v2993 = vunpack.c.h.b16 %v359
  %v2994 = vunpack.c.l.b16 %v360
  %v2995 = vunpack.c.h.b16 %v360
  %v2996 = vunpack.c.l.b16 %v361
  %v2997 = vunpack.c.h.b16 %v361
  %v2998 = vunpack.c.l.b16 %v362
  %v2999 = vunpack.c.h.b16 %v362
  %v3000 = vunpack.c.l.b16 %v363
  %v3001 = vunpack.c.h.b16 %v363
  %v3002 = vunpack.c.l.b16 %v364
  %v3003 = vunpack.c.h.b16 %v364
  %v3004 = vunpack.c.l.b16 %v365
  %v3005 = vunpack.c.h.b16 %v365
  %v3006 = vunpack.c.l.b16 %v366
  %v3007 = vunpack.c.h.b16 %v366
  %v3008 = vunpack.c.l.b16 %v367
  %v3009 = vunpack.c.h.b16 %v367
  %v3010 = vunpack.c.l.b16 %v368
  %v3011 = vunpack.c.h.b16 %v368
  %v3012 = vunpack.c.l.b16 %v369
  %v3013 = vunpack.c.h.b16 %v369
  %v3014 = vunpack.c.l.b16 %v370
  %v3015 = vunpack.c.h.b16 %v370
  %v3016 = vunpack.c.l.b16 %v371
  %v3017 = vunpack.c.h.b16 %v371
  %v3018 = vunpack.c.l.b16 %v372
  %v3019 = vunpack.c.h.b16 %v372
  %v3020 = vunpack.c.l.b16 %v373
  %v3021 = vunpack.c.h.b16 %v373
  %v3022 = vunpack.c.l.b16 %v374
  %v3023 = vunpack.c.h.b16 %v374
  %v3024 = vunpack.c.l.b16 %v375
  %v3025 = vunpack.c.h.b16 %v375
  %v3026 = vunpack.c.l.b16 %v376
  %v3027 = vunpack.c.h.b16 %v376
  %v3028 = vunpack.c.l.b16 %v377
  %v3029 = vunpack.c.h.b16 %v377
  %v3030 = vunpack.c.l.b16 %v378
  %v3031 = vunpack.c.h.b16 %v378
  %v3032 = vunpack.c.l.b16 %v379
  %v3033 = vunpack.c.h.b16 %v379
  %v3034 = vunpack.c.l.b16 %v380
  %v3035 = vunpack.c.h.b16 %v380
  %v3036 = vunpack.c.l.b16 %v381
  %v3037 = vunpack.c.h.b16 %v381
  %v3038 = vunpack.c.l.b16 %v382
  %v3039 = vunpack.c.h.b16 %v382
  %v3040 = vunpack.c.l.b16 %v383
  %v3041 = vunpack.c.h.b16 %v383
  %v3042 = vunpack.c.l.b16 %v384
  %v3043 = vunpack.c.h.b16 %v384
  %v3044 = vunpack.c.l.b16 %v385
  %v3045 = vunpack.c.h.b16 %v385
  %v3046 = vunpack.c.l.b16 %v386
  %v3047 = vunpack.c.h.b16 %v386
  %v3048 = vunpack.c.l.b16 %v387
  %v3049 = vunpack.c.h.b16 %v387
  %v3050 = vunpack.c.l.b16 %v388
  %v3051 = vunpack.c.h.b16 %v388
  %v3052 = vunpack.c.l.b16 %v389
  %v3053 = vunpack.c.h.b16 %v389
  %v3054 = vunpack.c.l.b16 %v390
  %v3055 = vunpack.c.h.b16 %v390
  %v3056 = vunpack.c.l.b16 %v391
  %v3057 = vunpack.c.h.b16 %v391
  %v3058 = vunpack.c.l.b16 %v392
  %v3059 = vunpack.c.h.b16 %v392
  %v3060 = vunpack.c.l.b16 %v393
  %v3061 = vunpack.c.h.b16 %v393
  %v3062 = vunpack.c.l.b16 %v394
  %v3063 = vunpack.c.h.b16 %v394
  %v3064 = vunpack.c.l.b16 %v395
  %v3065 = vunpack.c.h.b16 %v395
  %v3066 = vunpack.c.l.b16 %v396
  %v3067 = vunpack.c.h.b16 %v396
  %v3068 = vunpack.c.l.b16 %v397
  %v3069 = vunpack.c.h.b16 %v397
  %v3070 = vunpack.c.l.b16 %v398
  %v3071 = vunpack.c.h.b16 %v398
  %v3072 = vunpack.c.l.b16 %v399
  %v3073 = vunpack.c.h.b16 %v399
  %v3074 = vunpack.c.l.b16 %v400
  %v3075 = vunpack.c.h.b16 %v400
  %v3076 = vunpack.c.l.b16 %v401
  %v3077 = vunpack.c.h.b16 %v401
  %v3078 = vunpack.c.l.b16 %v402
  %v3079 = vunpack.c.h.b16 %v402
  %v3080 = vunpack.c.l.b16 %v403
  %v3081 = vunpack.c.h.b16 %v403
  %v3082 = vunpack.c.l.b16 %v404
  %v3083 = vunpack.c.h.b16 %v404
  %v3084 = vunpack.c.l.b16 %v405
  %v3085 = vunpack.c.h.b16 %v405
  %v3086 = vunpack.c.l.b16 %v406
  %v3087 = vunpack.c.h.b16 %v406
  %v3088 = vunpack.c.l.b16 %v407
  %v3089 = vunpack.c.h.b16 %v407
  %v3090 = vunpack.c.l.b16 %v408
  %v3091 = vunpack.c.h.b16 %v408
  %v3092 = vunpack.c.l.b16 %v409
  %v3093 = vunpack.c.h.b16 %v409
  %v3094 = vunpack.c.l.b16 %v410
  %v3095 = vunpack.c.h.b16 %v410
  %v3096 = vunpack.c.l.b16 %v411
  %v3097 = vunpack.c.h.b16 %v411
  %v3098 = vunpack.c.l.b16 %v412
  %v3099 = vunpack.c.h.b16 %v412
  %v3100 = vunpack.c.l.b16 %v413
  %v3101 = vunpack.c.h.b16 %v413
  %v3102 = vunpack.c.l.b16 %v414
  %v3103 = vunpack.c.h.b16 %v414
  %v3104 = vunpack.c.l.b16 %v415
  %v3105 = vunpack.c.h.b16 %v415
  %v3106 = vunpack.c.l.b16 %v416
  %v3107 = vunpack.c.h.b16 %v416
  %v3108 = vunpack.c.l.b16 %v417
  %v3109 = vunpack.c.h.b16 %v417
  %v3110 = vunpack.c.l.b16 %v418
  %v3111 = vunpack.c.h.b16 %v418
  %v3112 = vunpack.c.l.b16 %v419
  %v3113 = vunpack.c.h.b16 %v419
  %v3114 = vunpack.c.l.b16 %v420
  %v3115 = vunpack.c.h.b16 %v420
  %v3116 = vunpack.c.l.b16 %v421
  %v3117 = vunpack.c.h.b16 %v421
  %v3118 = vunpack.c.l.b16 %v422
  %v3119 = vunpack.c.h.b16 %v422
  %v3120 = vunpack.c.l.b16 %v423
  %v3121 = vunpack.c.h.b16 %v423
  %v3122 = vunpack.c.l.b16 %v424
  %v3123 = vunpack.c.h.b16 %v424
  %v3124 = vunpack.c.l.b16 %v425
  %v3125 = vunpack.c.h.b16 %v425
  %v3126 = vunpack.c.l.b16 %v426
  %v3127 = vunpack.c.h.b16 %v426
  %v3128 = vunpack.c.l.b16 %v427
  %v3129 = vunpack.c.h.b16 %v427
  %v3130 = vunpack.c.l.b16 %v428
  %v3131 = vunpack.c.h.b16 %v428
  %v3132 = vunpack.c.l.b16 %v429
  %v3133 = vunpack.c.h.b16 %v429
  %v3134 = vunpack.c.l.b16 %v430
  %v3135 = vunpack.c.h.b16 %v430
  %v3136 = vunpack.c.l.b16 %v431
  %v3137 = vunpack.c.h.b16 %v431
  %v3138 = vunpack.c.l.b16 %v432
  %v3139 = vunpack.c.h.b16 %v432
  %v3140 = vunpack.c.l.b16 %v433
  %v3141 = vunpack.c.h.b16 %v433
  %v3142 = vunpack.c.l.b16 %v434
  %v3143 = vunpack.c.h.b16 %v434
  %v3144 = vunpack.c.l.b16 %v435
  %v3145 = vunpack.c.h.b16 %v435
  %v3146 = vunpack.c.l.b16 %v436
  %v3147 = vunpack.c.h.b16 %v436
  %v3148 = vunpack.c.l.b16 %v437
  %v3149 = vunpack.c.h.b16 %v437
  %v3150 = vunpack.c.l.b16 %v438
  %v3151 = vunpack.c.h.b16 %v438
  %v3152 = vunpack.c.l.b16 %v439
  %v3153 = vunpack.c.h.b16 %v439
  %v3154 = vunpack.c.l.b16 %v440
  %v3155 = vunpack.c.h.b16 %v440
  %v3156 = vunpack.c.l.b16 %v441
  %v3157 = vunpack.c.h.b16 %v441
  %v3158 = vunpack.c.l.b16 %v442
  %v3159 = vunpack.c.h.b16 %v442
  %v3160 = vunpack.c.l.b16 %v443
  %v3161 = vunpack.c.h.b16 %v443
  %v3162 = vunpack.c.l.b16 %v444
  %v3163 = vunpack.c.h.b16 %v444
  %v3164 = vunpack.c.l.b16 %v445
  %v3165 = vunpack.c.h.b16 %v445
  %v3166 = vunpack.c.l.b16 %v446
  %v3167 = vunpack.c.h.b16 %v446
  %v3168 = vunpack.c.l.b16 %v447
  %v3169 = vunpack.c.h.b16 %v447
  %v3170 = vunpack.c.l.b16 %v448
  %v3171 = vunpack.c.h.b16 %v448
  %v3172 = vunpack.c.l.b16 %v449
  %v3173 = vunpack.c.h.b16 %v449
  %v3174 = vunpack.c.l.b16 %v450
  %v3175 = vunpack.c.h.b16 %v450
  %v3176 = vunpack.c.l.b16 %v451
  %v3177 = vunpack.c.h.b16 %v451
  %v3178 = vunpack.c.l.b16 %v452
  %v3179 = vunpack.c.h.b16 %v452
  %v3180 = vunpack.c.l.b16 %v453
  %v3181 = vunpack.c.h.b16 %v453
  %v3182 = vunpack.c.l.b16 %v454
  %v3183 = vunpack.c.h.b16 %v454
  %v3184 = vunpack.c.l.b16 %v455
  %v3185 = vunpack.c.h.b16 %v455
  %v3186 = vunpack.c.l.b16 %v456
  %v3187 = vunpack.c.h.b16 %v456
  %v3188 = vunpack.c.l.b16 %v457
  %v3189 = vunpack.c.h.b16 %v457
  %v3190 = vunpack.c.l.b16 %v458
  %v3191 = vunpack.c.h.b16 %v458
  %v3192 = vunpack.c.l.b16 %v459
  %v3193 = vunpack.c.h.b16 %v459
  %v3194 = vunpack.c.l.b16 %v460
  %v3195 = vunpack.c.h.b16 %v460
  %v3196 = vunpack.c.l.b16 %v461
  %v3197 = vunpack.c.h.b16 %v461
  %v3198 = vunpack.c.l.b16 %v462
  %v3199 = vunpack.c.h.b16 %v462
  %v3200 = vunpack.c.l.b16 %v463
  %v3201 = vunpack.c.h.b16 %v463
  %v3202 = vunpack.c.l.b16 %v464
  %v3203 = vunpack.c.h.b16 %v464
  %v3204 = vunpack.c.l.b16 %v465
  %v3205 = vunpack.c.h.b16 %v465
  %v3206 = vunpack.c.l.b16 %v466
  %v3207 = vunpack.c.h.b16 %v466
  %v3208 = vunpack.c.l.b16 %v467
  %v3209 = vunpack.c.h.b16 %v467
  %v3210 = vunpack.c.l.b16 %v468
  %v3211 = vunpack.c.h.b16 %v468
  %v3212 = vunpack.c.l.b16 %v469
  %v3213 = vunpack.c.h.b16 %v469
  %v3214 = vunpack.c.l.b16 %v470
  %v3215 = vunpack.c.h.b16 %v470
  %v3216 = vunpack.c.l.b16 %v471
  %v3217 = vunpack.c.h.b16 %v471
  %v3218 = vunpack.c.l.b16 %v472
  %v3219 = vunpack.c.h.b16 %v472
  %v3220 = vunpack.c.l.b16 %v473
  %v3221 = vunpack.c.h.b16 %v473
  %v3222 = vunpack.c.l.b16 %v474
  %v3223 = vunpack.c.h.b16 %v474
  %v3224 = vunpack.c.l.b16 %v475
  %v3225 = vunpack.c.h.b16 %v475
  %v3226 = vunpack.c.l.b16 %v476
  %v3227 = vunpack.c.h.b16 %v476
  %v3228 = vunpack.c.l.b16 %v477
  %v3229 = vunpack.c.h.b16 %v477
  %v3230 = vunpack.c.l.b16 %v478
  %v3231 = vunpack.c.h.b16 %v478
  %v3232 = vunpack.c.l.b16 %v479
  %v3233 = vunpack.c.h.b16 %v479
  %v3234 = vunpack.c.l.b16 %v480
  %v3235 = vunpack.c.h.b16 %v480
  %v3236 = vunpack.c.l.b16 %v481
  %v3237 = vunpack.c.h.b16 %v481
  %v3238 = vunpack.c.l.b16 %v482
  %v3239 = vunpack.c.h.b16 %v482
  %v3240 = vunpack.c.l.b16 %v483
  %v3241 = vunpack.c.h.b16 %v483
  %v3242 = vunpack.c.l.b16 %v484
  %v3243 = vunpack.c.h.b16 %v484
  %v3244 = vunpack.c.l.b16 %v485
  %v3245 = vunpack.c.h.b16 %v485
  %v3246 = vunpack.c.l.b16 %v486
  %v3247 = vunpack.c.h.b16 %v486
  %v3248 = vunpack.c.l.b16 %v487
  %v3249 = vunpack.c.h.b16 %v487
  %v3250 = vunpack.c.l.b16 %v488
  %v3251 = vunpack.c.h.b16 %v488
  %v3252 = vunpack.c.l.b16 %v489
  %v3253 = vunpack.c.h.b16 %v489
  %v3254 = vunpack.c.l.b16 %v490
  %v3255 = vunpack.c.h.b16 %v490
  %v3256 = vunpack.c.l.b16 %v491
  %v3257 = vunpack.c.h.b16 %v491
  %v3258 = vunpack.c.l.b16 %v492
  %v3259 = vunpack.c.h.b16 %v492
  %v3260 = vunpack.c.l.b16 %v493
  %v3261 = vunpack.c.h.b16 %v493
  %v3262 = vunpack.c.l.b16 %v494
  %v3263 = vunpack.c.h.b16 %v494
  %v3264 = vunpack.c.l.b16 %v495
  %v3265 = vunpack.c.h.b16 %v495
  %v3266 = vunpack.c.l.b16 %v496
  %v3267 = vunpack.c.h.b16 %v496
  %v3268 = vunpack.c.l.b16 %v497
  %v3269 = vunpack.c.h.b16 %v497
  %v3270 = vunpack.c.l.b16 %v498
  %v3271 = vunpack.c.h.b16 %v498
  %v3272 = vunpack.c.l.b16 %v499
  %v3273 = vunpack.c.h.b16 %v499
  %v3274 = vunpack.c.l.b16 %v500
  %v3275 = vunpack.c.h.b16 %v500
  %v3276 = vunpack.c.l.b16 %v501
  %v3277 = vunpack.c.h.b16 %v501
  %v3278 = vunpack.c.l.b16 %v502
  %v3279 = vunpack.c.h.b16 %v502
  %v3280 = vunpack.c.l.b16 %v503
  %v3281 = vunpack.c.h.b16 %v503
  %v3282 = vunpack.c.l.b16 %v504
  %v3283 = vunpack.c.h.b16 %v504
  %v3284 = vunpack.c.l.b16 %v505
  %v3285 = vunpack.c.h.b16 %v505
  %v3286 = vunpack.c.l.b16 %v506
  %v3287 = vunpack.c.h.b16 %v506
  %v3288 = vunpack.c.l.b16 %v507
  %v3289 = vunpack.c.h.b16 %v507
  %v3290 = vunpack.c.l.b16 %v508
  %v3291 = vunpack.c.h.b16 %v508
  %v3292 = vunpack.c.l.b16 %v509
  %v3293 = vunpack.c.h.b16 %v509
  %v3294 = vunpack.c.l.b16 %v510
  %v3295 = vunpack.c.h.b16 %v510
  %v3296 = vunpack.c.l.b16 %v511
  %v3297 = vunpack.c.h.b16 %v511
  %v3298 = vunpack.c.l.b16 %v512
  %v3299 = vunpack.c.h.b16 %v512
  %v3300 = vunpack.c.l.b16 %v513
  %v3301 = vunpack.c.h.b16 %v513
  %v3302 = vunpack.c.l.b16 %v514
  %v3303 = vunpack.c.h.b16 %v514
  %v3304 = vunpack.c.l.b16 %v515
  %v3305 = vunpack.c.h.b16 %v515
  %v3306 = vunpack.c.l.b16 %v516
  %v3307 = vunpack.c.h.b16 %v516
  %v3308 = vunpack.c.l.b16 %v517
  %v3309 = vunpack.c.h.b16 %v517
  %v3310 = vunpack.c.l.b16 %v518
  %v3311 = vunpack.c.h.b16 %v518
  %v3312 = vunpack.c.l.b16 %v519
  %v3313 = vunpack.c.h.b16 %v519
  %v3314 = vunpack.c.l.b16 %v520
  %v3315 = vunpack.c.h.b16 %v520
  %v3316 = vunpack.c.l.b16 %v521
  %v3317 = vunpack.c.h.b16 %v521
  %v3318 = vunpack.c.l.b16 %v522
  %v3319 = vunpack.c.h.b16 %v522
  %v3320 = vunpack.c.l.b16 %v523
  %v3321 = vunpack.c.h.b16 %v523
  %v3322 = vunpack.c.l.b16 %v524
  %v3323 = vunpack.c.h.b16 %v524
  %v3324 = vunpack.c.l.b16 %v525
  %v3325 = vunpack.c.h.b16 %v525
  %v3326 = vunpack.c.l.b16 %v526
  %v3327 = vunpack.c.h.b16 %v526
  %v3328 = vunpack.c.l.b16 %v527
  %v3329 = vunpack.c.h.b16 %v527
  %v3330 = vunpack.c.l.b16 %v528
  %v3331 = vunpack.c.h.b16 %v528
  %v3332 = vunpack.c.l.b16 %v529
  %v3333 = vunpack.c.h.b16 %v529
  %v3334 = vunpack.c.l.b16 %v530
  %v3335 = vunpack.c.h.b16 %v530
  %v3336 = vunpack.c.l.b16 %v531
  %v3337 = vunpack.c.h.b16 %v531
  %v3338 = vunpack.c.l.b16 %v532
  %v3339 = vunpack.c.h.b16 %v532
  %v3340 = vunpack.c.l.b16 %v533
  %v3341 = vunpack.c.h.b16 %v533
  %v3342 = vunpack.c.l.b16 %v534
  %v3343 = vunpack.c.h.b16 %v534
  %v3344 = vunpack.c.l.b16 %v535
  %v3345 = vunpack.c.h.b16 %v535
  %v3346 = vunpack.c.l.b16 %v536
  %v3347 = vunpack.c.h.b16 %v536
  %v3348 = vunpack.c.l.b16 %v537
  %v3349 = vunpack.c.h.b16 %v537
  %v3350 = vunpack.c.l.b16 %v538
  %v3351 = vunpack.c.h.b16 %v538
  %v3352 = vunpack.c.l.b16 %v539
  %v3353 = vunpack.c.h.b16 %v539
  %v3354 = vunpack.c.l.b16 %v540
  %v3355 = vunpack.c.h.b16 %v540
  %v3356 = vunpack.c.l.b16 %v541
  %v3357 = vunpack.c.h.b16 %v541
  %v3358 = vunpack.c.l.b16 %v542
  %v3359 = vunpack.c.h.b16 %v542
  %v3360 = vunpack.c.l.b16 %v543
  %v3361 = vunpack.c.h.b16 %v543
  %v3362 = vunpack.c.l.b16 %v544
  %v3363 = vunpack.c.h.b16 %v544
  %v3364 = vunpack.c.l.b16 %v545
  %v3365 = vunpack.c.h.b16 %v545
  %v3366 = vunpack.c.l.b16 %v546
  %v3367 = vunpack.c.h.b16 %v546
  %v3368 = vunpack.c.l.b16 %v547
  %v3369 = vunpack.c.h.b16 %v547
  %v3370 = vunpack.c.l.b16 %v548
  %v3371 = vunpack.c.h.b16 %v548
  %v3372 = vunpack.c.l.b16 %v549
  %v3373 = vunpack.c.h.b16 %v549
  %v3374 = vunpack.c.l.b16 %v550
  %v3375 = vunpack.c.h.b16 %v550
  %v3376 = vunpack.c.l.b16 %v551
  %v3377 = vunpack.c.h.b16 %v551
  %v3378 = vunpack.c.l.b16 %v552
  %v3379 = vunpack.c.h.b16 %v552
  %v3380 = vunpack.c.l.b16 %v553
  %v3381 = vunpack.c.h.b16 %v553
  %v3382 = vunpack.c.l.b16 %v554
  %v3383 = vunpack.c.h.b16 %v554
  %v3384 = vunpack.c.l.b16 %v555
  %v3385 = vunpack.c.h.b16 %v555
  %v3386 = vunpack.c.l.b16 %v556
  %v3387 = vunpack.c.h.b16 %v556
  %v3388 = vunpack.c.l.b16 %v557
  %v3389 = vunpack.c.h.b16 %v557
  %v3390 = vunpack.c.l.b16 %v558
  %v3391 = vunpack.c.h.b16 %v558
  %v3392 = vunpack.c.l.b16 %v559
  %v3393 = vunpack.c.h.b16 %v559
  %v3394 = vunpack.c.l.b16 %v560
  %v3395 = vunpack.c.h.b16 %v560
  %v3396 = vunpack.c.l.b16 %v561
  %v3397 = vunpack.c.h.b16 %v561
  %v3398 = vunpack.c.l.b16 %v562
  %v3399 = vunpack.c.h.b16 %v562
  %v3400 = vunpack.c.l.b16 %v563
  %v3401 = vunpack.c.h.b16 %v563
  %v3402 = vunpack.c.l.b16 %v564
  %v3403 = vunpack.c.h.b16 %v564
  %v3404 = vunpack.c.l.b16 %v565
  %v3405 = vunpack.c.h.b16 %v565
  %v3406 = vunpack.c.l.b16 %v566
  %v3407 = vunpack.c.h.b16 %v566
  %v3408 = vunpack.c.l.b16 %v567
  %v3409 = vunpack.c.h.b16 %v567
  %v3410 = vunpack.c.l.b16 %v568
  %v3411 = vunpack.c.h.b16 %v568
  %v3412 = vunpack.c.l.b16 %v569
  %v3413 = vunpack.c.h.b16 %v569
  %v3414 = vunpack.c.l.b16 %v570
  %v3415 = vunpack.c.h.b16 %v570
  %v3416 = vunpack.c.l.b16 %v571
  %v3417 = vunpack.c.h.b16 %v571
  %v3418 = vunpack.c.l.b16 %v572
  %v3419 = vunpack.c.h.b16 %v572
  %v3420 = vunpack.c.l.b16 %v573
  %v3421 = vunpack.c.h.b16 %v573
  %v3422 = vunpack.c.l.b16 %v574
  %v3423 = vunpack.c.h.b16 %v574
  %v3424 = vunpack.c.l.b16 %v575
  %v3425 = vunpack.c.h.b16 %v575
  %v3426 = vunpack.c.l.b16 %v576
  %v3427 = vunpack.c.h.b16 %v576
  %v3428 = vunpack.c.l.b16 %v577
  %v3429 = vunpack.c.h.b16 %v577
  %v3430 = vunpack.c.l.b16 %v578
  %v3431 = vunpack.c.h.b16 %v578
  %v3432 = vunpack.c.l.b16 %v579
  %v3433 = vunpack.c.h.b16 %v579
  %v3434 = vunpack.c.l.b16 %v580
  %v3435 = vunpack.c.h.b16 %v580
  %v3436 = vunpack.c.l.b16 %v581
  %v3437 = vunpack.c.h.b16 %v581
  %v3438 = vunpack.c.l.b16 %v582
  %v3439 = vunpack.c.h.b16 %v582
  %v3440 = vunpack.c.l.b16 %v583
  %v3441 = vunpack.c.h.b16 %v583
  %v3442 = vunpack.c.l.b16 %v584
  %v3443 = vunpack.c.h.b16 %v584
  %v3444 = vunpack.c.l.b16 %v585
  %v3445 = vunpack.c.h.b16 %v585
  %v3446 = vunpack.c.l.b16 %v586
  %v3447 = vunpack.c.h.b16 %v586
  %v3448 = vunpack.c.l.b16 %v587
  %v3449 = vunpack.c.h.b16 %v587
  %v3450 = vunpack.c.l.b16 %v588
  %v3451 = vunpack.c.h.b16 %v588
  %v3452 = vunpack.c.l.b16 %v589
  %v3453 = vunpack.c.h.b16 %v589
  %v3454 = vunpack.c.l.b16 %v590
  %v3455 = vunpack.c.h.b16 %v590
  %v3456 = vunpack.c.l.b16 %v591
  %v3457 = vunpack.c.h.b16 %v591
  %v3458 = vunpack.c.l.b16 %v592
  %v3459 = vunpack.c.h.b16 %v592
  %v3460 = vunpack.c.l.b16 %v593
  %v3461 = vunpack.c.h.b16 %v593
  %v3462 = vunpack.c.l.b16 %v594
  %v3463 = vunpack.c.h.b16 %v594
  %v3464 = vunpack.c.l.b16 %v595
  %v3465 = vunpack.c.h.b16 %v595
  %v3466 = vunpack.c.l.b16 %v596
  %v3467 = vunpack.c.h.b16 %v596
  %v3468 = vunpack.c.l.b16 %v597
  %v3469 = vunpack.c.h.b16 %v597
  %v3470 = vunpack.c.l.b16 %v598
  %v3471 = vunpack.c.h.b16 %v598
  %v3472 = vunpack.c.l.b16 %v599
  %v3473 = vunpack.c.h.b16 %v599
  %v3474 = vunpack.c.l.b16 %v600
  %v3475 = vunpack.c.h.b16 %v600
  %v3476 = vunpack.c.l.b16 %v601
  %v3477 = vunpack.c.h.b16 %v601
  %v3478 = vunpack.c.l.b16 %v602
  %v3479 = vunpack.c.h.b16 %v602
  %v3480 = vunpack.c.l.b16 %v603
  %v3481 = vunpack.c.h.b16 %v603
  %v3482 = vunpack.c.l.b16 %v604
  %v3483 = vunpack.c.h.b16 %v604
  %v3484 = vunpack.c.l.b16 %v605
  %v3485 = vunpack.c.h.b16 %v605
  %v3486 = vunpack.c.l.b16 %v606
  %v3487 = vunpack.c.h.b16 %v606
  %v3488 = vunpack.c.l.b16 %v607
  %v3489 = vunpack.c.h.b16 %v607
  %v3490 = vunpack.c.l.b16 %v608
  %v3491 = vunpack.c.h.b16 %v608
  %v3492 = vunpack.c.l.b16 %v609
  %v3493 = vunpack.c.h.b16 %v609
  %v3494 = vunpack.c.l.b16 %v610
  %v3495 = vunpack.c.h.b16 %v610
  %v3496 = vunpack.c.l.b16 %v611
  %v3497 = vunpack.c.h.b16 %v611
  %v3498 = vunpack.c.l.b16 %v612
  %v3499 = vunpack.c.h.b16 %v612
  %v3500 = vunpack.c.l.b16 %v613
  %v3501 = vunpack.c.h.b16 %v613
  %v3502 = vunpack.c.l.b16 %v614
  %v3503 = vunpack.c.h.b16 %v614
  %v3504 = vunpack.c.l.b16 %v615
  %v3505 = vunpack.c.h.b16 %v615
  %v3506 = vunpack.c.l.b16 %v616
  %v3507 = vunpack.c.h.b16 %v616
  %v3508 = vunpack.c.l.b16 %v617
  %v3509 = vunpack.c.h.b16 %v617
  %v3510 = vunpack.c.l.b16 %v618
  %v3511 = vunpack.c.h.b16 %v618
  %v3512 = vunpack.c.l.b16 %v619
  %v3513 = vunpack.c.h.b16 %v619
  %v3514 = vunpack.c.l.b16 %v620
  %v3515 = vunpack.c.h.b16 %v620
  %v3516 = vunpack.c.l.b16 %v621
  %v3517 = vunpack.c.h.b16 %v621
  %v3518 = vunpack.c.l.b16 %v622
  %v3519 = vunpack.c.h.b16 %v622
  %v3520 = vunpack.c.l.b16 %v623
  %v3521 = vunpack.c.h.b16 %v623
  %v3522 = vunpack.c.l.b16 %v624
  %v3523 = vunpack.c.h.b16 %v624
  %v3524 = vunpack.c.l.b16 %v625
  %v3525 = vunpack.c.h.b16 %v625
  %v3526 = vunpack.c.l.b16 %v626
  %v3527 = vunpack.c.h.b16 %v626
  %v3528 = vunpack.c.l.b16 %v627
  %v3529 = vunpack.c.h.b16 %v627
  %v3530 = vunpack.c.l.b16 %v628
  %v3531 = vunpack.c.h.b16 %v628
  %v3532 = vunpack.c.l.b16 %v629
  %v3533 = vunpack.c.h.b16 %v629
  %v3534 = vunpack.c.l.b16 %v630
  %v3535 = vunpack.c.h.b16 %v630
  %v3536 = vunpack.c.l.b16 %v631
  %v3537 = vunpack.c.h.b16 %v631
  %v3538 = vunpack.c.l.b16 %v632
  %v3539 = vunpack.c.h.b16 %v632
  %v3540 = vunpack.c.l.b16 %v633
  %v3541 = vunpack.c.h.b16 %v633
  %v3542 = vunpack.c.l.b16 %v634
  %v3543 = vunpack.c.h.b16 %v634
  %v3544 = vunpack.c.l.b16 %v635
  %v3545 = vunpack.c.h.b16 %v635
  %v3546 = vunpack.c.l.b16 %v636
  %v3547 = vunpack.c.h.b16 %v636
  %v3548 = vunpack.c.l.b16 %v637
  %v3549 = vunpack.c.h.b16 %v637
  %v3550 = vunpack.c.l.b16 %v638
  %v3551 = vunpack.c.h.b16 %v638
  %v3552 = vunpack.c.l.b16 %v639
  %v3553 = vunpack.c.h.b16 %v639
  %v3554 = vunpack.c.l.b16 %v640
  %v3555 = vunpack.c.h.b16 %v640
  %v3556 = vunpack.c.l.b16 %v641
  %v3557 = vunpack.c.h.b16 %v641
  %v3558 = vunpack.c.l.b16 %v642
  %v3559 = vunpack.c.h.b16 %v642
  %v3560 = vunpack.c.l.b16 %v643
  %v3561 = vunpack.c.h.b16 %v643
  %v3562 = vunpack.c.l.b16 %v644
  %v3563 = vunpack.c.h.b16 %v644
  %v3564 = vunpack.c.l.b16 %v645
  %v3565 = vunpack.c.h.b16 %v645
  %v3566 = vunpack.c.l.b16 %v646
  %v3567 = vunpack.c.h.b16 %v646
  %v3568 = vunpack.c.l.b16 %v647
  %v3569 = vunpack.c.h.b16 %v647
  %v3570 = vunpack.c.l.b16 %v648
  %v3571 = vunpack.c.h.b16 %v648
  %v3572 = vunpack.c.l.b16 %v649
  %v3573 = vunpack.c.h.b16 %v649
  %v3574 = vunpack.c.l.b16 %v650
  %v3575 = vunpack.c.h.b16 %v650
  %v3576 = vunpack.c.l.b16 %v651
  %v3577 = vunpack.c.h.b16 %v651
  %v3578 = vunpack.c.l.b16 %v652
  %v3579 = vunpack.c.h.b16 %v652
  %v3580 = vunpack.c.l.b16 %v653
  %v3581 = vunpack.c.h.b16 %v653
  %v3582 = vunpack.c.l.b16 %v654
  %v3583 = vunpack.c.h.b16 %v654
  %v3584 = vunpack.c.l.b16 %v655
  %v3585 = vunpack.c.h.b16 %v655
  %v3586 = vunpack.c.l.b16 %v656
  %v3587 = vunpack.c.h.b16 %v656
  %v3588 = vunpack.c.l.b16 %v657
  %v3589 = vunpack.c.h.b16 %v657
  %v3590 = vunpack.c.l.b16 %v658
  %v3591 = vunpack.c.h.b16 %v658
  %v3592 = vunpack.c.l.b16 %v659
  %v3593 = vunpack.c.h.b16 %v659
  %v3594 = vunpack.c.l.b16 %v660
  %v3595 = vunpack.c.h.b16 %v660
  %v3596 = vunpack.c.l.b16 %v661
  %v3597 = vunpack.c.h.b16 %v661
  %v3598 = vunpack.c.l.b16 %v662
  %v3599 = vunpack.c.h.b16 %v662
  %v3600 = vunpack.c.l.b16 %v663
  %v3601 = vunpack.c.h.b16 %v663
  %v3602 = vunpack.c.l.b16 %v664
  %v3603 = vunpack.c.h.b16 %v664
  %v3604 = vunpack.c.l.b16 %v665
  %v3605 = vunpack.c.h.b16 %v665
  %v3606 = vunpack.c.l.b16 %v666
  %v3607 = vunpack.c.h.b16 %v666
  %v3608 = vunpack.c.l.b16 %v667
  %v3609 = vunpack.c.h.b16 %v667
  %v3610 = vunpack.c.l.b16 %v668
  %v3611 = vunpack.c.h.b16 %v668
  %v3612 = vunpack.c.l.b16 %v669
  %v3613 = vunpack.c.h.b16 %v669
  %v3614 = vunpack.c.l.b16 %v670
  %v3615 = vunpack.c.h.b16 %v670
  %v3616 = vunpack.c.l.b16 %v671
  %v3617 = vunpack.c.h.b16 %v671
  %v3618 = vunpack.c.l.b16 %v672
  %v3619 = vunpack.c.h.b16 %v672
  %v3620 = vunpack.c.l.b16 %v673
  %v3621 = vunpack.c.h.b16 %v673
  %v3622 = vunpack.c.l.b16 %v674
  %v3623 = vunpack.c.h.b16 %v674
  %v3624 = vunpack.c.l.b16 %v675
  %v3625 = vunpack.c.h.b16 %v675
  %v3626 = vunpack.c.l.b16 %v676
  %v3627 = vunpack.c.h.b16 %v676
  %v3628 = vunpack.c.l.b16 %v677
  %v3629 = vunpack.c.h.b16 %v677
  %v3630 = vunpack.c.l.b16 %v678
  %v3631 = vunpack.c.h.b16 %v678
  %v3632 = vunpack.c.l.b16 %v679
  %v3633 = vunpack.c.h.b16 %v679
  %v3634 = vunpack.c.l.b16 %v680
  %v3635 = vunpack.c.h.b16 %v680
  %v3636 = vunpack.c.l.b16 %v681
  %v3637 = vunpack.c.h.b16 %v681
  %v3638 = vunpack.c.l.b16 %v682
  %v3639 = vunpack.c.h.b16 %v682
  %v3640 = vunpack.c.l.b16 %v683
  %v3641 = vunpack.c.h.b16 %v683
  %v3642 = vunpack.c.l.b16 %v684
  %v3643 = vunpack.c.h.b16 %v684
  %v3644 = vunpack.c.l.b16 %v685
  %v3645 = vunpack.c.h.b16 %v685
  %v3646 = vunpack.c.l.b16 %v686
  %v3647 = vunpack.c.h.b16 %v686
  %v3648 = vunpack.c.l.b16 %v687
  %v3649 = vunpack.c.h.b16 %v687
  %v3650 = vunpack.c.l.b16 %v688
  %v3651 = vunpack.c.h.b16 %v688
  %v3652 = vunpack.c.l.b16 %v689
  %v3653 = vunpack.c.h.b16 %v689
  %v3654 = vunpack.c.l.b16 %v690
  %v3655 = vunpack.c.h.b16 %v690
  %v3656 = vunpack.c.l.b16 %v691
  %v3657 = vunpack.c.h.b16 %v691
  %v3658 = vunpack.c.l.b16 %v692
  %v3659 = vunpack.c.h.b16 %v692
  %v3660 = vunpack.c.l.b16 %v693
  %v3661 = vunpack.c.h.b16 %v693
  %v3662 = vunpack.c.l.b16 %v694
  %v3663 = vunpack.c.h.b16 %v694
  %v3664 = vunpack.c.l.b16 %v695
  %v3665 = vunpack.c.h.b16 %v695
  %v3666 = vunpack.c.l.b16 %v696
  %v3667 = vunpack.c.h.b16 %v696
  %v3668 = vunpack.c.l.b16 %v697
  %v3669 = vunpack.c.h.b16 %v697
  %v3670 = vunpack.c.l.b16 %v698
  %v3671 = vunpack.c.h.b16 %v698
  %v3672 = vunpack.c.l.b16 %v699
  %v3673 = vunpack.c.h.b16 %v699
  %v3674 = vunpack.c.l.b16 %v700
  %v3675 = vunpack.c.h.b16 %v700
  %v3676 = vunpack.c.l.b16 %v701
  %v3677 = vunpack.c.h.b16 %v701
  %v3678 = vunpack.c.l.b16 %v702
  %v3679 = vunpack.c.h.b16 %v702
  %v3680 = vunpack.c.l.b16 %v703
  %v3681 = vunpack.c.h.b16 %v703
  %v3682 = vunpack.c.l.b16 %v704
  %v3683 = vunpack.c.h.b16 %v704
  %v3684 = vunpack.c.l.b16 %v705
  %v3685 = vunpack.c.h.b16 %v705
  %v3686 = vunpack.c.l.b16 %v706
  %v3687 = vunpack.c.h.b16 %v706
  %v3688 = vunpack.c.l.b16 %v707
  %v3689 = vunpack.c.h.b16 %v707
  %v3690 = vunpack.c.l.b16 %v708
  %v3691 = vunpack.c.h.b16 %v708
  %v3692 = vunpack.c.l.b16 %v709
  %v3693 = vunpack.c.h.b16 %v709
  %v3694 = vunpack.c.l.b16 %v710
  %v3695 = vunpack.c.h.b16 %v710
  %v3696 = vunpack.c.l.b16 %v711
  %v3697 = vunpack.c.h.b16 %v711
  %v3698 = vunpack.c.l.b16 %v712
  %v3699 = vunpack.c.h.b16 %v712
  %v3700 = vunpack.c.l.b16 %v713
  %v3701 = vunpack.c.h.b16 %v713
  %v3702 = vunpack.c.l.b16 %v714
  %v3703 = vunpack.c.h.b16 %v714
  %v3704 = vunpack.c.l.b16 %v715
  %v3705 = vunpack.c.h.b16 %v715
  %v3706 = vunpack.c.l.b16 %v716
  %v3707 = vunpack.c.h.b16 %v716
  %v3708 = vunpack.c.l.b16 %v717
  %v3709 = vunpack.c.h.b16 %v717
  %v3710 = vunpack.c.l.b16 %v718
  %v3711 = vunpack.c.h.b16 %v718
  %v3712 = vunpack.c.l.b16 %v719
  %v3713 = vunpack.c.h.b16 %v719
  %v3714 = vunpack.c.l.b16 %v720
  %v3715 = vunpack.c.h.b16 %v720
  %v3716 = vunpack.c.l.b16 %v721
  %v3717 = vunpack.c.h.b16 %v721
  %v3718 = vunpack.c.l.b16 %v722
  %v3719 = vunpack.c.h.b16 %v722
  %v3720 = vunpack.c.l.b16 %v723
  %v3721 = vunpack.c.h.b16 %v723
  %v3722 = vunpack.c.l.b16 %v724
  %v3723 = vunpack.c.h.b16 %v724
  %v3724 = vunpack.c.l.b16 %v725
  %v3725 = vunpack.c.h.b16 %v725
  %v3726 = vunpack.c.l.b16 %v726
  %v3727 = vunpack.c.h.b16 %v726
  %v3728 = vunpack.c.l.b16 %v727
  %v3729 = vunpack.c.h.b16 %v727
  %v3730 = vunpack.c.l.b16 %v728
  %v3731 = vunpack.c.h.b16 %v728
  %v3732 = vunpack.c.l.b16 %v729
  %v3733 = vunpack.c.h.b16 %v729
  %v3734 = vunpack.c.l.b16 %v730
  %v3735 = vunpack.c.h.b16 %v730
  %v3736 = vunpack.c.l.b16 %v731
  %v3737 = vunpack.c.h.b16 %v731
  %v3738 = vunpack.c.l.b16 %v732
  %v3739 = vunpack.c.h.b16 %v732
  %v3740 = vunpack.c.l.b16 %v733
  %v3741 = vunpack.c.h.b16 %v733
  %v3742 = vunpack.c.l.b16 %v734
  %v3743 = vunpack.c.h.b16 %v734
  %v3744 = vunpack.c.l.b16 %v735
  %v3745 = vunpack.c.h.b16 %v735
  %v3746 = vunpack.c.l.b16 %v736
  %v3747 = vunpack.c.h.b16 %v736
  %v3748 = vunpack.c.l.b16 %v737
  %v3749 = vunpack.c.h.b16 %v737
  %v3750 = vunpack.c.l.b16 %v738
  %v3751 = vunpack.c.h.b16 %v738
  %v3752 = vunpack.c.l.b16 %v739
  %v3753 = vunpack.c.h.b16 %v739
  %v3754 = vunpack.c.l.b16 %v740
  %v3755 = vunpack.c.h.b16 %v740
  %v3756 = vunpack.c.l.b16 %v741
  %v3757 = vunpack.c.h.b16 %v741
  %v3758 = vunpack.c.l.b16 %v742
  %v3759 = vunpack.c.h.b16 %v742
  %v3760 = vunpack.c.l.b16 %v743
  %v3761 = vunpack.c.h.b16 %v743
  %v3762 = vunpack.c.l.b16 %v744
  %v3763 = vunpack.c.h.b16 %v744
  %v3764 = vunpack.c.l.b16 %v745
  %v3765 = vunpack.c.h.b16 %v745
  %v3766 = vunpack.c.l.b16 %v746
  %v3767 = vunpack.c.h.b16 %v746
  %v3768 = vunpack.c.l.b16 %v747
  %v3769 = vunpack.c.h.b16 %v747
  %v3770 = vunpack.c.l.b16 %v748
  %v3771 = vunpack.c.h.b16 %v748
  %v3772 = vunpack.c.l.b16 %v749
  %v3773 = vunpack.c.h.b16 %v749
  %v3774 = vunpack.c.l.b16 %v750
  %v3775 = vunpack.c.h.b16 %v750
  %v3776 = vunpack.c.l.b16 %v751
  %v3777 = vunpack.c.h.b16 %v751
  %v3778 = vunpack.c.l.b16 %v752
  %v3779 = vunpack.c.h.b16 %v752
  %v3780 = vunpack.c.l.b16 %v753
  %v3781 = vunpack.c.h.b16 %v753
  %v3782 = vunpack.c.l.b16 %v754
  %v3783 = vunpack.c.h.b16 %v754
  %v3784 = vunpack.c.l.b16 %v755
  %v3785 = vunpack.c.h.b16 %v755
  %v3786 = vunpack.c.l.b16 %v756
  %v3787 = vunpack.c.h.b16 %v756
  %v3788 = vunpack.c.l.b16 %v757
  %v3789 = vunpack.c.h.b16 %v757
  %v3790 = vunpack.c.l.b16 %v758
  %v3791 = vunpack.c.h.b16 %v758
  %v3792 = vunpack.c.l.b16 %v759
  %v3793 = vunpack.c.h.b16 %v759
  %v3794 = vunpack.c.l.b16 %v760
  %v3795 = vunpack.c.h.b16 %v760
  %v3796 = vunpack.c.l.b16 %v761
  %v3797 = vunpack.c.h.b16 %v761
  %v3798 = vunpack.c.l.b16 %v762
  %v3799 = vunpack.c.h.b16 %v762
  %v3800 = vunpack.c.l.b16 %v763
  %v3801 = vunpack.c.h.b16 %v763
  %v3802 = vunpack.c.l.b16 %v764
  %v3803 = vunpack.c.h.b16 %v764
  %v3804 = vunpack.c.l.b16 %v765
  %v3805 = vunpack.c.h.b16 %v765
  %v3806 = vunpack.c.l.b16 %v766
  %v3807 = vunpack.c.h.b16 %v766
  %v3808 = vunpack.c.l.b16 %v767
  %v3809 = vunpack.c.h.b16 %v767
  %v3810 = vunpack.c.l.b16 %v768
  %v3811 = vunpack.c.h.b16 %v768
  %v3812 = vunpack.c.l.b16 %v769
  %v3813 = vunpack.c.h.b16 %v769
  %v3814 = vunpack.c.l.b16 %v770
  %v3815 = vunpack.c.h.b16 %v770
  %v3816 = vunpack.c.l.b16 %v771
  %v3817 = vunpack.c.h.b16 %v771
  %v3818 = vunpack.c.l.b16 %v772
  %v3819 = vunpack.c.h.b16 %v772
  %v3820 = vunpack.c.l.b16 %v773
  %v3821 = vunpack.c.h.b16 %v773
  %v3822 = vunpack.c.l.b16 %v774
  %v3823 = vunpack.c.h.b16 %v774
  %v3824 = vunpack.c.l.b16 %v775
  %v3825 = vunpack.c.h.b16 %v775
  %v3826 = vunpack.c.l.b16 %v776
  %v3827 = vunpack.c.h.b16 %v776
  %v3828 = vunpack.c.l.b16 %v777
  %v3829 = vunpack.c.h.b16 %v777
  %v3830 = vunpack.c.l.b16 %v778
  %v3831 = vunpack.c.h.b16 %v778
  %v3832 = vunpack.c.l.b16 %v779
  %v3833 = vunpack.c.h.b16 %v779
  %v3834 = vunpack.c.l.b16 %v780
  %v3835 = vunpack.c.h.b16 %v780
  %v3836 = vunpack.c.l.b16 %v781
  %v3837 = vunpack.c.h.b16 %v781
  %v3838 = vunpack.c.l.b16 %v782
  %v3839 = vunpack.c.h.b16 %v782
  %v3840 = vunpack.c.l.b16 %v783
  %v3841 = vunpack.c.h.b16 %v783
  %v3842 = vunpack.c.l.b16 %v784
  %v3843 = vunpack.c.h.b16 %v784
  %v3844 = vunpack.c.l.b16 %v785
  %v3845 = vunpack.c.h.b16 %v785
  %v3846 = vunpack.c.l.b16 %v786
  %v3847 = vunpack.c.h.b16 %v786
  %v3848 = vunpack.c.l.b16 %v787
  %v3849 = vunpack.c.h.b16 %v787
  %v3850 = vunpack.c.l.b16 %v788
  %v3851 = vunpack.c.h.b16 %v788
  %v3852 = vunpack.c.l.b16 %v789
  %v3853 = vunpack.c.h.b16 %v789
  %v3854 = vunpack.c.l.b16 %v790
  %v3855 = vunpack.c.h.b16 %v790
  %v3856 = vunpack.c.l.b16 %v791
  %v3857 = vunpack.c.h.b16 %v791
  %v3858 = vunpack.c.l.b16 %v792
  %v3859 = vunpack.c.h.b16 %v792
  %v3860 = vunpack.c.l.b16 %v793
  %v3861 = vunpack.c.h.b16 %v793
  %v3862 = vunpack.c.l.b16 %v794
  %v3863 = vunpack.c.h.b16 %v794
  %v3864 = vunpack.c.l.b16 %v795
  %v3865 = vunpack.c.h.b16 %v795
  %v3866 = vunpack.c.l.b16 %v796
  %v3867 = vunpack.c.h.b16 %v796
  %v3868 = vunpack.c.l.b16 %v797
  %v3869 = vunpack.c.h.b16 %v797
  %v3870 = vunpack.c.l.b16 %v798
  %v3871 = vunpack.c.h.b16 %v798
  %v3872 = vunpack.c.l.b16 %v799
  %v3873 = vunpack.c.h.b16 %v799
  %v3874 = vunpack.c.l.b16 %v800
  %v3875 = vunpack.c.h.b16 %v800
  %v3876 = vunpack.c.l.b16 %v801
  %v3877 = vunpack.c.h.b16 %v801
  %v3878 = vunpack.c.l.b16 %v802
  %v3879 = vunpack.c.h.b16 %v802
  %v3880 = vunpack.c.l.b16 %v803
  %v3881 = vunpack.c.h.b16 %v803
  %v3882 = vunpack.c.l.b16 %v804
  %v3883 = vunpack.c.h.b16 %v804
  %v3884 = vunpack.c.l.b16 %v805
  %v3885 = vunpack.c.h.b16 %v805
  %v3886 = vunpack.c.l.b16 %v806
  %v3887 = vunpack.c.h.b16 %v806
  %v3888 = vunpack.c.l.b16 %v807
  %v3889 = vunpack.c.h.b16 %v807
  %v3890 = vunpack.c.l.b16 %v808
  %v3891 = vunpack.c.h.b16 %v808
  %v3892 = vunpack.c.l.b16 %v809
  %v3893 = vunpack.c.h.b16 %v809
  %v3894 = vunpack.c.l.b16 %v810
  %v3895 = vunpack.c.h.b16 %v810
  %v3896 = vunpack.c.l.b16 %v811
  %v3897 = vunpack.c.h.b16 %v811
  %v3898 = vunpack.c.l.b16 %v812
  %v3899 = vunpack.c.h.b16 %v812
  %v3900 = vunpack.c.l.b16 %v813
  %v3901 = vunpack.c.h.b16 %v813
  %v3902 = vunpack.c.l.b16 %v814
  %v3903 = vunpack.c.h.b16 %v814
  %v3904 = vunpack.c.l.b16 %v815
  %v3905 = vunpack.c.h.b16 %v815
  %v3906 = vunpack.c.l.b16 %v816
  %v3907 = vunpack.c.h.b16 %v816
  %v3908 = vunpack.c.l.b16 %v817
  %v3909 = vunpack.c.h.b16 %v817
  %v3910 = vunpack.c.l.b16 %v818
  %v3911 = vunpack.c.h.b16 %v818
  %v3912 = vunpack.c.l.b16 %v819
  %v3913 = vunpack.c.h.b16 %v819
  %v3914 = vunpack.c.l.b16 %v820
  %v3915 = vunpack.c.h.b16 %v820
  %v3916 = vunpack.c.l.b16 %v821
  %v3917 = vunpack.c.h.b16 %v821
  %v3918 = vunpack.c.l.b16 %v822
  %v3919 = vunpack.c.h.b16 %v822
  %v3920 = vunpack.c.l.b16 %v823
  %v3921 = vunpack.c.h.b16 %v823
  %v3922 = vunpack.c.l.b16 %v824
  %v3923 = vunpack.c.h.b16 %v824
  %v3924 = vunpack.c.l.b16 %v825
  %v3925 = vunpack.c.h.b16 %v825
  %v3926 = vunpack.c.l.b16 %v826
  %v3927 = vunpack.c.h.b16 %v826
  %v3928 = vunpack.c.l.b16 %v827
  %v3929 = vunpack.c.h.b16 %v827
  %v3930 = vunpack.c.l.b16 %v828
  %v3931 = vunpack.c.h.b16 %v828
  %v3932 = vunpack.c.l.b16 %v829
  %v3933 = vunpack.c.h.b16 %v829
  %v3934 = vunpack.c.l.b16 %v830
  %v3935 = vunpack.c.h.b16 %v830
  %v3936 = vunpack.c.l.b16 %v831
  %v3937 = vunpack.c.h.b16 %v831
  %v3938 = vunpack.c.l.b16 %v832
  %v3939 = vunpack.c.h.b16 %v832
  %v3940 = vunpack.c.l.b16 %v833
  %v3941 = vunpack.c.h.b16 %v833
  %v3942 = vunpack.c.l.b16 %v834
  %v3943 = vunpack.c.h.b16 %v834
  %v3944 = vunpack.c.l.b16 %v835
  %v3945 = vunpack.c.h.b16 %v835
  %v3946 = vunpack.c.l.b16 %v836
  %v3947 = vunpack.c.h.b16 %v836
  %v3948 = vunpack.c.l.b16 %v837
  %v3949 = vunpack.c.h.b16 %v837
  %v3950 = vunpack.c.l.b16 %v838
  %v3951 = vunpack.c.h.b16 %v838
  %v3952 = vunpack.c.l.b16 %v839
  %v3953 = vunpack.c.h.b16 %v839
  %v3954 = vunpack.c.l.b16 %v840
  %v3955 = vunpack.c.h.b16 %v840
  %v3956 = vunpack.c.l.b16 %v841
  %v3957 = vunpack.c.h.b16 %v841
  %v3958 = vunpack.c.l.b16 %v842
  %v3959 = vunpack.c.h.b16 %v842
  %v3960 = vunpack.c.l.b16 %v843
  %v3961 = vunpack.c.h.b16 %v843
  %v3962 = vunpack.c.l.b16 %v844
  %v3963 = vunpack.c.h.b16 %v844
  %v3964 = vunpack.c.l.b16 %v845
  %v3965 = vunpack.c.h.b16 %v845
  %v3966 = vunpack.c.l.b16 %v846
  %v3967 = vunpack.c.h.b16 %v846
  %v3968 = vunpack.c.l.b16 %v847
  %v3969 = vunpack.c.h.b16 %v847
  %v3970 = vunpack.c.l.b16 %v848
  %v3971 = vunpack.c.h.b16 %v848
  %v3972 = vunpack.c.l.b16 %v849
  %v3973 = vunpack.c.h.b16 %v849
  %v3974 = vunpack.c.l.b16 %v850
  %v3975 = vunpack.c.h.b16 %v850
  %v3976 = vunpack.c.l.b16 %v851
  %v3977 = vunpack.c.h.b16 %v851
  %v3978 = vunpack.c.l.b16 %v852
  %v3979 = vunpack.c.h.b16 %v852
  %v3980 = vunpack.c.l.b16 %v853
  %v3981 = vunpack.c.h.b16 %v853
  %v3982 = vunpack.c.l.b16 %v854
  %v3983 = vunpack.c.h.b16 %v854
  %v3984 = vunpack.c.l.b16 %v855
  %v3985 = vunpack.c.h.b16 %v855
  %v3986 = vunpack.c.l.b16 %v856
  %v3987 = vunpack.c.h.b16 %v856
  %v3988 = vunpack.c.l.b16 %v857
  %v3989 = vunpack.c.h.b16 %v857
  %v3990 = vunpack.c.l.b16 %v858
  %v3991 = vunpack.c.h.b16 %v858
  %v3992 = vunpack.c.l.b16 %v859
  %v3993 = vunpack.c.h.b16 %v859
  %v3994 = vunpack.c.l.b16 %v860
  %v3995 = vunpack.c.h.b16 %v860
  %v3996 = vunpack.c.l.b16 %v861
  %v3997 = vunpack.c.h.b16 %v861
  %v3998 = vunpack.c.l.b16 %v862
  %v3999 = vunpack.c.h.b16 %v862
  %v4000 = vunpack.c.l.b16 %v863
  %v4001 = vunpack.c.h.b16 %v863
  %v4002 = vunpack.c.l.b16 %v864
  %v4003 = vunpack.c.h.b16 %v864
  %v4004 = vunpack.c.l.b16 %v865
  %v4005 = vunpack.c.h.b16 %v865
  %v4006 = vunpack.c.l.b16 %v866
  %v4007 = vunpack.c.h.b16 %v866
  %v4008 = vunpack.c.l.b16 %v867
  %v4009 = vunpack.c.h.b16 %v867
  %v4010 = vunpack.c.l.b16 %v868
  %v4011 = vunpack.c.h.b16 %v868
  %v4012 = vunpack.c.l.b16 %v869
  %v4013 = vunpack.c.h.b16 %v869
  %v4014 = vunpack.c.l.b16 %v870
  %v4015 = vunpack.c.h.b16 %v870
  %v4016 = vunpack.c.l.b16 %v871
  %v4017 = vunpack.c.h.b16 %v871
  %v4018 = vunpack.c.l.b16 %v872
  %v4019 = vunpack.c.h.b16 %v872
  %v4020 = vunpack.c.l.b16 %v873
  %v4021 = vunpack.c.h.b16 %v873
  %v4022 = vunpack.c.l.b16 %v874
  %v4023 = vunpack.c.h.b16 %v874
  %v4024 = vunpack.c.l.b16 %v875
  %v4025 = vunpack.c.h.b16 %v875
  %v4026 = vunpack.c.l.b16 %v876
  %v4027 = vunpack.c.h.b16 %v876
  %v4028 = vunpack.c.l.b16 %v877
  %v4029 = vunpack.c.h.b16 %v877
  %v4030 = vunpack.c.l.b16 %v878
  %v4031 = vunpack.c.h.b16 %v878
  %v4032 = vunpack.c.l.b16 %v879
  %v4033 = vunpack.c.h.b16 %v879
  %v4034 = vunpack.c.l.b16 %v880
  %v4035 = vunpack.c.h.b16 %v880
  %v4036 = vunpack.c.l.b16 %v881
  %v4037 = vunpack.c.h.b16 %v881
  %v4038 = vunpack.c.l.b16 %v882
  %v4039 = vunpack.c.h.b16 %v882
  %v4040 = vunpack.c.l.b16 %v883
  %v4041 = vunpack.c.h.b16 %v883
  %v4042 = vunpack.c.l.b16 %v884
  %v4043 = vunpack.c.h.b16 %v884
  %v4044 = vunpack.c.l.b16 %v885
  %v4045 = vunpack.c.h.b16 %v885
  %v4046 = vunpack.c.l.b16 %v886
  %v4047 = vunpack.c.h.b16 %v886
  %v4048 = vunpack.c.l.b16 %v887
  %v4049 = vunpack.c.h.b16 %v887
  %v4050 = vunpack.c.l.b16 %v888
  %v4051 = vunpack.c.h.b16 %v888
  %v4052 = vunpack.c.l.b16 %v889
  %v4053 = vunpack.c.h.b16 %v889
  %v4054 = vunpack.c.l.b16 %v890
  %v4055 = vunpack.c.h.b16 %v890
  %v4056 = vunpack.c.l.b16 %v891
  %v4057 = vunpack.c.h.b16 %v891
  %v4058 = vunpack.c.l.b16 %v892
  %v4059 = vunpack.c.h.b16 %v892
  %v4060 = vunpack.c.l.b16 %v893
  %v4061 = vunpack.c.h.b16 %v893
  %v4062 = vunpack.c.l.b16 %v894
  %v4063 = vunpack.c.h.b16 %v894
  %v4064 = vunpack.c.l.b16 %v895
  %v4065 = vunpack.c.h.b16 %v895
  %v4066 = vunpack.c.l.b16 %v896
  %v4067 = vunpack.c.h.b16 %v896
  %v4068 = vunpack.c.l.b16 %v897
  %v4069 = vunpack.c.h.b16 %v897
  %v4070 = vunpack.c.l.b16 %v898
  %v4071 = vunpack.c.h.b16 %v898
  %v4072 = vunpack.c.l.b16 %v899
  %v4073 = vunpack.c.h.b16 %v899
  %v4074 = vunpack.c.l.b16 %v900
  %v4075 = vunpack.c.h.b16 %v900
  %v4076 = vunpack.c.l.b16 %v901
  %v4077 = vunpack.c.h.b16 %v901
  %v4078 = vunpack.c.l.b16 %v902
  %v4079 = vunpack.c.h.b16 %v902
  %v4080 = vunpack.c.l.b16 %v903
  %v4081 = vunpack.c.h.b16 %v903
  %v4082 = vunpack.c.l.b16 %v904
  %v4083 = vunpack.c.h.b16 %v904
  %v4084 = vunpack.c.l.b16 %v905
  %v4085 = vunpack.c.h.b16 %v905
  %v4086 = vunpack.c.l.b16 %v906
  %v4087 = vunpack.c.h.b16 %v906
  %v4088 = vunpack.c.l.b16 %v907
  %v4089 = vunpack.c.h.b16 %v907
  %v4090 = vunpack.c.l.b16 %v908
  %v4091 = vunpack.c.h.b16 %v908
  %v4092 = vunpack.c.l.b16 %v909
  %v4093 = vunpack.c.h.b16 %v909
  %v4094 = vunpack.c.l.b16 %v910
  %v4095 = vunpack.c.h.b16 %v910
  %v4096 = vunpack.c.l.b16 %v911
  %v4097 = vunpack.c.h.b16 %v911
  %v4098 = vunpack.c.l.b16 %v912
  %v4099 = vunpack.c.h.b16 %v912
  %v4100 = vunpack.c.l.b16 %v913
  %v4101 = vunpack.c.h.b16 %v913
  %v4102 = vunpack.c.l.b16 %v914
  %v4103 = vunpack.c.h.b16 %v914
  %v4104 = vunpack.c.l.b16 %v915
  %v4105 = vunpack.c.h.b16 %v915
  %v4106 = vunpack.c.l.b16 %v916
  %v4107 = vunpack.c.h.b16 %v916
  %v4108 = vunpack.c.l.b16 %v917
  %v4109 = vunpack.c.h.b16 %v917
  %v4110 = vunpack.c.l.b16 %v918
  %v4111 = vunpack.c.h.b16 %v918
  %v4112 = vunpack.c.l.b16 %v919
  %v4113 = vunpack.c.h.b16 %v919
  %v4114 = vunpack.c.l.b16 %v920
  %v4115 = vunpack.c.h.b16 %v920
  %v4116 = vunpack.c.l.b16 %v921
  %v4117 = vunpack.c.h.b16 %v921
  %v4118 = vunpack.c.l.b16 %v922
  %v4119 = vunpack.c.h.b16 %v922
  %v4120 = vunpack.c.l.b16 %v923
  %v4121 = vunpack.c.h.b16 %v923
  %v4122 = vunpack.c.l.b16 %v924
  %v4123 = vunpack.c.h.b16 %v924
  %v4124 = vunpack.c.l.b16 %v925
  %v4125 = vunpack.c.h.b16 %v925
  %v4126 = vunpack.c.l.b16 %v926
  %v4127 = vunpack.c.h.b16 %v926
  %v4128 = vunpack.c.l.b16 %v927
  %v4129 = vunpack.c.h.b16 %v927
  %v4130 = vunpack.c.l.b16 %v928
  %v4131 = vunpack.c.h.b16 %v928
  %v4132 = vunpack.c.l.b16 %v929
  %v4133 = vunpack.c.h.b16 %v929
  %v4134 = vunpack.c.l.b16 %v930
  %v4135 = vunpack.c.h.b16 %v930
  %v4136 = vunpack.c.l.b16 %v931
  %v4137 = vunpack.c.h.b16 %v931
  %v4138 = vunpack.c.l.b16 %v932
  %v4139 = vunpack.c.h.b16 %v932
  %v4140 = vunpack.c.l.b16 %v933
  %v4141 = vunpack.c.h.b16 %v933
  %v4142 = vunpack.c.l.b16 %v934
  %v4143 = vunpack.c.h.b16 %v934
  %v4144 = vunpack.c.l.b16 %v935
  %v4145 = vunpack.c.h.b16 %v935
  %v4146 = vunpack.c.l.b16 %v936
  %v4147 = vunpack.c.h.b16 %v936
  %v4148 = vunpack.c.l.b16 %v937
  %v4149 = vunpack.c.h.b16 %v937
  %v4150 = vunpack.c.l.b16 %v938
  %v4151 = vunpack.c.h.b16 %v938
  %v4152 = vunpack.c.l.b16 %v939
  %v4153 = vunpack.c.h.b16 %v939
  %v4154 = vunpack.c.l.b16 %v940
  %v4155 = vunpack.c.h.b16 %v940
  %v4156 = vunpack.c.l.b16 %v941
  %v4157 = vunpack.c.h.b16 %v941
  %v4158 = vunpack.c.l.b16 %v942
  %v4159 = vunpack.c.h.b16 %v942
  %v4160 = vunpack.c.l.b16 %v943
  %v4161 = vunpack.c.h.b16 %v943
  %v4162 = vunpack.c.l.b16 %v944
  %v4163 = vunpack.c.h.b16 %v944
  %v4164 = vunpack.c.l.b16 %v945
  %v4165 = vunpack.c.h.b16 %v945
  %v4166 = vunpack.c.l.b16 %v946
  %v4167 = vunpack.c.h.b16 %v946
  %v4168 = vunpack.c.l.b16 %v947
  %v4169 = vunpack.c.h.b16 %v947
  %v4170 = vunpack.c.l.b16 %v948
  %v4171 = vunpack.c.h.b16 %v948
  %v4172 = vunpack.c.l.b16 %v949
  %v4173 = vunpack.c.h.b16 %v949
  %v4174 = vunpack.c.l.b16 %v950
  %v4175 = vunpack.c.h.b16 %v950
  %v4176 = vunpack.c.l.b16 %v951
  %v4177 = vunpack.c.h.b16 %v951
  %v4178 = vunpack.c.l.b16 %v952
  %v4179 = vunpack.c.h.b16 %v952
  %v4180 = vunpack.c.l.b16 %v953
  %v4181 = vunpack.c.h.b16 %v953
  %v4182 = vunpack.c.l.b16 %v954
  %v4183 = vunpack.c.h.b16 %v954
  %v4184 = vunpack.c.l.b16 %v955
  %v4185 = vunpack.c.h.b16 %v955
  %v4186 = vunpack.c.l.b16 %v956
  %v4187 = vunpack.c.h.b16 %v956
  %v4188 = vunpack.c.l.b16 %v957
  %v4189 = vunpack.c.h.b16 %v957
  %v4190 = vunpack.c.l.b16 %v958
  %v4191 = vunpack.c.h.b16 %v958
  %v4192 = vunpack.c.l.b16 %v959
  %v4193 = vunpack.c.h.b16 %v959
  %v4194 = vunpack.c.l.b16 %v960
  %v4195 = vunpack.c.h.b16 %v960
  %v4196 = vunpack.c.l.b16 %v961
  %v4197 = vunpack.c.h.b16 %v961
  %v4198 = vunpack.c.l.b16 %v962
  %v4199 = vunpack.c.h.b16 %v962
  %v4200 = vunpack.c.l.b16 %v963
  %v4201 = vunpack.c.h.b16 %v963
  %v4202 = vunpack.c.l.b16 %v964
  %v4203 = vunpack.c.h.b16 %v964
  %v4204 = vunpack.c.l.b16 %v965
  %v4205 = vunpack.c.h.b16 %v965
  %v4206 = vunpack.c.l.b16 %v966
  %v4207 = vunpack.c.h.b16 %v966
  %v4208 = vunpack.c.l.b16 %v967
  %v4209 = vunpack.c.h.b16 %v967
  %v4210 = vunpack.c.l.b16 %v968
  %v4211 = vunpack.c.h.b16 %v968
  %v4212 = vunpack.c.l.b16 %v969
  %v4213 = vunpack.c.h.b16 %v969
  %v4214 = vunpack.c.l.b16 %v970
  %v4215 = vunpack.c.h.b16 %v970
  %v4216 = vunpack.c.l.b16 %v971
  %v4217 = vunpack.c.h.b16 %v971
  %v4218 = vunpack.c.l.b16 %v972
  %v4219 = vunpack.c.h.b16 %v972
  %v4220 = vunpack.c.l.b16 %v973
  %v4221 = vunpack.c.h.b16 %v973
  %v4222 = vunpack.c.l.b16 %v974
  %v4223 = vunpack.c.h.b16 %v974
  %v4224 = vunpack.c.l.b16 %v975
  %v4225 = vunpack.c.h.b16 %v975
  %v4226 = vunpack.c.l.b16 %v976
  %v4227 = vunpack.c.h.b16 %v976
  %v4228 = vunpack.c.l.b16 %v977
  %v4229 = vunpack.c.h.b16 %v977
  %v4230 = vunpack.c.l.b16 %v978
  %v4231 = vunpack.c.h.b16 %v978
  %v4232 = vunpack.c.l.b16 %v979
  %v4233 = vunpack.c.h.b16 %v979
  %v4234 = vunpack.c.l.b16 %v980
  %v4235 = vunpack.c.h.b16 %v980
  %v4236 = vunpack.c.l.b16 %v981
  %v4237 = vunpack.c.h.b16 %v981
  %v4238 = vunpack.c.l.b16 %v982
  %v4239 = vunpack.c.h.b16 %v982
  %v4240 = vunpack.c.l.b16 %v983
  %v4241 = vunpack.c.h.b16 %v983
  %v4242 = vunpack.c.l.b16 %v984
  %v4243 = vunpack.c.h.b16 %v984
  %v4244 = vunpack.c.l.b16 %v985
  %v4245 = vunpack.c.h.b16 %v985
  %v4246 = vunpack.c.l.b16 %v986
  %v4247 = vunpack.c.h.b16 %v986
  %v4248 = vunpack.c.l.b16 %v987
  %v4249 = vunpack.c.h.b16 %v987
  %v4250 = vunpack.c.l.b16 %v988
  %v4251 = vunpack.c.h.b16 %v988
  %v4252 = vunpack.c.l.b16 %v989
  %v4253 = vunpack.c.h.b16 %v989
  %v4254 = vunpack.c.l.b16 %v990
  %v4255 = vunpack.c.h.b16 %v990
  %v4256 = vunpack.c.l.b16 %v991
  %v4257 = vunpack.c.h.b16 %v991
  %v4258 = vunpack.c.l.b16 %v992
  %v4259 = vunpack.c.h.b16 %v992
  %v4260 = vunpack.c.l.b16 %v993
  %v4261 = vunpack.c.h.b16 %v993
  %v4262 = vunpack.c.l.b16 %v994
  %v4263 = vunpack.c.h.b16 %v994
  %v4264 = vunpack.c.l.b16 %v995
  %v4265 = vunpack.c.h.b16 %v995
  %v4266 = vunpack.c.l.b16 %v996
  %v4267 = vunpack.c.h.b16 %v996
  %v4268 = vunpack.c.l.b16 %v997
  %v4269 = vunpack.c.h.b16 %v997
  %v4270 = vunpack.c.l.b16 %v998
  %v4271 = vunpack.c.h.b16 %v998
  %v4272 = vunpack.c.l.b16 %v999
  %v4273 = vunpack.c.h.b16 %v999
  %v4274 = vunpack.c.l.b16 %v1000
  %v4275 = vunpack.c.h.b16 %v1000
  %v4276 = vunpack.c.l.b16 %v1001
  %v4277 = vunpack.c.h.b16 %v1001
  %v4278 = vunpack.c.l.b16 %v1002
  %v4279 = vunpack.c.h.b16 %v1002
  %v4280 = vunpack.c.l.b16 %v1003
  %v4281 = vunpack.c.h.b16 %v1003
  %v4282 = vunpack.c.l.b16 %v1004
  %v4283 = vunpack.c.h.b16 %v1004
  %v4284 = vunpack.c.l.b16 %v1005
  %v4285 = vunpack.c.h.b16 %v1005
  %v4286 = vunpack.c.l.b16 %v1006
  %v4287 = vunpack.c.h.b16 %v1006
  %v4288 = vunpack.c.l.b16 %v1007
  %v4289 = vunpack.c.h.b16 %v1007
  %v4290 = vunpack.c.l.b16 %v1008
  %v4291 = vunpack.c.h.b16 %v1008
  %v4292 = vunpack.c.l.b16 %v1009
  %v4293 = vunpack.c.h.b16 %v1009
  %v4294 = vunpack.c.l.b16 %v1010
  %v4295 = vunpack.c.h.b16 %v1010
  %v4296 = vunpack.c.l.b16 %v1011
  %v4297 = vunpack.c.h.b16 %v1011
  %v4298 = vunpack.c.l.b16 %v1012
  %v4299 = vunpack.c.h.b16 %v1012
  %v4300 = vunpack.c.l.b16 %v1013
  %v4301 = vunpack.c.h.b16 %v1013
  %v4302 = vunpack.c.l.b16 %v1014
  %v4303 = vunpack.c.h.b16 %v1014
  %v4304 = vunpack.c.l.b16 %v1015
  %v4305 = vunpack.c.h.b16 %v1015
  %v4306 = vunpack.c.l.b16 %v1016
  %v4307 = vunpack.c.h.b16 %v1016
  %v4308 = vunpack.c.l.b16 %v1017
  %v4309 = vunpack.c.h.b16 %v1017
  %v4310 = vunpack.c.l.b16 %v1018
  %v4311 = vunpack.c.h.b16 %v1018
  %v4312 = vunpack.c.l.b16 %v1019
  %v4313 = vunpack.c.h.b16 %v1019
  %v4314 = vunpack.c.l.b16 %v1020
  %v4315 = vunpack.c.h.b16 %v1020
  %v4316 = vunpack.c.l.b16 %v1021
  %v4317 = vunpack.c.h.b16 %v1021
  %v4318 = vunpack.c.l.b16 %v1022
  %v4319 = vunpack.c.h.b16 %v1022
  %v4320 = vunpack.c.l.b16 %v1023
  %v4321 = vunpack.c.h.b16 %v1023
  %v4322 = vunpack.c.l.b16 %v1024
  %v4323 = vunpack.c.h.b16 %v1024
  %v4324 = vunpack.c.l.b16 %v1025
  %v4325 = vunpack.c.h.b16 %v1025
  %v4326 = vunpack.c.l.b16 %v1026
  %v4327 = vunpack.c.h.b16 %v1026
  %v4328 = vunpack.c.l.b16 %v1027
  %v4329 = vunpack.c.h.b16 %v1027
  %v4330 = vunpack.c.l.b16 %v1028
  %v4331 = vunpack.c.h.b16 %v1028
  %v4332 = vunpack.c.l.b16 %v1029
  %v4333 = vunpack.c.h.b16 %v1029
  %v4334 = vunpack.c.l.b16 %v1030
  %v4335 = vunpack.c.h.b16 %v1030
  %v4336 = vunpack.c.l.b16 %v1031
  %v4337 = vunpack.c.h.b16 %v1031
  %v4338 = vunpack.c.l.b16 %v1032
  %v4339 = vunpack.c.h.b16 %v1032
  %v4340 = vunpack.c.l.b16 %v1033
  %v4341 = vunpack.c.h.b16 %v1033
  %v4342 = vunpack.c.l.b16 %v1034
  %v4343 = vunpack.c.h.b16 %v1034
  %v4344 = vunpack.c.l.b16 %v1035
  %v4345 = vunpack.c.h.b16 %v1035
  %v4346 = vunpack.c.l.b16 %v1036
  %v4347 = vunpack.c.h.b16 %v1036
  %v4348 = vunpack.c.l.b16 %v1037
  %v4349 = vunpack.c.h.b16 %v1037
  %v4350 = vunpack.c.l.b16 %v1038
  %v4351 = vunpack.c.h.b16 %v1038
  %v4352 = vunpack.c.l.b16 %v1039
  %v4353 = vunpack.c.h.b16 %v1039
  %v4354 = vunpack.c.l.b16 %v1040
  %v4355 = vunpack.c.h.b16 %v1040
  %v4356 = vunpack.c.l.b16 %v1041
  %v4357 = vunpack.c.h.b16 %v1041
  %v4358 = vunpack.c.l.b16 %v1042
  %v4359 = vunpack.c.h.b16 %v1042
  %v4360 = vunpack.c.l.b16 %v1043
  %v4361 = vunpack.c.h.b16 %v1043
  %v4362 = vunpack.c.l.b16 %v1044
  %v4363 = vunpack.c.h.b16 %v1044
  %v4364 = vunpack.c.l.b16 %v1045
  %v4365 = vunpack.c.h.b16 %v1045
  %v4366 = vunpack.c.l.b16 %v1046
  %v4367 = vunpack.c.h.b16 %v1046
  %v4368 = vunpack.c.l.b16 %v1047
  %v4369 = vunpack.c.h.b16 %v1047
  %v4370 = vunpack.c.l.b16 %v1048
  %v4371 = vunpack.c.h.b16 %v1048
  %v4372 = vunpack.c.l.b16 %v1049
  %v4373 = vunpack.c.h.b16 %v1049
  %v4374 = vunpack.c.l.b16 %v1050
  %v4375 = vunpack.c.h.b16 %v1050
  %v4376 = vunpack.c.l.b16 %v1051
  %v4377 = vunpack.c.h.b16 %v1051
  %v4378 = vunpack.c.l.b16 %v1052
  %v4379 = vunpack.c.h.b16 %v1052
  %v4380 = vunpack.c.l.b16 %v1053
  %v4381 = vunpack.c.h.b16 %v1053
  %v4382 = vunpack.c.l.b16 %v1054
  %v4383 = vunpack.c.h.b16 %v1054
  %v4384 = vunpack.c.l.b16 %v1055
  %v4385 = vunpack.c.h.b16 %v1055
  %v4386 = vunpack.c.l.b16 %v1056
  %v4387 = vunpack.c.h.b16 %v1056
  %v4388 = vunpack.c.l.b16 %v1057
  %v4389 = vunpack.c.h.b16 %v1057
  %v4390 = vunpack.c.l.b16 %v1058
  %v4391 = vunpack.c.h.b16 %v1058
  %v4392 = vunpack.c.l.b16 %v1059
  %v4393 = vunpack.c.h.b16 %v1059
  %v4394 = vunpack.c.l.b16 %v1060
  %v4395 = vunpack.c.h.b16 %v1060
  %v4396 = vunpack.c.l.b16 %v1061
  %v4397 = vunpack.c.h.b16 %v1061
  %v4398 = vunpack.c.l.b16 %v1062
  %v4399 = vunpack.c.h.b16 %v1062
  %v4400 = vunpack.c.l.b16 %v1063
  %v4401 = vunpack.c.h.b16 %v1063
  %v4402 = vunpack.c.l.b16 %v1064
  %v4403 = vunpack.c.h.b16 %v1064
  %v4404 = vunpack.c.l.b16 %v1065
  %v4405 = vunpack.c.h.b16 %v1065
  %v4406 = vunpack.c.l.b16 %v1066
  %v4407 = vunpack.c.h.b16 %v1066
  %v4408 = vunpack.c.l.b16 %v1067
  %v4409 = vunpack.c.h.b16 %v1067
  %v4410 = vunpack.c.l.b16 %v1068
  %v4411 = vunpack.c.h.b16 %v1068
  %v4412 = vunpack.c.l.b16 %v1069
  %v4413 = vunpack.c.h.b16 %v1069
  %v4414 = vunpack.c.l.b16 %v1070
  %v4415 = vunpack.c.h.b16 %v1070
  %v4416 = vunpack.c.l.b16 %v1071
  %v4417 = vunpack.c.h.b16 %v1071
  %v4418 = vunpack.c.l.b16 %v1072
  %v4419 = vunpack.c.h.b16 %v1072
  %v4420 = vunpack.c.l.b16 %v1073
  %v4421 = vunpack.c.h.b16 %v1073
  %v4422 = vunpack.c.l.b16 %v1074
  %v4423 = vunpack.c.h.b16 %v1074
  %v4424 = vunpack.c.l.b16 %v1075
  %v4425 = vunpack.c.h.b16 %v1075
  %v4426 = vunpack.c.l.b16 %v1076
  %v4427 = vunpack.c.h.b16 %v1076
  %v4428 = vunpack.c.l.b16 %v1077
  %v4429 = vunpack.c.h.b16 %v1077
  %v4430 = vunpack.c.l.b16 %v1078
  %v4431 = vunpack.c.h.b16 %v1078
  %v4432 = vunpack.c.l.b16 %v1079
  %v4433 = vunpack.c.h.b16 %v1079
  %v4434 = vunpack.c.l.b16 %v1080
  %v4435 = vunpack.c.h.b16 %v1080
  %v4436 = vunpack.c.l.b16 %v1081
  %v4437 = vunpack.c.h.b16 %v1081
  %v4438 = vunpack.c.l.b16 %v1082
  %v4439 = vunpack.c.h.b16 %v1082
  %v4440 = vunpack.c.l.b16 %v1083
  %v4441 = vunpack.c.h.b16 %v1083
  %v4442 = vunpack.c.l.b16 %v1084
  %v4443 = vunpack.c.h.b16 %v1084
  %v4444 = vunpack.c.l.b16 %v1085
  %v4445 = vunpack.c.h.b16 %v1085
  %v4446 = vunpack.c.l.b16 %v1086
  %v4447 = vunpack.c.h.b16 %v1086
  %v4448 = vunpack.c.l.b16 %v1087
  %v4449 = vunpack.c.h.b16 %v1087
  %v4450 = vunpack.c.l.b16 %v1088
  %v4451 = vunpack.c.h.b16 %v1088
  %v4452 = vunpack.c.l.b16 %v1089
  %v4453 = vunpack.c.h.b16 %v1089
  %v4454 = vunpack.c.l.b16 %v1090
  %v4455 = vunpack.c.h.b16 %v1090
  %v4456 = vunpack.c.l.b16 %v1091
  %v4457 = vunpack.c.h.b16 %v1091
  %v4458 = vpack.c.b16 %v2414, %v2410
  %v4459 = vpack.c.b16 %v2415, %v2411
  %v4460 = vpack.c.b16 %v2416, %v2412
  %v4461 = vpack.c.b16 %v2417, %v2413
  %v4462 = vpack.c.b16 %v2422, %v2418
  %v4463 = vpack.c.b16 %v2423, %v2419
  %v4464 = vpack.c.b16 %v2424, %v2420
  %v4465 = vpack.c.b16 %v2425, %v2421
  %v4466 = vpack.c.b16 %v2430, %v2426
  %v4467 = vpack.c.b16 %v2431, %v2427
  %v4468 = vpack.c.b16 %v2432, %v2428
  %v4469 = vpack.c.b16 %v2433, %v2429
  %v4470 = vpack.c.b16 %v2438, %v2434
  %v4471 = vpack.c.b16 %v2439, %v2435
  %v4472 = vpack.c.b16 %v2440, %v2436
  %v4473 = vpack.c.b16 %v2441, %v2437
  %v4474 = vpack.c.b16 %v2446, %v2442
  %v4475 = vpack.c.b16 %v2447, %v2443
  %v4476 = vpack.c.b16 %v2448, %v2444
  %v4477 = vpack.c.b16 %v2449, %v2445
  %v4478 = vpack.c.b16 %v2454, %v2450
  %v4479 = vpack.c.b16 %v2455, %v2451
  %v4480 = vpack.c.b16 %v2456, %v2452
  %v4481 = vpack.c.b16 %v2457, %v2453
  %v4482 = vpack.c.b16 %v2462, %v2458
  %v4483 = vpack.c.b16 %v2463, %v2459
  %v4484 = vpack.c.b16 %v2464, %v2460
  %v4485 = vpack.c.b16 %v2465, %v2461
  %v4486 = vpack.c.b16 %v2470, %v2466
  %v4487 = vpack.c.b16 %v2471, %v2467
  %v4488 = vpack.c.b16 %v2472, %v2468
  %v4489 = vpack.c.b16 %v2473, %v2469
  %v4490 = vpack.c.b16 %v2478, %v2474
  %v4491 = vpack.c.b16 %v2479, %v2475
  %v4492 = vpack.c.b16 %v2480, %v2476
  %v4493 = vpack.c.b16 %v2481, %v2477
  %v4494 = vpack.c.b16 %v2486, %v2482
  %v4495 = vpack.c.b16 %v2487, %v2483
  %v4496 = vpack.c.b16 %v2488, %v2484
  %v4497 = vpack.c.b16 %v2489, %v2485
  %v4498 = vpack.c.b16 %v2494, %v2490
  %v4499 = vpack.c.b16 %v2495, %v2491
  %v4500 = vpack.c.b16 %v2496, %v2492
  %v4501 = vpack.c.b16 %v2497, %v2493
  %v4502 = vpack.c.b16 %v2502, %v2498
  %v4503 = vpack.c.b16 %v2503, %v2499
  %v4504 = vpack.c.b16 %v2504, %v2500
  %v4505 = vpack.c.b16 %v2505, %v2501
  %v4506 = vpack.c.b16 %v2510, %v2506
  %v4507 = vpack.c.b16 %v2511, %v2507
  %v4508 = vpack.c.b16 %v2512, %v2508
  %v4509 = vpack.c.b16 %v2513, %v2509
  %v4510 = vpack.c.b16 %v2518, %v2514
  %v4511 = vpack.c.b16 %v2519, %v2515
  %v4512 = vpack.c.b16 %v2520, %v2516
  %v4513 = vpack.c.b16 %v2521, %v2517
  %v4514 = vpack.c.b16 %v2526, %v2522
  %v4515 = vpack.c.b16 %v2527, %v2523
  %v4516 = vpack.c.b16 %v2528, %v2524
  %v4517 = vpack.c.b16 %v2529, %v2525
  %v4518 = vpack.c.b16 %v2534, %v2530
  %v4519 = vpack.c.b16 %v2535, %v2531
  %v4520 = vpack.c.b16 %v2536, %v2532
  %v4521 = vpack.c.b16 %v2537, %v2533
  %v4522 = vpack.c.b16 %v2542, %v2538
  %v4523 = vpack.c.b16 %v2543, %v2539
  %v4524 = vpack.c.b16 %v2544, %v2540
  %v4525 = vpack.c.b16 %v2545, %v2541
  %v4526 = vpack.c.b16 %v2550, %v2546
  %v4527 = vpack.c.b16 %v2551, %v2547
  %v4528 = vpack.c.b16 %v2552, %v2548
  %v4529 = vpack.c.b16 %v2553, %v2549
  %v4530 = vpack.c.b16 %v2558, %v2554
  %v4531 = vpack.c.b16 %v2559, %v2555
  %v4532 = vpack.c.b16 %v2560, %v2556
  %v4533 = vpack.c.b16 %v2561, %v2557
  %v4534 = vpack.c.b16 %v2566, %v2562
  %v4535 = vpack.c.b16 %v2567, %v2563
  %v4536 = vpack.c.b16 %v2568, %v2564
  %v4537 = vpack.c.b16 %v2569, %v2565
  %v4538 = vpack.c.b16 %v2574, %v2570
  %v4539 = vpack.c.b16 %v2575, %v2571
  %v4540 = vpack.c.b16 %v2576, %v2572
  %v4541 = vpack.c.b16 %v2577, %v2573
  %v4542 = vpack.c.b16 %v2582, %v2578
  %v4543 = vpack.c.b16 %v2583, %v2579
  %v4544 = vpack.c.b16 %v2584, %v2580
  %v4545 = vpack.c.b16 %v2585, %v2581
  %v4546 = vpack.c.b16 %v2590, %v2586
  %v4547 = vpack.c.b16 %v2591, %v2587
  %v4548 = vpack.c.b16 %v2592, %v2588
  %v4549 = vpack.c.b16 %v2593, %v2589
  %v4550 = vpack.c.b16 %v2598, %v2594
  %v4551 = vpack.c.b16 %v2599, %v2595
  %v4552 = vpack.c.b16 %v2600, %v2596
  %v4553 = vpack.c.b16 %v2601, %v2597
  %v4554 = vpack.c.b16 %v2606, %v2602
  %v4555 = vpack.c.b16 %v2607, %v2603
  %v4556 = vpack.c.b16 %v2608, %v2604
  %v4557 = vpack.c.b16 %v2609, %v2605
  %v4558 = vpack.c.b16 %v2614, %v2610
  %v4559 = vpack.c.b16 %v2615, %v2611
  %v4560 = vpack.c.b16 %v2616, %v2612
  %v4561 = vpack.c.b16 %v2617, %v2613
  %v4562 = vpack.c.b16 %v2622, %v2618
  %v4563 = vpack.c.b16 %v2623, %v2619
  %v4564 = vpack.c.b16 %v2624, %v2620
  %v4565 = vpack.c.b16 %v2625, %v2621
  %v4566 = vpack.c.b16 %v2630, %v2626
  %v4567 = vpack.c.b16 %v2631, %v2627
  %v4568 = vpack.c.b16 %v2632, %v2628
  %v4569 = vpack.c.b16 %v2633, %v2629
  %v4570 = vpack.c.b16 %v2638, %v2634
  %v4571 = vpack.c.b16 %v2639, %v2635
  %v4572 = vpack.c.b16 %v2640, %v2636
  %v4573 = vpack.c.b16 %v2641, %v2637
  %v4574 = vpack.c.b16 %v2646, %v2642
  %v4575 = vpack.c.b16 %v2647, %v2643
  %v4576 = vpack.c.b16 %v2648, %v2644
  %v4577 = vpack.c.b16 %v2649, %v2645
  %v4578 = vpack.c.b16 %v2654, %v2650
  %v4579 = vpack.c.b16 %v2655, %v2651
  %v4580 = vpack.c.b16 %v2656, %v2652
  %v4581 = vpack.c.b16 %v2657, %v2653
  %v4582 = vpack.c.b16 %v2662, %v2658
  %v4583 = vpack.c.b16 %v2663, %v2659
  %v4584 = vpack.c.b16 %v2664, %v2660
  %v4585 = vpack.c.b16 %v2665, %v2661
  %v4586 = vpack.c.b16 %v2670, %v2666
  %v4587 = vpack.c.b16 %v2671, %v2667
  %v4588 = vpack.c.b16 %v2672, %v2668
  %v4589 = vpack.c.b16 %v2673, %v2669
  %v4590 = vpack.c.b16 %v2678, %v2674
  %v4591 = vpack.c.b16 %v2679, %v2675
  %v4592 = vpack.c.b16 %v2680, %v2676
  %v4593 = vpack.c.b16 %v2681, %v2677
  %v4594 = vpack.c.b16 %v2686, %v2682
  %v4595 = vpack.c.b16 %v2687, %v2683
  %v4596 = vpack.c.b16 %v2688, %v2684
  %v4597 = vpack.c.b16 %v2689, %v2685
  %v4598 = vpack.c.b16 %v2694, %v2690
  %v4599 = vpack.c.b16 %v2695, %v2691
  %v4600 = vpack.c.b16 %v2696, %v2692
  %v4601 = vpack.c.b16 %v2697, %v2693
  %v4602 = vpack.c.b16 %v2702, %v2698
  %v4603 = vpack.c.b16 %v2703, %v2699
  %v4604 = vpack.c.b16 %v2704, %v2700
  %v4605 = vpack.c.b16 %v2705, %v2701
  %v4606 = vpack.c.b16 %v2710, %v2706
  %v4607 = vpack.c.b16 %v2711, %v2707
  %v4608 = vpack.c.b16 %v2712, %v2708
  %v4609 = vpack.c.b16 %v2713, %v2709
  %v4610 = vpack.c.b16 %v2718, %v2714
  %v4611 = vpack.c.b16 %v2719, %v2715
  %v4612 = vpack.c.b16 %v2720, %v2716
  %v4613 = vpack.c.b16 %v2721, %v2717
  %v4614 = vpack.c.b16 %v2726, %v2722
  %v4615 = vpack.c.b16 %v2727, %v2723
  %v4616 = vpack.c.b16 %v2728, %v2724
  %v4617 = vpack.c.b16 %v2729, %v2725
  %v4618 = vpack.c.b16 %v2734, %v2730
  %v4619 = vpack.c.b16 %v2735, %v2731
  %v4620 = vpack.c.b16 %v2736, %v2732
  %v4621 = vpack.c.b16 %v2737, %v2733
  %v4622 = vpack.c.b16 %v2742, %v2738
  %v4623 = vpack.c.b16 %v2743, %v2739
  %v4624 = vpack.c.b16 %v2744, %v2740
  %v4625 = vpack.c.b16 %v2745, %v2741
  %v4626 = vpack.c.b16 %v2750, %v2746
  %v4627 = vpack.c.b16 %v2751, %v2747
  %v4628 = vpack.c.b16 %v2752, %v2748
  %v4629 = vpack.c.b16 %v2753, %v2749
  %v4630 = vpack.c.b16 %v2758, %v2754
  %v4631 = vpack.c.b16 %v2759, %v2755
  %v4632 = vpack.c.b16 %v2760, %v2756
  %v4633 = vpack.c.b16 %v2761, %v2757
  %v4634 = vpack.c.b16 %v2766, %v2762
  %v4635 = vpack.c.b16 %v2767, %v2763
  %v4636 = vpack.c.b16 %v2768, %v2764
  %v4637 = vpack.c.b16 %v2769, %v2765
  %v4638 = vpack.c.b16 %v2774, %v2770
  %v4639 = vpack.c.b16 %v2775, %v2771
  %v4640 = vpack.c.b16 %v2776, %v2772
  %v4641 = vpack.c.b16 %v2777, %v2773
  %v4642 = vpack.c.b16 %v2782, %v2778
  %v4643 = vpack.c.b16 %v2783, %v2779
  %v4644 = vpack.c.b16 %v2784, %v2780
  %v4645 = vpack.c.b16 %v2785, %v2781
  %v4646 = vpack.c.b16 %v2790, %v2786
  %v4647 = vpack.c.b16 %v2791, %v2787
  %v4648 = vpack.c.b16 %v2792, %v2788
  %v4649 = vpack.c.b16 %v2793, %v2789
  %v4650 = vpack.c.b16 %v2798, %v2794
  %v4651 = vpack.c.b16 %v2799, %v2795
  %v4652 = vpack.c.b16 %v2800, %v2796
  %v4653 = vpack.c.b16 %v2801, %v2797
  %v4654 = vpack.c.b16 %v2806, %v2802
  %v4655 = vpack.c.b16 %v2807, %v2803
  %v4656 = vpack.c.b16 %v2808, %v2804
  %v4657 = vpack.c.b16 %v2809, %v2805
  %v4658 = vpack.c.b16 %v2814, %v2810
  %v4659 = vpack.c.b16 %v2815, %v2811
  %v4660 = vpack.c.b16 %v2816, %v2812
  %v4661 = vpack.c.b16 %v2817, %v2813
  %v4662 = vpack.c.b16 %v2822, %v2818
  %v4663 = vpack.c.b16 %v2823, %v2819
  %v4664 = vpack.c.b16 %v2824, %v2820
  %v4665 = vpack.c.b16 %v2825, %v2821
  %v4666 = vpack.c.b16 %v2830, %v2826
  %v4667 = vpack.c.b16 %v2831, %v2827
  %v4668 = vpack.c.b16 %v2832, %v2828
  %v4669 = vpack.c.b16 %v2833, %v2829
  %v4670 = vpack.c.b16 %v2838, %v2834
  %v4671 = vpack.c.b16 %v2839, %v2835
  %v4672 = vpack.c.b16 %v2840, %v2836
  %v4673 = vpack.c.b16 %v2841, %v2837
  %v4674 = vpack.c.b16 %v2846, %v2842
  %v4675 = vpack.c.b16 %v2847, %v2843
  %v4676 = vpack.c.b16 %v2848, %v2844
  %v4677 = vpack.c.b16 %v2849, %v2845
  %v4678 = vpack.c.b16 %v2854, %v2850
  %v4679 = vpack.c.b16 %v2855, %v2851
  %v4680 = vpack.c.b16 %v2856, %v2852
  %v4681 = vpack.c.b16 %v2857, %v2853
  %v4682 = vpack.c.b16 %v2862, %v2858
  %v4683 = vpack.c.b16 %v2863, %v2859
  %v4684 = vpack.c.b16 %v2864, %v2860
  %v4685 = vpack.c.b16 %v2865, %v2861
  %v4686 = vpack.c.b16 %v2870, %v2866
  %v4687 = vpack.c.b16 %v2871, %v2867
  %v4688 = vpack.c.b16 %v2872, %v2868
  %v4689 = vpack.c.b16 %v2873, %v2869
  %v4690 = vpack.c.b16 %v2878, %v2874
  %v4691 = vpack.c.b16 %v2879, %v2875
  %v4692 = vpack.c.b16 %v2880, %v2876
  %v4693 = vpack.c.b16 %v2881, %v2877
  %v4694 = vpack.c.b16 %v2886, %v2882
  %v4695 = vpack.c.b16 %v2887, %v2883
  %v4696 = vpack.c.b16 %v2888, %v2884
  %v4697 = vpack.c.b16 %v2889, %v2885
  %v4698 = vpack.c.b16 %v2894, %v2890
  %v4699 = vpack.c.b16 %v2895, %v2891
  %v4700 = vpack.c.b16 %v2896, %v2892
  %v4701 = vpack.c.b16 %v2897, %v2893
  %v4702 = vpack.c.b16 %v2902, %v2898
  %v4703 = vpack.c.b16 %v2903, %v2899
  %v4704 = vpack.c.b16 %v2904, %v2900
  %v4705 = vpack.c.b16 %v2905, %v2901
  %v4706 = vpack.c.b16 %v2910, %v2906
  %v4707 = vpack.c.b16 %v2911, %v2907
  %v4708 = vpack.c.b16 %v2912, %v2908
  %v4709 = vpack.c.b16 %v2913, %v2909
  %v4710 = vpack.c.b16 %v2918, %v2914
  %v4711 = vpack.c.b16 %v2919, %v2915
  %v4712 = vpack.c.b16 %v2920, %v2916
  %v4713 = vpack.c.b16 %v2921, %v2917
  %v4714 = vpack.c.b16 %v2926, %v2922
  %v4715 = vpack.c.b16 %v2927, %v2923
  %v4716 = vpack.c.b16 %v2928, %v2924
  %v4717 = vpack.c.b16 %v2929, %v2925
  %v4718 = vpack.c.b16 %v2934, %v2930
  %v4719 = vpack.c.b16 %v2935, %v2931
  %v4720 = vpack.c.b16 %v2936, %v2932
  %v4721 = vpack.c.b16 %v2937, %v2933
  %v4722 = vpack.c.b16 %v2942, %v2938
  %v4723 = vpack.c.b16 %v2943, %v2939
  %v4724 = vpack.c.b16 %v2944, %v2940
  %v4725 = vpack.c.b16 %v2945, %v2941
  %v4726 = vpack.c.b16 %v2950, %v2946
  %v4727 = vpack.c.b16 %v2951, %v2947
  %v4728 = vpack.c.b16 %v2952, %v2948
  %v4729 = vpack.c.b16 %v2953, %v2949
  %v4730 = vpack.c.b16 %v2958, %v2954
  %v4731 = vpack.c.b16 %v2959, %v2955
  %v4732 = vpack.c.b16 %v2960, %v2956
  %v4733 = vpack.c.b16 %v2961, %v2957
  %v4734 = vpack.c.b16 %v2966, %v2962
  %v4735 = vpack.c.b16 %v2967, %v2963
  %v4736 = vpack.c.b16 %v2968, %v2964
  %v4737 = vpack.c.b16 %v2969, %v2965
  %v4738 = vpack.c.b16 %v2974, %v2970
  %v4739 = vpack.c.b16 %v2975, %v2971
  %v4740 = vpack.c.b16 %v2976, %v2972
  %v4741 = vpack.c.b16 %v2977, %v2973
  %v4742 = vpack.c.b16 %v2982, %v2978
  %v4743 = vpack.c.b16 %v2983, %v2979
  %v4744 = vpack.c.b16 %v2984, %v2980
  %v4745 = vpack.c.b16 %v2985, %v2981
  %v4746 = vpack.c.b16 %v2990, %v2986
  %v4747 = vpack.c.b16 %v2991, %v2987
  %v4748 = vpack.c.b16 %v2992, %v2988
  %v4749 = vpack.c.b16 %v2993, %v2989
  %v4750 = vpack.c.b16 %v2998, %v2994
  %v4751 = vpack.c.b16 %v2999, %v2995
  %v4752 = vpack.c.b16 %v3000, %v2996
  %v4753 = vpack.c.b16 %v3001, %v2997
  %v4754 = vpack.c.b16 %v3006, %v3002
  %v4755 = vpack.c.b16 %v3007, %v3003
  %v4756 = vpack.c.b16 %v3008, %v3004
  %v4757 = vpack.c.b16 %v3009, %v3005
  %v4758 = vpack.c.b16 %v3014, %v3010
  %v4759 = vpack.c.b16 %v3015, %v3011
  %v4760 = vpack.c.b16 %v3016, %v3012
  %v4761 = vpack.c.b16 %v3017, %v3013
  %v4762 = vpack.c.b16 %v3022, %v3018
  %v4763 = vpack.c.b16 %v3023, %v3019
  %v4764 = vpack.c.b16 %v3024, %v3020
  %v4765 = vpack.c.b16 %v3025, %v3021
  %v4766 = vpack.c.b16 %v3030, %v3026
  %v4767 = vpack.c.b16 %v3031, %v3027
  %v4768 = vpack.c.b16 %v3032, %v3028
  %v4769 = vpack.c.b16 %v3033, %v3029
  %v4770 = vpack.c.b16 %v3038, %v3034
  %v4771 = vpack.c.b16 %v3039, %v3035
  %v4772 = vpack.c.b16 %v3040, %v3036
  %v4773 = vpack.c.b16 %v3041, %v3037
  %v4774 = vpack.c.b16 %v3046, %v3042
  %v4775 = vpack.c.b16 %v3047, %v3043
  %v4776 = vpack.c.b16 %v3048, %v3044
  %v4777 = vpack.c.b16 %v3049, %v3045
  %v4778 = vpack.c.b16 %v3054, %v3050
  %v4779 = vpack.c.b16 %v3055, %v3051
  %v4780 = vpack.c.b16 %v3056, %v3052
  %v4781 = vpack.c.b16 %v3057, %v3053
  %v4782 = vpack.c.b16 %v3062, %v3058
  %v4783 = vpack.c.b16 %v3063, %v3059
  %v4784 = vpack.c.b16 %v3064, %v3060
  %v4785 = vpack.c.b16 %v3065, %v3061
  %v4786 = vpack.c.b16 %v3070, %v3066
  %v4787 = vpack.c.b16 %v3071, %v3067
  %v4788 = vpack.c.b16 %v3072, %v3068
  %v4789 = vpack.c.b16 %v3073, %v3069
  %v4790 = vpack.c.b16 %v3078, %v3074
  %v4791 = vpack.c.b16 %v3079, %v3075
  %v4792 = vpack.c.b16 %v3080, %v3076
  %v4793 = vpack.c.b16 %v3081, %v3077
  %v4794 = vpack.c.b16 %v3086, %v3082
  %v4795 = vpack.c.b16 %v3087, %v3083
  %v4796 = vpack.c.b16 %v3088, %v3084
  %v4797 = vpack.c.b16 %v3089, %v3085
  %v4798 = vpack.c.b16 %v3094, %v3090
  %v4799 = vpack.c.b16 %v3095, %v3091
  %v4800 = vpack.c.b16 %v3096, %v3092
  %v4801 = vpack.c.b16 %v3097, %v3093
  %v4802 = vpack.c.b16 %v3102, %v3098
  %v4803 = vpack.c.b16 %v3103, %v3099
  %v4804 = vpack.c.b16 %v3104, %v3100
  %v4805 = vpack.c.b16 %v3105, %v3101
  %v4806 = vpack.c.b16 %v3110, %v3106
  %v4807 = vpack.c.b16 %v3111, %v3107
  %v4808 = vpack.c.b16 %v3112, %v3108
  %v4809 = vpack.c.b16 %v3113, %v3109
  %v4810 = vpack.c.b16 %v3118, %v3114
  %v4811 = vpack.c.b16 %v3119, %v3115
  %v4812 = vpack.c.b16 %v3120, %v3116
  %v4813 = vpack.c.b16 %v3121, %v3117
  %v4814 = vpack.c.b16 %v3126, %v3122
  %v4815 = vpack.c.b16 %v3127, %v3123
  %v4816 = vpack.c.b16 %v3128, %v3124
  %v4817 = vpack.c.b16 %v3129, %v3125
  %v4818 = vpack.c.b16 %v3134, %v3130
  %v4819 = vpack.c.b16 %v3135, %v3131
  %v4820 = vpack.c.b16 %v3136, %v3132
  %v4821 = vpack.c.b16 %v3137, %v3133
  %v4822 = vpack.c.b16 %v3142, %v3138
  %v4823 = vpack.c.b16 %v3143, %v3139
  %v4824 = vpack.c.b16 %v3144, %v3140
  %v4825 = vpack.c.b16 %v3145, %v3141
  %v4826 = vpack.c.b16 %v3150, %v3146
  %v4827 = vpack.c.b16 %v3151, %v3147
  %v4828 = vpack.c.b16 %v3152, %v3148
  %v4829 = vpack.c.b16 %v3153, %v3149
  %v4830 = vpack.c.b16 %v3158, %v3154
  %v4831 = vpack.c.b16 %v3159, %v3155
  %v4832 = vpack.c.b16 %v3160, %v3156
  %v4833 = vpack.c.b16 %v3161, %v3157
  %v4834 = vpack.c.b16 %v3166, %v3162
  %v4835 = vpack.c.b16 %v3167, %v3163
  %v4836 = vpack.c.b16 %v3168, %v3164
  %v4837 = vpack.c.b16 %v3169, %v3165
  %v4838 = vpack.c.b16 %v3174, %v3170
  %v4839 = vpack.c.b16 %v3175, %v3171
  %v4840 = vpack.c.b16 %v3176, %v3172
  %v4841 = vpack.c.b16 %v3177, %v3173
  %v4842 = vpack.c.b16 %v3182, %v3178
  %v4843 = vpack.c.b16 %v3183, %v3179
  %v4844 = vpack.c.b16 %v3184, %v3180
  %v4845 = vpack.c.b16 %v3185, %v3181
  %v4846 = vpack.c.b16 %v3190, %v3186
  %v4847 = vpack.c.b16 %v3191, %v3187
  %v4848 = vpack.c.b16 %v3192, %v3188
  %v4849 = vpack.c.b16 %v3193, %v3189
  %v4850 = vpack.c.b16 %v3198, %v3194
  %v4851 = vpack.c.b16 %v3199, %v3195
  %v4852 = vpack.c.b16 %v3200, %v3196
  %v4853 = vpack.c.b16 %v3201, %v3197
  %v4854 = vpack.c.b16 %v3206, %v3202
  %v4855 = vpack.c.b16 %v3207, %v3203
  %v4856 = vpack.c.b16 %v3208, %v3204
  %v4857 = vpack.c.b16 %v3209, %v3205
  %v4858 = vpack.c.b16 %v3214, %v3210
  %v4859 = vpack.c.b16 %v3215, %v3211
  %v4860 = vpack.c.b16 %v3216, %v3212
  %v4861 = vpack.c.b16 %v3217, %v3213
  %v4862 = vpack.c.b16 %v3222, %v3218
  %v4863 = vpack.c.b16 %v3223, %v3219
  %v4864 = vpack.c.b16 %v3224, %v3220
  %v4865 = vpack.c.b16 %v3225, %v3221
  %v4866 = vpack.c.b16 %v3230, %v3226
  %v4867 = vpack.c.b16 %v3231, %v3227
  %v4868 = vpack.c.b16 %v3232, %v3228
  %v4869 = vpack.c.b16 %v3233, %v3229
  %v4870 = vpack.c.b16 %v3238, %v3234
  %v4871 = vpack.c.b16 %v3239, %v3235
  %v4872 = vpack.c.b16 %v3240, %v3236
  %v4873 = vpack.c.b16 %v3241, %v3237
  %v4874 = vpack.c.b16 %v3246, %v3242
  %v4875 = vpack.c.b16 %v3247, %v3243
  %v4876 = vpack.c.b16 %v3248, %v3244
  %v4877 = vpack.c.b16 %v3249, %v3245
  %v4878 = vpack.c.b16 %v3254, %v3250
  %v4879 = vpack.c.b16 %v3255, %v3251
  %v4880 = vpack.c.b16 %v3256, %v3252
  %v4881 = vpack.c.b16 %v3257, %v3253
  %v4882 = vpack.c.b16 %v3262, %v3258
  %v4883 = vpack.c.b16 %v3263, %v3259
  %v4884 = vpack.c.b16 %v3264, %v3260
  %v4885 = vpack.c.b16 %v3265, %v3261
  %v4886 = vpack.c.b16 %v3270, %v3266
  %v4887 = vpack.c.b16 %v3271, %v3267
  %v4888 = vpack.c.b16 %v3272, %v3268
  %v4889 = vpack.c.b16 %v3273, %v3269
  %v4890 = vpack.c.b16 %v3278, %v3274
  %v4891 = vpack.c.b16 %v3279, %v3275
  %v4892 = vpack.c.b16 %v3280, %v3276
  %v4893 = vpack.c.b16 %v3281, %v3277
  %v4894 = vpack.c.b16 %v3286, %v3282
  %v4895 = vpack.c.b16 %v3287, %v3283
  %v4896 = vpack.c.b16 %v3288, %v3284
  %v4897 = vpack.c.b16 %v3289, %v3285
  %v4898 = vpack.c.b16 %v3294, %v3290
  %v4899 = vpack.c.b16 %v3295, %v3291
  %v4900 = vpack.c.b16 %v3296, %v3292
  %v4901 = vpack.c.b16 %v3297, %v3293
  %v4902 = vpack.c.b16 %v3302, %v3298
  %v4903 = vpack.c.b16 %v3303, %v3299
  %v4904 = vpack.c.b16 %v3304, %v3300
  %v4905 = vpack.c.b16 %v3305, %v3301
  %v4906 = vpack.c.b16 %v3310, %v3306
  %v4907 = vpack.c.b16 %v3311, %v3307
  %v4908 = vpack.c.b16 %v3312, %v3308
  %v4909 = vpack.c.b16 %v3313, %v3309
  %v4910 = vpack.c.b16 %v3318, %v3314
  %v4911 = vpack.c.b16 %v3319, %v3315
  %v4912 = vpack.c.b16 %v3320, %v3316
  %v4913 = vpack.c.b16 %v3321, %v3317
  %v4914 = vpack.c.b16 %v3326, %v3322
  %v4915 = vpack.c.b16 %v3327, %v3323
  %v4916 = vpack.c.b16 %v3328, %v3324
  %v4917 = vpack.c.b16 %v3329, %v3325
  %v4918 = vpack.c.b16 %v3334, %v3330
  %v4919 = vpack.c.b16 %v3335, %v3331
  %v4920 = vpack.c.b16 %v3336, %v3332
  %v4921 = vpack.c.b16 %v3337, %v3333
  %v4922 = vpack.c.b16 %v3342, %v3338
  %v4923 = vpack.c.b16 %v3343, %v3339
  %v4924 = vpack.c.b16 %v3344, %v3340
  %v4925 = vpack.c.b16 %v3345, %v3341
  %v4926 = vpack.c.b16 %v3350, %v3346
  %v4927 = vpack.c.b16 %v3351, %v3347
  %v4928 = vpack.c.b16 %v3352, %v3348
  %v4929 = vpack.c.b16 %v3353, %v3349
  %v4930 = vpack.c.b16 %v3358, %v3354
  %v4931 = vpack.c.b16 %v3359, %v3355
  %v4932 = vpack.c.b16 %v3360, %v3356
  %v4933 = vpack.c.b16 %v3361, %v3357
  %v4934 = vpack.c.b16 %v3366, %v3362
  %v4935 = vpack.c.b16 %v3367, %v3363
  %v4936 = vpack.c.b16 %v3368, %v3364
  %v4937 = vpack.c.b16 %v3369, %v3365
  %v4938 = vpack.c.b16 %v3374, %v3370
  %v4939 = vpack.c.b16 %v3375, %v3371
  %v4940 = vpack.c.b16 %v3376, %v3372
  %v4941 = vpack.c.b16 %v3377, %v3373
  %v4942 = vpack.c.b16 %v3382, %v3378
  %v4943 = vpack.c.b16 %v3383, %v3379
  %v4944 = vpack.c.b16 %v3384, %v3380
  %v4945 = vpack.c.b16 %v3385, %v3381
  %v4946 = vpack.c.b16 %v3390, %v3386
  %v4947 = vpack.c.b16 %v3391, %v3387
  %v4948 = vpack.c.b16 %v3392, %v3388
  %v4949 = vpack.c.b16 %v3393, %v3389
  %v4950 = vpack.c.b16 %v3398, %v3394
  %v4951 = vpack.c.b16 %v3399, %v3395
  %v4952 = vpack.c.b16 %v3400, %v3396
  %v4953 = vpack.c.b16 %v3401, %v3397
  %v4954 = vpack.c.b16 %v3406, %v3402
  %v4955 = vpack.c.b16 %v3407, %v3403
  %v4956 = vpack.c.b16 %v3408, %v3404
  %v4957 = vpack.c.b16 %v3409, %v3405
  %v4958 = vpack.c.b16 %v3414, %v3410
  %v4959 = vpack.c.b16 %v3415, %v3411
  %v4960 = vpack.c.b16 %v3416, %v3412
  %v4961 = vpack.c.b16 %v3417, %v3413
  %v4962 = vpack.c.b16 %v3422, %v3418
  %v4963 = vpack.c.b16 %v3423, %v3419
  %v4964 = vpack.c.b16 %v3424, %v3420
  %v4965 = vpack.c.b16 %v3425, %v3421
  %v4966 = vpack.c.b16 %v3430, %v3426
  %v4967 = vpack.c.b16 %v3431, %v3427
  %v4968 = vpack.c.b16 %v3432, %v3428
  %v4969 = vpack.c.b16 %v3433, %v3429
  %v4970 = vpack.c.b16 %v3438, %v3434
  %v4971 = vpack.c.b16 %v3439, %v3435
  %v4972 = vpack.c.b16 %v3440, %v3436
  %v4973 = vpack.c.b16 %v3441, %v3437
  %v4974 = vpack.c.b16 %v3446, %v3442
  %v4975 = vpack.c.b16 %v3447, %v3443
  %v4976 = vpack.c.b16 %v3448, %v3444
  %v4977 = vpack.c.b16 %v3449, %v3445
  %v4978 = vpack.c.b16 %v3454, %v3450
  %v4979 = vpack.c.b16 %v3455, %v3451
  %v4980 = vpack.c.b16 %v3456, %v3452
  %v4981 = vpack.c.b16 %v3457, %v3453
  %v4982 = vpack.c.b16 %v3462, %v3458
  %v4983 = vpack.c.b16 %v3463, %v3459
  %v4984 = vpack.c.b16 %v3464, %v3460
  %v4985 = vpack.c.b16 %v3465, %v3461
  %v4986 = vpack.c.b16 %v3470, %v3466
  %v4987 = vpack.c.b16 %v3471, %v3467
  %v4988 = vpack.c.b16 %v3472, %v3468
  %v4989 = vpack.c.b16 %v3473, %v3469
  %v4990 = vpack.c.b16 %v3478, %v3474
  %v4991 = vpack.c.b16 %v3479, %v3475
  %v4992 = vpack.c.b16 %v3480, %v3476
  %v4993 = vpack.c.b16 %v3481, %v3477
  %v4994 = vpack.c.b16 %v3486, %v3482
  %v4995 = vpack.c.b16 %v3487, %v3483
  %v4996 = vpack.c.b16 %v3488, %v3484
  %v4997 = vpack.c.b16 %v3489, %v3485
  %v4998 = vpack.c.b16 %v3494, %v3490
  %v4999 = vpack.c.b16 %v3495, %v3491
  %v5000 = vpack.c.b16 %v3496, %v3492
  %v5001 = vpack.c.b16 %v3497, %v3493
  %v5002 = vpack.c.b16 %v3502, %v3498
  %v5003 = vpack.c.b16 %v3503, %v3499
  %v5004 = vpack.c.b16 %v3504, %v3500
  %v5005 = vpack.c.b16 %v3505, %v3501
  %v5006 = vpack.c.b16 %v3510, %v3506
  %v5007 = vpack.c.b16 %v3511, %v3507
  %v5008 = vpack.c.b16 %v3512, %v3508
  %v5009 = vpack.c.b16 %v3513, %v3509
  %v5010 = vpack.c.b16 %v3518, %v3514
  %v5011 = vpack.c.b16 %v3519, %v3515
  %v5012 = vpack.c.b16 %v3520, %v3516
  %v5013 = vpack.c.b16 %v3521, %v3517
  %v5014 = vpack.c.b16 %v3526, %v3522
  %v5015 = vpack.c.b16 %v3527, %v3523
  %v5016 = vpack.c.b16 %v3528, %v3524
  %v5017 = vpack.c.b16 %v3529, %v3525
  %v5018 = vpack.c.b16 %v3534, %v3530
  %v5019 = vpack.c.b16 %v3535, %v3531
  %v5020 = vpack.c.b16 %v3536, %v3532
  %v5021 = vpack.c.b16 %v3537, %v3533
  %v5022 = vpack.c.b16 %v3542, %v3538
  %v5023 = vpack.c.b16 %v3543, %v3539
  %v5024 = vpack.c.b16 %v3544, %v3540
  %v5025 = vpack.c.b16 %v3545, %v3541
  %v5026 = vpack.c.b16 %v3550, %v3546
  %v5027 = vpack.c.b16 %v3551, %v3547
  %v5028 = vpack.c.b16 %v3552, %v3548
  %v5029 = vpack.c.b16 %v3553, %v3549
  %v5030 = vpack.c.b16 %v3558, %v3554
  %v5031 = vpack.c.b16 %v3559, %v3555
  %v5032 = vpack.c.b16 %v3560, %v3556
  %v5033 = vpack.c.b16 %v3561, %v3557
  %v5034 = vpack.c.b16 %v3566, %v3562
  %v5035 = vpack.c.b16 %v3567, %v3563
  %v5036 = vpack.c.b16 %v3568, %v3564
  %v5037 = vpack.c.b16 %v3569, %v3565
  %v5038 = vpack.c.b16 %v3574, %v3570
  %v5039 = vpack.c.b16 %v3575, %v3571
  %v5040 = vpack.c.b16 %v3576, %v3572
  %v5041 = vpack.c.b16 %v3577, %v3573
  %v5042 = vpack.c.b16 %v3582, %v3578
  %v5043 = vpack.c.b16 %v3583, %v3579
  %v5044 = vpack.c.b16 %v3584, %v3580
  %v5045 = vpack.c.b16 %v3585, %v3581
  %v5046 = vpack.c.b16 %v3590, %v3586
  %v5047 = vpack.c.b16 %v3591, %v3587
  %v5048 = vpack.c.b16 %v3592, %v3588
  %v5049 = vpack.c.b16 %v3593, %v3589
  %v5050 = vpack.c.b16 %v3598, %v3594
  %v5051 = vpack.c.b16 %v3599, %v3595
  %v5052 = vpack.c.b16 %v3600, %v3596
  %v5053 = vpack.c.b16 %v3601, %v3597
  %v5054 = vpack.c.b16 %v3606, %v3602
  %v5055 = vpack.c.b16 %v3607, %v3603
  %v5056 = vpack.c.b16 %v3608, %v3604
  %v5057 = vpack.c.b16 %v3609, %v3605
  %v5058 = vpack.c.b16 %v3614, %v3610
  %v5059 = vpack.c.b16 %v3615, %v3611
  %v5060 = vpack.c.b16 %v3616, %v3612
  %v5061 = vpack.c.b16 %v3617, %v3613
  %v5062 = vpack.c.b16 %v3622, %v3618
  %v5063 = vpack.c.b16 %v3623, %v3619
  %v5064 = vpack.c.b16 %v3624, %v3620
  %v5065 = vpack.c.b16 %v3625, %v3621
  %v5066 = vpack.c.b16 %v3630, %v3626
  %v5067 = vpack.c.b16 %v3631, %v3627
  %v5068 = vpack.c.b16 %v3632, %v3628
  %v5069 = vpack.c.b16 %v3633, %v3629
  %v5070 = vpack.c.b16 %v3638, %v3634
  %v5071 = vpack.c.b16 %v3639, %v3635
  %v5072 = vpack.c.b16 %v3640, %v3636
  %v5073 = vpack.c.b16 %v3641, %v3637
  %v5074 = vpack.c.b16 %v3646, %v3642
  %v5075 = vpack.c.b16 %v3647, %v3643
  %v5076 = vpack.c.b16 %v3648, %v3644
  %v5077 = vpack.c.b16 %v3649, %v3645
  %v5078 = vpack.c.b16 %v3654, %v3650
  %v5079 = vpack.c.b16 %v3655, %v3651
  %v5080 = vpack.c.b16 %v3656, %v3652
  %v5081 = vpack.c.b16 %v3657, %v3653
  %v5082 = vpack.c.b16 %v3662, %v3658
  %v5083 = vpack.c.b16 %v3663, %v3659
  %v5084 = vpack.c.b16 %v3664, %v3660
  %v5085 = vpack.c.b16 %v3665, %v3661
  %v5086 = vpack.c.b16 %v3670, %v3666
  %v5087 = vpack.c.b16 %v3671, %v3667
  %v5088 = vpack.c.b16 %v3672, %v3668
  %v5089 = vpack.c.b16 %v3673, %v3669
  %v5090 = vpack.c.b16 %v3678, %v3674
  %v5091 = vpack.c.b16 %v3679, %v3675
  %v5092 = vpack.c.b16 %v3680, %v3676
  %v5093 = vpack.c.b16 %v3681, %v3677
  %v5094 = vpack.c.b16 %v3686, %v3682
  %v5095 = vpack.c.b16 %v3687, %v3683
  %v5096 = vpack.c.b16 %v3688, %v3684
  %v5097 = vpack.c.b16 %v3689, %v3685
  %v5098 = vpack.c.b16 %v3694, %v3690
  %v5099 = vpack.c.b16 %v3695, %v3691
  %v5100 = vpack.c.b16 %v3696, %v3692
  %v5101 = vpack.c.b16 %v3697, %v3693
  %v5102 = vpack.c.b16 %v3702, %v3698
  %v5103 = vpack.c.b16 %v3703, %v3699
  %v5104 = vpack.c.b16 %v3704, %v3700
  %v5105 = vpack.c.b16 %v3705, %v3701
  %v5106 = vpack.c.b16 %v3710, %v3706
  %v5107 = vpack.c.b16 %v3711, %v3707
  %v5108 = vpack.c.b16 %v3712, %v3708
  %v5109 = vpack.c.b16 %v3713, %v3709
  %v5110 = vpack.c.b16 %v3718, %v3714
  %v5111 = vpack.c.b16 %v3719, %v3715
  %v5112 = vpack.c.b16 %v3720, %v3716
  %v5113 = vpack.c.b16 %v3721, %v3717
  %v5114 = vpack.c.b16 %v3726, %v3722
  %v5115 = vpack.c.b16 %v3727, %v3723
  %v5116 = vpack.c.b16 %v3728, %v3724
  %v5117 = vpack.c.b16 %v3729, %v3725
  %v5118 = vpack.c.b16 %v3734, %v3730
  %v5119 = vpack.c.b16 %v3735, %v3731
  %v5120 = vpack.c.b16 %v3736, %v3732
  %v5121 = vpack.c.b16 %v3737, %v3733
  %v5122 = vpack.c.b16 %v3742, %v3738
  %v5123 = vpack.c.b16 %v3743, %v3739
  %v5124 = vpack.c.b16 %v3744, %v3740
  %v5125 = vpack.c.b16 %v3745, %v3741
  %v5126 = vpack.c.b16 %v3750, %v3746
  %v5127 = vpack.c.b16 %v3751, %v3747
  %v5128 = vpack.c.b16 %v3752, %v3748
  %v5129 = vpack.c.b16 %v3753, %v3749
  %v5130 = vpack.c.b16 %v3758, %v3754
  %v5131 = vpack.c.b16 %v3759, %v3755
  %v5132 = vpack.c.b16 %v3760, %v3756
  %v5133 = vpack.c.b16 %v3761, %v3757
  %v5134 = vpack.c.b16 %v3766, %v3762
  %v5135 = vpack.c.b16 %v3767, %v3763
  %v5136 = vpack.c.b16 %v3768, %v3764
  %v5137 = vpack.c.b16 %v3769, %v3765
  %v5138 = vpack.c.b16 %v3774, %v3770
  %v5139 = vpack.c.b16 %v3775, %v3771
  %v5140 = vpack.c.b16 %v3776, %v3772
  %v5141 = vpack.c.b16 %v3777, %v3773
  %v5142 = vpack.c.b16 %v3782, %v3778
  %v5143 = vpack.c.b16 %v3783, %v3779
  %v5144 = vpack.c.b16 %v3784, %v3780
  %v5145 = vpack.c.b16 %v3785, %v3781
  %v5146 = vpack.c.b16 %v3790, %v3786
  %v5147 = vpack.c.b16 %v3791, %v3787
  %v5148 = vpack.c.b16 %v3792, %v3788
  %v5149 = vpack.c.b16 %v3793, %v3789
  %v5150 = vpack.c.b16 %v3798, %v3794
  %v5151 = vpack.c.b16 %v3799, %v3795
  %v5152 = vpack.c.b16 %v3800, %v3796
  %v5153 = vpack.c.b16 %v3801, %v3797
  %v5154 = vpack.c.b16 %v3806, %v3802
  %v5155 = vpack.c.b16 %v3807, %v3803
  %v5156 = vpack.c.b16 %v3808, %v3804
  %v5157 = vpack.c.b16 %v3809, %v3805
  %v5158 = vpack.c.b16 %v3814, %v3810
  %v5159 = vpack.c.b16 %v3815, %v3811
  %v5160 = vpack.c.b16 %v3816, %v3812
  %v5161 = vpack.c.b16 %v3817, %v3813
  %v5162 = vpack.c.b16 %v3822, %v3818
  %v5163 = vpack.c.b16 %v3823, %v3819
  %v5164 = vpack.c.b16 %v3824, %v3820
  %v5165 = vpack.c.b16 %v3825, %v3821
  %v5166 = vpack.c.b16 %v3830, %v3826
  %v5167 = vpack.c.b16 %v3831, %v3827
  %v5168 = vpack.c.b16 %v3832, %v3828
  %v5169 = vpack.c.b16 %v3833, %v3829
  %v5170 = vpack.c.b16 %v3838, %v3834
  %v5171 = vpack.c.b16 %v3839, %v3835
  %v5172 = vpack.c.b16 %v3840, %v3836
  %v5173 = vpack.c.b16 %v3841, %v3837
  %v5174 = vpack.c.b16 %v3846, %v3842
  %v5175 = vpack.c.b16 %v3847, %v3843
  %v5176 = vpack.c.b16 %v3848, %v3844
  %v5177 = vpack.c.b16 %v3849, %v3845
  %v5178 = vpack.c.b16 %v3854, %v3850
  %v5179 = vpack.c.b16 %v3855, %v3851
  %v5180 = vpack.c.b16 %v3856, %v3852
  %v5181 = vpack.c.b16 %v3857, %v3853
  %v5182 = vpack.c.b16 %v3862, %v3858
  %v5183 = vpack.c.b16 %v3863, %v3859
  %v5184 = vpack.c.b16 %v3864, %v3860
  %v5185 = vpack.c.b16 %v3865, %v3861
  %v5186 = vpack.c.b16 %v3870, %v3866
  %v5187 = vpack.c.b16 %v3871, %v3867
  %v5188 = vpack.c.b16 %v3872, %v3868
  %v5189 = vpack.c.b16 %v3873, %v3869
  %v5190 = vpack.c.b16 %v3878, %v3874
  %v5191 = vpack.c.b16 %v3879, %v3875
  %v5192 = vpack.c.b16 %v3880, %v3876
  %v5193 = vpack.c.b16 %v3881, %v3877
  %v5194 = vpack.c.b16 %v3886, %v3882
  %v5195 = vpack.c.b16 %v3887, %v3883
  %v5196 = vpack.c.b16 %v3888, %v3884
  %v5197 = vpack.c.b16 %v3889, %v3885
  %v5198 = vpack.c.b16 %v3894, %v3890
  %v5199 = vpack.c.b16 %v3895, %v3891
  %v5200 = vpack.c.b16 %v3896, %v3892
  %v5201 = vpack.c.b16 %v3897, %v3893
  %v5202 = vpack.c.b16 %v3902, %v3898
  %v5203 = vpack.c.b16 %v3903, %v3899
  %v5204 = vpack.c.b16 %v3904, %v3900
  %v5205 = vpack.c.b16 %v3905, %v3901
  %v5206 = vpack.c.b16 %v3910, %v3906
  %v5207 = vpack.c.b16 %v3911, %v3907
  %v5208 = vpack.c.b16 %v3912, %v3908
  %v5209 = vpack.c.b16 %v3913, %v3909
  %v5210 = vpack.c.b16 %v3918, %v3914
  %v5211 = vpack.c.b16 %v3919, %v3915
  %v5212 = vpack.c.b16 %v3920, %v3916
  %v5213 = vpack.c.b16 %v3921, %v3917
  %v5214 = vpack.c.b16 %v3926, %v3922
  %v5215 = vpack.c.b16 %v3927, %v3923
  %v5216 = vpack.c.b16 %v3928, %v3924
  %v5217 = vpack.c.b16 %v3929, %v3925
  %v5218 = vpack.c.b16 %v3934, %v3930
  %v5219 = vpack.c.b16 %v3935, %v3931
  %v5220 = vpack.c.b16 %v3936, %v3932
  %v5221 = vpack.c.b16 %v3937, %v3933
  %v5222 = vpack.c.b16 %v3942, %v3938
  %v5223 = vpack.c.b16 %v3943, %v3939
  %v5224 = vpack.c.b16 %v3944, %v3940
  %v5225 = vpack.c.b16 %v3945, %v3941
  %v5226 = vpack.c.b16 %v3950, %v3946
  %v5227 = vpack.c.b16 %v3951, %v3947
  %v5228 = vpack.c.b16 %v3952, %v3948
  %v5229 = vpack.c.b16 %v3953, %v3949
  %v5230 = vpack.c.b16 %v3958, %v3954
  %v5231 = vpack.c.b16 %v3959, %v3955
  %v5232 = vpack.c.b16 %v3960, %v3956
  %v5233 = vpack.c.b16 %v3961, %v3957
  %v5234 = vpack.c.b16 %v3966, %v3962
  %v5235 = vpack.c.b16 %v3967, %v3963
  %v5236 = vpack.c.b16 %v3968, %v3964
  %v5237 = vpack.c.b16 %v3969, %v3965
  %v5238 = vpack.c.b16 %v3974, %v3970
  %v5239 = vpack.c.b16 %v3975, %v3971
  %v5240 = vpack.c.b16 %v3976, %v3972
  %v5241 = vpack.c.b16 %v3977, %v3973
  %v5242 = vpack.c.b16 %v3982, %v3978
  %v5243 = vpack.c.b16 %v3983, %v3979
  %v5244 = vpack.c.b16 %v3984, %v3980
  %v5245 = vpack.c.b16 %v3985, %v3981
  %v5246 = vpack.c.b16 %v3990, %v3986
  %v5247 = vpack.c.b16 %v3991, %v3987
  %v5248 = vpack.c.b16 %v3992, %v3988
  %v5249 = vpack.c.b16 %v3993, %v3989
  %v5250 = vpack.c.b16 %v3998, %v3994
  %v5251 = vpack.c.b16 %v3999, %v3995
  %v5252 = vpack.c.b16 %v4000, %v3996
  %v5253 = vpack.c.b16 %v4001, %v3997
  %v5254 = vpack.c.b16 %v4006, %v4002
  %v5255 = vpack.c.b16 %v4007, %v4003
  %v5256 = vpack.c.b16 %v4008, %v4004
  %v5257 = vpack.c.b16 %v4009, %v4005
  %v5258 = vpack.c.b16 %v4014, %v4010
  %v5259 = vpack.c.b16 %v4015, %v4011
  %v5260 = vpack.c.b16 %v4016, %v4012
  %v5261 = vpack.c.b16 %v4017, %v4013
  %v5262 = vpack.c.b16 %v4022, %v4018
  %v5263 = vpack.c.b16 %v4023, %v4019
  %v5264 = vpack.c.b16 %v4024, %v4020
  %v5265 = vpack.c.b16 %v4025, %v4021
  %v5266 = vpack.c.b16 %v4030, %v4026
  %v5267 = vpack.c.b16 %v4031, %v4027
  %v5268 = vpack.c.b16 %v4032, %v4028
  %v5269 = vpack.c.b16 %v4033, %v4029
  %v5270 = vpack.c.b16 %v4038, %v4034
  %v5271 = vpack.c.b16 %v4039, %v4035
  %v5272 = vpack.c.b16 %v4040, %v4036
  %v5273 = vpack.c.b16 %v4041, %v4037
  %v5274 = vpack.c.b16 %v4046, %v4042
  %v5275 = vpack.c.b16 %v4047, %v4043
  %v5276 = vpack.c.b16 %v4048, %v4044
  %v5277 = vpack.c.b16 %v4049, %v4045
  %v5278 = vpack.c.b16 %v4054, %v4050
  %v5279 = vpack.c.b16 %v4055, %v4051
  %v5280 = vpack.c.b16 %v4056, %v4052
  %v5281 = vpack.c.b16 %v4057, %v4053
  %v5282 = vpack.c.b16 %v4062, %v4058
  %v5283 = vpack.c.b16 %v4063, %v4059
  %v5284 = vpack.c.b16 %v4064, %v4060
  %v5285 = vpack.c.b16 %v4065, %v4061
  %v5286 = vpack.c.b16 %v4070, %v4066
  %v5287 = vpack.c.b16 %v4071, %v4067
  %v5288 = vpack.c.b16 %v4072, %v4068
  %v5289 = vpack.c.b16 %v4073, %v4069
  %v5290 = vpack.c.b16 %v4078, %v4074
  %v5291 = vpack.c.b16 %v4079, %v4075
  %v5292 = vpack.c.b16 %v4080, %v4076
  %v5293 = vpack.c.b16 %v4081, %v4077
  %v5294 = vpack.c.b16 %v4086, %v4082
  %v5295 = vpack.c.b16 %v4087, %v4083
  %v5296 = vpack.c.b16 %v4088, %v4084
  %v5297 = vpack.c.b16 %v4089, %v4085
  %v5298 = vpack.c.b16 %v4094, %v4090
  %v5299 = vpack.c.b16 %v4095, %v4091
  %v5300 = vpack.c.b16 %v4096, %v4092
  %v5301 = vpack.c.b16 %v4097, %v4093
  %v5302 = vpack.c.b16 %v4102, %v4098
  %v5303 = vpack.c.b16 %v4103, %v4099
  %v5304 = vpack.c.b16 %v4104, %v4100
  %v5305 = vpack.c.b16 %v4105, %v4101
  %v5306 = vpack.c.b16 %v4110, %v4106
  %v5307 = vpack.c.b16 %v4111, %v4107
  %v5308 = vpack.c.b16 %v4112, %v4108
  %v5309 = vpack.c.b16 %v4113, %v4109
  %v5310 = vpack.c.b16 %v4118, %v4114
  %v5311 = vpack.c.b16 %v4119, %v4115
  %v5312 = vpack.c.b16 %v4120, %v4116
  %v5313 = vpack.c.b16 %v4121, %v4117
  %v5314 = vpack.c.b16 %v4126, %v4122
  %v5315 = vpack.c.b16 %v4127, %v4123
  %v5316 = vpack.c.b16 %v4128, %v4124
  %v5317 = vpack.c.b16 %v4129, %v4125
  %v5318 = vpack.c.b16 %v4134, %v4130
  %v5319 = vpack.c.b16 %v4135, %v4131
  %v5320 = vpack.c.b16 %v4136, %v4132
  %v5321 = vpack.c.b16 %v4137, %v4133
  %v5322 = vpack.c.b16 %v4142, %v4138
  %v5323 = vpack.c.b16 %v4143, %v4139
  %v5324 = vpack.c.b16 %v4144, %v4140
  %v5325 = vpack.c.b16 %v4145, %v4141
  %v5326 = vpack.c.b16 %v4150, %v4146
  %v5327 = vpack.c.b16 %v4151, %v4147
  %v5328 = vpack.c.b16 %v4152, %v4148
  %v5329 = vpack.c.b16 %v4153, %v4149
  %v5330 = vpack.c.b16 %v4158, %v4154
  %v5331 = vpack.c.b16 %v4159, %v4155
  %v5332 = vpack.c.b16 %v4160, %v4156
  %v5333 = vpack.c.b16 %v4161, %v4157
  %v5334 = vpack.c.b16 %v4166, %v4162
  %v5335 = vpack.c.b16 %v4167, %v4163
  %v5336 = vpack.c.b16 %v4168, %v4164
  %v5337 = vpack.c.b16 %v4169, %v4165
  %v5338 = vpack.c.b16 %v4174, %v4170
  %v5339 = vpack.c.b16 %v4175, %v4171
  %v5340 = vpack.c.b16 %v4176, %v4172
  %v5341 = vpack.c.b16 %v4177, %v4173
  %v5342 = vpack.c.b16 %v4182, %v4178
  %v5343 = vpack.c.b16 %v4183, %v4179
  %v5344 = vpack.c.b16 %v4184, %v4180
  %v5345 = vpack.c.b16 %v4185, %v4181
  %v5346 = vpack.c.b16 %v4190, %v4186
  %v5347 = vpack.c.b16 %v4191, %v4187
  %v5348 = vpack.c.b16 %v4192, %v4188
  %v5349 = vpack.c.b16 %v4193, %v4189
  %v5350 = vpack.c.b16 %v4198, %v4194
  %v5351 = vpack.c.b16 %v4199, %v4195
  %v5352 = vpack.c.b16 %v4200, %v4196
  %v5353 = vpack.c.b16 %v4201, %v4197
  %v5354 = vpack.c.b16 %v4206, %v4202
  %v5355 = vpack.c.b16 %v4207, %v4203
  %v5356 = vpack.c.b16 %v4208, %v4204
  %v5357 = vpack.c.b16 %v4209, %v4205
  %v5358 = vpack.c.b16 %v4214, %v4210
  %v5359 = vpack.c.b16 %v4215, %v4211
  %v5360 = vpack.c.b16 %v4216, %v4212
  %v5361 = vpack.c.b16 %v4217, %v4213
  %v5362 = vpack.c.b16 %v4222, %v4218
  %v5363 = vpack.c.b16 %v4223, %v4219
  %v5364 = vpack.c.b16 %v4224, %v4220
  %v5365 = vpack.c.b16 %v4225, %v4221
  %v5366 = vpack.c.b16 %v4230, %v4226
  %v5367 = vpack.c.b16 %v4231, %v4227
  %v5368 = vpack.c.b16 %v4232, %v4228
  %v5369 = vpack.c.b16 %v4233, %v4229
  %v5370 = vpack.c.b16 %v4238, %v4234
  %v5371 = vpack.c.b16 %v4239, %v4235
  %v5372 = vpack.c.b16 %v4240, %v4236
  %v5373 = vpack.c.b16 %v4241, %v4237
  %v5374 = vpack.c.b16 %v4246, %v4242
  %v5375 = vpack.c.b16 %v4247, %v4243
  %v5376 = vpack.c.b16 %v4248, %v4244
  %v5377 = vpack.c.b16 %v4249, %v4245
  %v5378 = vpack.c.b16 %v4254, %v4250
  %v5379 = vpack.c.b16 %v4255, %v4251
  %v5380 = vpack.c.b16 %v4256, %v4252
  %v5381 = vpack.c.b16 %v4257, %v4253
  %v5382 = vpack.c.b16 %v4262, %v4258
  %v5383 = vpack.c.b16 %v4263, %v4259
  %v5384 = vpack.c.b16 %v4264, %v4260
  %v5385 = vpack.c.b16 %v4265, %v4261
  %v5386 = vpack.c.b16 %v4270, %v4266
  %v5387 = vpack.c.b16 %v4271, %v4267
  %v5388 = vpack.c.b16 %v4272, %v4268
  %v5389 = vpack.c.b16 %v4273, %v4269
  %v5390 = vpack.c.b16 %v4278, %v4274
  %v5391 = vpack.c.b16 %v4279, %v4275
  %v5392 = vpack.c.b16 %v4280, %v4276
  %v5393 = vpack.c.b16 %v4281, %v4277
  %v5394 = vpack.c.b16 %v4286, %v4282
  %v5395 = vpack.c.b16 %v4287, %v4283
  %v5396 = vpack.c.b16 %v4288, %v4284
  %v5397 = vpack.c.b16 %v4289, %v4285
  %v5398 = vpack.c.b16 %v4294, %v4290
  %v5399 = vpack.c.b16 %v4295, %v4291
  %v5400 = vpack.c.b16 %v4296, %v4292
  %v5401 = vpack.c.b16 %v4297, %v4293
  %v5402 = vpack.c.b16 %v4302, %v4298
  %v5403 = vpack.c.b16 %v4303, %v4299
  %v5404 = vpack.c.b16 %v4304, %v4300
  %v5405 = vpack.c.b16 %v4305, %v4301
  %v5406 = vpack.c.b16 %v4310, %v4306
  %v5407 = vpack.c.b16 %v4311, %v4307
  %v5408 = vpack.c.b16 %v4312, %v4308
  %v5409 = vpack.c.b16 %v4313, %v4309
  %v5410 = vpack.c.b16 %v4318, %v4314
  %v5411 = vpack.c.b16 %v4319, %v4315
  %v5412 = vpack.c.b16 %v4320, %v4316
  %v5413 = vpack.c.b16 %v4321, %v4317
  %v5414 = vpack.c.b16 %v4326, %v4322
  %v5415 = vpack.c.b16 %v4327, %v4323
  %v5416 = vpack.c.b16 %v4328, %v4324
  %v5417 = vpack.c.b16 %v4329, %v4325
  %v5418 = vpack.c.b16 %v4334, %v4330
  %v5419 = vpack.c.b16 %v4335, %v4331
  %v5420 = vpack.c.b16 %v4336, %v4332
  %v5421 = vpack.c.b16 %v4337, %v4333
  %v5422 = vpack.c.b16 %v4342, %v4338
  %v5423 = vpack.c.b16 %v4343, %v4339
  %v5424 = vpack.c.b16 %v4344, %v4340
  %v5425 = vpack.c.b16 %v4345, %v4341
  %v5426 = vpack.c.b16 %v4350, %v4346
  %v5427 = vpack.c.b16 %v4351, %v4347
  %v5428 = vpack.c.b16 %v4352, %v4348
  %v5429 = vpack.c.b16 %v4353, %v4349
  %v5430 = vpack.c.b16 %v4358, %v4354
  %v5431 = vpack.c.b16 %v4359, %v4355
  %v5432 = vpack.c.b16 %v4360, %v4356
  %v5433 = vpack.c.b16 %v4361, %v4357
  %v5434 = vpack.c.b16 %v4366, %v4362
  %v5435 = vpack.c.b16 %v4367, %v4363
  %v5436 = vpack.c.b16 %v4368, %v4364
  %v5437 = vpack.c.b16 %v4369, %v4365
  %v5438 = vpack.c.b16 %v4374, %v4370
  %v5439 = vpack.c.b16 %v4375, %v4371
  %v5440 = vpack.c.b16 %v4376, %v4372
  %v5441 = vpack.c.b16 %v4377, %v4373
  %v5442 = vpack.c.b16 %v4382, %v4378
  %v5443 = vpack.c.b16 %v4383, %v4379
  %v5444 = vpack.c.b16 %v4384, %v4380
  %v5445 = vpack.c.b16 %v4385, %v4381
  %v5446 = vpack.c.b16 %v4390, %v4386
  %v5447 = vpack.c.b16 %v4391, %v4387
  %v5448 = vpack.c.b16 %v4392, %v4388
  %v5449 = vpack.c.b16 %v4393, %v4389
  %v5450 = vpack.c.b16 %v4398, %v4394
  %v5451 = vpack.c.b16 %v4399, %v4395
  %v5452 = vpack.c.b16 %v4400, %v4396
  %v5453 = vpack.c.b16 %v4401, %v4397
  %v5454 = vpack.c.b16 %v4406, %v4402
  %v5455 = vpack.c.b16 %v4407, %v4403
  %v5456 = vpack.c.b16 %v4408, %v4404
  %v5457 = vpack.c.b16 %v4409, %v4405
  %v5458 = vpack.c.b16 %v4414, %v4410
  %v5459 = vpack.c.b16 %v4415, %v4411
  %v5460 = vpack.c.b16 %v4416, %v4412
  %v5461 = vpack.c.b16 %v4417, %v4413
  %v5462 = vpack.c.b16 %v4422, %v4418
  %v5463 = vpack.c.b16 %v4423, %v4419
  %v5464 = vpack.c.b16 %v4424, %v4420
  %v5465 = vpack.c.b16 %v4425, %v4421
  %v5466 = vpack.c.b16 %v4430, %v4426
  %v5467 = vpack.c.b16 %v4431, %v4427
  %v5468 = vpack.c.b16 %v4432, %v4428
  %v5469 = vpack.c.b16 %v4433, %v4429
  %v5470 = vpack.c.b16 %v4438, %v4434
  %v5471 = vpack.c.b16 %v4439, %v4435
  %v5472 = vpack.c.b16 %v4440, %v4436
  %v5473 = vpack.c.b16 %v4441, %v4437
  %v5474 = vpack.c.b16 %v4446, %v4442
  %v5475 = vpack.c.b16 %v4447, %v4443
  %v5476 = vpack.c.b16 %v4448, %v4444
  %v5477 = vpack.c.b16 %v4449, %v4445
  %v5478 = vpack.c.b16 %v4454, %v4450
  %v5479 = vpack.c.b16 %v4455, %v4451
  %v5480 = vpack.c.b16 %v4456, %v4452
  %v5481 = vpack.c.b16 %v4457, %v4453
  %6506 = vmatprep.subr.bf16.mxu0 %v4459
  %6507 = vmatpush1.bf16.msra.mxu0 %v4458
  %6508 = vmatprep.subr.bf16.mxu0 %v4463
  %6509 = vmatpush1.bf16.msra.mxu0 %v4462
  %6510 = vmatprep.subr.bf16.mxu0 %v4467
  %6511 = vmatpush1.bf16.msra.mxu0 %v4466
  %6512 = vmatprep.subr.bf16.mxu0 %v4471
  %6513 = vmatpush1.bf16.msra.mxu0 %v4470
  %6514 = vmatprep.subr.bf16.mxu0 %v4475
  %6515 = vmatpush1.bf16.msra.mxu0 %v4474
  %6516 = vmatprep.subr.bf16.mxu0 %v4479
  %6517 = vmatpush1.bf16.msra.mxu0 %v4478
  %6518 = vmatprep.subr.bf16.mxu0 %v4483
  %6519 = vmatpush1.bf16.msra.mxu0 %v4482
  %6520 = vmatprep.subr.bf16.mxu0 %v4487
  %6521 = vmatpush1.bf16.msra.mxu0 %v4486
  %6522 = vmatprep.subr.bf16.mxu0 %v4491
  %6523 = vmatpush1.bf16.msra.mxu0 %v4490
  %6524 = vmatprep.subr.bf16.mxu0 %v4495
  %6525 = vmatpush1.bf16.msra.mxu0 %v4494
  %6526 = vmatprep.subr.bf16.mxu0 %v4499
  %6527 = vmatpush1.bf16.msra.mxu0 %v4498
  %6528 = vmatprep.subr.bf16.mxu0 %v4503
  %6529 = vmatpush1.bf16.msra.mxu0 %v4502
  %6530 = vmatprep.subr.bf16.mxu0 %v4507
  %6531 = vmatpush1.bf16.msra.mxu0 %v4506
  %6532 = vmatprep.subr.bf16.mxu0 %v4511
  %6533 = vmatpush1.bf16.msra.mxu0 %v4510
  %6534 = vmatprep.subr.bf16.mxu0 %v4515
  %6535 = vmatpush1.bf16.msra.mxu0 %v4514
  %6536 = vmatprep.subr.bf16.mxu0 %v4519
  %6537 = vmatpush1.bf16.msra.mxu0 %v4518
  %6538 = vmatprep.mubr.bf16.mxu0 %v1259
  %6539 = vmatmul.mubr.bf16.gmra.mrb[0].mxu0 %v1258
  %v6540 = vpop.f32.mrb[0].mxu0
  %v6541 = vadd.f32 %v1097, %v6540
  %v6542 = vpop.f32.mrb[0].mxu0
  %v6543 = vadd.f32 %v1101, %v6542
  %v6544 = vpop.f32.mrb[0].mxu0
  %v6545 = vadd.f32 %v1097, %v6544
  %v6546 = vpop.f32.mrb[0].mxu0
  %v6547 = vadd.f32 %v1101, %v6546
  %6548 = vmatprep.mubr.bf16.mxu0 %v1291
  %6549 = vmatmul.mubr.bf16.gmra.mrb[0].mxu0 %v1290
  %v6550 = vpop.f32.mrb[0].mxu0
  %v6551 = vadd.f32 %v1097, %v6550
  %v6552 = vpop.f32.mrb[0].mxu0
  %v6553 = vadd.f32 %v1101, %v6552
  %v6554 = vpop.f32.mrb[0].mxu0
  %v6555 = vpop.f32.mrb[0].mxu0
  %6556 = vdwg.mxu0
  %6557 = vmatprep.subr.bf16.mxu0 %v4523
  %6558 = vmatpush1.bf16.msra.mxu0 %v4522
  %6559 = vmatprep.subr.bf16.mxu0 %v4527
  %6560 = vmatpush1.bf16.msra.mxu0 %v4526
  %6561 = vmatprep.subr.bf16.mxu0 %v4531
  %6562 = vmatpush1.bf16.msra.mxu0 %v4530
  %6563 = vmatprep.subr.bf16.mxu0 %v4535
  %6564 = vmatpush1.bf16.msra.mxu0 %v4534
  %6565 = vmatprep.subr.bf16.mxu0 %v4539
  %6566 = vmatpush1.bf16.msra.mxu0 %v4538
  %6567 = vmatprep.subr.bf16.mxu0 %v4543
  %6568 = vmatpush1.bf16.msra.mxu0 %v4542
  %6569 = vmatprep.subr.bf16.mxu0 %v4547
  %6570 = vmatpush1.bf16.msra.mxu0 %v4546
  %6571 = vmatprep.subr.bf16.mxu0 %v4551
  %6572 = vmatpush1.bf16.msra.mxu0 %v4550
  %6573 = vmatprep.subr.bf16.mxu0 %v4555
  %6574 = vmatpush1.bf16.msra.mxu0 %v4554
  %6575 = vmatprep.subr.bf16.mxu0 %v4559
  %6576 = vmatpush1.bf16.msra.mxu0 %v4558
  %6577 = vmatprep.subr.bf16.mxu0 %v4563
  %6578 = vmatpush1.bf16.msra.mxu0 %v4562
  %6579 = vmatprep.subr.bf16.mxu0 %v4567
  %6580 = vmatpush1.bf16.msra.mxu0 %v4566
  %6581 = vmatprep.subr.bf16.mxu0 %v4571
  %6582 = vmatpush1.bf16.msra.mxu0 %v4570
  %6583 = vmatprep.subr.bf16.mxu0 %v4575
  %6584 = vmatpush1.bf16.msra.mxu0 %v4574
  %6585 = vmatprep.subr.bf16.mxu0 %v4579
  %6586 = vmatpush1.bf16.msra.mxu0 %v4578
  %6587 = vmatprep.subr.bf16.mxu0 %v4583
  %6588 = vmatpush1.bf16.msra.mxu0 %v4582
  %6589 = vmatprep.mubr.bf16.mxu0 %v1261
  %6590 = vmatmul.mubr.bf16.gmra.mrb[0].mxu0 %v1260
  %v6591 = vpop.f32.mrb[0].mxu0
  %v6592 = vadd.f32 %v6541, %v6591
  %v6593 = vpop.f32.mrb[0].mxu0
  %v6594 = vadd.f32 %v6543, %v6593
  %v6595 = vpop.f32.mrb[0].mxu0
  %v6596 = vadd.f32 %v6545, %v6595
  %v6597 = vpop.f32.mrb[0].mxu0
  %v6598 = vadd.f32 %v6547, %v6597
  %6599 = vmatprep.mubr.bf16.mxu0 %v1293
  %6600 = vmatmul.mubr.bf16.gmra.mrb[0].mxu0 %v1292
  %v6601 = vpop.f32.mrb[0].mxu0
  %v6602 = vadd.f32 %v6551, %v6601
  %v6603 = vpop.f32.mrb[0].mxu0
  %v6604 = vadd.f32 %v6553, %v6603
  %v6605 = vpop.f32.mrb[0].mxu0
  %v6606 = vpop.f32.mrb[0].mxu0
  %6607 = vdwg.mxu0
  %6608 = vmatprep.subr.bf16.mxu0 %v4587
  %6609 = vmatpush1.bf16.msra.mxu0 %v4586
  %6610 = vmatprep.subr.bf16.mxu0 %v4591
  %6611 = vmatpush1.bf16.msra.mxu0 %v4590
  %6612 = vmatprep.subr.bf16.mxu0 %v4595
  %6613 = vmatpush1.bf16.msra.mxu0 %v4594
  %6614 = vmatprep.subr.bf16.mxu0 %v4599
  %6615 = vmatpush1.bf16.msra.mxu0 %v4598
  %6616 = vmatprep.subr.bf16.mxu0 %v4603
  %6617 = vmatpush1.bf16.msra.mxu0 %v4602
  %6618 = vmatprep.subr.bf16.mxu0 %v4607
  %6619 = vmatpush1.bf16.msra.mxu0 %v4606
  %6620 = vmatprep.subr.bf16.mxu0 %v4611
  %6621 = vmatpush1.bf16.msra.mxu0 %v4610
  %6622 = vmatprep.subr.bf16.mxu0 %v4615
  %6623 = vmatpush1.bf16.msra.mxu0 %v4614
  %6624 = vmatprep.subr.bf16.mxu0 %v4619
  %6625 = vmatpush1.bf16.msra.mxu0 %v4618
  %6626 = vmatprep.subr.bf16.mxu0 %v4623
  %6627 = vmatpush1.bf16.msra.mxu0 %v4622
  %6628 = vmatprep.subr.bf16.mxu0 %v4627
  %6629 = vmatpush1.bf16.msra.mxu0 %v4626
  %6630 = vmatprep.subr.bf16.mxu0 %v4631
  %6631 = vmatpush1.bf16.msra.mxu0 %v4630
  %6632 = vmatprep.subr.bf16.mxu0 %v4635
  %6633 = vmatpush1.bf16.msra.mxu0 %v4634
  %6634 = vmatprep.subr.bf16.mxu0 %v4639
  %6635 = vmatpush1.bf16.msra.mxu0 %v4638
  %6636 = vmatprep.subr.bf16.mxu0 %v4643
  %6637 = vmatpush1.bf16.msra.mxu0 %v4642
  %6638 = vmatprep.subr.bf16.mxu0 %v4647
  %6639 = vmatpush1.bf16.msra.mxu0 %v4646
  %6640 = vmatprep.mubr.bf16.mxu0 %v1263
  %6641 = vmatmul.mubr.bf16.gmra.mrb[0].mxu0 %v1262
  %v6642 = vpop.f32.mrb[0].mxu0
  %v6643 = vadd.f32 %v6592, %v6642
  %v6644 = vpop.f32.mrb[0].mxu0
  %v6645 = vadd.f32 %v6594, %v6644
  %v6646 = vpop.f32.mrb[0].mxu0
  %v6647 = vadd.f32 %v6596, %v6646
  %v6648 = vpop.f32.mrb[0].mxu0
  %v6649 = vadd.f32 %v6598, %v6648
  %6650 = vmatprep.mubr.bf16.mxu0 %v1295
  %6651 = vmatmul.mubr.bf16.gmra.mrb[0].mxu0 %v1294
  %v6652 = vpop.f32.mrb[0].mxu0
  %v6653 = vadd.f32 %v6602, %v6652
  %v6654 = vpop.f32.mrb[0].mxu0
  %v6655 = vadd.f32 %v6604, %v6654
  %v6656 = vpop.f32.mrb[0].mxu0
  %v6657 = vpop.f32.mrb[0].mxu0
  %6658 = vdwg.mxu0
  %6659 = vmatprep.subr.bf16.mxu0 %v4651
  %6660 = vmatpush1.bf16.msra.mxu0 %v4650
  %6661 = vmatprep.subr.bf16.mxu0 %v4655
  %6662 = vmatpush1.bf16.msra.mxu0 %v4654
  %6663 = vmatprep.subr.bf16.mxu0 %v4659
  %6664 = vmatpush1.bf16.msra.mxu0 %v4658
  %6665 = vmatprep.subr.bf16.mxu0 %v4663
  %6666 = vmatpush1.bf16.msra.mxu0 %v4662
  %6667 = vmatprep.subr.bf16.mxu0 %v4667
  %6668 = vmatpush1.bf16.msra.mxu0 %v4666
  %6669 = vmatprep.subr.bf16.mxu0 %v4671
  %6670 = vmatpush1.bf16.msra.mxu0 %v4670
  %6671 = vmatprep.subr.bf16.mxu0 %v4675
  %6672 = vmatpush1.bf16.msra.mxu0 %v4674
  %6673 = vmatprep.subr.bf16.mxu0 %v4679
  %6674 = vmatpush1.bf16.msra.mxu0 %v4678
  %6675 = vmatprep.subr.bf16.mxu0 %v4683
  %6676 = vmatpush1.bf16.msra.mxu0 %v4682
  %6677 = vmatprep.subr.bf16.mxu0 %v4687
  %6678 = vmatpush1.bf16.msra.mxu0 %v4686
  %6679 = vmatprep.subr.bf16.mxu0 %v4691
  %6680 = vmatpush1.bf16.msra.mxu0 %v4690
  %6681 = vmatprep.subr.bf16.mxu0 %v4695
  %6682 = vmatpush1.bf16.msra.mxu0 %v4694
  %6683 = vmatprep.subr.bf16.mxu0 %v4699
  %6684 = vmatpush1.bf16.msra.mxu0 %v4698
  %6685 = vmatprep.subr.bf16.mxu0 %v4703
  %6686 = vmatpush1.bf16.msra.mxu0 %v4702
  %6687 = vmatprep.subr.bf16.mxu0 %v4707
  %6688 = vmatpush1.bf16.msra.mxu0 %v4706
  %6689 = vmatprep.subr.bf16.mxu0 %v4711
  %6690 = vmatpush1.bf16.msra.mxu0 %v4710
  %6691 = vmatprep.mubr.bf16.mxu0 %v1265
  %6692 = vmatmul.mubr.bf16.gmra.mrb[0].mxu0 %v1264
  %v6693 = vpop.f32.mrb[0].mxu0
  %v6694 = vadd.f32 %v6643, %v6693
  %v6695 = vpop.f32.mrb[0].mxu0
  %v6696 = vadd.f32 %v6645, %v6695
  %v6697 = vpop.f32.mrb[0].mxu0
  %v6698 = vadd.f32 %v6647, %v6697
  %v6699 = vpop.f32.mrb[0].mxu0
  %v6700 = vadd.f32 %v6649, %v6699
  %6701 = vmatprep.mubr.bf16.mxu0 %v1297
  %6702 = vmatmul.mubr.bf16.gmra.mrb[0].mxu0 %v1296
  %v6703 = vpop.f32.mrb[0].mxu0
  %v6704 = vadd.f32 %v6653, %v6703
  %v6705 = vpop.f32.mrb[0].mxu0
  %v6706 = vadd.f32 %v6655, %v6705
  %v6707 = vpop.f32.mrb[0].mxu0
  %v6708 = vpop.f32.mrb[0].mxu0
  %6709 = vdwg.mxu0
  %6710 = vmatprep.subr.bf16.mxu0 %v4715
  %6711 = vmatpush1.bf16.msra.mxu0 %v4714
  %6712 = vmatprep.subr.bf16.mxu0 %v4719
  %6713 = vmatpush1.bf16.msra.mxu0 %v4718
  %6714 = vmatprep.subr.bf16.mxu0 %v4723
  %6715 = vmatpush1.bf16.msra.mxu0 %v4722
  %6716 = vmatprep.subr.bf16.mxu0 %v4727
  %6717 = vmatpush1.bf16.msra.mxu0 %v4726
  %6718 = vmatprep.subr.bf16.mxu0 %v4731
  %6719 = vmatpush1.bf16.msra.mxu0 %v4730
  %6720 = vmatprep.subr.bf16.mxu0 %v4735
  %6721 = vmatpush1.bf16.msra.mxu0 %v4734
  %6722 = vmatprep.subr.bf16.mxu0 %v4739
  %6723 = vmatpush1.bf16.msra.mxu0 %v4738
  %6724 = vmatprep.subr.bf16.mxu0 %v4743
  %6725 = vmatpush1.bf16.msra.mxu0 %v4742
  %6726 = vmatprep.subr.bf16.mxu0 %v4747
  %6727 = vmatpush1.bf16.msra.mxu0 %v4746
  %6728 = vmatprep.subr.bf16.mxu0 %v4751
  %6729 = vmatpush1.bf16.msra.mxu0 %v4750
  %6730 = vmatprep.subr.bf16.mxu0 %v4755
  %6731 = vmatpush1.bf16.msra.mxu0 %v4754
  %6732 = vmatprep.subr.bf16.mxu0 %v4759
  %6733 = vmatpush1.bf16.msra.mxu0 %v4758
  %6734 = vmatprep.subr.bf16.mxu0 %v4763
  %6735 = vmatpush1.bf16.msra.mxu0 %v4762
  %6736 = vmatprep.subr.bf16.mxu0 %v4767
  %6737 = vmatpush1.bf16.msra.mxu0 %v4766
  %6738 = vmatprep.subr.bf16.mxu0 %v4771
  %6739 = vmatpush1.bf16.msra.mxu0 %v4770
  %6740 = vmatprep.subr.bf16.mxu0 %v4775
  %6741 = vmatpush1.bf16.msra.mxu0 %v4774
  %6742 = vmatprep.mubr.bf16.mxu0 %v1267
  %6743 = vmatmul.mubr.bf16.gmra.mrb[0].mxu0 %v1266
  %v6744 = vpop.f32.mrb[0].mxu0
  %v6745 = vadd.f32 %v6694, %v6744
  %v6746 = vpop.f32.mrb[0].mxu0
  %v6747 = vadd.f32 %v6696, %v6746
  %v6748 = vpop.f32.mrb[0].mxu0
  %v6749 = vadd.f32 %v6698, %v6748
  %v6750 = vpop.f32.mrb[0].mxu0
  %v6751 = vadd.f32 %v6700, %v6750
  %6752 = vmatprep.mubr.bf16.mxu0 %v1299
  %6753 = vmatmul.mubr.bf16.gmra.mrb[0].mxu0 %v1298
  %v6754 = vpop.f32.mrb[0].mxu0
  %v6755 = vadd.f32 %v6704, %v6754
  %v6756 = vpop.f32.mrb[0].mxu0
  %v6757 = vadd.f32 %v6706, %v6756
  %v6758 = vpop.f32.mrb[0].mxu0
  %v6759 = vpop.f32.mrb[0].mxu0
  %6760 = vdwg.mxu0
  %6761 = vmatprep.subr.bf16.mxu0 %v4779
  %6762 = vmatpush1.bf16.msra.mxu0 %v4778
  %6763 = vmatprep.subr.bf16.mxu0 %v4783
  %6764 = vmatpush1.bf16.msra.mxu0 %v4782
  %6765 = vmatprep.subr.bf16.mxu0 %v4787
  %6766 = vmatpush1.bf16.msra.mxu0 %v4786
  %6767 = vmatprep.subr.bf16.mxu0 %v4791
  %6768 = vmatpush1.bf16.msra.mxu0 %v4790
  %6769 = vmatprep.subr.bf16.mxu0 %v4795
  %6770 = vmatpush1.bf16.msra.mxu0 %v4794
  %6771 = vmatprep.subr.bf16.mxu0 %v4799
  %6772 = vmatpush1.bf16.msra.mxu0 %v4798
  %6773 = vmatprep.subr.bf16.mxu0 %v4803
  %6774 = vmatpush1.bf16.msra.mxu0 %v4802
  %6775 = vmatprep.subr.bf16.mxu0 %v4807
  %6776 = vmatpush1.bf16.msra.mxu0 %v4806
  %6777 = vmatprep.subr.bf16.mxu0 %v4811
  %6778 = vmatpush1.bf16.msra.mxu0 %v4810
  %6779 = vmatprep.subr.bf16.mxu0 %v4815
  %6780 = vmatpush1.bf16.msra.mxu0 %v4814
  %6781 = vmatprep.subr.bf16.mxu0 %v4819
  %6782 = vmatpush1.bf16.msra.mxu0 %v4818
  %6783 = vmatprep.subr.bf16.mxu0 %v4823
  %6784 = vmatpush1.bf16.msra.mxu0 %v4822
  %6785 = vmatprep.subr.bf16.mxu0 %v4827
  %6786 = vmatpush1.bf16.msra.mxu0 %v4826
  %6787 = vmatprep.subr.bf16.mxu0 %v4831
  %6788 = vmatpush1.bf16.msra.mxu0 %v4830
  %6789 = vmatprep.subr.bf16.mxu0 %v4835
  %6790 = vmatpush1.bf16.msra.mxu0 %v4834
  %6791 = vmatprep.subr.bf16.mxu0 %v4839
  %6792 = vmatpush1.bf16.msra.mxu0 %v4838
  %6793 = vmatprep.mubr.bf16.mxu0 %v1269
  %6794 = vmatmul.mubr.bf16.gmra.mrb[0].mxu0 %v1268
  %v6795 = vpop.f32.mrb[0].mxu0
  %v6796 = vadd.f32 %v6745, %v6795
  %v6797 = vpop.f32.mrb[0].mxu0
  %v6798 = vadd.f32 %v6747, %v6797
  %v6799 = vpop.f32.mrb[0].mxu0
  %v6800 = vadd.f32 %v6749, %v6799
  %v6801 = vpop.f32.mrb[0].mxu0
  %v6802 = vadd.f32 %v6751, %v6801
  %6803 = vmatprep.mubr.bf16.mxu0 %v1301
  %6804 = vmatmul.mubr.bf16.gmra.mrb[0].mxu0 %v1300
  %v6805 = vpop.f32.mrb[0].mxu0
  %v6806 = vadd.f32 %v6755, %v6805
  %v6807 = vpop.f32.mrb[0].mxu0
  %v6808 = vadd.f32 %v6757, %v6807
  %v6809 = vpop.f32.mrb[0].mxu0
  %v6810 = vpop.f32.mrb[0].mxu0
  %6811 = vdwg.mxu0
  %6812 = vmatprep.subr.bf16.mxu0 %v4843
  %6813 = vmatpush1.bf16.msra.mxu0 %v4842
  %6814 = vmatprep.subr.bf16.mxu0 %v4847
  %6815 = vmatpush1.bf16.msra.mxu0 %v4846
  %6816 = vmatprep.subr.bf16.mxu0 %v4851
  %6817 = vmatpush1.bf16.msra.mxu0 %v4850
  %6818 = vmatprep.subr.bf16.mxu0 %v4855
  %6819 = vmatpush1.bf16.msra.mxu0 %v4854
  %6820 = vmatprep.subr.bf16.mxu0 %v4859
  %6821 = vmatpush1.bf16.msra.mxu0 %v4858
  %6822 = vmatprep.subr.bf16.mxu0 %v4863
  %6823 = vmatpush1.bf16.msra.mxu0 %v4862
  %6824 = vmatprep.subr.bf16.mxu0 %v4867
  %6825 = vmatpush1.bf16.msra.mxu0 %v4866
  %6826 = vmatprep.subr.bf16.mxu0 %v4871
  %6827 = vmatpush1.bf16.msra.mxu0 %v4870
  %6828 = vmatprep.subr.bf16.mxu0 %v4875
  %6829 = vmatpush1.bf16.msra.mxu0 %v4874
  %6830 = vmatprep.subr.bf16.mxu0 %v4879
  %6831 = vmatpush1.bf16.msra.mxu0 %v4878
  %6832 = vmatprep.subr.bf16.mxu0 %v4883
  %6833 = vmatpush1.bf16.msra.mxu0 %v4882
  %6834 = vmatprep.subr.bf16.mxu0 %v4887
  %6835 = vmatpush1.bf16.msra.mxu0 %v4886
  %6836 = vmatprep.subr.bf16.mxu0 %v4891
  %6837 = vmatpush1.bf16.msra.mxu0 %v4890
  %6838 = vmatprep.subr.bf16.mxu0 %v4895
  %6839 = vmatpush1.bf16.msra.mxu0 %v4894
  %6840 = vmatprep.subr.bf16.mxu0 %v4899
  %6841 = vmatpush1.bf16.msra.mxu0 %v4898
  %6842 = vmatprep.subr.bf16.mxu0 %v4903
  %6843 = vmatpush1.bf16.msra.mxu0 %v4902
  %6844 = vmatprep.mubr.bf16.mxu0 %v1271
  %6845 = vmatmul.mubr.bf16.gmra.mrb[0].mxu0 %v1270
  %v6846 = vpop.f32.mrb[0].mxu0
  %v6847 = vadd.f32 %v6796, %v6846
  %v6848 = vpop.f32.mrb[0].mxu0
  %v6849 = vadd.f32 %v6798, %v6848
  %v6850 = vpop.f32.mrb[0].mxu0
  %v6851 = vadd.f32 %v6800, %v6850
  %v6852 = vpop.f32.mrb[0].mxu0
  %v6853 = vadd.f32 %v6802, %v6852
  %6854 = vmatprep.mubr.bf16.mxu0 %v1303
  %6855 = vmatmul.mubr.bf16.gmra.mrb[0].mxu0 %v1302
  %v6856 = vpop.f32.mrb[0].mxu0
  %v6857 = vadd.f32 %v6806, %v6856
  %v6858 = vpop.f32.mrb[0].mxu0
  %v6859 = vadd.f32 %v6808, %v6858
  %v6860 = vpop.f32.mrb[0].mxu0
  %v6861 = vpop.f32.mrb[0].mxu0
  %6862 = vdwg.mxu0
  %6863 = vmatprep.subr.bf16.mxu0 %v4907
  %6864 = vmatpush1.bf16.msra.mxu0 %v4906
  %6865 = vmatprep.subr.bf16.mxu0 %v4911
  %6866 = vmatpush1.bf16.msra.mxu0 %v4910
  %6867 = vmatprep.subr.bf16.mxu0 %v4915
  %6868 = vmatpush1.bf16.msra.mxu0 %v4914
  %6869 = vmatprep.subr.bf16.mxu0 %v4919
  %6870 = vmatpush1.bf16.msra.mxu0 %v4918
  %6871 = vmatprep.subr.bf16.mxu0 %v4923
  %6872 = vmatpush1.bf16.msra.mxu0 %v4922
  %6873 = vmatprep.subr.bf16.mxu0 %v4927
  %6874 = vmatpush1.bf16.msra.mxu0 %v4926
  %6875 = vmatprep.subr.bf16.mxu0 %v4931
  %6876 = vmatpush1.bf16.msra.mxu0 %v4930
  %6877 = vmatprep.subr.bf16.mxu0 %v4935
  %6878 = vmatpush1.bf16.msra.mxu0 %v4934
  %6879 = vmatprep.subr.bf16.mxu0 %v4939
  %6880 = vmatpush1.bf16.msra.mxu0 %v4938
  %6881 = vmatprep.subr.bf16.mxu0 %v4943
  %6882 = vmatpush1.bf16.msra.mxu0 %v4942
  %6883 = vmatprep.subr.bf16.mxu0 %v4947
  %6884 = vmatpush1.bf16.msra.mxu0 %v4946
  %6885 = vmatprep.subr.bf16.mxu0 %v4951
  %6886 = vmatpush1.bf16.msra.mxu0 %v4950
  %6887 = vmatprep.subr.bf16.mxu0 %v4955
  %6888 = vmatpush1.bf16.msra.mxu0 %v4954
  %6889 = vmatprep.subr.bf16.mxu0 %v4959
  %6890 = vmatpush1.bf16.msra.mxu0 %v4958
  %6891 = vmatprep.subr.bf16.mxu0 %v4963
  %6892 = vmatpush1.bf16.msra.mxu0 %v4962
  %6893 = vmatprep.subr.bf16.mxu0 %v4967
  %6894 = vmatpush1.bf16.msra.mxu0 %v4966
  %6895 = vmatprep.mubr.bf16.mxu0 %v1273
  %6896 = vmatmul.mubr.bf16.gmra.mrb[0].mxu0 %v1272
  %v6897 = vpop.f32.mrb[0].mxu0
  %v6898 = vadd.f32 %v6847, %v6897
  %v6899 = vpop.f32.mrb[0].mxu0
  %v6900 = vadd.f32 %v6849, %v6899
  %v6901 = vpop.f32.mrb[0].mxu0
  %v6902 = vadd.f32 %v6851, %v6901
  %v6903 = vpop.f32.mrb[0].mxu0
  %v6904 = vadd.f32 %v6853, %v6903
  %6905 = vmatprep.mubr.bf16.mxu0 %v1305
  %6906 = vmatmul.mubr.bf16.gmra.mrb[0].mxu0 %v1304
  %v6907 = vpop.f32.mrb[0].mxu0
  %v6908 = vadd.f32 %v6857, %v6907
  %v6909 = vpop.f32.mrb[0].mxu0
  %v6910 = vadd.f32 %v6859, %v6909
  %v6911 = vpop.f32.mrb[0].mxu0
  %v6912 = vpop.f32.mrb[0].mxu0
  %6913 = vdwg.mxu0
  %6914 = vmatprep.subr.bf16.mxu0 %v4971
  %6915 = vmatpush1.bf16.msra.mxu0 %v4970
  %6916 = vmatprep.subr.bf16.mxu0 %v4975
  %6917 = vmatpush1.bf16.msra.mxu0 %v4974
  %6918 = vmatprep.subr.bf16.mxu0 %v4979
  %6919 = vmatpush1.bf16.msra.mxu0 %v4978
  %6920 = vmatprep.subr.bf16.mxu0 %v4983
  %6921 = vmatpush1.bf16.msra.mxu0 %v4982
  %6922 = vmatprep.subr.bf16.mxu0 %v4987
  %6923 = vmatpush1.bf16.msra.mxu0 %v4986
  %6924 = vmatprep.subr.bf16.mxu0 %v4991
  %6925 = vmatpush1.bf16.msra.mxu0 %v4990
  %6926 = vmatprep.subr.bf16.mxu0 %v4995
  %6927 = vmatpush1.bf16.msra.mxu0 %v4994
  %6928 = vmatprep.subr.bf16.mxu0 %v4999
  %6929 = vmatpush1.bf16.msra.mxu0 %v4998
  %6930 = vmatprep.subr.bf16.mxu0 %v5003
  %6931 = vmatpush1.bf16.msra.mxu0 %v5002
  %6932 = vmatprep.subr.bf16.mxu0 %v5007
  %6933 = vmatpush1.bf16.msra.mxu0 %v5006
  %6934 = vmatprep.subr.bf16.mxu0 %v5011
  %6935 = vmatpush1.bf16.msra.mxu0 %v5010
  %6936 = vmatprep.subr.bf16.mxu0 %v5015
  %6937 = vmatpush1.bf16.msra.mxu0 %v5014
  %6938 = vmatprep.subr.bf16.mxu0 %v5019
  %6939 = vmatpush1.bf16.msra.mxu0 %v5018
  %6940 = vmatprep.subr.bf16.mxu0 %v5023
  %6941 = vmatpush1.bf16.msra.mxu0 %v5022
  %6942 = vmatprep.subr.bf16.mxu0 %v5027
  %6943 = vmatpush1.bf16.msra.mxu0 %v5026
  %6944 = vmatprep.subr.bf16.mxu0 %v5031
  %6945 = vmatpush1.bf16.msra.mxu0 %v5030
  %6946 = vmatprep.mubr.bf16.mxu0 %v1275
  %6947 = vmatmul.mubr.bf16.gmra.mrb[0].mxu0 %v1274
  %v6948 = vpop.f32.mrb[0].mxu0
  %v6949 = vadd.f32 %v6898, %v6948
  %v6950 = vpop.f32.mrb[0].mxu0
  %v6951 = vadd.f32 %v6900, %v6950
  %v6952 = vpop.f32.mrb[0].mxu0
  %v6953 = vadd.f32 %v6902, %v6952
  %v6954 = vpop.f32.mrb[0].mxu0
  %v6955 = vadd.f32 %v6904, %v6954
  %6956 = vmatprep.mubr.bf16.mxu0 %v1307
  %6957 = vmatmul.mubr.bf16.gmra.mrb[0].mxu0 %v1306
  %v6958 = vpop.f32.mrb[0].mxu0
  %v6959 = vadd.f32 %v6908, %v6958
  %v6960 = vpop.f32.mrb[0].mxu0
  %v6961 = vadd.f32 %v6910, %v6960
  %v6962 = vpop.f32.mrb[0].mxu0
  %v6963 = vpop.f32.mrb[0].mxu0
  %6964 = vdwg.mxu0
  %6965 = vmatprep.subr.bf16.mxu0 %v5035
  %6966 = vmatpush1.bf16.msra.mxu0 %v5034
  %6967 = vmatprep.subr.bf16.mxu0 %v5039
  %6968 = vmatpush1.bf16.msra.mxu0 %v5038
  %6969 = vmatprep.subr.bf16.mxu0 %v5043
  %6970 = vmatpush1.bf16.msra.mxu0 %v5042
  %6971 = vmatprep.subr.bf16.mxu0 %v5047
  %6972 = vmatpush1.bf16.msra.mxu0 %v5046
  %6973 = vmatprep.subr.bf16.mxu0 %v5051
  %6974 = vmatpush1.bf16.msra.mxu0 %v5050
  %6975 = vmatprep.subr.bf16.mxu0 %v5055
  %6976 = vmatpush1.bf16.msra.mxu0 %v5054
  %6977 = vmatprep.subr.bf16.mxu0 %v5059
  %6978 = vmatpush1.bf16.msra.mxu0 %v5058
  %6979 = vmatprep.subr.bf16.mxu0 %v5063
  %6980 = vmatpush1.bf16.msra.mxu0 %v5062
  %6981 = vmatprep.subr.bf16.mxu0 %v5067
  %6982 = vmatpush1.bf16.msra.mxu0 %v5066
  %6983 = vmatprep.subr.bf16.mxu0 %v5071
  %6984 = vmatpush1.bf16.msra.mxu0 %v5070
  %6985 = vmatprep.subr.bf16.mxu0 %v5075
  %6986 = vmatpush1.bf16.msra.mxu0 %v5074
  %6987 = vmatprep.subr.bf16.mxu0 %v5079
  %6988 = vmatpush1.bf16.msra.mxu0 %v5078
  %6989 = vmatprep.subr.bf16.mxu0 %v5083
  %6990 = vmatpush1.bf16.msra.mxu0 %v5082
  %6991 = vmatprep.subr.bf16.mxu0 %v5087
  %6992 = vmatpush1.bf16.msra.mxu0 %v5086
  %6993 = vmatprep.subr.bf16.mxu0 %v5091
  %6994 = vmatpush1.bf16.msra.mxu0 %v5090
  %6995 = vmatprep.subr.bf16.mxu0 %v5095
  %6996 = vmatpush1.bf16.msra.mxu0 %v5094
  %6997 = vmatprep.mubr.bf16.mxu0 %v1277
  %6998 = vmatmul.mubr.bf16.gmra.mrb[0].mxu0 %v1276
  %v6999 = vpop.f32.mrb[0].mxu0
  %v7000 = vadd.f32 %v6949, %v6999
  %v7001 = vpop.f32.mrb[0].mxu0
  %v7002 = vadd.f32 %v6951, %v7001
  %v7003 = vpop.f32.mrb[0].mxu0
  %v7004 = vadd.f32 %v6953, %v7003
  %v7005 = vpop.f32.mrb[0].mxu0
  %v7006 = vadd.f32 %v6955, %v7005
  %7007 = vmatprep.mubr.bf16.mxu0 %v1309
  %7008 = vmatmul.mubr.bf16.gmra.mrb[0].mxu0 %v1308
  %v7009 = vpop.f32.mrb[0].mxu0
  %v7010 = vadd.f32 %v6959, %v7009
  %v7011 = vpop.f32.mrb[0].mxu0
  %v7012 = vadd.f32 %v6961, %v7011
  %v7013 = vpop.f32.mrb[0].mxu0
  %v7014 = vpop.f32.mrb[0].mxu0
  %7015 = vdwg.mxu0
  %7016 = vmatprep.subr.bf16.mxu0 %v5099
  %7017 = vmatpush1.bf16.msra.mxu0 %v5098
  %7018 = vmatprep.subr.bf16.mxu0 %v5103
  %7019 = vmatpush1.bf16.msra.mxu0 %v5102
  %7020 = vmatprep.subr.bf16.mxu0 %v5107
  %7021 = vmatpush1.bf16.msra.mxu0 %v5106
  %7022 = vmatprep.subr.bf16.mxu0 %v5111
  %7023 = vmatpush1.bf16.msra.mxu0 %v5110
  %7024 = vmatprep.subr.bf16.mxu0 %v5115
  %7025 = vmatpush1.bf16.msra.mxu0 %v5114
  %7026 = vmatprep.subr.bf16.mxu0 %v5119
  %7027 = vmatpush1.bf16.msra.mxu0 %v5118
  %7028 = vmatprep.subr.bf16.mxu0 %v5123
  %7029 = vmatpush1.bf16.msra.mxu0 %v5122
  %7030 = vmatprep.subr.bf16.mxu0 %v5127
  %7031 = vmatpush1.bf16.msra.mxu0 %v5126
  %7032 = vmatprep.subr.bf16.mxu0 %v5131
  %7033 = vmatpush1.bf16.msra.mxu0 %v5130
  %7034 = vmatprep.subr.bf16.mxu0 %v5135
  %7035 = vmatpush1.bf16.msra.mxu0 %v5134
  %7036 = vmatprep.subr.bf16.mxu0 %v5139
  %7037 = vmatpush1.bf16.msra.mxu0 %v5138
  %7038 = vmatprep.subr.bf16.mxu0 %v5143
  %7039 = vmatpush1.bf16.msra.mxu0 %v5142
  %7040 = vmatprep.subr.bf16.mxu0 %v5147
  %7041 = vmatpush1.bf16.msra.mxu0 %v5146
  %7042 = vmatprep.subr.bf16.mxu0 %v5151
  %7043 = vmatpush1.bf16.msra.mxu0 %v5150
  %7044 = vmatprep.subr.bf16.mxu0 %v5155
  %7045 = vmatpush1.bf16.msra.mxu0 %v5154
  %7046 = vmatprep.subr.bf16.mxu0 %v5159
  %7047 = vmatpush1.bf16.msra.mxu0 %v5158
  %7048 = vmatprep.mubr.bf16.mxu0 %v1279
  %7049 = vmatmul.mubr.bf16.gmra.mrb[0].mxu0 %v1278
  %v7050 = vpop.f32.mrb[0].mxu0
  %v7051 = vadd.f32 %v7000, %v7050
  %v7052 = vpop.f32.mrb[0].mxu0
  %v7053 = vadd.f32 %v7002, %v7052
  %v7054 = vpop.f32.mrb[0].mxu0
  %v7055 = vadd.f32 %v7004, %v7054
  %v7056 = vpop.f32.mrb[0].mxu0
  %v7057 = vadd.f32 %v7006, %v7056
  %7058 = vmatprep.mubr.bf16.mxu0 %v1311
  %7059 = vmatmul.mubr.bf16.gmra.mrb[0].mxu0 %v1310
  %v7060 = vpop.f32.mrb[0].mxu0
  %v7061 = vadd.f32 %v7010, %v7060
  %v7062 = vpop.f32.mrb[0].mxu0
  %v7063 = vadd.f32 %v7012, %v7062
  %v7064 = vpop.f32.mrb[0].mxu0
  %v7065 = vpop.f32.mrb[0].mxu0
  %7066 = vdwg.mxu0
  %7067 = vmatprep.subr.bf16.mxu0 %v5163
  %7068 = vmatpush1.bf16.msra.mxu0 %v5162
  %7069 = vmatprep.subr.bf16.mxu0 %v5167
  %7070 = vmatpush1.bf16.msra.mxu0 %v5166
  %7071 = vmatprep.subr.bf16.mxu0 %v5171
  %7072 = vmatpush1.bf16.msra.mxu0 %v5170
  %7073 = vmatprep.subr.bf16.mxu0 %v5175
  %7074 = vmatpush1.bf16.msra.mxu0 %v5174
  %7075 = vmatprep.subr.bf16.mxu0 %v5179
  %7076 = vmatpush1.bf16.msra.mxu0 %v5178
  %7077 = vmatprep.subr.bf16.mxu0 %v5183
  %7078 = vmatpush1.bf16.msra.mxu0 %v5182
  %7079 = vmatprep.subr.bf16.mxu0 %v5187
  %7080 = vmatpush1.bf16.msra.mxu0 %v5186
  %7081 = vmatprep.subr.bf16.mxu0 %v5191
  %7082 = vmatpush1.bf16.msra.mxu0 %v5190
  %7083 = vmatprep.subr.bf16.mxu0 %v5195
  %7084 = vmatpush1.bf16.msra.mxu0 %v5194
  %7085 = vmatprep.subr.bf16.mxu0 %v5199
  %7086 = vmatpush1.bf16.msra.mxu0 %v5198
  %7087 = vmatprep.subr.bf16.mxu0 %v5203
  %7088 = vmatpush1.bf16.msra.mxu0 %v5202
  %7089 = vmatprep.subr.bf16.mxu0 %v5207
  %7090 = vmatpush1.bf16.msra.mxu0 %v5206
  %7091 = vmatprep.subr.bf16.mxu0 %v5211
  %7092 = vmatpush1.bf16.msra.mxu0 %v5210
  %7093 = vmatprep.subr.bf16.mxu0 %v5215
  %7094 = vmatpush1.bf16.msra.mxu0 %v5214
  %7095 = vmatprep.subr.bf16.mxu0 %v5219
  %7096 = vmatpush1.bf16.msra.mxu0 %v5218
  %7097 = vmatprep.subr.bf16.mxu0 %v5223
  %7098 = vmatpush1.bf16.msra.mxu0 %v5222
  %7099 = vmatprep.mubr.bf16.mxu0 %v1281
  %7100 = vmatmul.mubr.bf16.gmra.mrb[0].mxu0 %v1280
  %v7101 = vpop.f32.mrb[0].mxu0
  %v7102 = vadd.f32 %v7051, %v7101
  %v7103 = vpop.f32.mrb[0].mxu0
  %v7104 = vadd.f32 %v7053, %v7103
  %v7105 = vpop.f32.mrb[0].mxu0
  %v7106 = vadd.f32 %v7055, %v7105
  %v7107 = vpop.f32.mrb[0].mxu0
  %v7108 = vadd.f32 %v7057, %v7107
  %7109 = vmatprep.mubr.bf16.mxu0 %v1313
  %7110 = vmatmul.mubr.bf16.gmra.mrb[0].mxu0 %v1312
  %v7111 = vpop.f32.mrb[0].mxu0
  %v7112 = vadd.f32 %v7061, %v7111
  %v7113 = vpop.f32.mrb[0].mxu0
  %v7114 = vadd.f32 %v7063, %v7113
  %v7115 = vpop.f32.mrb[0].mxu0
  %v7116 = vpop.f32.mrb[0].mxu0
  %7117 = vdwg.mxu0
  %7118 = vmatprep.subr.bf16.mxu0 %v5227
  %7119 = vmatpush1.bf16.msra.mxu0 %v5226
  %7120 = vmatprep.subr.bf16.mxu0 %v5231
  %7121 = vmatpush1.bf16.msra.mxu0 %v5230
  %7122 = vmatprep.subr.bf16.mxu0 %v5235
  %7123 = vmatpush1.bf16.msra.mxu0 %v5234
  %7124 = vmatprep.subr.bf16.mxu0 %v5239
  %7125 = vmatpush1.bf16.msra.mxu0 %v5238
  %7126 = vmatprep.subr.bf16.mxu0 %v5243
  %7127 = vmatpush1.bf16.msra.mxu0 %v5242
  %7128 = vmatprep.subr.bf16.mxu0 %v5247
  %7129 = vmatpush1.bf16.msra.mxu0 %v5246
  %7130 = vmatprep.subr.bf16.mxu0 %v5251
  %7131 = vmatpush1.bf16.msra.mxu0 %v5250
  %7132 = vmatprep.subr.bf16.mxu0 %v5255
  %7133 = vmatpush1.bf16.msra.mxu0 %v5254
  %7134 = vmatprep.subr.bf16.mxu0 %v5259
  %7135 = vmatpush1.bf16.msra.mxu0 %v5258
  %7136 = vmatprep.subr.bf16.mxu0 %v5263
  %7137 = vmatpush1.bf16.msra.mxu0 %v5262
  %7138 = vmatprep.subr.bf16.mxu0 %v5267
  %7139 = vmatpush1.bf16.msra.mxu0 %v5266
  %7140 = vmatprep.subr.bf16.mxu0 %v5271
  %7141 = vmatpush1.bf16.msra.mxu0 %v5270
  %7142 = vmatprep.subr.bf16.mxu0 %v5275
  %7143 = vmatpush1.bf16.msra.mxu0 %v5274
  %7144 = vmatprep.subr.bf16.mxu0 %v5279
  %7145 = vmatpush1.bf16.msra.mxu0 %v5278
  %7146 = vmatprep.subr.bf16.mxu0 %v5283
  %7147 = vmatpush1.bf16.msra.mxu0 %v5282
  %7148 = vmatprep.subr.bf16.mxu0 %v5287
  %7149 = vmatpush1.bf16.msra.mxu0 %v5286
  %7150 = vmatprep.mubr.bf16.mxu0 %v1283
  %7151 = vmatmul.mubr.bf16.gmra.mrb[0].mxu0 %v1282
  %v7152 = vpop.f32.mrb[0].mxu0
  %v7153 = vadd.f32 %v7102, %v7152
  %v7154 = vpop.f32.mrb[0].mxu0
  %v7155 = vadd.f32 %v7104, %v7154
  %v7156 = vpop.f32.mrb[0].mxu0
  %v7157 = vadd.f32 %v7106, %v7156
  %v7158 = vpop.f32.mrb[0].mxu0
  %v7159 = vadd.f32 %v7108, %v7158
  %7160 = vmatprep.mubr.bf16.mxu0 %v1315
  %7161 = vmatmul.mubr.bf16.gmra.mrb[0].mxu0 %v1314
  %v7162 = vpop.f32.mrb[0].mxu0
  %v7163 = vadd.f32 %v7112, %v7162
  %v7164 = vpop.f32.mrb[0].mxu0
  %v7165 = vadd.f32 %v7114, %v7164
  %v7166 = vpop.f32.mrb[0].mxu0
  %v7167 = vpop.f32.mrb[0].mxu0
  %7168 = vdwg.mxu0
  %7169 = vmatprep.subr.bf16.mxu0 %v5291
  %7170 = vmatpush1.bf16.msra.mxu0 %v5290
  %7171 = vmatprep.subr.bf16.mxu0 %v5295
  %7172 = vmatpush1.bf16.msra.mxu0 %v5294
  %7173 = vmatprep.subr.bf16.mxu0 %v5299
  %7174 = vmatpush1.bf16.msra.mxu0 %v5298
  %7175 = vmatprep.subr.bf16.mxu0 %v5303
  %7176 = vmatpush1.bf16.msra.mxu0 %v5302
  %7177 = vmatprep.subr.bf16.mxu0 %v5307
  %7178 = vmatpush1.bf16.msra.mxu0 %v5306
  %7179 = vmatprep.subr.bf16.mxu0 %v5311
  %7180 = vmatpush1.bf16.msra.mxu0 %v5310
  %7181 = vmatprep.subr.bf16.mxu0 %v5315
  %7182 = vmatpush1.bf16.msra.mxu0 %v5314
  %7183 = vmatprep.subr.bf16.mxu0 %v5319
  %7184 = vmatpush1.bf16.msra.mxu0 %v5318
  %7185 = vmatprep.subr.bf16.mxu0 %v5323
  %7186 = vmatpush1.bf16.msra.mxu0 %v5322
  %7187 = vmatprep.subr.bf16.mxu0 %v5327
  %7188 = vmatpush1.bf16.msra.mxu0 %v5326
  %7189 = vmatprep.subr.bf16.mxu0 %v5331
  %7190 = vmatpush1.bf16.msra.mxu0 %v5330
  %7191 = vmatprep.subr.bf16.mxu0 %v5335
  %7192 = vmatpush1.bf16.msra.mxu0 %v5334
  %7193 = vmatprep.subr.bf16.mxu0 %v5339
  %7194 = vmatpush1.bf16.msra.mxu0 %v5338
  %7195 = vmatprep.subr.bf16.mxu0 %v5343
  %7196 = vmatpush1.bf16.msra.mxu0 %v5342
  %7197 = vmatprep.subr.bf16.mxu0 %v5347
  %7198 = vmatpush1.bf16.msra.mxu0 %v5346
  %7199 = vmatprep.subr.bf16.mxu0 %v5351
  %7200 = vmatpush1.bf16.msra.mxu0 %v5350
  %7201 = vmatprep.mubr.bf16.mxu0 %v1285
  %7202 = vmatmul.mubr.bf16.gmra.mrb[0].mxu0 %v1284
  %v7203 = vpop.f32.mrb[0].mxu0
  %v7204 = vadd.f32 %v7153, %v7203
  %v7205 = vpop.f32.mrb[0].mxu0
  %v7206 = vadd.f32 %v7155, %v7205
  %v7207 = vpop.f32.mrb[0].mxu0
  %v7208 = vadd.f32 %v7157, %v7207
  %v7209 = vpop.f32.mrb[0].mxu0
  %v7210 = vadd.f32 %v7159, %v7209
  %7211 = vmatprep.mubr.bf16.mxu0 %v1317
  %7212 = vmatmul.mubr.bf16.gmra.mrb[0].mxu0 %v1316
  %v7213 = vpop.f32.mrb[0].mxu0
  %v7214 = vadd.f32 %v7163, %v7213
  %v7215 = vpop.f32.mrb[0].mxu0
  %v7216 = vadd.f32 %v7165, %v7215
  %v7217 = vpop.f32.mrb[0].mxu0
  %v7218 = vpop.f32.mrb[0].mxu0
  %7219 = vdwg.mxu0
  %7220 = vmatprep.subr.bf16.mxu0 %v5355
  %7221 = vmatpush1.bf16.msra.mxu0 %v5354
  %7222 = vmatprep.subr.bf16.mxu0 %v5359
  %7223 = vmatpush1.bf16.msra.mxu0 %v5358
  %7224 = vmatprep.subr.bf16.mxu0 %v5363
  %7225 = vmatpush1.bf16.msra.mxu0 %v5362
  %7226 = vmatprep.subr.bf16.mxu0 %v5367
  %7227 = vmatpush1.bf16.msra.mxu0 %v5366
  %7228 = vmatprep.subr.bf16.mxu0 %v5371
  %7229 = vmatpush1.bf16.msra.mxu0 %v5370
  %7230 = vmatprep.subr.bf16.mxu0 %v5375
  %7231 = vmatpush1.bf16.msra.mxu0 %v5374
  %7232 = vmatprep.subr.bf16.mxu0 %v5379
  %7233 = vmatpush1.bf16.msra.mxu0 %v5378
  %7234 = vmatprep.subr.bf16.mxu0 %v5383
  %7235 = vmatpush1.bf16.msra.mxu0 %v5382
  %7236 = vmatprep.subr.bf16.mxu0 %v5387
  %7237 = vmatpush1.bf16.msra.mxu0 %v5386
  %7238 = vmatprep.subr.bf16.mxu0 %v5391
  %7239 = vmatpush1.bf16.msra.mxu0 %v5390
  %7240 = vmatprep.subr.bf16.mxu0 %v5395
  %7241 = vmatpush1.bf16.msra.mxu0 %v5394
  %7242 = vmatprep.subr.bf16.mxu0 %v5399
  %7243 = vmatpush1.bf16.msra.mxu0 %v5398
  %7244 = vmatprep.subr.bf16.mxu0 %v5403
  %7245 = vmatpush1.bf16.msra.mxu0 %v5402
  %7246 = vmatprep.subr.bf16.mxu0 %v5407
  %7247 = vmatpush1.bf16.msra.mxu0 %v5406
  %7248 = vmatprep.subr.bf16.mxu0 %v5411
  %7249 = vmatpush1.bf16.msra.mxu0 %v5410
  %7250 = vmatprep.subr.bf16.mxu0 %v5415
  %7251 = vmatpush1.bf16.msra.mxu0 %v5414
  %7252 = vmatprep.mubr.bf16.mxu0 %v1287
  %7253 = vmatmul.mubr.bf16.gmra.mrb[0].mxu0 %v1286
  %v7254 = vpop.f32.mrb[0].mxu0
  %v7255 = vadd.f32 %v7204, %v7254
  %v7256 = vpop.f32.mrb[0].mxu0
  %v7257 = vadd.f32 %v7206, %v7256
  %v7258 = vpop.f32.mrb[0].mxu0
  %v7259 = vadd.f32 %v7208, %v7258
  %v7260 = vpop.f32.mrb[0].mxu0
  %v7261 = vadd.f32 %v7210, %v7260
  %7262 = vmatprep.mubr.bf16.mxu0 %v1319
  %7263 = vmatmul.mubr.bf16.gmra.mrb[0].mxu0 %v1318
  %v7264 = vpop.f32.mrb[0].mxu0
  %v7265 = vadd.f32 %v7214, %v7264
  %v7266 = vpop.f32.mrb[0].mxu0
  %v7267 = vadd.f32 %v7216, %v7266
  %v7268 = vpop.f32.mrb[0].mxu0
  %v7269 = vpop.f32.mrb[0].mxu0
  %7270 = vdwg.mxu0
  %7271 = vmatprep.subr.bf16.mxu0 %v5419
  %7272 = vmatpush1.bf16.msra.mxu0 %v5418
  %7273 = vmatprep.subr.bf16.mxu0 %v5423
  %7274 = vmatpush1.bf16.msra.mxu0 %v5422
  %7275 = vmatprep.subr.bf16.mxu0 %v5427
  %7276 = vmatpush1.bf16.msra.mxu0 %v5426
  %7277 = vmatprep.subr.bf16.mxu0 %v5431
  %7278 = vmatpush1.bf16.msra.mxu0 %v5430
  %7279 = vmatprep.subr.bf16.mxu0 %v5435
  %7280 = vmatpush1.bf16.msra.mxu0 %v5434
  %7281 = vmatprep.subr.bf16.mxu0 %v5439
  %7282 = vmatpush1.bf16.msra.mxu0 %v5438
  %7283 = vmatprep.subr.bf16.mxu0 %v5443
  %7284 = vmatpush1.bf16.msra.mxu0 %v5442
  %7285 = vmatprep.subr.bf16.mxu0 %v5447
  %7286 = vmatpush1.bf16.msra.mxu0 %v5446
  %7287 = vmatprep.subr.bf16.mxu0 %v5451
  %7288 = vmatpush1.bf16.msra.mxu0 %v5450
  %7289 = vmatprep.subr.bf16.mxu0 %v5455
  %7290 = vmatpush1.bf16.msra.mxu0 %v5454
  %7291 = vmatprep.subr.bf16.mxu0 %v5459
  %7292 = vmatpush1.bf16.msra.mxu0 %v5458
  %7293 = vmatprep.subr.bf16.mxu0 %v5463
  %7294 = vmatpush1.bf16.msra.mxu0 %v5462
  %7295 = vmatprep.subr.bf16.mxu0 %v5467
  %7296 = vmatpush1.bf16.msra.mxu0 %v5466
  %7297 = vmatprep.subr.bf16.mxu0 %v5471
  %7298 = vmatpush1.bf16.msra.mxu0 %v5470
  %7299 = vmatprep.subr.bf16.mxu0 %v5475
  %7300 = vmatpush1.bf16.msra.mxu0 %v5474
  %7301 = vmatprep.subr.bf16.mxu0 %v5479
  %7302 = vmatpush1.bf16.msra.mxu0 %v5478
  %7303 = vmatprep.mubr.bf16.mxu0 %v1289
  %7304 = vmatmul.mubr.bf16.gmra.mrb[0].mxu0 %v1288
  %v7305 = vpop.f32.mrb[0].mxu0
  %v7306 = vadd.f32 %v7255, %v7305
  %v7307 = vpop.f32.mrb[0].mxu0
  %v7308 = vadd.f32 %v7257, %v7307
  %v7309 = vpop.f32.mrb[0].mxu0
  %v7310 = vadd.f32 %v7259, %v7309
  %v7311 = vpop.f32.mrb[0].mxu0
  %v7312 = vadd.f32 %v7261, %v7311
  %7313 = vmatprep.mubr.bf16.mxu0 %v1321
  %7314 = vmatmul.mubr.bf16.gmra.mrb[0].mxu0 %v1320
  %v7315 = vpop.f32.mrb[0].mxu0
  %v7316 = vadd.f32 %v7265, %v7315
  %v7317 = vpop.f32.mrb[0].mxu0
  %v7318 = vadd.f32 %v7267, %v7317
  %v7319 = vpop.f32.mrb[0].mxu0
  %v7320 = vpop.f32.mrb[0].mxu0
  %7321 = vdwg.mxu0
  %7322 = vmatprep.subr.bf16.mxu0 %v4461
  %7323 = vmatpush1.bf16.msra.mxu0 %v4460
  %7324 = vmatprep.subr.bf16.mxu0 %v4465
  %7325 = vmatpush1.bf16.msra.mxu0 %v4464
  %7326 = vmatprep.subr.bf16.mxu0 %v4469
  %7327 = vmatpush1.bf16.msra.mxu0 %v4468
  %7328 = vmatprep.subr.bf16.mxu0 %v4473
  %7329 = vmatpush1.bf16.msra.mxu0 %v4472
  %7330 = vmatprep.subr.bf16.mxu0 %v4477
  %7331 = vmatpush1.bf16.msra.mxu0 %v4476
  %7332 = vmatprep.subr.bf16.mxu0 %v4481
  %7333 = vmatpush1.bf16.msra.mxu0 %v4480
  %7334 = vmatprep.subr.bf16.mxu0 %v4485
  %7335 = vmatpush1.bf16.msra.mxu0 %v4484
  %7336 = vmatprep.subr.bf16.mxu0 %v4489
  %7337 = vmatpush1.bf16.msra.mxu0 %v4488
  %7338 = vmatprep.subr.bf16.mxu0 %v4493
  %7339 = vmatpush1.bf16.msra.mxu0 %v4492
  %7340 = vmatprep.subr.bf16.mxu0 %v4497
  %7341 = vmatpush1.bf16.msra.mxu0 %v4496
  %7342 = vmatprep.subr.bf16.mxu0 %v4501
  %7343 = vmatpush1.bf16.msra.mxu0 %v4500
  %7344 = vmatprep.subr.bf16.mxu0 %v4505
  %7345 = vmatpush1.bf16.msra.mxu0 %v4504
  %7346 = vmatprep.subr.bf16.mxu0 %v4509
  %7347 = vmatpush1.bf16.msra.mxu0 %v4508
  %7348 = vmatprep.subr.bf16.mxu0 %v4513
  %7349 = vmatpush1.bf16.msra.mxu0 %v4512
  %7350 = vmatprep.subr.bf16.mxu0 %v4517
  %7351 = vmatpush1.bf16.msra.mxu0 %v4516
  %7352 = vmatprep.subr.bf16.mxu0 %v4521
  %7353 = vmatpush1.bf16.msra.mxu0 %v4520
  %7354 = vmatprep.mubr.bf16.mxu0 %v1259
  %7355 = vmatmul.mubr.bf16.gmra.mrb[0].mxu0 %v1258
  %v7356 = vpop.f32.mrb[0].mxu0
  %v7357 = vadd.f32 %v1105, %v7356
  %v7358 = vpop.f32.mrb[0].mxu0
  %v7359 = vadd.f32 %v1109, %v7358
  %v7360 = vpop.f32.mrb[0].mxu0
  %v7361 = vadd.f32 %v1105, %v7360
  %v7362 = vpop.f32.mrb[0].mxu0
  %v7363 = vadd.f32 %v1109, %v7362
  %7364 = vmatprep.mubr.bf16.mxu0 %v1291
  %7365 = vmatmul.mubr.bf16.gmra.mrb[0].mxu0 %v1290
  %v7366 = vpop.f32.mrb[0].mxu0
  %v7367 = vadd.f32 %v1105, %v7366
  %v7368 = vpop.f32.mrb[0].mxu0
  %v7369 = vadd.f32 %v1109, %v7368
  %v7370 = vpop.f32.mrb[0].mxu0
  %v7371 = vpop.f32.mrb[0].mxu0
  %7372 = vdwg.mxu0
  %7373 = vmatprep.subr.bf16.mxu0 %v4525
  %7374 = vmatpush1.bf16.msra.mxu0 %v4524
  %7375 = vmatprep.subr.bf16.mxu0 %v4529
  %7376 = vmatpush1.bf16.msra.mxu0 %v4528
  %7377 = vmatprep.subr.bf16.mxu0 %v4533
  %7378 = vmatpush1.bf16.msra.mxu0 %v4532
  %7379 = vmatprep.subr.bf16.mxu0 %v4537
  %7380 = vmatpush1.bf16.msra.mxu0 %v4536
  %7381 = vmatprep.subr.bf16.mxu0 %v4541
  %7382 = vmatpush1.bf16.msra.mxu0 %v4540
  %7383 = vmatprep.subr.bf16.mxu0 %v4545
  %7384 = vmatpush1.bf16.msra.mxu0 %v4544
  %7385 = vmatprep.subr.bf16.mxu0 %v4549
  %7386 = vmatpush1.bf16.msra.mxu0 %v4548
  %7387 = vmatprep.subr.bf16.mxu0 %v4553
  %7388 = vmatpush1.bf16.msra.mxu0 %v4552
  %7389 = vmatprep.subr.bf16.mxu0 %v4557
  %7390 = vmatpush1.bf16.msra.mxu0 %v4556
  %7391 = vmatprep.subr.bf16.mxu0 %v4561
  %7392 = vmatpush1.bf16.msra.mxu0 %v4560
  %7393 = vmatprep.subr.bf16.mxu0 %v4565
  %7394 = vmatpush1.bf16.msra.mxu0 %v4564
  %7395 = vmatprep.subr.bf16.mxu0 %v4569
  %7396 = vmatpush1.bf16.msra.mxu0 %v4568
  %7397 = vmatprep.subr.bf16.mxu0 %v4573
  %7398 = vmatpush1.bf16.msra.mxu0 %v4572
  %7399 = vmatprep.subr.bf16.mxu0 %v4577
  %7400 = vmatpush1.bf16.msra.mxu0 %v4576
  %7401 = vmatprep.subr.bf16.mxu0 %v4581
  %7402 = vmatpush1.bf16.msra.mxu0 %v4580
  %7403 = vmatprep.subr.bf16.mxu0 %v4585
  %7404 = vmatpush1.bf16.msra.mxu0 %v4584
  %7405 = vmatprep.mubr.bf16.mxu0 %v1261
  %7406 = vmatmul.mubr.bf16.gmra.mrb[0].mxu0 %v1260
  %v7407 = vpop.f32.mrb[0].mxu0
  %v7408 = vadd.f32 %v7357, %v7407
  %v7409 = vpop.f32.mrb[0].mxu0
  %v7410 = vadd.f32 %v7359, %v7409
  %v7411 = vpop.f32.mrb[0].mxu0
  %v7412 = vadd.f32 %v7361, %v7411
  %v7413 = vpop.f32.mrb[0].mxu0
  %v7414 = vadd.f32 %v7363, %v7413
  %7415 = vmatprep.mubr.bf16.mxu0 %v1293
  %7416 = vmatmul.mubr.bf16.gmra.mrb[0].mxu0 %v1292
  %v7417 = vpop.f32.mrb[0].mxu0
  %v7418 = vadd.f32 %v7367, %v7417
  %v7419 = vpop.f32.mrb[0].mxu0
  %v7420 = vadd.f32 %v7369, %v7419
  %v7421 = vpop.f32.mrb[0].mxu0
  %v7422 = vpop.f32.mrb[0].mxu0
  %7423 = vdwg.mxu0
  %7424 = vmatprep.subr.bf16.mxu0 %v4589
  %7425 = vmatpush1.bf16.msra.mxu0 %v4588
  %7426 = vmatprep.subr.bf16.mxu0 %v4593
  %7427 = vmatpush1.bf16.msra.mxu0 %v4592
  %7428 = vmatprep.subr.bf16.mxu0 %v4597
  %7429 = vmatpush1.bf16.msra.mxu0 %v4596
  %7430 = vmatprep.subr.bf16.mxu0 %v4601
  %7431 = vmatpush1.bf16.msra.mxu0 %v4600
  %7432 = vmatprep.subr.bf16.mxu0 %v4605
  %7433 = vmatpush1.bf16.msra.mxu0 %v4604
  %7434 = vmatprep.subr.bf16.mxu0 %v4609
  %7435 = vmatpush1.bf16.msra.mxu0 %v4608
  %7436 = vmatprep.subr.bf16.mxu0 %v4613
  %7437 = vmatpush1.bf16.msra.mxu0 %v4612
  %7438 = vmatprep.subr.bf16.mxu0 %v4617
  %7439 = vmatpush1.bf16.msra.mxu0 %v4616
  %7440 = vmatprep.subr.bf16.mxu0 %v4621
  %7441 = vmatpush1.bf16.msra.mxu0 %v4620
  %7442 = vmatprep.subr.bf16.mxu0 %v4625
  %7443 = vmatpush1.bf16.msra.mxu0 %v4624
  %7444 = vmatprep.subr.bf16.mxu0 %v4629
  %7445 = vmatpush1.bf16.msra.mxu0 %v4628
  %7446 = vmatprep.subr.bf16.mxu0 %v4633
  %7447 = vmatpush1.bf16.msra.mxu0 %v4632
  %7448 = vmatprep.subr.bf16.mxu0 %v4637
  %7449 = vmatpush1.bf16.msra.mxu0 %v4636
  %7450 = vmatprep.subr.bf16.mxu0 %v4641
  %7451 = vmatpush1.bf16.msra.mxu0 %v4640
  %7452 = vmatprep.subr.bf16.mxu0 %v4645
  %7453 = vmatpush1.bf16.msra.mxu0 %v4644
  %7454 = vmatprep.subr.bf16.mxu0 %v4649
  %7455 = vmatpush1.bf16.msra.mxu0 %v4648
  %7456 = vmatprep.mubr.bf16.mxu0 %v1263
  %7457 = vmatmul.mubr.bf16.gmra.mrb[0].mxu0 %v1262
  %v7458 = vpop.f32.mrb[0].mxu0
  %v7459 = vadd.f32 %v7408, %v7458
  %v7460 = vpop.f32.mrb[0].mxu0
  %v7461 = vadd.f32 %v7410, %v7460
  %v7462 = vpop.f32.mrb[0].mxu0
  %v7463 = vadd.f32 %v7412, %v7462
  %v7464 = vpop.f32.mrb[0].mxu0
  %v7465 = vadd.f32 %v7414, %v7464
  %7466 = vmatprep.mubr.bf16.mxu0 %v1295
  %7467 = vmatmul.mubr.bf16.gmra.mrb[0].mxu0 %v1294
  %v7468 = vpop.f32.mrb[0].mxu0
  %v7469 = vadd.f32 %v7418, %v7468
  %v7470 = vpop.f32.mrb[0].mxu0
  %v7471 = vadd.f32 %v7420, %v7470
  %v7472 = vpop.f32.mrb[0].mxu0
  %v7473 = vpop.f32.mrb[0].mxu0
  %7474 = vdwg.mxu0
  %7475 = vmatprep.subr.bf16.mxu0 %v4653
  %7476 = vmatpush1.bf16.msra.mxu0 %v4652
  %7477 = vmatprep.subr.bf16.mxu0 %v4657
  %7478 = vmatpush1.bf16.msra.mxu0 %v4656
  %7479 = vmatprep.subr.bf16.mxu0 %v4661
  %7480 = vmatpush1.bf16.msra.mxu0 %v4660
  %7481 = vmatprep.subr.bf16.mxu0 %v4665
  %7482 = vmatpush1.bf16.msra.mxu0 %v4664
  %7483 = vmatprep.subr.bf16.mxu0 %v4669
  %7484 = vmatpush1.bf16.msra.mxu0 %v4668
  %7485 = vmatprep.subr.bf16.mxu0 %v4673
  %7486 = vmatpush1.bf16.msra.mxu0 %v4672
  %7487 = vmatprep.subr.bf16.mxu0 %v4677
  %7488 = vmatpush1.bf16.msra.mxu0 %v4676
  %7489 = vmatprep.subr.bf16.mxu0 %v4681
  %7490 = vmatpush1.bf16.msra.mxu0 %v4680
  %7491 = vmatprep.subr.bf16.mxu0 %v4685
  %7492 = vmatpush1.bf16.msra.mxu0 %v4684
  %7493 = vmatprep.subr.bf16.mxu0 %v4689
  %7494 = vmatpush1.bf16.msra.mxu0 %v4688
  %7495 = vmatprep.subr.bf16.mxu0 %v4693
  %7496 = vmatpush1.bf16.msra.mxu0 %v4692
  %7497 = vmatprep.subr.bf16.mxu0 %v4697
  %7498 = vmatpush1.bf16.msra.mxu0 %v4696
  %7499 = vmatprep.subr.bf16.mxu0 %v4701
  %7500 = vmatpush1.bf16.msra.mxu0 %v4700
  %7501 = vmatprep.subr.bf16.mxu0 %v4705
  %7502 = vmatpush1.bf16.msra.mxu0 %v4704
  %7503 = vmatprep.subr.bf16.mxu0 %v4709
  %7504 = vmatpush1.bf16.msra.mxu0 %v4708
  %7505 = vmatprep.subr.bf16.mxu0 %v4713
  %7506 = vmatpush1.bf16.msra.mxu0 %v4712
  %7507 = vmatprep.mubr.bf16.mxu0 %v1265
  %7508 = vmatmul.mubr.bf16.gmra.mrb[0].mxu0 %v1264
  %v7509 = vpop.f32.mrb[0].mxu0
  %v7510 = vadd.f32 %v7459, %v7509
  %v7511 = vpop.f32.mrb[0].mxu0
  %v7512 = vadd.f32 %v7461, %v7511
  %v7513 = vpop.f32.mrb[0].mxu0
  %v7514 = vadd.f32 %v7463, %v7513
  %v7515 = vpop.f32.mrb[0].mxu0
  %v7516 = vadd.f32 %v7465, %v7515
  %7517 = vmatprep.mubr.bf16.mxu0 %v1297
  %7518 = vmatmul.mubr.bf16.gmra.mrb[0].mxu0 %v1296
  %v7519 = vpop.f32.mrb[0].mxu0
  %v7520 = vadd.f32 %v7469, %v7519
  %v7521 = vpop.f32.mrb[0].mxu0
  %v7522 = vadd.f32 %v7471, %v7521
  %v7523 = vpop.f32.mrb[0].mxu0
  %v7524 = vpop.f32.mrb[0].mxu0
  %7525 = vdwg.mxu0
  %7526 = vmatprep.subr.bf16.mxu0 %v4717
  %7527 = vmatpush1.bf16.msra.mxu0 %v4716
  %7528 = vmatprep.subr.bf16.mxu0 %v4721
  %7529 = vmatpush1.bf16.msra.mxu0 %v4720
  %7530 = vmatprep.subr.bf16.mxu0 %v4725
  %7531 = vmatpush1.bf16.msra.mxu0 %v4724
  %7532 = vmatprep.subr.bf16.mxu0 %v4729
  %7533 = vmatpush1.bf16.msra.mxu0 %v4728
  %7534 = vmatprep.subr.bf16.mxu0 %v4733
  %7535 = vmatpush1.bf16.msra.mxu0 %v4732
  %7536 = vmatprep.subr.bf16.mxu0 %v4737
  %7537 = vmatpush1.bf16.msra.mxu0 %v4736
  %7538 = vmatprep.subr.bf16.mxu0 %v4741
  %7539 = vmatpush1.bf16.msra.mxu0 %v4740
  %7540 = vmatprep.subr.bf16.mxu0 %v4745
  %7541 = vmatpush1.bf16.msra.mxu0 %v4744
  %7542 = vmatprep.subr.bf16.mxu0 %v4749
  %7543 = vmatpush1.bf16.msra.mxu0 %v4748
  %7544 = vmatprep.subr.bf16.mxu0 %v4753
  %7545 = vmatpush1.bf16.msra.mxu0 %v4752
  %7546 = vmatprep.subr.bf16.mxu0 %v4757
  %7547 = vmatpush1.bf16.msra.mxu0 %v4756
  %7548 = vmatprep.subr.bf16.mxu0 %v4761
  %7549 = vmatpush1.bf16.msra.mxu0 %v4760
  %7550 = vmatprep.subr.bf16.mxu0 %v4765
  %7551 = vmatpush1.bf16.msra.mxu0 %v4764
  %7552 = vmatprep.subr.bf16.mxu0 %v4769
  %7553 = vmatpush1.bf16.msra.mxu0 %v4768
  %7554 = vmatprep.subr.bf16.mxu0 %v4773
  %7555 = vmatpush1.bf16.msra.mxu0 %v4772
  %7556 = vmatprep.subr.bf16.mxu0 %v4777
  %7557 = vmatpush1.bf16.msra.mxu0 %v4776
  %7558 = vmatprep.mubr.bf16.mxu0 %v1267
  %7559 = vmatmul.mubr.bf16.gmra.mrb[0].mxu0 %v1266
  %v7560 = vpop.f32.mrb[0].mxu0
  %v7561 = vadd.f32 %v7510, %v7560
  %v7562 = vpop.f32.mrb[0].mxu0
  %v7563 = vadd.f32 %v7512, %v7562
  %v7564 = vpop.f32.mrb[0].mxu0
  %v7565 = vadd.f32 %v7514, %v7564
  %v7566 = vpop.f32.mrb[0].mxu0
  %v7567 = vadd.f32 %v7516, %v7566
  %7568 = vmatprep.mubr.bf16.mxu0 %v1299
  %7569 = vmatmul.mubr.bf16.gmra.mrb[0].mxu0 %v1298
  %v7570 = vpop.f32.mrb[0].mxu0
  %v7571 = vadd.f32 %v7520, %v7570
  %v7572 = vpop.f32.mrb[0].mxu0
  %v7573 = vadd.f32 %v7522, %v7572
  %v7574 = vpop.f32.mrb[0].mxu0
  %v7575 = vpop.f32.mrb[0].mxu0
  %7576 = vdwg.mxu0
  %7577 = vmatprep.subr.bf16.mxu0 %v4781
  %7578 = vmatpush1.bf16.msra.mxu0 %v4780
  %7579 = vmatprep.subr.bf16.mxu0 %v4785
  %7580 = vmatpush1.bf16.msra.mxu0 %v4784
  %7581 = vmatprep.subr.bf16.mxu0 %v4789
  %7582 = vmatpush1.bf16.msra.mxu0 %v4788
  %7583 = vmatprep.subr.bf16.mxu0 %v4793
  %7584 = vmatpush1.bf16.msra.mxu0 %v4792
  %7585 = vmatprep.subr.bf16.mxu0 %v4797
  %7586 = vmatpush1.bf16.msra.mxu0 %v4796
  %7587 = vmatprep.subr.bf16.mxu0 %v4801
  %7588 = vmatpush1.bf16.msra.mxu0 %v4800
  %7589 = vmatprep.subr.bf16.mxu0 %v4805
  %7590 = vmatpush1.bf16.msra.mxu0 %v4804
  %7591 = vmatprep.subr.bf16.mxu0 %v4809
  %7592 = vmatpush1.bf16.msra.mxu0 %v4808
  %7593 = vmatprep.subr.bf16.mxu0 %v4813
  %7594 = vmatpush1.bf16.msra.mxu0 %v4812
  %7595 = vmatprep.subr.bf16.mxu0 %v4817
  %7596 = vmatpush1.bf16.msra.mxu0 %v4816
  %7597 = vmatprep.subr.bf16.mxu0 %v4821
  %7598 = vmatpush1.bf16.msra.mxu0 %v4820
  %7599 = vmatprep.subr.bf16.mxu0 %v4825
  %7600 = vmatpush1.bf16.msra.mxu0 %v4824
  %7601 = vmatprep.subr.bf16.mxu0 %v4829
  %7602 = vmatpush1.bf16.msra.mxu0 %v4828
  %7603 = vmatprep.subr.bf16.mxu0 %v4833
  %7604 = vmatpush1.bf16.msra.mxu0 %v4832
  %7605 = vmatprep.subr.bf16.mxu0 %v4837
  %7606 = vmatpush1.bf16.msra.mxu0 %v4836
  %7607 = vmatprep.subr.bf16.mxu0 %v4841
  %7608 = vmatpush1.bf16.msra.mxu0 %v4840
  %7609 = vmatprep.mubr.bf16.mxu0 %v1269
  %7610 = vmatmul.mubr.bf16.gmra.mrb[0].mxu0 %v1268
  %v7611 = vpop.f32.mrb[0].mxu0
  %v7612 = vadd.f32 %v7561, %v7611
  %v7613 = vpop.f32.mrb[0].mxu0
  %v7614 = vadd.f32 %v7563, %v7613
  %v7615 = vpop.f32.mrb[0].mxu0
  %v7616 = vadd.f32 %v7565, %v7615
  %v7617 = vpop.f32.mrb[0].mxu0
  %v7618 = vadd.f32 %v7567, %v7617
  %7619 = vmatprep.mubr.bf16.mxu0 %v1301
  %7620 = vmatmul.mubr.bf16.gmra.mrb[0].mxu0 %v1300
  %v7621 = vpop.f32.mrb[0].mxu0
  %v7622 = vadd.f32 %v7571, %v7621
  %v7623 = vpop.f32.mrb[0].mxu0
  %v7624 = vadd.f32 %v7573, %v7623
  %v7625 = vpop.f32.mrb[0].mxu0
  %v7626 = vpop.f32.mrb[0].mxu0
  %7627 = vdwg.mxu0
  %7628 = vmatprep.subr.bf16.mxu0 %v4845
  %7629 = vmatpush1.bf16.msra.mxu0 %v4844
  %7630 = vmatprep.subr.bf16.mxu0 %v4849
  %7631 = vmatpush1.bf16.msra.mxu0 %v4848
  %7632 = vmatprep.subr.bf16.mxu0 %v4853
  %7633 = vmatpush1.bf16.msra.mxu0 %v4852
  %7634 = vmatprep.subr.bf16.mxu0 %v4857
  %7635 = vmatpush1.bf16.msra.mxu0 %v4856
  %7636 = vmatprep.subr.bf16.mxu0 %v4861
  %7637 = vmatpush1.bf16.msra.mxu0 %v4860
  %7638 = vmatprep.subr.bf16.mxu0 %v4865
  %7639 = vmatpush1.bf16.msra.mxu0 %v4864
  %7640 = vmatprep.subr.bf16.mxu0 %v4869
  %7641 = vmatpush1.bf16.msra.mxu0 %v4868
  %7642 = vmatprep.subr.bf16.mxu0 %v4873
  %7643 = vmatpush1.bf16.msra.mxu0 %v4872
  %7644 = vmatprep.subr.bf16.mxu0 %v4877
  %7645 = vmatpush1.bf16.msra.mxu0 %v4876
  %7646 = vmatprep.subr.bf16.mxu0 %v4881
  %7647 = vmatpush1.bf16.msra.mxu0 %v4880
  %7648 = vmatprep.subr.bf16.mxu0 %v4885
  %7649 = vmatpush1.bf16.msra.mxu0 %v4884
  %7650 = vmatprep.subr.bf16.mxu0 %v4889
  %7651 = vmatpush1.bf16.msra.mxu0 %v4888
  %7652 = vmatprep.subr.bf16.mxu0 %v4893
  %7653 = vmatpush1.bf16.msra.mxu0 %v4892
  %7654 = vmatprep.subr.bf16.mxu0 %v4897
  %7655 = vmatpush1.bf16.msra.mxu0 %v4896
  %7656 = vmatprep.subr.bf16.mxu0 %v4901
  %7657 = vmatpush1.bf16.msra.mxu0 %v4900
  %7658 = vmatprep.subr.bf16.mxu0 %v4905
  %7659 = vmatpush1.bf16.msra.mxu0 %v4904
  %7660 = vmatprep.mubr.bf16.mxu0 %v1271
  %7661 = vmatmul.mubr.bf16.gmra.mrb[0].mxu0 %v1270
  %v7662 = vpop.f32.mrb[0].mxu0
  %v7663 = vadd.f32 %v7612, %v7662
  %v7664 = vpop.f32.mrb[0].mxu0
  %v7665 = vadd.f32 %v7614, %v7664
  %v7666 = vpop.f32.mrb[0].mxu0
  %v7667 = vadd.f32 %v7616, %v7666
  %v7668 = vpop.f32.mrb[0].mxu0
  %v7669 = vadd.f32 %v7618, %v7668
  %7670 = vmatprep.mubr.bf16.mxu0 %v1303
  %7671 = vmatmul.mubr.bf16.gmra.mrb[0].mxu0 %v1302
  %v7672 = vpop.f32.mrb[0].mxu0
  %v7673 = vadd.f32 %v7622, %v7672
  %v7674 = vpop.f32.mrb[0].mxu0
  %v7675 = vadd.f32 %v7624, %v7674
  %v7676 = vpop.f32.mrb[0].mxu0
  %v7677 = vpop.f32.mrb[0].mxu0
  %7678 = vdwg.mxu0
  %7679 = vmatprep.subr.bf16.mxu0 %v4909
  %7680 = vmatpush1.bf16.msra.mxu0 %v4908
  %7681 = vmatprep.subr.bf16.mxu0 %v4913
  %7682 = vmatpush1.bf16.msra.mxu0 %v4912
  %7683 = vmatprep.subr.bf16.mxu0 %v4917
  %7684 = vmatpush1.bf16.msra.mxu0 %v4916
  %7685 = vmatprep.subr.bf16.mxu0 %v4921
  %7686 = vmatpush1.bf16.msra.mxu0 %v4920
  %7687 = vmatprep.subr.bf16.mxu0 %v4925
  %7688 = vmatpush1.bf16.msra.mxu0 %v4924
  %7689 = vmatprep.subr.bf16.mxu0 %v4929
  %7690 = vmatpush1.bf16.msra.mxu0 %v4928
  %7691 = vmatprep.subr.bf16.mxu0 %v4933
  %7692 = vmatpush1.bf16.msra.mxu0 %v4932
  %7693 = vmatprep.subr.bf16.mxu0 %v4937
  %7694 = vmatpush1.bf16.msra.mxu0 %v4936
  %7695 = vmatprep.subr.bf16.mxu0 %v4941
  %7696 = vmatpush1.bf16.msra.mxu0 %v4940
  %7697 = vmatprep.subr.bf16.mxu0 %v4945
  %7698 = vmatpush1.bf16.msra.mxu0 %v4944
  %7699 = vmatprep.subr.bf16.mxu0 %v4949
  %7700 = vmatpush1.bf16.msra.mxu0 %v4948
  %7701 = vmatprep.subr.bf16.mxu0 %v4953
  %7702 = vmatpush1.bf16.msra.mxu0 %v4952
  %7703 = vmatprep.subr.bf16.mxu0 %v4957
  %7704 = vmatpush1.bf16.msra.mxu0 %v4956
  %7705 = vmatprep.subr.bf16.mxu0 %v4961
  %7706 = vmatpush1.bf16.msra.mxu0 %v4960
  %7707 = vmatprep.subr.bf16.mxu0 %v4965
  %7708 = vmatpush1.bf16.msra.mxu0 %v4964
  %7709 = vmatprep.subr.bf16.mxu0 %v4969
  %7710 = vmatpush1.bf16.msra.mxu0 %v4968
  %7711 = vmatprep.mubr.bf16.mxu0 %v1273
  %7712 = vmatmul.mubr.bf16.gmra.mrb[0].mxu0 %v1272
  %v7713 = vpop.f32.mrb[0].mxu0
  %v7714 = vadd.f32 %v7663, %v7713
  %v7715 = vpop.f32.mrb[0].mxu0
  %v7716 = vadd.f32 %v7665, %v7715
  %v7717 = vpop.f32.mrb[0].mxu0
  %v7718 = vadd.f32 %v7667, %v7717
  %v7719 = vpop.f32.mrb[0].mxu0
  %v7720 = vadd.f32 %v7669, %v7719
  %7721 = vmatprep.mubr.bf16.mxu0 %v1305
  %7722 = vmatmul.mubr.bf16.gmra.mrb[0].mxu0 %v1304
  %v7723 = vpop.f32.mrb[0].mxu0
  %v7724 = vadd.f32 %v7673, %v7723
  %v7725 = vpop.f32.mrb[0].mxu0
  %v7726 = vadd.f32 %v7675, %v7725
  %v7727 = vpop.f32.mrb[0].mxu0
  %v7728 = vpop.f32.mrb[0].mxu0
  %7729 = vdwg.mxu0
  %7730 = vmatprep.subr.bf16.mxu0 %v4973
  %7731 = vmatpush1.bf16.msra.mxu0 %v4972
  %7732 = vmatprep.subr.bf16.mxu0 %v4977
  %7733 = vmatpush1.bf16.msra.mxu0 %v4976
  %7734 = vmatprep.subr.bf16.mxu0 %v4981
  %7735 = vmatpush1.bf16.msra.mxu0 %v4980
  %7736 = vmatprep.subr.bf16.mxu0 %v4985
  %7737 = vmatpush1.bf16.msra.mxu0 %v4984
  %7738 = vmatprep.subr.bf16.mxu0 %v4989
  %7739 = vmatpush1.bf16.msra.mxu0 %v4988
  %7740 = vmatprep.subr.bf16.mxu0 %v4993
  %7741 = vmatpush1.bf16.msra.mxu0 %v4992
  %7742 = vmatprep.subr.bf16.mxu0 %v4997
  %7743 = vmatpush1.bf16.msra.mxu0 %v4996
  %7744 = vmatprep.subr.bf16.mxu0 %v5001
  %7745 = vmatpush1.bf16.msra.mxu0 %v5000
  %7746 = vmatprep.subr.bf16.mxu0 %v5005
  %7747 = vmatpush1.bf16.msra.mxu0 %v5004
  %7748 = vmatprep.subr.bf16.mxu0 %v5009
  %7749 = vmatpush1.bf16.msra.mxu0 %v5008
  %7750 = vmatprep.subr.bf16.mxu0 %v5013
  %7751 = vmatpush1.bf16.msra.mxu0 %v5012
  %7752 = vmatprep.subr.bf16.mxu0 %v5017
  %7753 = vmatpush1.bf16.msra.mxu0 %v5016
  %7754 = vmatprep.subr.bf16.mxu0 %v5021
  %7755 = vmatpush1.bf16.msra.mxu0 %v5020
  %7756 = vmatprep.subr.bf16.mxu0 %v5025
  %7757 = vmatpush1.bf16.msra.mxu0 %v5024
  %7758 = vmatprep.subr.bf16.mxu0 %v5029
  %7759 = vmatpush1.bf16.msra.mxu0 %v5028
  %7760 = vmatprep.subr.bf16.mxu0 %v5033
  %7761 = vmatpush1.bf16.msra.mxu0 %v5032
  %7762 = vmatprep.mubr.bf16.mxu0 %v1275
  %7763 = vmatmul.mubr.bf16.gmra.mrb[0].mxu0 %v1274
  %v7764 = vpop.f32.mrb[0].mxu0
  %v7765 = vadd.f32 %v7714, %v7764
  %v7766 = vpop.f32.mrb[0].mxu0
  %v7767 = vadd.f32 %v7716, %v7766
  %v7768 = vpop.f32.mrb[0].mxu0
  %v7769 = vadd.f32 %v7718, %v7768
  %v7770 = vpop.f32.mrb[0].mxu0
  %v7771 = vadd.f32 %v7720, %v7770
  %7772 = vmatprep.mubr.bf16.mxu0 %v1307
  %7773 = vmatmul.mubr.bf16.gmra.mrb[0].mxu0 %v1306
  %v7774 = vpop.f32.mrb[0].mxu0
  %v7775 = vadd.f32 %v7724, %v7774
  %v7776 = vpop.f32.mrb[0].mxu0
  %v7777 = vadd.f32 %v7726, %v7776
  %v7778 = vpop.f32.mrb[0].mxu0
  %v7779 = vpop.f32.mrb[0].mxu0
  %7780 = vdwg.mxu0
  %7781 = vmatprep.subr.bf16.mxu0 %v5037
  %7782 = vmatpush1.bf16.msra.mxu0 %v5036
  %7783 = vmatprep.subr.bf16.mxu0 %v5041
  %7784 = vmatpush1.bf16.msra.mxu0 %v5040
  %7785 = vmatprep.subr.bf16.mxu0 %v5045
  %7786 = vmatpush1.bf16.msra.mxu0 %v5044
  %7787 = vmatprep.subr.bf16.mxu0 %v5049
  %7788 = vmatpush1.bf16.msra.mxu0 %v5048
  %7789 = vmatprep.subr.bf16.mxu0 %v5053
  %7790 = vmatpush1.bf16.msra.mxu0 %v5052
  %7791 = vmatprep.subr.bf16.mxu0 %v5057
  %7792 = vmatpush1.bf16.msra.mxu0 %v5056
  %7793 = vmatprep.subr.bf16.mxu0 %v5061
  %7794 = vmatpush1.bf16.msra.mxu0 %v5060
  %7795 = vmatprep.subr.bf16.mxu0 %v5065
  %7796 = vmatpush1.bf16.msra.mxu0 %v5064
  %7797 = vmatprep.subr.bf16.mxu0 %v5069
  %7798 = vmatpush1.bf16.msra.mxu0 %v5068
  %7799 = vmatprep.subr.bf16.mxu0 %v5073
  %7800 = vmatpush1.bf16.msra.mxu0 %v5072
  %7801 = vmatprep.subr.bf16.mxu0 %v5077
  %7802 = vmatpush1.bf16.msra.mxu0 %v5076
  %7803 = vmatprep.subr.bf16.mxu0 %v5081
  %7804 = vmatpush1.bf16.msra.mxu0 %v5080
  %7805 = vmatprep.subr.bf16.mxu0 %v5085
  %7806 = vmatpush1.bf16.msra.mxu0 %v5084
  %7807 = vmatprep.subr.bf16.mxu0 %v5089
  %7808 = vmatpush1.bf16.msra.mxu0 %v5088
  %7809 = vmatprep.subr.bf16.mxu0 %v5093
  %7810 = vmatpush1.bf16.msra.mxu0 %v5092
  %7811 = vmatprep.subr.bf16.mxu0 %v5097
  %7812 = vmatpush1.bf16.msra.mxu0 %v5096
  %7813 = vmatprep.mubr.bf16.mxu0 %v1277
  %7814 = vmatmul.mubr.bf16.gmra.mrb[0].mxu0 %v1276
  %v7815 = vpop.f32.mrb[0].mxu0
  %v7816 = vadd.f32 %v7765, %v7815
  %v7817 = vpop.f32.mrb[0].mxu0
  %v7818 = vadd.f32 %v7767, %v7817
  %v7819 = vpop.f32.mrb[0].mxu0
  %v7820 = vadd.f32 %v7769, %v7819
  %v7821 = vpop.f32.mrb[0].mxu0
  %v7822 = vadd.f32 %v7771, %v7821
  %7823 = vmatprep.mubr.bf16.mxu0 %v1309
  %7824 = vmatmul.mubr.bf16.gmra.mrb[0].mxu0 %v1308
  %v7825 = vpop.f32.mrb[0].mxu0
  %v7826 = vadd.f32 %v7775, %v7825
  %v7827 = vpop.f32.mrb[0].mxu0
  %v7828 = vadd.f32 %v7777, %v7827
  %v7829 = vpop.f32.mrb[0].mxu0
  %v7830 = vpop.f32.mrb[0].mxu0
  %7831 = vdwg.mxu0
  %7832 = vmatprep.subr.bf16.mxu0 %v5101
  %7833 = vmatpush1.bf16.msra.mxu0 %v5100
  %7834 = vmatprep.subr.bf16.mxu0 %v5105
  %7835 = vmatpush1.bf16.msra.mxu0 %v5104
  %7836 = vmatprep.subr.bf16.mxu0 %v5109
  %7837 = vmatpush1.bf16.msra.mxu0 %v5108
  %7838 = vmatprep.subr.bf16.mxu0 %v5113
  %7839 = vmatpush1.bf16.msra.mxu0 %v5112
  %7840 = vmatprep.subr.bf16.mxu0 %v5117
  %7841 = vmatpush1.bf16.msra.mxu0 %v5116
  %7842 = vmatprep.subr.bf16.mxu0 %v5121
  %7843 = vmatpush1.bf16.msra.mxu0 %v5120
  %7844 = vmatprep.subr.bf16.mxu0 %v5125
  %7845 = vmatpush1.bf16.msra.mxu0 %v5124
  %7846 = vmatprep.subr.bf16.mxu0 %v5129
  %7847 = vmatpush1.bf16.msra.mxu0 %v5128
  %7848 = vmatprep.subr.bf16.mxu0 %v5133
  %7849 = vmatpush1.bf16.msra.mxu0 %v5132
  %7850 = vmatprep.subr.bf16.mxu0 %v5137
  %7851 = vmatpush1.bf16.msra.mxu0 %v5136
  %7852 = vmatprep.subr.bf16.mxu0 %v5141
  %7853 = vmatpush1.bf16.msra.mxu0 %v5140
  %7854 = vmatprep.subr.bf16.mxu0 %v5145
  %7855 = vmatpush1.bf16.msra.mxu0 %v5144
  %7856 = vmatprep.subr.bf16.mxu0 %v5149
  %7857 = vmatpush1.bf16.msra.mxu0 %v5148
  %7858 = vmatprep.subr.bf16.mxu0 %v5153
  %7859 = vmatpush1.bf16.msra.mxu0 %v5152
  %7860 = vmatprep.subr.bf16.mxu0 %v5157
  %7861 = vmatpush1.bf16.msra.mxu0 %v5156
  %7862 = vmatprep.subr.bf16.mxu0 %v5161
  %7863 = vmatpush1.bf16.msra.mxu0 %v5160
  %7864 = vmatprep.mubr.bf16.mxu0 %v1279
  %7865 = vmatmul.mubr.bf16.gmra.mrb[0].mxu0 %v1278
  %v7866 = vpop.f32.mrb[0].mxu0
  %v7867 = vadd.f32 %v7816, %v7866
  %v7868 = vpop.f32.mrb[0].mxu0
  %v7869 = vadd.f32 %v7818, %v7868
  %v7870 = vpop.f32.mrb[0].mxu0
  %v7871 = vadd.f32 %v7820, %v7870
  %v7872 = vpop.f32.mrb[0].mxu0
  %v7873 = vadd.f32 %v7822, %v7872
  %7874 = vmatprep.mubr.bf16.mxu0 %v1311
  %7875 = vmatmul.mubr.bf16.gmra.mrb[0].mxu0 %v1310
  %v7876 = vpop.f32.mrb[0].mxu0
  %v7877 = vadd.f32 %v7826, %v7876
  %v7878 = vpop.f32.mrb[0].mxu0
  %v7879 = vadd.f32 %v7828, %v7878
  %v7880 = vpop.f32.mrb[0].mxu0
  %v7881 = vpop.f32.mrb[0].mxu0
  %7882 = vdwg.mxu0
  %7883 = vmatprep.subr.bf16.mxu0 %v5165
  %7884 = vmatpush1.bf16.msra.mxu0 %v5164
  %7885 = vmatprep.subr.bf16.mxu0 %v5169
  %7886 = vmatpush1.bf16.msra.mxu0 %v5168
  %7887 = vmatprep.subr.bf16.mxu0 %v5173
  %7888 = vmatpush1.bf16.msra.mxu0 %v5172
  %7889 = vmatprep.subr.bf16.mxu0 %v5177
  %7890 = vmatpush1.bf16.msra.mxu0 %v5176
  %7891 = vmatprep.subr.bf16.mxu0 %v5181
  %7892 = vmatpush1.bf16.msra.mxu0 %v5180
  %7893 = vmatprep.subr.bf16.mxu0 %v5185
  %7894 = vmatpush1.bf16.msra.mxu0 %v5184
  %7895 = vmatprep.subr.bf16.mxu0 %v5189
  %7896 = vmatpush1.bf16.msra.mxu0 %v5188
  %7897 = vmatprep.subr.bf16.mxu0 %v5193
  %7898 = vmatpush1.bf16.msra.mxu0 %v5192
  %7899 = vmatprep.subr.bf16.mxu0 %v5197
  %7900 = vmatpush1.bf16.msra.mxu0 %v5196
  %7901 = vmatprep.subr.bf16.mxu0 %v5201
  %7902 = vmatpush1.bf16.msra.mxu0 %v5200
  %7903 = vmatprep.subr.bf16.mxu0 %v5205
  %7904 = vmatpush1.bf16.msra.mxu0 %v5204
  %7905 = vmatprep.subr.bf16.mxu0 %v5209
  %7906 = vmatpush1.bf16.msra.mxu0 %v5208
  %7907 = vmatprep.subr.bf16.mxu0 %v5213
  %7908 = vmatpush1.bf16.msra.mxu0 %v5212
  %7909 = vmatprep.subr.bf16.mxu0 %v5217
  %7910 = vmatpush1.bf16.msra.mxu0 %v5216
  %7911 = vmatprep.subr.bf16.mxu0 %v5221
  %7912 = vmatpush1.bf16.msra.mxu0 %v5220
  %7913 = vmatprep.subr.bf16.mxu0 %v5225
  %7914 = vmatpush1.bf16.msra.mxu0 %v5224
  %7915 = vmatprep.mubr.bf16.mxu0 %v1281
  %7916 = vmatmul.mubr.bf16.gmra.mrb[0].mxu0 %v1280
  %v7917 = vpop.f32.mrb[0].mxu0
  %v7918 = vadd.f32 %v7867, %v7917
  %v7919 = vpop.f32.mrb[0].mxu0
  %v7920 = vadd.f32 %v7869, %v7919
  %v7921 = vpop.f32.mrb[0].mxu0
  %v7922 = vadd.f32 %v7871, %v7921
  %v7923 = vpop.f32.mrb[0].mxu0
  %v7924 = vadd.f32 %v7873, %v7923
  %7925 = vmatprep.mubr.bf16.mxu0 %v1313
  %7926 = vmatmul.mubr.bf16.gmra.mrb[0].mxu0 %v1312
  %v7927 = vpop.f32.mrb[0].mxu0
  %v7928 = vadd.f32 %v7877, %v7927
  %v7929 = vpop.f32.mrb[0].mxu0
  %v7930 = vadd.f32 %v7879, %v7929
  %v7931 = vpop.f32.mrb[0].mxu0
  %v7932 = vpop.f32.mrb[0].mxu0
  %7933 = vdwg.mxu0
  %7934 = vmatprep.subr.bf16.mxu0 %v5229
  %7935 = vmatpush1.bf16.msra.mxu0 %v5228
  %7936 = vmatprep.subr.bf16.mxu0 %v5233
  %7937 = vmatpush1.bf16.msra.mxu0 %v5232
  %7938 = vmatprep.subr.bf16.mxu0 %v5237
  %7939 = vmatpush1.bf16.msra.mxu0 %v5236
  %7940 = vmatprep.subr.bf16.mxu0 %v5241
  %7941 = vmatpush1.bf16.msra.mxu0 %v5240
  %7942 = vmatprep.subr.bf16.mxu0 %v5245
  %7943 = vmatpush1.bf16.msra.mxu0 %v5244
  %7944 = vmatprep.subr.bf16.mxu0 %v5249
  %7945 = vmatpush1.bf16.msra.mxu0 %v5248
  %7946 = vmatprep.subr.bf16.mxu0 %v5253
  %7947 = vmatpush1.bf16.msra.mxu0 %v5252
  %7948 = vmatprep.subr.bf16.mxu0 %v5257
  %7949 = vmatpush1.bf16.msra.mxu0 %v5256
  %7950 = vmatprep.subr.bf16.mxu0 %v5261
  %7951 = vmatpush1.bf16.msra.mxu0 %v5260
  %7952 = vmatprep.subr.bf16.mxu0 %v5265
  %7953 = vmatpush1.bf16.msra.mxu0 %v5264
  %7954 = vmatprep.subr.bf16.mxu0 %v5269
  %7955 = vmatpush1.bf16.msra.mxu0 %v5268
  %7956 = vmatprep.subr.bf16.mxu0 %v5273
  %7957 = vmatpush1.bf16.msra.mxu0 %v5272
  %7958 = vmatprep.subr.bf16.mxu0 %v5277
  %7959 = vmatpush1.bf16.msra.mxu0 %v5276
  %7960 = vmatprep.subr.bf16.mxu0 %v5281
  %7961 = vmatpush1.bf16.msra.mxu0 %v5280
  %7962 = vmatprep.subr.bf16.mxu0 %v5285
  %7963 = vmatpush1.bf16.msra.mxu0 %v5284
  %7964 = vmatprep.subr.bf16.mxu0 %v5289
  %7965 = vmatpush1.bf16.msra.mxu0 %v5288
  %7966 = vmatprep.mubr.bf16.mxu0 %v1283
  %7967 = vmatmul.mubr.bf16.gmra.mrb[0].mxu0 %v1282
  %v7968 = vpop.f32.mrb[0].mxu0
  %v7969 = vadd.f32 %v7918, %v7968
  %v7970 = vpop.f32.mrb[0].mxu0
  %v7971 = vadd.f32 %v7920, %v7970
  %v7972 = vpop.f32.mrb[0].mxu0
  %v7973 = vadd.f32 %v7922, %v7972
  %v7974 = vpop.f32.mrb[0].mxu0
  %v7975 = vadd.f32 %v7924, %v7974
  %7976 = vmatprep.mubr.bf16.mxu0 %v1315
  %7977 = vmatmul.mubr.bf16.gmra.mrb[0].mxu0 %v1314
  %v7978 = vpop.f32.mrb[0].mxu0
  %v7979 = vadd.f32 %v7928, %v7978
  %v7980 = vpop.f32.mrb[0].mxu0
  %v7981 = vadd.f32 %v7930, %v7980
  %v7982 = vpop.f32.mrb[0].mxu0
  %v7983 = vpop.f32.mrb[0].mxu0
  %7984 = vdwg.mxu0
  %7985 = vmatprep.subr.bf16.mxu0 %v5293
  %7986 = vmatpush1.bf16.msra.mxu0 %v5292
  %7987 = vmatprep.subr.bf16.mxu0 %v5297
  %7988 = vmatpush1.bf16.msra.mxu0 %v5296
  %7989 = vmatprep.subr.bf16.mxu0 %v5301
  %7990 = vmatpush1.bf16.msra.mxu0 %v5300
  %7991 = vmatprep.subr.bf16.mxu0 %v5305
  %7992 = vmatpush1.bf16.msra.mxu0 %v5304
  %7993 = vmatprep.subr.bf16.mxu0 %v5309
  %7994 = vmatpush1.bf16.msra.mxu0 %v5308
  %7995 = vmatprep.subr.bf16.mxu0 %v5313
  %7996 = vmatpush1.bf16.msra.mxu0 %v5312
  %7997 = vmatprep.subr.bf16.mxu0 %v5317
  %7998 = vmatpush1.bf16.msra.mxu0 %v5316
  %7999 = vmatprep.subr.bf16.mxu0 %v5321
  %8000 = vmatpush1.bf16.msra.mxu0 %v5320
  %8001 = vmatprep.subr.bf16.mxu0 %v5325
  %8002 = vmatpush1.bf16.msra.mxu0 %v5324
  %8003 = vmatprep.subr.bf16.mxu0 %v5329
  %8004 = vmatpush1.bf16.msra.mxu0 %v5328
  %8005 = vmatprep.subr.bf16.mxu0 %v5333
  %8006 = vmatpush1.bf16.msra.mxu0 %v5332
  %8007 = vmatprep.subr.bf16.mxu0 %v5337
  %8008 = vmatpush1.bf16.msra.mxu0 %v5336
  %8009 = vmatprep.subr.bf16.mxu0 %v5341
  %8010 = vmatpush1.bf16.msra.mxu0 %v5340
  %8011 = vmatprep.subr.bf16.mxu0 %v5345
  %8012 = vmatpush1.bf16.msra.mxu0 %v5344
  %8013 = vmatprep.subr.bf16.mxu0 %v5349
  %8014 = vmatpush1.bf16.msra.mxu0 %v5348
  %8015 = vmatprep.subr.bf16.mxu0 %v5353
  %8016 = vmatpush1.bf16.msra.mxu0 %v5352
  %8017 = vmatprep.mubr.bf16.mxu0 %v1285
  %8018 = vmatmul.mubr.bf16.gmra.mrb[0].mxu0 %v1284
  %v8019 = vpop.f32.mrb[0].mxu0
  %v8020 = vadd.f32 %v7969, %v8019
  %v8021 = vpop.f32.mrb[0].mxu0
  %v8022 = vadd.f32 %v7971, %v8021
  %v8023 = vpop.f32.mrb[0].mxu0
  %v8024 = vadd.f32 %v7973, %v8023
  %v8025 = vpop.f32.mrb[0].mxu0
  %v8026 = vadd.f32 %v7975, %v8025
  %8027 = vmatprep.mubr.bf16.mxu0 %v1317
  %8028 = vmatmul.mubr.bf16.gmra.mrb[0].mxu0 %v1316
  %v8029 = vpop.f32.mrb[0].mxu0
  %v8030 = vadd.f32 %v7979, %v8029
  %v8031 = vpop.f32.mrb[0].mxu0
  %v8032 = vadd.f32 %v7981, %v8031
  %v8033 = vpop.f32.mrb[0].mxu0
  %v8034 = vpop.f32.mrb[0].mxu0
  %8035 = vdwg.mxu0
  %8036 = vmatprep.subr.bf16.mxu0 %v5357
  %8037 = vmatpush1.bf16.msra.mxu0 %v5356
  %8038 = vmatprep.subr.bf16.mxu0 %v5361
  %8039 = vmatpush1.bf16.msra.mxu0 %v5360
  %8040 = vmatprep.subr.bf16.mxu0 %v5365
  %8041 = vmatpush1.bf16.msra.mxu0 %v5364
  %8042 = vmatprep.subr.bf16.mxu0 %v5369
  %8043 = vmatpush1.bf16.msra.mxu0 %v5368
  %8044 = vmatprep.subr.bf16.mxu0 %v5373
  %8045 = vmatpush1.bf16.msra.mxu0 %v5372
  %8046 = vmatprep.subr.bf16.mxu0 %v5377
  %8047 = vmatpush1.bf16.msra.mxu0 %v5376
  %8048 = vmatprep.subr.bf16.mxu0 %v5381
  %8049 = vmatpush1.bf16.msra.mxu0 %v5380
  %8050 = vmatprep.subr.bf16.mxu0 %v5385
  %8051 = vmatpush1.bf16.msra.mxu0 %v5384
  %8052 = vmatprep.subr.bf16.mxu0 %v5389
  %8053 = vmatpush1.bf16.msra.mxu0 %v5388
  %8054 = vmatprep.subr.bf16.mxu0 %v5393
  %8055 = vmatpush1.bf16.msra.mxu0 %v5392
  %8056 = vmatprep.subr.bf16.mxu0 %v5397
  %8057 = vmatpush1.bf16.msra.mxu0 %v5396
  %8058 = vmatprep.subr.bf16.mxu0 %v5401
  %8059 = vmatpush1.bf16.msra.mxu0 %v5400
  %8060 = vmatprep.subr.bf16.mxu0 %v5405
  %8061 = vmatpush1.bf16.msra.mxu0 %v5404
  %8062 = vmatprep.subr.bf16.mxu0 %v5409
  %8063 = vmatpush1.bf16.msra.mxu0 %v5408
  %8064 = vmatprep.subr.bf16.mxu0 %v5413
  %8065 = vmatpush1.bf16.msra.mxu0 %v5412
  %8066 = vmatprep.subr.bf16.mxu0 %v5417
  %8067 = vmatpush1.bf16.msra.mxu0 %v5416
  %8068 = vmatprep.mubr.bf16.mxu0 %v1287
  %8069 = vmatmul.mubr.bf16.gmra.mrb[0].mxu0 %v1286
  %v8070 = vpop.f32.mrb[0].mxu0
  %v8071 = vadd.f32 %v8020, %v8070
  %v8072 = vpop.f32.mrb[0].mxu0
  %v8073 = vadd.f32 %v8022, %v8072
  %v8074 = vpop.f32.mrb[0].mxu0
  %v8075 = vadd.f32 %v8024, %v8074
  %v8076 = vpop.f32.mrb[0].mxu0
  %v8077 = vadd.f32 %v8026, %v8076
  %8078 = vmatprep.mubr.bf16.mxu0 %v1319
  %8079 = vmatmul.mubr.bf16.gmra.mrb[0].mxu0 %v1318
  %v8080 = vpop.f32.mrb[0].mxu0
  %v8081 = vadd.f32 %v8030, %v8080
  %v8082 = vpop.f32.mrb[0].mxu0
  %v8083 = vadd.f32 %v8032, %v8082
  %v8084 = vpop.f32.mrb[0].mxu0
  %v8085 = vpop.f32.mrb[0].mxu0
  %8086 = vdwg.mxu0
  %8087 = vmatprep.subr.bf16.mxu0 %v5421
  %8088 = vmatpush1.bf16.msra.mxu0 %v5420
  %8089 = vmatprep.subr.bf16.mxu0 %v5425
  %8090 = vmatpush1.bf16.msra.mxu0 %v5424
  %8091 = vmatprep.subr.bf16.mxu0 %v5429
  %8092 = vmatpush1.bf16.msra.mxu0 %v5428
  %8093 = vmatprep.subr.bf16.mxu0 %v5433
  %8094 = vmatpush1.bf16.msra.mxu0 %v5432
  %8095 = vmatprep.subr.bf16.mxu0 %v5437
  %8096 = vmatpush1.bf16.msra.mxu0 %v5436
  %8097 = vmatprep.subr.bf16.mxu0 %v5441
  %8098 = vmatpush1.bf16.msra.mxu0 %v5440
  %8099 = vmatprep.subr.bf16.mxu0 %v5445
  %8100 = vmatpush1.bf16.msra.mxu0 %v5444
  %8101 = vmatprep.subr.bf16.mxu0 %v5449
  %8102 = vmatpush1.bf16.msra.mxu0 %v5448
  %8103 = vmatprep.subr.bf16.mxu0 %v5453
  %8104 = vmatpush1.bf16.msra.mxu0 %v5452
  %8105 = vmatprep.subr.bf16.mxu0 %v5457
  %8106 = vmatpush1.bf16.msra.mxu0 %v5456
  %8107 = vmatprep.subr.bf16.mxu0 %v5461
  %8108 = vmatpush1.bf16.msra.mxu0 %v5460
  %8109 = vmatprep.subr.bf16.mxu0 %v5465
  %8110 = vmatpush1.bf16.msra.mxu0 %v5464
  %8111 = vmatprep.subr.bf16.mxu0 %v5469
  %8112 = vmatpush1.bf16.msra.mxu0 %v5468
  %8113 = vmatprep.subr.bf16.mxu0 %v5473
  %8114 = vmatpush1.bf16.msra.mxu0 %v5472
  %8115 = vmatprep.subr.bf16.mxu0 %v5477
  %8116 = vmatpush1.bf16.msra.mxu0 %v5476
  %8117 = vmatprep.subr.bf16.mxu0 %v5481
  %8118 = vmatpush1.bf16.msra.mxu0 %v5480
  %8119 = vmatprep.mubr.bf16.mxu0 %v1289
  %8120 = vmatmul.mubr.bf16.gmra.mrb[0].mxu0 %v1288
  %v8121 = vpop.f32.mrb[0].mxu0
  %v8122 = vadd.f32 %v8071, %v8121
  %v8123 = vpop.f32.mrb[0].mxu0
  %v8124 = vadd.f32 %v8073, %v8123
  %v8125 = vpop.f32.mrb[0].mxu0
  %v8126 = vadd.f32 %v8075, %v8125
  %v8127 = vpop.f32.mrb[0].mxu0
  %v8128 = vadd.f32 %v8077, %v8127
  %8129 = vmatprep.mubr.bf16.mxu0 %v1321
  %8130 = vmatmul.mubr.bf16.gmra.mrb[0].mxu0 %v1320
  %v8131 = vpop.f32.mrb[0].mxu0
  %v8132 = vadd.f32 %v8081, %v8131
  %v8133 = vpop.f32.mrb[0].mxu0
  %v8134 = vadd.f32 %v8083, %v8133
  %v8135 = vpop.f32.mrb[0].mxu0
  %v8136 = vpop.f32.mrb[0].mxu0
  %8137 = vdwg.mxu0
  %v8138 = vadd.f32 %v7306, %v7310
  %vm8139 = vcmask 1041408
  %v8140 = vsel %vm8139, %v7316, 0.0
  %v8141 = vadd.f32 %v8138, %v8140
  %v8142 = vrot.slane %v8141, 4
  %v8143 = vadd.f32 %v8141, %v8142
  %v8144 = vrot.slane %v8143, 2
  %v8145 = vadd.f32 %v8143, %v8144
  %v8146 = vrot.slane %v8145, 1
  %v8147 = vadd.f32 %v8145, %v8146
  %v8148 = vadd.f32 %v7308, %v7312
  %v8149 = vsel %vm8139, %v7318, 0.0
  %v8150 = vadd.f32 %v8148, %v8149
  %v8151 = vrot.slane %v8150, 4
  %v8152 = vadd.f32 %v8150, %v8151
  %v8153 = vrot.slane %v8152, 2
  %v8154 = vadd.f32 %v8152, %v8153
  %v8155 = vrot.slane %v8154, 1
  %v8156 = vadd.f32 %v8154, %v8155
  %v8157 = vadd.f32 %v8122, %v8126
  %v8158 = vsel %vm8139, %v8132, 0.0
  %v8159 = vadd.f32 %v8157, %v8158
  %v8160 = vrot.slane %v8159, 4
  %v8161 = vadd.f32 %v8159, %v8160
  %v8162 = vrot.slane %v8161, 2
  %v8163 = vadd.f32 %v8161, %v8162
  %v8164 = vrot.slane %v8163, 1
  %v8165 = vadd.f32 %v8163, %v8164
  %v8166 = vadd.f32 %v8124, %v8128
  %v8167 = vsel %vm8139, %v8134, 0.0
  %v8168 = vadd.f32 %v8166, %v8167
  %v8169 = vrot.slane %v8168, 4
  %v8170 = vadd.f32 %v8168, %v8169
  %v8171 = vrot.slane %v8170, 2
  %v8172 = vadd.f32 %v8170, %v8171
  %v8173 = vrot.slane %v8172, 1
  %v8174 = vadd.f32 %v8172, %v8173
  %v8175 = vmul.f32 %v8147, 0.055555556
  %v8176 = vmul.f32 %v8156, 0.055555556
  %v8177 = vmul.f32 %v8165, 0.055555556
  %v8178 = vmul.f32 %v8174, 0.055555556
  %v8179 = vsub.f32 %v7306, %v8175
  %v8180 = vsub.f32 %v7308, %v8176
  %v8181 = vsub.f32 %v8122, %v8177
  %v8182 = vsub.f32 %v8124, %v8178
  %v8183 = vsub.f32 %v7310, %v8175
  %v8184 = vsub.f32 %v7312, %v8176
  %v8185 = vsub.f32 %v8126, %v8177
  %v8186 = vsub.f32 %v8128, %v8178
  %v8187 = vsub.f32 %v7316, %v8175
  %v8188 = vsub.f32 %v7318, %v8176
  %v8189 = vsub.f32 %v8132, %v8177
  %v8190 = vsub.f32 %v8134, %v8178
  %v8191 = vmul.f32 %v8179, %v8179
  %v8192 = vmul.f32 %v8180, %v8180
  %v8193 = vmul.f32 %v8181, %v8181
  %v8194 = vmul.f32 %v8182, %v8182
  %v8195 = vmul.f32 %v8183, %v8183
  %v8196 = vmul.f32 %v8184, %v8184
  %v8197 = vmul.f32 %v8185, %v8185
  %v8198 = vmul.f32 %v8186, %v8186
  %v8199 = vmul.f32 %v8187, %v8187
  %v8200 = vmul.f32 %v8188, %v8188
  %v8201 = vmul.f32 %v8189, %v8189
  %v8202 = vmul.f32 %v8190, %v8190
  %v8203 = vadd.f32 %v8191, %v8195
  %v8204 = vsel %vm8139, %v8199, 0.0
  %v8205 = vadd.f32 %v8203, %v8204
  %v8206 = vrot.slane %v8205, 4
  %v8207 = vadd.f32 %v8205, %v8206
  %v8208 = vrot.slane %v8207, 2
  %v8209 = vadd.f32 %v8207, %v8208
  %v8210 = vrot.slane %v8209, 1
  %v8211 = vadd.f32 %v8209, %v8210
  %v8212 = vadd.f32 %v8192, %v8196
  %v8213 = vsel %vm8139, %v8200, 0.0
  %v8214 = vadd.f32 %v8212, %v8213
  %v8215 = vrot.slane %v8214, 4
  %v8216 = vadd.f32 %v8214, %v8215
  %v8217 = vrot.slane %v8216, 2
  %v8218 = vadd.f32 %v8216, %v8217
  %v8219 = vrot.slane %v8218, 1
  %v8220 = vadd.f32 %v8218, %v8219
  %v8221 = vadd.f32 %v8193, %v8197
  %v8222 = vsel %vm8139, %v8201, 0.0
  %v8223 = vadd.f32 %v8221, %v8222
  %v8224 = vrot.slane %v8223, 4
  %v8225 = vadd.f32 %v8223, %v8224
  %v8226 = vrot.slane %v8225, 2
  %v8227 = vadd.f32 %v8225, %v8226
  %v8228 = vrot.slane %v8227, 1
  %v8229 = vadd.f32 %v8227, %v8228
  %v8230 = vadd.f32 %v8194, %v8198
  %v8231 = vsel %vm8139, %v8202, 0.0
  %v8232 = vadd.f32 %v8230, %v8231
  %v8233 = vrot.slane %v8232, 4
  %v8234 = vadd.f32 %v8232, %v8233
  %v8235 = vrot.slane %v8234, 2
  %v8236 = vadd.f32 %v8234, %v8235
  %v8237 = vrot.slane %v8236, 1
  %v8238 = vadd.f32 %v8236, %v8237
  %v8239 = vmul.f32 %v8211, 0.055555556
  %v8240 = vmul.f32 %v8220, 0.055555556
  %v8241 = vmul.f32 %v8229, 0.055555556
  %v8242 = vmul.f32 %v8238, 0.055555556
  %v8243 = vadd.f32 %v8239, 1e-05
  %v8244 = vadd.f32 %v8240, 1e-05
  %v8245 = vadd.f32 %v8241, 1e-05
  %v8246 = vadd.f32 %v8242, 1e-05
  %v8247 = vrsqrt.pop %v8243
  %v8248 = vrsqrt.pop %v8244
  %v8249 = vrsqrt.pop %v8245
  %v8250 = vrsqrt.pop %v8246
  %v8251 = vmul.f32 %v8179, %v8247
  %v8252 = vmul.f32 %v8180, %v8248
  %v8253 = vmul.f32 %v8181, %v8249
  %v8254 = vmul.f32 %v8182, %v8250
  %v8255 = vmul.f32 %v8183, %v8247
  %v8256 = vmul.f32 %v8184, %v8248
  %v8257 = vmul.f32 %v8185, %v8249
  %v8258 = vmul.f32 %v8186, %v8250
  %v8259 = vmul.f32 %v8187, %v8247
  %v8260 = vmul.f32 %v8188, %v8248
  %v8261 = vmul.f32 %v8189, %v8249
  %v8262 = vmul.f32 %v8190, %v8250
  %v8263 = vld [vmem:[%s3] sm:$0xf]
  %v8265 = vlaneseq
  %v8266 = vshrl.u32 %v8265, 7
  %v8267 = vsub.s32 0, %v8266
  %v8268 = vrot.slane %v8263, %v8267
  %v8269 = vlaneseq
  %v8270 = vshrl.u32 %v8269, 7
  %v8271 = vsub.s32 1, %v8270
  %v8272 = vrot.slane %v8263, %v8271
  %v8273 = vlaneseq
  %v8274 = vshrl.u32 %v8273, 7
  %v8275 = vsub.s32 2, %v8274
  %v8276 = vrot.slane %v8263, %v8275
  %v8277 = vlaneseq
  %v8278 = vshrl.u32 %v8277, 7
  %v8279 = vsub.s32 3, %v8278
  %v8280 = vrot.slane %v8263, %v8279
  %v8285 = vmul.f32 %v8251, %v8268
  %v8286 = vmul.f32 %v8252, %v8272
  %v8287 = vmul.f32 %v8253, %v8276
  %v8288 = vmul.f32 %v8254, %v8280
  %v8289 = vmul.f32 %v8255, %v8268
  %v8290 = vmul.f32 %v8256, %v8272
  %v8291 = vmul.f32 %v8257, %v8276
  %v8292 = vmul.f32 %v8258, %v8280
  %v8293 = vmul.f32 %v8259, %v8268
  %v8294 = vmul.f32 %v8260, %v8272
  %v8295 = vmul.f32 %v8261, %v8276
  %v8296 = vmul.f32 %v8262, %v8280
  %v8297 = vld [vmem:[%s4] sm:$0xf]
  %v8299 = vlaneseq
  %v8300 = vshrl.u32 %v8299, 7
  %v8301 = vsub.s32 0, %v8300
  %v8302 = vrot.slane %v8297, %v8301
  %v8303 = vlaneseq
  %v8304 = vshrl.u32 %v8303, 7
  %v8305 = vsub.s32 1, %v8304
  %v8306 = vrot.slane %v8297, %v8305
  %v8307 = vlaneseq
  %v8308 = vshrl.u32 %v8307, 7
  %v8309 = vsub.s32 2, %v8308
  %v8310 = vrot.slane %v8297, %v8309
  %v8311 = vlaneseq
  %v8312 = vshrl.u32 %v8311, 7
  %v8313 = vsub.s32 3, %v8312
  %v8314 = vrot.slane %v8297, %v8313
  %v8319 = vadd.f32 %v8285, %v8302
  %v8320 = vadd.f32 %v8286, %v8306
  %v8321 = vadd.f32 %v8287, %v8310
  %v8322 = vadd.f32 %v8288, %v8314
  %v8323 = vadd.f32 %v8289, %v8302
  %v8324 = vadd.f32 %v8290, %v8306
  %v8325 = vadd.f32 %v8291, %v8310
  %v8326 = vadd.f32 %v8292, %v8314
  %v8327 = vadd.f32 %v8293, %v8302
  %v8328 = vadd.f32 %v8294, %v8306
  %v8329 = vadd.f32 %v8295, %v8310
  %v8330 = vadd.f32 %v8296, %v8314
  %vm8331 = vcmp.gt.f32.partialorder %v8319, 0.0
  %vm8332 = vcmp.gt.f32.partialorder %v8320, 0.0
  %vm8333 = vcmp.gt.f32.partialorder %v8321, 0.0
  %vm8334 = vcmp.gt.f32.partialorder %v8322, 0.0
  %vm8335 = vcmp.gt.f32.partialorder %v8323, 0.0
  %vm8336 = vcmp.gt.f32.partialorder %v8324, 0.0
  %vm8337 = vcmp.gt.f32.partialorder %v8325, 0.0
  %vm8338 = vcmp.gt.f32.partialorder %v8326, 0.0
  %vm8339 = vcmp.gt.f32.partialorder %v8327, 0.0
  %vm8340 = vcmp.gt.f32.partialorder %v8328, 0.0
  %vm8341 = vcmp.gt.f32.partialorder %v8329, 0.0
  %vm8342 = vcmp.gt.f32.partialorder %v8330, 0.0
  %v8343 = vmul.f32 %v8319, 0.2
  %v8344 = vmul.f32 %v8320, 0.2
  %v8345 = vmul.f32 %v8321, 0.2
  %v8346 = vmul.f32 %v8322, 0.2
  %v8347 = vmul.f32 %v8323, 0.2
  %v8348 = vmul.f32 %v8324, 0.2
  %v8349 = vmul.f32 %v8325, 0.2
  %v8350 = vmul.f32 %v8326, 0.2
  %v8351 = vmul.f32 %v8327, 0.2
  %v8352 = vmul.f32 %v8328, 0.2
  %v8353 = vmul.f32 %v8329, 0.2
  %v8354 = vmul.f32 %v8330, 0.2
  %v8355 = vsel %vm8331, %v8319, %v8343
  %v8356 = vsel %vm8332, %v8320, %v8344
  %v8357 = vsel %vm8333, %v8321, %v8345
  %v8358 = vsel %vm8334, %v8322, %v8346
  %v8359 = vsel %vm8335, %v8323, %v8347
  %v8360 = vsel %vm8336, %v8324, %v8348
  %v8361 = vsel %vm8337, %v8325, %v8349
  %v8362 = vsel %vm8338, %v8326, %v8350
  %v8363 = vsel %vm8339, %v8327, %v8351
  %v8364 = vsel %vm8340, %v8328, %v8352
  %v8365 = vsel %vm8341, %v8329, %v8353
  %v8366 = vsel %vm8342, %v8330, %v8354
  %v8367 = vpack.c.bf16 %v8359, %v8355
  %v8368 = vpack.c.bf16 %v8360, %v8356
  %v8369 = vpack.c.bf16 %v8361, %v8357
  %v8370 = vpack.c.bf16 %v8362, %v8358
  %v8371 = vpack.c.bf16 %v8363, %v8363
  %v8372 = vpack.c.bf16 %v8364, %v8364
  %v8373 = vpack.c.bf16 %v8365, %v8365
  %v8374 = vpack.c.bf16 %v8366, %v8366
  %v8383 = vunpack.c.l.b16 %v8367
  %v8384 = vunpack.c.l.b16 %v8368
  %v8385 = vunpack.c.l.b16 %v8369
  %v8386 = vunpack.c.l.b16 %v8370
  %v8387 = vunpack.c.h.b16 %v8367
  %v8388 = vunpack.c.h.b16 %v8368
  %v8389 = vunpack.c.h.b16 %v8369
  %v8390 = vunpack.c.h.b16 %v8370
  %v8391 = vunpack.c.l.b16 %v8371
  %v8392 = vunpack.c.l.b16 %v8372
  %v8393 = vunpack.c.l.b16 %v8373
  %v8394 = vunpack.c.l.b16 %v8374
  %v8395 = vpack.c.b16 %v8384, %v8383
  %v8396 = vpack.c.b16 %v8386, %v8385
  %v8397 = vpack.c.b16 %v8388, %v8387
  %v8398 = vpack.c.b16 %v8390, %v8389
  %v8399 = vpack.c.b16 %v8392, %v8391
  %v8400 = vpack.c.b16 %v8394, %v8393
  %8407 = vst [vmem:[%s5] sm:$0xff] %v8395
  %8408 = vst [vmem:[%s5 + $0x8] sm:$0xff] %v8396
  %8409 = vst [vmem:[%s5 + $0x10] sm:$0xff] %v8397
  %8410 = vst [vmem:[%s5 + $0x18] sm:$0xff] %v8398
  %8411 = vst [vmem:[%s5 + $0x20] sm:$0x11] %v8399
  %8412 = vst [vmem:[%s5 + $0x28] sm:$0x11] %v8400
  // Predicated region
  $region22: #{discriminator_forward.8} parent=0 // pred_check
    _
  $region23: #{discriminator_forward.8} parent=0 // pred_check_branch
    %8414 = sbr.rel (0) target = $region25
  $region24: #{discriminator_forward.8} parent=0 // pred_region
    _
  $region25: #{discriminator_forward.8} parent=0 // pred_fallthru
    _
  // Predicated region
  $region26: #{discriminator_forward.8} parent=0 // pred_check
    _
  $region27: #{discriminator_forward.8} parent=0 // pred_check_branch
    %8416 = sbr.rel (0) target = $region29
  $region28: #{discriminator_forward.8} parent=0 // pred_region
    _
  $region29: #{discriminator_forward.8} parent=0 // pred_fallthru
    _

</llo_original>
